<compile_context>
chip_gen: v5e
topology: v5e:2x2
jax: 0.10.0
libtpu: 0.0.40
codegen_flags: <defaults>
</compile_context>

<pallas_src>
import jax
import jax.numpy as jnp
from jax.experimental import pallas as pl
from jax.experimental.pallas import tpu as pltpu

D_IN = 784
D_PAD = 896        # 7 * 128 — lane-aligned hidden dim
OUT = 10
OUT_PAD = 128      # lane-dense output width
NEG_BIAS = -1e30   # padded logits -> exp() == 0, log_softmax unaffected


def mlp_kernel(x_ref, w1_ref, b1_ref, w2_ref, b2_ref, w3_ref, b3_ref, out_ref):
    # x tile: (TB, 784) f32 read once from HBM; cast to bf16 in-kernel.
    x = x_ref[...].astype(jnp.bfloat16)

    # Layer 1: K = 784 (unpadded), N = 896.  f32 accumulate; bias+ReLU in f32; only the
    # bf16 inter-layer activation is materialized (halves epilogue VMEM load/store traffic).
    h1 = jnp.maximum(
        jnp.dot(x, w1_ref[...], preferred_element_type=jnp.float32) + b1_ref[...],
        0.0,
    ).astype(jnp.bfloat16)

    h2 = jnp.maximum(
        jnp.dot(h1, w2_ref[...], preferred_element_type=jnp.float32) + b2_ref[...],
        0.0,
    ).astype(jnp.bfloat16)

    z = jnp.dot(h2, w3_ref[...], preferred_element_type=jnp.float32) + b3_ref[...]

    # log_softmax along dim=1, numerically stable, all in f32.  Padded logits sit at
    # ~-1e30, so the row max comes from the real logits and their exp() is exactly 0.
    m = jnp.max(z, axis=1, keepdims=True)
    shifted = z - m
    lse = jnp.log(jnp.sum(jnp.exp(shifted), axis=1, keepdims=True))
    out_ref[...] = (shifted - lse).astype(out_ref.dtype)


def pack_params(params):
    """Pad f32 (784,784)/(784,10) params to lane-aligned bf16/f32 kernel params.

    Padding invariants (relied on by the kernel): every padded weight entry is exactly 0,
    padded b1/b2 entries are 0 (so padded hidden activations are exactly 0), and padded
    b3 entries are NEG_BIAS (so padded logits never win the softmax).
    """
    # TODO(synk): optional fp8-e4m3 weight quantization for the v7x MXU (needs accuracy validation).
    w1, b1, w2, b2, w3, b3 = params
    w1p = jnp.zeros((D_IN, D_PAD), jnp.bfloat16).at[:, :D_IN].set(w1.astype(jnp.bfloat16))
    b1p = jnp.zeros((1, D_PAD), jnp.float32).at[:, :D_IN].set(b1)
    w2p = jnp.zeros((D_PAD, D_PAD), jnp.bfloat16).at[:D_IN, :D_IN].set(w2.astype(jnp.bfloat16))
    b2p = jnp.zeros((1, D_PAD), jnp.float32).at[:, :D_IN].set(b2)
    w3p = jnp.zeros((D_PAD, OUT_PAD), jnp.bfloat16).at[:D_IN, :OUT].set(w3.astype(jnp.bfloat16))
    b3p = jnp.full((1, OUT_PAD), NEG_BIAS, jnp.float32).at[:, :OUT].set(b3)
    return (w1p, b1p, w2p, b2p, w3p, b3p)


def _choose_batch_tile(B: int) -> int:
    """Big tiles for big batches (amortize ~0.35us/step); >=2 tiles when possible (v7x TCs)."""
    if B >= 2048:
        return 1024
    if B >= 1024:
        return 512
    if B >= 512:
        return 256
    if B <= 8:
        return 8
    half = (B + 1) // 2
    return max(8, ((half + 7) // 8) * 8)   # 8-row (f32 sublane) aligned


def _make_call(batch_tile, n_tiles, B_pad, single_buffer_weights):
    resident = lambda i: (0, 0)   # weights/biases pinned: same block every grid step
    wkw = {"pipeline_mode": pl.Buffered(1)} if single_buffer_weights else {}

    weight_bytes = 2 * (D_IN * D_PAD + D_PAD * D_PAD + D_PAD * OUT_PAD)
    flops = 2 * B_pad * (D_IN * D_PAD + D_PAD * D_PAD + D_PAD * OUT_PAD)
    bytes_accessed = (B_pad * D_IN * 4            # x (f32, read once)
                      + weight_bytes              # bf16 weights
                      + 4 * (2 * D_PAD + OUT_PAD) # f32 biases
                      + B_pad * OUT_PAD * 4)      # f32 output

    return pl.pallas_call(
        mlp_kernel,
        out_shape=jax.ShapeDtypeStruct((B_pad, OUT_PAD), jnp.float32),
        grid=(n_tiles,),
        in_specs=[
            pl.BlockSpec((batch_tile, D_IN), lambda i: (i, 0)),      # x tile (pipelined)
            pl.BlockSpec((D_IN, D_PAD), resident, **wkw),            # w1
            pl.BlockSpec((1, D_PAD), resident, **wkw),               # b1
            pl.BlockSpec((D_PAD, D_PAD), resident, **wkw),           # w2
            pl.BlockSpec((1, D_PAD), resident, **wkw),               # b2
            pl.BlockSpec((D_PAD, OUT_PAD), resident, **wkw),         # w3
            pl.BlockSpec((1, OUT_PAD), resident, **wkw),             # b3
        ],
        out_specs=pl.BlockSpec((batch_tile, OUT_PAD), lambda i: (i, 0)),
        compiler_params=pltpu.CompilerParams(
            dimension_semantics=("parallel",),
            vmem_limit_bytes=48 << 20,
        ),
        cost_estimate=pl.CostEstimate(
            flops=flops,
            transcendentals=B_pad * OUT_PAD,
            bytes_accessed=bytes_accessed,
        ),
    )


def paper_model_forward(x, packed_params, *, batch_tile=None):
    B = x.shape[0]
    bt = batch_tile if batch_tile is not None else _choose_batch_tile(B)
    n_tiles = pl.cdiv(B, bt)
    B_pad = n_tiles * bt

    # Zero-copy fast path when B is already a multiple of the tile; otherwise pad batch only.
    x_in = x if B_pad == B else jnp.pad(x, ((0, B_pad - B), (0, 0)))

    last_err = None
    for single_buffer in (True, False):
        try:
            out = _make_call(bt, n_tiles, B_pad, single_buffer)(x_in, *packed_params)
            out = jax.block_until_ready(out)
            return out[:B, :OUT]
        except Exception as e:  # pl.Buffered(1) unsupported on this JAX version -> default buffering
            last_err = e
    raise last_err


def init_params(key):
    # nn.Linear-style uniform init; stored transposed (in, out) for y = x @ W + b.
    k1, k2, k3, k4, k5, k6 = jax.random.split(key, 6)
    s = 1.0 / jnp.sqrt(784.0)
    w1 = jax.random.uniform(k1, (784, 784), jnp.float32, -s, s)
    b1 = jax.random.uniform(k2, (1, 784), jnp.float32, -s, s)
    w2 = jax.random.uniform(k3, (784, 784), jnp.float32, -s, s)
    b2 = jax.random.uniform(k4, (1, 784), jnp.float32, -s, s)
    w3 = jax.random.uniform(k5, (784, 10), jnp.float32, -s, s)
    b3 = jax.random.uniform(k6, (1, 10), jnp.float32, -s, s)
    return (w1, b1, w2, b2, w3, b3)


def ref_forward(x, params):
    # Plain-JAX reference mirroring the kernel's bf16-input / f32-accumulate arithmetic.
    w1, b1, w2, b2, w3, b3 = params
    xb = x.astype(jnp.bfloat16)
    h1 = jnp.maximum(jnp.dot(xb, w1.astype(jnp.bfloat16),
                             preferred_element_type=jnp.float32) + b1, 0.0)
    h2 = jnp.maximum(jnp.dot(h1.astype(jnp.bfloat16), w2.astype(jnp.bfloat16),
                             preferred_element_type=jnp.float32) + b2, 0.0)
    z = jnp.dot(h2.astype(jnp.bfloat16), w3.astype(jnp.bfloat16),
                preferred_element_type=jnp.float32) + b3
    return jax.nn.log_softmax(z, axis=1)


if __name__ == "__main__":
    key = jax.random.PRNGKey(0)
    kx, kp = jax.random.split(key)

    B = 8
    x = jax.random.normal(kx, (B, D_IN), jnp.float32)
    params = init_params(kp)
    packed = pack_params(params)

    out = paper_model_forward(x, packed)
    out = jax.block_until_ready(out)

    ref = ref_forward(x, params)
    assert out.shape == (B, OUT)
    assert bool(jnp.all(jnp.isfinite(out)))
    assert jnp.allclose(out, ref, atol=1e-2, rtol=1e-2), float(jnp.max(jnp.abs(out - ref)))

    print("KERNEL_OK")
</pallas_src>

<mosaic_0001>
module attributes {stable_mosaic.version = 11 : i64} {
  func.func @mlp_kernel(%arg0: i32, %arg1: memref<8x784xf32, #tpu.memory_space<vmem>>, %arg2: memref<784x896xbf16, #tpu.memory_space<vmem>>, %arg3: memref<1x896xf32, #tpu.memory_space<vmem>>, %arg4: memref<896x896xbf16, #tpu.memory_space<vmem>>, %arg5: memref<1x896xf32, #tpu.memory_space<vmem>>, %arg6: memref<896x128xbf16, #tpu.memory_space<vmem>>, %arg7: memref<1x128xf32, #tpu.memory_space<vmem>>, %arg8: memref<8x128xf32, #tpu.memory_space<vmem>>) attributes {dimension_semantics = [#tpu.dimension_semantics<parallel>], iteration_bounds = array<i64: 1>, scalar_prefetch = 0 : i64, scratch_operands = 0 : i64, tpu.core_type = #tpu.core_type<tc>, window_params = [{transform_indices = @transform_0, window_bounds = array<i64: 8, 784>}, {pipeline_mode = #tpu.pipeline_mode<synchronous>, transform_indices = @transform_1, window_bounds = array<i64: 784, 896>}, {pipeline_mode = #tpu.pipeline_mode<synchronous>, transform_indices = @transform_2, window_bounds = array<i64: 1, 896>}, {pipeline_mode = #tpu.pipeline_mode<synchronous>, transform_indices = @transform_3, window_bounds = array<i64: 896, 896>}, {pipeline_mode = #tpu.pipeline_mode<synchronous>, transform_indices = @transform_4, window_bounds = array<i64: 1, 896>}, {pipeline_mode = #tpu.pipeline_mode<synchronous>, transform_indices = @transform_5, window_bounds = array<i64: 896, 128>}, {pipeline_mode = #tpu.pipeline_mode<synchronous>, transform_indices = @transform_6, window_bounds = array<i64: 1, 128>}, {transform_indices = @transform_7, window_bounds = array<i64: 8, 128>}]} {
    %c0 = arith.constant 0 : index
    %c0_0 = arith.constant 0 : index
    %0 = vector.load %arg1[%c0, %c0_0] : memref<8x784xf32, #tpu.memory_space<vmem>>, vector<8x784xf32>
    %1 = arith.truncf %0 : vector<8x784xf32> to vector<8x784xbf16>
    %c0_1 = arith.constant 0 : index
    %c0_2 = arith.constant 0 : index
    %2 = vector.load %arg2[%c0_1, %c0_2] : memref<784x896xbf16, #tpu.memory_space<vmem>>, vector<784x896xbf16>
    %cst = arith.constant dense<0.000000e+00> : vector<8x896xf32>
    %3 = tpu.matmul %1, %2, %cst {dimension_numbers = #tpu.dot_dimension_numbers<[1], [0], [0], [1], [0, 0, 1, 1], [], []>} : vector<8x784xbf16>, vector<784x896xbf16>, vector<8x896xf32> -> vector<8x896xf32>
    %c0_3 = arith.constant 0 : index
    %c0_4 = arith.constant 0 : index
    %4 = vector.load %arg3[%c0_3, %c0_4] : memref<1x896xf32, #tpu.memory_space<vmem>>, vector<1x896xf32>
    %5 = vector.broadcast %4 : vector<1x896xf32> to vector<8x896xf32>
    %6 = arith.addf %3, %5 : vector<8x896xf32>
    %cst_5 = arith.constant 0.000000e+00 : f32
    %7 = vector.broadcast %cst_5 : f32 to vector<8x896xf32>
    %8 = arith.maximumf %6, %7 : vector<8x896xf32>
    %9 = arith.truncf %8 : vector<8x896xf32> to vector<8x896xbf16>
    %c0_6 = arith.constant 0 : index
    %c0_7 = arith.constant 0 : index
    %10 = vector.load %arg4[%c0_6, %c0_7] : memref<896x896xbf16, #tpu.memory_space<vmem>>, vector<896x896xbf16>
    %cst_8 = arith.constant dense<0.000000e+00> : vector<8x896xf32>
    %11 = tpu.matmul %9, %10, %cst_8 {dimension_numbers = #tpu.dot_dimension_numbers<[1], [0], [0], [1], [0, 0, 1, 1], [], []>} : vector<8x896xbf16>, vector<896x896xbf16>, vector<8x896xf32> -> vector<8x896xf32>
    %c0_9 = arith.constant 0 : index
    %c0_10 = arith.constant 0 : index
    %12 = vector.load %arg5[%c0_9, %c0_10] : memref<1x896xf32, #tpu.memory_space<vmem>>, vector<1x896xf32>
    %13 = vector.broadcast %12 : vector<1x896xf32> to vector<8x896xf32>
    %14 = arith.addf %11, %13 : vector<8x896xf32>
    %cst_11 = arith.constant 0.000000e+00 : f32
    %15 = vector.broadcast %cst_11 : f32 to vector<8x896xf32>
    %16 = arith.maximumf %14, %15 : vector<8x896xf32>
    %17 = arith.truncf %16 : vector<8x896xf32> to vector<8x896xbf16>
    %c0_12 = arith.constant 0 : index
    %c0_13 = arith.constant 0 : index
    %18 = vector.load %arg6[%c0_12, %c0_13] : memref<896x128xbf16, #tpu.memory_space<vmem>>, vector<896x128xbf16>
    %cst_14 = arith.constant dense<0.000000e+00> : vector<8x128xf32>
    %19 = tpu.matmul %17, %18, %cst_14 {dimension_numbers = #tpu.dot_dimension_numbers<[1], [0], [0], [1], [0, 0, 1, 1], [], []>} : vector<8x896xbf16>, vector<896x128xbf16>, vector<8x128xf32> -> vector<8x128xf32>
    %c0_15 = arith.constant 0 : index
    %c0_16 = arith.constant 0 : index
    %20 = vector.load %arg7[%c0_15, %c0_16] : memref<1x128xf32, #tpu.memory_space<vmem>>, vector<1x128xf32>
    %21 = vector.broadcast %20 : vector<1x128xf32> to vector<8x128xf32>
    %22 = arith.addf %19, %21 : vector<8x128xf32>
    %cst_17 = arith.constant dense<0xFF800000> : vector<8xf32>
    %23 = vector.multi_reduction <maximumf>, %22, %cst_17 [1] : vector<8x128xf32> to vector<8xf32>
    %24 = vector.shape_cast %23 : vector<8xf32> to vector<8x1xf32>
    %25 = vector.broadcast %24 : vector<8x1xf32> to vector<8x128xf32>
    %26 = arith.subf %22, %25 : vector<8x128xf32>
    %27 = math.exp %26 : vector<8x128xf32>
    %cst_18 = arith.constant dense<0.000000e+00> : vector<8xf32>
    %28 = vector.multi_reduction <add>, %27, %cst_18 [1] : vector<8x128xf32> to vector<8xf32>
    %29 = vector.shape_cast %28 : vector<8xf32> to vector<8x1xf32>
    %30 = math.log %29 : vector<8x1xf32>
    %31 = vector.broadcast %30 : vector<8x1xf32> to vector<8x128xf32>
    %32 = arith.subf %26, %31 : vector<8x128xf32>
    %c0_19 = arith.constant 0 : index
    %c0_20 = arith.constant 0 : index
    %33 = vector.load %arg8[%c0_19, %c0_20] : memref<8x128xf32, #tpu.memory_space<vmem>>, vector<8x128xf32>
    tpu.vector_store %arg8[%c0_19, %c0_20], %32 {strides = array<i32>} : memref<8x128xf32, #tpu.memory_space<vmem>>, vector<8x128xf32>,
    return
  }
  func.func @transform_0(%arg0: i32) -> (i32, i32) {
    %c0_i32 = arith.constant 0 : i32
    %c0_i32_0 = arith.constant 0 : i32
    return %arg0, %c0_i32 : i32, i32
  }
  func.func @transform_1(%arg0: i32) -> (i32, i32) {
    %c0_i32 = arith.constant 0 : i32
    %c0_i32_0 = arith.constant 0 : i32
    %c0_i32_1 = arith.constant 0 : i32
    return %c0_i32, %c0_i32_0 : i32, i32
  }
  func.func @transform_2(%arg0: i32) -> (i32, i32) {
    %c0_i32 = arith.constant 0 : i32
    %c0_i32_0 = arith.constant 0 : i32
    %c0_i32_1 = arith.constant 0 : i32
    return %c0_i32, %c0_i32_0 : i32, i32
  }
  func.func @transform_3(%arg0: i32) -> (i32, i32) {
    %c0_i32 = arith.constant 0 : i32
    %c0_i32_0 = arith.constant 0 : i32
    %c0_i32_1 = arith.constant 0 : i32
    return %c0_i32, %c0_i32_0 : i32, i32
  }
  func.func @transform_4(%arg0: i32) -> (i32, i32) {
    %c0_i32 = arith.constant 0 : i32
    %c0_i32_0 = arith.constant 0 : i32
    %c0_i32_1 = arith.constant 0 : i32
    return %c0_i32, %c0_i32_0 : i32, i32
  }
  func.func @transform_5(%arg0: i32) -> (i32, i32) {
    %c0_i32 = arith.constant 0 : i32
    %c0_i32_0 = arith.constant 0 : i32
    %c0_i32_1 = arith.constant 0 : i32
    return %c0_i32, %c0_i32_0 : i32, i32
  }
  func.func @transform_6(%arg0: i32) -> (i32, i32) {
    %c0_i32 = arith.constant 0 : i32
    %c0_i32_0 = arith.constant 0 : i32
    %c0_i32_1 = arith.constant 0 : i32
    return %c0_i32, %c0_i32_0 : i32, i32
  }
  func.func @transform_7(%arg0: i32) -> (i32, i32) {
    %c0_i32 = arith.constant 0 : i32
    %c0_i32_0 = arith.constant 0 : i32
    return %arg0, %c0_i32 : i32, i32
  }
}

module attributes {stable_mosaic.version = 11 : i64} {
  func.func @mlp_kernel(%arg0: i32, %arg1: memref<8x784xf32, #tpu.memory_space<vmem>>, %arg2: memref<784x896xbf16, #tpu.memory_space<vmem>>, %arg3: memref<1x896xf32, #tpu.memory_space<vmem>>, %arg4: memref<896x896xbf16, #tpu.memory_space<vmem>>, %arg5: memref<1x896xf32, #tpu.memory_space<vmem>>, %arg6: memref<896x128xbf16, #tpu.memory_space<vmem>>, %arg7: memref<1x128xf32, #tpu.memory_space<vmem>>, %arg8: memref<8x128xf32, #tpu.memory_space<vmem>>) attributes {dimension_semantics = [#tpu.dimension_semantics<parallel>], iteration_bounds = array<i64: 1>, scalar_prefetch = 0 : i64, scratch_operands = 0 : i64, tpu.core_type = #tpu.core_type<tc>, window_params = [{transform_indices = @transform_0, window_bounds = array<i64: 8, 784>}, {pipeline_mode = #tpu.pipeline_mode<synchronous>, transform_indices = @transform_1, window_bounds = array<i64: 784, 896>}, {pipeline_mode = #tpu.pipeline_mode<synchronous>, transform_indices = @transform_2, window_bounds = array<i64: 1, 896>}, {pipeline_mode = #tpu.pipeline_mode<synchronous>, transform_indices = @transform_3, window_bounds = array<i64: 896, 896>}, {pipeline_mode = #tpu.pipeline_mode<synchronous>, transform_indices = @transform_4, window_bounds = array<i64: 1, 896>}, {pipeline_mode = #tpu.pipeline_mode<synchronous>, transform_indices = @transform_5, window_bounds = array<i64: 896, 128>}, {pipeline_mode = #tpu.pipeline_mode<synchronous>, transform_indices = @transform_6, window_bounds = array<i64: 1, 128>}, {transform_indices = @transform_7, window_bounds = array<i64: 8, 128>}]} {
    %c0 = arith.constant 0 : index
    %c0_0 = arith.constant 0 : index
    %0 = vector.load %arg1[%c0, %c0_0] : memref<8x784xf32, #tpu.memory_space<vmem>>, vector<8x784xf32>
    %1 = arith.truncf %0 : vector<8x784xf32> to vector<8x784xbf16>
    %c0_1 = arith.constant 0 : index
    %c0_2 = arith.constant 0 : index
    %2 = vector.load %arg2[%c0_1, %c0_2] : memref<784x896xbf16, #tpu.memory_space<vmem>>, vector<784x896xbf16>
    %cst = arith.constant dense<0.000000e+00> : vector<8x896xf32>
    %3 = tpu.matmul %1, %2, %cst {dimension_numbers = #tpu.dot_dimension_numbers<[1], [0], [0], [1], [0, 0, 1, 1], [], []>} : vector<8x784xbf16>, vector<784x896xbf16>, vector<8x896xf32> -> vector<8x896xf32>
    %c0_3 = arith.constant 0 : index
    %c0_4 = arith.constant 0 : index
    %4 = vector.load %arg3[%c0_3, %c0_4] : memref<1x896xf32, #tpu.memory_space<vmem>>, vector<1x896xf32>
    %5 = vector.broadcast %4 : vector<1x896xf32> to vector<8x896xf32>
    %6 = arith.addf %3, %5 : vector<8x896xf32>
    %cst_5 = arith.constant 0.000000e+00 : f32
    %7 = vector.broadcast %cst_5 : f32 to vector<8x896xf32>
    %8 = arith.maximumf %6, %7 : vector<8x896xf32>
    %9 = arith.truncf %8 : vector<8x896xf32> to vector<8x896xbf16>
    %c0_6 = arith.constant 0 : index
    %c0_7 = arith.constant 0 : index
    %10 = vector.load %arg4[%c0_6, %c0_7] : memref<896x896xbf16, #tpu.memory_space<vmem>>, vector<896x896xbf16>
    %cst_8 = arith.constant dense<0.000000e+00> : vector<8x896xf32>
    %11 = tpu.matmul %9, %10, %cst_8 {dimension_numbers = #tpu.dot_dimension_numbers<[1], [0], [0], [1], [0, 0, 1, 1], [], []>} : vector<8x896xbf16>, vector<896x896xbf16>, vector<8x896xf32> -> vector<8x896xf32>
    %c0_9 = arith.constant 0 : index
    %c0_10 = arith.constant 0 : index
    %12 = vector.load %arg5[%c0_9, %c0_10] : memref<1x896xf32, #tpu.memory_space<vmem>>, vector<1x896xf32>
    %13 = vector.broadcast %12 : vector<1x896xf32> to vector<8x896xf32>
    %14 = arith.addf %11, %13 : vector<8x896xf32>
    %cst_11 = arith.constant 0.000000e+00 : f32
    %15 = vector.broadcast %cst_11 : f32 to vector<8x896xf32>
    %16 = arith.maximumf %14, %15 : vector<8x896xf32>
    %17 = arith.truncf %16 : vector<8x896xf32> to vector<8x896xbf16>
    %c0_12 = arith.constant 0 : index
    %c0_13 = arith.constant 0 : index
    %18 = vector.load %arg6[%c0_12, %c0_13] : memref<896x128xbf16, #tpu.memory_space<vmem>>, vector<896x128xbf16>
    %cst_14 = arith.constant dense<0.000000e+00> : vector<8x128xf32>
    %19 = tpu.matmul %17, %18, %cst_14 {dimension_numbers = #tpu.dot_dimension_numbers<[1], [0], [0], [1], [0, 0, 1, 1], [], []>} : vector<8x896xbf16>, vector<896x128xbf16>, vector<8x128xf32> -> vector<8x128xf32>
    %c0_15 = arith.constant 0 : index
    %c0_16 = arith.constant 0 : index
    %20 = vector.load %arg7[%c0_15, %c0_16] : memref<1x128xf32, #tpu.memory_space<vmem>>, vector<1x128xf32>
    %21 = vector.broadcast %20 : vector<1x128xf32> to vector<8x128xf32>
    %22 = arith.addf %19, %21 : vector<8x128xf32>
    %cst_17 = arith.constant dense<0xFF800000> : vector<8xf32>
    %23 = vector.multi_reduction <maximumf>, %22, %cst_17 [1] : vector<8x128xf32> to vector<8xf32>
    %24 = vector.shape_cast %23 : vector<8xf32> to vector<8x1xf32>
    %25 = vector.broadcast %24 : vector<8x1xf32> to vector<8x128xf32>
    %26 = arith.subf %22, %25 : vector<8x128xf32>
    %27 = math.exp %26 : vector<8x128xf32>
    %cst_18 = arith.constant dense<0.000000e+00> : vector<8xf32>
    %28 = vector.multi_reduction <add>, %27, %cst_18 [1] : vector<8x128xf32> to vector<8xf32>
    %29 = vector.shape_cast %28 : vector<8xf32> to vector<8x1xf32>
    %30 = math.log %29 : vector<8x1xf32>
    %31 = vector.broadcast %30 : vector<8x1xf32> to vector<8x128xf32>
    %32 = arith.subf %26, %31 : vector<8x128xf32>
    %c0_19 = arith.constant 0 : index
    %c0_20 = arith.constant 0 : index
    %33 = vector.load %arg8[%c0_19, %c0_20] : memref<8x128xf32, #tpu.memory_space<vmem>>, vector<8x128xf32>
    tpu.vector_store %arg8[%c0_19, %c0_20], %32 {strides = array<i32>} : memref<8x128xf32, #tpu.memory_space<vmem>>, vector<8x128xf32>,
    return
  }
  func.func @transform_0(%arg0: i32) -> (i32, i32) {
    %c0_i32 = arith.constant 0 : i32
    %c0_i32_0 = arith.constant 0 : i32
    return %arg0, %c0_i32 : i32, i32
  }
  func.func @transform_1(%arg0: i32) -> (i32, i32) {
    %c0_i32 = arith.constant 0 : i32
    %c0_i32_0 = arith.constant 0 : i32
    %c0_i32_1 = arith.constant 0 : i32
    return %c0_i32, %c0_i32_0 : i32, i32
  }
  func.func @transform_2(%arg0: i32) -> (i32, i32) {
    %c0_i32 = arith.constant 0 : i32
    %c0_i32_0 = arith.constant 0 : i32
    %c0_i32_1 = arith.constant 0 : i32
    return %c0_i32, %c0_i32_0 : i32, i32
  }
  func.func @transform_3(%arg0: i32) -> (i32, i32) {
    %c0_i32 = arith.constant 0 : i32
    %c0_i32_0 = arith.constant 0 : i32
    %c0_i32_1 = arith.constant 0 : i32
    return %c0_i32, %c0_i32_0 : i32, i32
  }
  func.func @transform_4(%arg0: i32) -> (i32, i32) {
    %c0_i32 = arith.constant 0 : i32
    %c0_i32_0 = arith.constant 0 : i32
    %c0_i32_1 = arith.constant 0 : i32
    return %c0_i32, %c0_i32_0 : i32, i32
  }
  func.func @transform_5(%arg0: i32) -> (i32, i32) {
    %c0_i32 = arith.constant 0 : i32
    %c0_i32_0 = arith.constant 0 : i32
    %c0_i32_1 = arith.constant 0 : i32
    return %c0_i32, %c0_i32_0 : i32, i32
  }
  func.func @transform_6(%arg0: i32) -> (i32, i32) {
    %c0_i32 = arith.constant 0 : i32
    %c0_i32_0 = arith.constant 0 : i32
    %c0_i32_1 = arith.constant 0 : i32
    return %c0_i32, %c0_i32_0 : i32, i32
  }
  func.func @transform_7(%arg0: i32) -> (i32, i32) {
    %c0_i32 = arith.constant 0 : i32
    %c0_i32_0 = arith.constant 0 : i32
    return %arg0, %c0_i32 : i32, i32
  }
}

</mosaic_0001>

<llo_original>
// kernel: tpu_custom_call.1
$region0: #{tpu_custom_call.1}
  #allocation0 [shape = 'u32[]', space=smem, size = 0x4, offset = 0x4, fixed_abs, tag = 'smem constant byte address 0x4 - core index']
  #allocation1 [shape = 'u32[72,128]{1,0:T(1,128)}', space=vmem, size = 0x9000, scoped, tag = 'internal scratch']
  %s0 = inlined_call_operand.hbm [shape: f32[8,784], index: 0, kind: input, shape index: {}]
  %s1 = inlined_call_operand.hbm [shape: bf16[784,896], index: 1, kind: input, shape index: {}]
  %s2 = inlined_call_operand.hbm [shape: f32[1,896], index: 2, kind: input, shape index: {}]
  %s3 = inlined_call_operand.hbm [shape: bf16[896,896], index: 3, kind: input, shape index: {}]
  %s4 = inlined_call_operand.hbm [shape: f32[1,896], index: 4, kind: input, shape index: {}]
  %s5 = inlined_call_operand.hbm [shape: bf16[896,128], index: 5, kind: input, shape index: {}]
  %s6 = inlined_call_operand.hbm [shape: f32[1,128], index: 6, kind: input, shape index: {}]
  %s7 = inlined_call_operand.hbm [shape: f32[8,128], index: 7, kind: output, shape index: {}]
  %s8 = sld [smem:[#allocation0]]
  $region66: #{tpu_custom_call.1} parent=0
    _
  %s10 = ssub.s32 1, %s8
  %s11 = scalar_select 0, %s10, %s8
  $region1: #{tpu_custom_call.1} parent=0
    #allocation2 [shape = 'u8[28672]{0}', space=vmem, size = 0x7000, scoped, tag = 'input window, operand 0, single buffered']
    #allocation3 [shape = 's32[1]{0}', space=sflag, size = 0x4, scoped, tag = 'scoped memory for tpu_custom_call.1']
    #allocation4 [shape = 's32[1]{0}', space=sflag, size = 0x4, scoped, tag = 'scoped memory for tpu_custom_call.1']
    #allocation5 [shape = 'u8[1404928]{0}', space=vmem, size = 0x157000, scoped, tag = 'input window, operand 1, single buffered']
    #allocation6 [shape = 's32[1]{0}', space=sflag, size = 0x4, scoped, tag = 'scoped memory for tpu_custom_call.1']
    #allocation7 [shape = 'u8[3584]{0}', space=vmem, size = 0x1000, scoped, tag = 'input window, operand 2, single buffered']
    #allocation8 [shape = 'u8[1605632]{0}', space=vmem, size = 0x188000, scoped, tag = 'input window, operand 3, single buffered']
    #allocation9 [shape = 's32[1]{0}', space=sflag, size = 0x4, scoped, tag = 'scoped memory for tpu_custom_call.1']
    #allocation10 [shape = 'u8[3584]{0}', space=vmem, size = 0x1000, scoped, tag = 'input window, operand 4, single buffered']
    #allocation11 [shape = 'u8[229376]{0}', space=vmem, size = 0x38000, scoped, tag = 'input window, operand 5, single buffered']
    #allocation12 [shape = 's32[1]{0}', space=sflag, size = 0x4, scoped, tag = 'scoped memory for tpu_custom_call.1']
    #allocation13 [shape = 'u8[512]{0}', space=vmem, size = 0x400, scoped, tag = 'input window, operand 6, single buffered']
    #allocation14 [shape = 'u8[4096]{0}', space=vmem, size = 0x1000, scoped, tag = 'output window, operand 0, single buffered']
    %12 = vsyncpa [#allocation3], 0
    %13 = vsyncpa [#allocation6], 0
    %14 = vsyncpa [#allocation9], 0
    %15 = vsyncpa [#allocation12], 0
    %16 = vsyncpa [#allocation4], 0
    // Predicated region
    $region2: #{tpu_custom_call.1} parent=1 // pred_check
      _
    $region3: #{tpu_custom_call.1} parent=1 // pred_check_branch
      %18 = sbr.rel (0) target = $region5
    $region4: #{tpu_custom_call.1} parent=1 // pred_region
      %20 = vsyncadd [#allocation3], 0
      %s22 = sshll.u32 %s0, 4
      %s23 = int_to_ptr.hbm [resolvable:$true] %s22
      %s24 = sshll.u32 [#allocation2], 4
      %s25 = int_to_ptr.vmem [resolvable:$true] %s24
      %27 = dma.hbm_to_vmem [thread:$0]  %s23, 896, %s25, [#allocation3]
    $region5: #{tpu_custom_call.1} parent=1 // pred_fallthru
      _
    // Predicated region
    $region6: #{tpu_custom_call.1} parent=1 // pred_check
      _
    $region7: #{tpu_custom_call.1} parent=1 // pred_check_branch
      %29 = sbr.rel (0) target = $region9
    $region8: #{tpu_custom_call.1} parent=1 // pred_region
      %31 = vsyncadd [#allocation6], 0
      %s32 = sshll.u32 %s1, 4
      %s33 = int_to_ptr.hbm [resolvable:$true] %s32
      %s34 = sshll.u32 [#allocation5], 4
      %s35 = int_to_ptr.vmem [resolvable:$true] %s34
      %40 = dma.hbm_to_vmem [thread:$0]  %s33, 43904, %s35, [#allocation6], 448, 448, 28
    $region9: #{tpu_custom_call.1} parent=1 // pred_fallthru
      _
    // Predicated region
    $region10: #{tpu_custom_call.1} parent=1 // pred_check
      _
    $region11: #{tpu_custom_call.1} parent=1 // pred_check_branch
      %42 = sbr.rel (0) target = $region13
    $region12: #{tpu_custom_call.1} parent=1 // pred_region
      %44 = vsyncadd [#allocation6], 0
      %s46 = sshll.u32 %s2, 4
      %s47 = int_to_ptr.hbm [resolvable:$true] %s46
      %s48 = sshll.u32 [#allocation7], 4
      %s49 = int_to_ptr.vmem [resolvable:$true] %s48
      %51 = dma.hbm_to_vmem [thread:$0]  %s47, 112, %s49, [#allocation6]
    $region13: #{tpu_custom_call.1} parent=1 // pred_fallthru
      _
    // Predicated region
    $region14: #{tpu_custom_call.1} parent=1 // pred_check
      _
    $region15: #{tpu_custom_call.1} parent=1 // pred_check_branch
      %53 = sbr.rel (0) target = $region17
    $region16: #{tpu_custom_call.1} parent=1 // pred_region
      %55 = vsyncadd [#allocation9], 0
      %s56 = sshll.u32 %s3, 4
      %s57 = int_to_ptr.hbm [resolvable:$true] %s56
      %s58 = sshll.u32 [#allocation8], 4
      %s59 = int_to_ptr.vmem [resolvable:$true] %s58
      %64 = dma.hbm_to_vmem [thread:$0]  %s57, 50176, %s59, [#allocation9], 448, 448, 28
    $region17: #{tpu_custom_call.1} parent=1 // pred_fallthru
      _
    // Predicated region
    $region18: #{tpu_custom_call.1} parent=1 // pred_check
      _
    $region19: #{tpu_custom_call.1} parent=1 // pred_check_branch
      %66 = sbr.rel (0) target = $region21
    $region20: #{tpu_custom_call.1} parent=1 // pred_region
      %68 = vsyncadd [#allocation9], 0
      %s70 = sshll.u32 %s4, 4
      %s71 = int_to_ptr.hbm [resolvable:$true] %s70
      %s72 = sshll.u32 [#allocation10], 4
      %s73 = int_to_ptr.vmem [resolvable:$true] %s72
      %75 = dma.hbm_to_vmem [thread:$0]  %s71, 112, %s73, [#allocation9]
    $region21: #{tpu_custom_call.1} parent=1 // pred_fallthru
      _
    // Predicated region
    $region22: #{tpu_custom_call.1} parent=1 // pred_check
      _
    $region23: #{tpu_custom_call.1} parent=1 // pred_check_branch
      %77 = sbr.rel (0) target = $region25
    $region24: #{tpu_custom_call.1} parent=1 // pred_region
      %79 = vsyncadd [#allocation12], 0
      %s80 = sshll.u32 %s5, 4
      %s81 = int_to_ptr.hbm [resolvable:$true] %s80
      %s82 = sshll.u32 [#allocation11], 4
      %s83 = int_to_ptr.vmem [resolvable:$true] %s82
      %88 = dma.hbm_to_vmem [thread:$0]  %s81, 7168, %s83, [#allocation12], 64, 64, 4
    $region25: #{tpu_custom_call.1} parent=1 // pred_fallthru
      _
    // Predicated region
    $region26: #{tpu_custom_call.1} parent=1 // pred_check
      _
    $region27: #{tpu_custom_call.1} parent=1 // pred_check_branch
      %90 = sbr.rel (0) target = $region29
    $region28: #{tpu_custom_call.1} parent=1 // pred_region
      %92 = vsyncadd [#allocation12], 0
      %s94 = sshll.u32 %s6, 4
      %s95 = int_to_ptr.hbm [resolvable:$true] %s94
      %s96 = sshll.u32 [#allocation13], 4
      %s97 = int_to_ptr.vmem [resolvable:$true] %s96
      %99 = dma.hbm_to_vmem [thread:$0]  %s95, 16, %s97, [#allocation12]
    $region29: #{tpu_custom_call.1} parent=1 // pred_fallthru
      _
    // Predicated region
    $region30: #{tpu_custom_call.1} parent=1 // pred_check
      _
    $region31: #{tpu_custom_call.1} parent=1 // pred_check_branch
      %101 = sbr.rel (0) target = $region33
    $region32: #{tpu_custom_call.1} parent=1 // pred_region
      %103 = dma.done [#allocation3], 896
    $region33: #{tpu_custom_call.1} parent=1 // pred_fallthru
      _
    // Predicated region
    $region34: #{tpu_custom_call.1} parent=1 // pred_check
      _
    $region35: #{tpu_custom_call.1} parent=1 // pred_check_branch
      %105 = sbr.rel (0) target = $region37
    $region36: #{tpu_custom_call.1} parent=1 // pred_region
      %107 = dma.done [#allocation6], 43904
    $region37: #{tpu_custom_call.1} parent=1 // pred_fallthru
      _
    // Predicated region
    $region38: #{tpu_custom_call.1} parent=1 // pred_check
      _
    $region39: #{tpu_custom_call.1} parent=1 // pred_check_branch
      %109 = sbr.rel (0) target = $region41
    $region40: #{tpu_custom_call.1} parent=1 // pred_region
      %111 = dma.done [#allocation6], 112
    $region41: #{tpu_custom_call.1} parent=1 // pred_fallthru
      _
    // Predicated region
    $region42: #{tpu_custom_call.1} parent=1 // pred_check
      _
    $region43: #{tpu_custom_call.1} parent=1 // pred_check_branch
      %113 = sbr.rel (0) target = $region45
    $region44: #{tpu_custom_call.1} parent=1 // pred_region
      %115 = dma.done [#allocation9], 50176
    $region45: #{tpu_custom_call.1} parent=1 // pred_fallthru
      _
    // Predicated region
    $region46: #{tpu_custom_call.1} parent=1 // pred_check
      _
    $region47: #{tpu_custom_call.1} parent=1 // pred_check_branch
      %117 = sbr.rel (0) target = $region49
    $region48: #{tpu_custom_call.1} parent=1 // pred_region
      %119 = dma.done [#allocation9], 112
    $region49: #{tpu_custom_call.1} parent=1 // pred_fallthru
      _
    // Predicated region
    $region50: #{tpu_custom_call.1} parent=1 // pred_check
      _
    $region51: #{tpu_custom_call.1} parent=1 // pred_check_branch
      %121 = sbr.rel (0) target = $region53
    $region52: #{tpu_custom_call.1} parent=1 // pred_region
      %123 = dma.done [#allocation12], 7168
    $region53: #{tpu_custom_call.1} parent=1 // pred_fallthru
      _
    // Predicated region
    $region54: #{tpu_custom_call.1} parent=1 // pred_check
      _
    $region55: #{tpu_custom_call.1} parent=1 // pred_check_branch
      %125 = sbr.rel (0) target = $region57
    $region56: #{tpu_custom_call.1} parent=1 // pred_region
      %127 = dma.done [#allocation12], 16
    $region57: #{tpu_custom_call.1} parent=1 // pred_fallthru
      _
    %v129 = vld [vmem:[#allocation2] sm:$0xff]
    %v130 = vld [vmem:[#allocation2 + $0x8] sm:$0xff]
    %v131 = vld [vmem:[#allocation2 + $0x10] sm:$0xff]
    %v132 = vld [vmem:[#allocation2 + $0x18] sm:$0xff]
    %v133 = vld [vmem:[#allocation2 + $0x20] sm:$0xff]
    %v134 = vld [vmem:[#allocation2 + $0x28] sm:$0xff]
    %v135 = vld [vmem:[#allocation2 + $0x30] sm:$0xff]
    %v136 = vpack.c.bf16 %v129, %v129
    %v137 = vpack.c.bf16 %v130, %v130
    %v138 = vpack.c.bf16 %v131, %v131
    %v139 = vpack.c.bf16 %v132, %v132
    %v140 = vpack.c.bf16 %v133, %v133
    %v141 = vpack.c.bf16 %v134, %v134
    %v142 = vpack.c.bf16 %v135, %v135
    %v143 = vld [vmem:[#allocation5] sm:$0xff]
    %v144 = vld [vmem:[#allocation5 + $0x8] sm:$0xff]
    %v145 = vld [vmem:[#allocation5 + $0x10] sm:$0xff]
    %v146 = vld [vmem:[#allocation5 + $0x18] sm:$0xf]
    %v147 = vld [vmem:[#allocation5 + $0x1c] sm:$0xff]
    %v148 = vld [vmem:[#allocation5 + $0x24] sm:$0xff]
    %v149 = vld [vmem:[#allocation5 + $0x2c] sm:$0xff]
    %v150 = vld [vmem:[#allocation5 + $0x34] sm:$0xf]
    %v151 = vld [vmem:[#allocation5 + $0x38] sm:$0xff]
    %v152 = vld [vmem:[#allocation5 + $0x40] sm:$0xff]
    %v153 = vld [vmem:[#allocation5 + $0x48] sm:$0xff]
    %v154 = vld [vmem:[#allocation5 + $0x50] sm:$0xf]
    %v155 = vld [vmem:[#allocation5 + $0x54] sm:$0xff]
    %v156 = vld [vmem:[#allocation5 + $0x5c] sm:$0xff]
    %v157 = vld [vmem:[#allocation5 + $0x64] sm:$0xff]
    %v158 = vld [vmem:[#allocation5 + $0x6c] sm:$0xf]
    %v159 = vld [vmem:[#allocation5 + $0x70] sm:$0xff]
    %v160 = vld [vmem:[#allocation5 + $0x78] sm:$0xff]
    %v161 = vld [vmem:[#allocation5 + $0x80] sm:$0xff]
    %v162 = vld [vmem:[#allocation5 + $0x88] sm:$0xf]
    %v163 = vld [vmem:[#allocation5 + $0x8c] sm:$0xff]
    %v164 = vld [vmem:[#allocation5 + $0x94] sm:$0xff]
    %v165 = vld [vmem:[#allocation5 + $0x9c] sm:$0xff]
    %v166 = vld [vmem:[#allocation5 + $0xa4] sm:$0xf]
    %v167 = vld [vmem:[#allocation5 + $0xa8] sm:$0xff]
    %v168 = vld [vmem:[#allocation5 + $0xb0] sm:$0xff]
    %v169 = vld [vmem:[#allocation5 + $0xb8] sm:$0xff]
    %v170 = vld [vmem:[#allocation5 + $0xc0] sm:$0xf]
    %v171 = vld [vmem:[#allocation5 + $0xc4] sm:$0xff]
    %v172 = vld [vmem:[#allocation5 + $0xcc] sm:$0xff]
    %v173 = vld [vmem:[#allocation5 + $0xd4] sm:$0xff]
    %v174 = vld [vmem:[#allocation5 + $0xdc] sm:$0xf]
    %v175 = vld [vmem:[#allocation5 + $0xe0] sm:$0xff]
    %v176 = vld [vmem:[#allocation5 + $0xe8] sm:$0xff]
    %v177 = vld [vmem:[#allocation5 + $0xf0] sm:$0xff]
    %v178 = vld [vmem:[#allocation5 + $0xf8] sm:$0xf]
    %v179 = vld [vmem:[#allocation5 + $0xfc] sm:$0xff]
    %v180 = vld [vmem:[#allocation5 + $0x104] sm:$0xff]
    %v181 = vld [vmem:[#allocation5 + $0x10c] sm:$0xff]
    %v182 = vld [vmem:[#allocation5 + $0x114] sm:$0xf]
    %v183 = vld [vmem:[#allocation5 + $0x118] sm:$0xff]
    %v184 = vld [vmem:[#allocation5 + $0x120] sm:$0xff]
    %v185 = vld [vmem:[#allocation5 + $0x128] sm:$0xff]
    %v186 = vld [vmem:[#allocation5 + $0x130] sm:$0xf]
    %v187 = vld [vmem:[#allocation5 + $0x134] sm:$0xff]
    %v188 = vld [vmem:[#allocation5 + $0x13c] sm:$0xff]
    %v189 = vld [vmem:[#allocation5 + $0x144] sm:$0xff]
    %v190 = vld [vmem:[#allocation5 + $0x14c] sm:$0xf]
    %v191 = vld [vmem:[#allocation5 + $0x150] sm:$0xff]
    %v192 = vld [vmem:[#allocation5 + $0x158] sm:$0xff]
    %v193 = vld [vmem:[#allocation5 + $0x160] sm:$0xff]
    %v194 = vld [vmem:[#allocation5 + $0x168] sm:$0xf]
    %v195 = vld [vmem:[#allocation5 + $0x16c] sm:$0xff]
    %v196 = vld [vmem:[#allocation5 + $0x174] sm:$0xff]
    %v197 = vld [vmem:[#allocation5 + $0x17c] sm:$0xff]
    %v198 = vld [vmem:[#allocation5 + $0x184] sm:$0xf]
    %v199 = vld [vmem:[#allocation5 + $0x188] sm:$0xff]
    %v200 = vld [vmem:[#allocation5 + $0x190] sm:$0xff]
    %v201 = vld [vmem:[#allocation5 + $0x198] sm:$0xff]
    %v202 = vld [vmem:[#allocation5 + $0x1a0] sm:$0xf]
    %v203 = vld [vmem:[#allocation5 + $0x1a4] sm:$0xff]
    %v204 = vld [vmem:[#allocation5 + $0x1ac] sm:$0xff]
    %v205 = vld [vmem:[#allocation5 + $0x1b4] sm:$0xff]
    %v206 = vld [vmem:[#allocation5 + $0x1bc] sm:$0xf]
    %v207 = vld [vmem:[#allocation5 + $0x1c0] sm:$0xff]
    %v208 = vld [vmem:[#allocation5 + $0x1c8] sm:$0xff]
    %v209 = vld [vmem:[#allocation5 + $0x1d0] sm:$0xff]
    %v210 = vld [vmem:[#allocation5 + $0x1d8] sm:$0xf]
    %v211 = vld [vmem:[#allocation5 + $0x1dc] sm:$0xff]
    %v212 = vld [vmem:[#allocation5 + $0x1e4] sm:$0xff]
    %v213 = vld [vmem:[#allocation5 + $0x1ec] sm:$0xff]
    %v214 = vld [vmem:[#allocation5 + $0x1f4] sm:$0xf]
    %v215 = vld [vmem:[#allocation5 + $0x1f8] sm:$0xff]
    %v216 = vld [vmem:[#allocation5 + $0x200] sm:$0xff]
    %v217 = vld [vmem:[#allocation5 + $0x208] sm:$0xff]
    %v218 = vld [vmem:[#allocation5 + $0x210] sm:$0xf]
    %v219 = vld [vmem:[#allocation5 + $0x214] sm:$0xff]
    %v220 = vld [vmem:[#allocation5 + $0x21c] sm:$0xff]
    %v221 = vld [vmem:[#allocation5 + $0x224] sm:$0xff]
    %v222 = vld [vmem:[#allocation5 + $0x22c] sm:$0xf]
    %v223 = vld [vmem:[#allocation5 + $0x230] sm:$0xff]
    %v224 = vld [vmem:[#allocation5 + $0x238] sm:$0xff]
    %v225 = vld [vmem:[#allocation5 + $0x240] sm:$0xff]
    %v226 = vld [vmem:[#allocation5 + $0x248] sm:$0xf]
    %v227 = vld [vmem:[#allocation5 + $0x24c] sm:$0xff]
    %v228 = vld [vmem:[#allocation5 + $0x254] sm:$0xff]
    %v229 = vld [vmem:[#allocation5 + $0x25c] sm:$0xff]
    %v230 = vld [vmem:[#allocation5 + $0x264] sm:$0xf]
    %v231 = vld [vmem:[#allocation5 + $0x268] sm:$0xff]
    %v232 = vld [vmem:[#allocation5 + $0x270] sm:$0xff]
    %v233 = vld [vmem:[#allocation5 + $0x278] sm:$0xff]
    %v234 = vld [vmem:[#allocation5 + $0x280] sm:$0xf]
    %v235 = vld [vmem:[#allocation5 + $0x284] sm:$0xff]
    %v236 = vld [vmem:[#allocation5 + $0x28c] sm:$0xff]
    %v237 = vld [vmem:[#allocation5 + $0x294] sm:$0xff]
    %v238 = vld [vmem:[#allocation5 + $0x29c] sm:$0xf]
    %v239 = vld [vmem:[#allocation5 + $0x2a0] sm:$0xff]
    %v240 = vld [vmem:[#allocation5 + $0x2a8] sm:$0xff]
    %v241 = vld [vmem:[#allocation5 + $0x2b0] sm:$0xff]
    %v242 = vld [vmem:[#allocation5 + $0x2b8] sm:$0xf]
    %v243 = vld [vmem:[#allocation5 + $0x2bc] sm:$0xff]
    %v244 = vld [vmem:[#allocation5 + $0x2c4] sm:$0xff]
    %v245 = vld [vmem:[#allocation5 + $0x2cc] sm:$0xff]
    %v246 = vld [vmem:[#allocation5 + $0x2d4] sm:$0xf]
    %v247 = vld [vmem:[#allocation5 + $0x2d8] sm:$0xff]
    %v248 = vld [vmem:[#allocation5 + $0x2e0] sm:$0xff]
    %v249 = vld [vmem:[#allocation5 + $0x2e8] sm:$0xff]
    %v250 = vld [vmem:[#allocation5 + $0x2f0] sm:$0xf]
    %v251 = vld [vmem:[#allocation5 + $0x2f4] sm:$0xff]
    %v252 = vld [vmem:[#allocation5 + $0x2fc] sm:$0xff]
    %v253 = vld [vmem:[#allocation5 + $0x304] sm:$0xff]
    %v254 = vld [vmem:[#allocation5 + $0x30c] sm:$0xf]
    %v255 = vld [vmem:[#allocation5 + $0x310] sm:$0xff]
    %v256 = vld [vmem:[#allocation5 + $0x318] sm:$0xff]
    %v257 = vld [vmem:[#allocation5 + $0x320] sm:$0xff]
    %v258 = vld [vmem:[#allocation5 + $0x328] sm:$0xf]
    %v259 = vld [vmem:[#allocation5 + $0x32c] sm:$0xff]
    %v260 = vld [vmem:[#allocation5 + $0x334] sm:$0xff]
    %v261 = vld [vmem:[#allocation5 + $0x33c] sm:$0xff]
    %v262 = vld [vmem:[#allocation5 + $0x344] sm:$0xf]
    %v263 = vld [vmem:[#allocation5 + $0x348] sm:$0xff]
    %v264 = vld [vmem:[#allocation5 + $0x350] sm:$0xff]
    %v265 = vld [vmem:[#allocation5 + $0x358] sm:$0xff]
    %v266 = vld [vmem:[#allocation5 + $0x360] sm:$0xf]
    %v267 = vld [vmem:[#allocation5 + $0x364] sm:$0xff]
    %v268 = vld [vmem:[#allocation5 + $0x36c] sm:$0xff]
    %v269 = vld [vmem:[#allocation5 + $0x374] sm:$0xff]
    %v270 = vld [vmem:[#allocation5 + $0x37c] sm:$0xf]
    %v271 = vld [vmem:[#allocation5 + $0x380] sm:$0xff]
    %v272 = vld [vmem:[#allocation5 + $0x388] sm:$0xff]
    %v273 = vld [vmem:[#allocation5 + $0x390] sm:$0xff]
    %v274 = vld [vmem:[#allocation5 + $0x398] sm:$0xf]
    %v275 = vld [vmem:[#allocation5 + $0x39c] sm:$0xff]
    %v276 = vld [vmem:[#allocation5 + $0x3a4] sm:$0xff]
    %v277 = vld [vmem:[#allocation5 + $0x3ac] sm:$0xff]
    %v278 = vld [vmem:[#allocation5 + $0x3b4] sm:$0xf]
    %v279 = vld [vmem:[#allocation5 + $0x3b8] sm:$0xff]
    %v280 = vld [vmem:[#allocation5 + $0x3c0] sm:$0xff]
    %v281 = vld [vmem:[#allocation5 + $0x3c8] sm:$0xff]
    %v282 = vld [vmem:[#allocation5 + $0x3d0] sm:$0xf]
    %v283 = vld [vmem:[#allocation5 + $0x3d4] sm:$0xff]
    %v284 = vld [vmem:[#allocation5 + $0x3dc] sm:$0xff]
    %v285 = vld [vmem:[#allocation5 + $0x3e4] sm:$0xff]
    %v286 = vld [vmem:[#allocation5 + $0x3ec] sm:$0xf]
    %v287 = vld [vmem:[#allocation5 + $0x3f0] sm:$0xff]
    %v288 = vld [vmem:[#allocation5 + $0x3f8] sm:$0xff]
    %v289 = vld [vmem:[#allocation5 + $0x400] sm:$0xff]
    %v290 = vld [vmem:[#allocation5 + $0x408] sm:$0xf]
    %v291 = vld [vmem:[#allocation5 + $0x40c] sm:$0xff]
    %v292 = vld [vmem:[#allocation5 + $0x414] sm:$0xff]
    %v293 = vld [vmem:[#allocation5 + $0x41c] sm:$0xff]
    %v294 = vld [vmem:[#allocation5 + $0x424] sm:$0xf]
    %v295 = vld [vmem:[#allocation5 + $0x428] sm:$0xff]
    %v296 = vld [vmem:[#allocation5 + $0x430] sm:$0xff]
    %v297 = vld [vmem:[#allocation5 + $0x438] sm:$0xff]
    %v298 = vld [vmem:[#allocation5 + $0x440] sm:$0xf]
    %v299 = vld [vmem:[#allocation5 + $0x444] sm:$0xff]
    %v300 = vld [vmem:[#allocation5 + $0x44c] sm:$0xff]
    %v301 = vld [vmem:[#allocation5 + $0x454] sm:$0xff]
    %v302 = vld [vmem:[#allocation5 + $0x45c] sm:$0xf]
    %v303 = vld [vmem:[#allocation5 + $0x460] sm:$0xff]
    %v304 = vld [vmem:[#allocation5 + $0x468] sm:$0xff]
    %v305 = vld [vmem:[#allocation5 + $0x470] sm:$0xff]
    %v306 = vld [vmem:[#allocation5 + $0x478] sm:$0xf]
    %v307 = vld [vmem:[#allocation5 + $0x47c] sm:$0xff]
    %v308 = vld [vmem:[#allocation5 + $0x484] sm:$0xff]
    %v309 = vld [vmem:[#allocation5 + $0x48c] sm:$0xff]
    %v310 = vld [vmem:[#allocation5 + $0x494] sm:$0xf]
    %v311 = vld [vmem:[#allocation5 + $0x498] sm:$0xff]
    %v312 = vld [vmem:[#allocation5 + $0x4a0] sm:$0xff]
    %v313 = vld [vmem:[#allocation5 + $0x4a8] sm:$0xff]
    %v314 = vld [vmem:[#allocation5 + $0x4b0] sm:$0xf]
    %v315 = vld [vmem:[#allocation5 + $0x4b4] sm:$0xff]
    %v316 = vld [vmem:[#allocation5 + $0x4bc] sm:$0xff]
    %v317 = vld [vmem:[#allocation5 + $0x4c4] sm:$0xff]
    %v318 = vld [vmem:[#allocation5 + $0x4cc] sm:$0xf]
    %v319 = vld [vmem:[#allocation5 + $0x4d0] sm:$0xff]
    %v320 = vld [vmem:[#allocation5 + $0x4d8] sm:$0xff]
    %v321 = vld [vmem:[#allocation5 + $0x4e0] sm:$0xff]
    %v322 = vld [vmem:[#allocation5 + $0x4e8] sm:$0xf]
    %v323 = vld [vmem:[#allocation5 + $0x4ec] sm:$0xff]
    %v324 = vld [vmem:[#allocation5 + $0x4f4] sm:$0xff]
    %v325 = vld [vmem:[#allocation5 + $0x4fc] sm:$0xff]
    %v326 = vld [vmem:[#allocation5 + $0x504] sm:$0xf]
    %v327 = vld [vmem:[#allocation5 + $0x508] sm:$0xff]
    %v328 = vld [vmem:[#allocation5 + $0x510] sm:$0xff]
    %v329 = vld [vmem:[#allocation5 + $0x518] sm:$0xff]
    %v330 = vld [vmem:[#allocation5 + $0x520] sm:$0xf]
    %v331 = vld [vmem:[#allocation5 + $0x524] sm:$0xff]
    %v332 = vld [vmem:[#allocation5 + $0x52c] sm:$0xff]
    %v333 = vld [vmem:[#allocation5 + $0x534] sm:$0xff]
    %v334 = vld [vmem:[#allocation5 + $0x53c] sm:$0xf]
    %v335 = vld [vmem:[#allocation5 + $0x540] sm:$0xff]
    %v336 = vld [vmem:[#allocation5 + $0x548] sm:$0xff]
    %v337 = vld [vmem:[#allocation5 + $0x550] sm:$0xff]
    %v338 = vld [vmem:[#allocation5 + $0x558] sm:$0xf]
    %v339 = vld [vmem:[#allocation5 + $0x55c] sm:$0xff]
    %v340 = vld [vmem:[#allocation5 + $0x564] sm:$0xff]
    %v341 = vld [vmem:[#allocation5 + $0x56c] sm:$0xff]
    %v342 = vld [vmem:[#allocation5 + $0x574] sm:$0xf]
    %v343 = vld [vmem:[#allocation5 + $0x578] sm:$0xff]
    %v344 = vld [vmem:[#allocation5 + $0x580] sm:$0xff]
    %v345 = vld [vmem:[#allocation5 + $0x588] sm:$0xff]
    %v346 = vld [vmem:[#allocation5 + $0x590] sm:$0xf]
    %v347 = vld [vmem:[#allocation5 + $0x594] sm:$0xff]
    %v348 = vld [vmem:[#allocation5 + $0x59c] sm:$0xff]
    %v349 = vld [vmem:[#allocation5 + $0x5a4] sm:$0xff]
    %v350 = vld [vmem:[#allocation5 + $0x5ac] sm:$0xf]
    %v351 = vld [vmem:[#allocation5 + $0x5b0] sm:$0xff]
    %v352 = vld [vmem:[#allocation5 + $0x5b8] sm:$0xff]
    %v353 = vld [vmem:[#allocation5 + $0x5c0] sm:$0xff]
    %v354 = vld [vmem:[#allocation5 + $0x5c8] sm:$0xf]
    %v355 = vld [vmem:[#allocation5 + $0x5cc] sm:$0xff]
    %v356 = vld [vmem:[#allocation5 + $0x5d4] sm:$0xff]
    %v357 = vld [vmem:[#allocation5 + $0x5dc] sm:$0xff]
    %v358 = vld [vmem:[#allocation5 + $0x5e4] sm:$0xf]
    %v359 = vld [vmem:[#allocation5 + $0x5e8] sm:$0xff]
    %v360 = vld [vmem:[#allocation5 + $0x5f0] sm:$0xff]
    %v361 = vld [vmem:[#allocation5 + $0x5f8] sm:$0xff]
    %v362 = vld [vmem:[#allocation5 + $0x600] sm:$0xf]
    %v363 = vld [vmem:[#allocation5 + $0x604] sm:$0xff]
    %v364 = vld [vmem:[#allocation5 + $0x60c] sm:$0xff]
    %v365 = vld [vmem:[#allocation5 + $0x614] sm:$0xff]
    %v366 = vld [vmem:[#allocation5 + $0x61c] sm:$0xf]
    %v367 = vld [vmem:[#allocation5 + $0x620] sm:$0xff]
    %v368 = vld [vmem:[#allocation5 + $0x628] sm:$0xff]
    %v369 = vld [vmem:[#allocation5 + $0x630] sm:$0xff]
    %v370 = vld [vmem:[#allocation5 + $0x638] sm:$0xf]
    %v371 = vld [vmem:[#allocation5 + $0x63c] sm:$0xff]
    %v372 = vld [vmem:[#allocation5 + $0x644] sm:$0xff]
    %v373 = vld [vmem:[#allocation5 + $0x64c] sm:$0xff]
    %v374 = vld [vmem:[#allocation5 + $0x654] sm:$0xf]
    %v375 = vld [vmem:[#allocation5 + $0x658] sm:$0xff]
    %v376 = vld [vmem:[#allocation5 + $0x660] sm:$0xff]
    %v377 = vld [vmem:[#allocation5 + $0x668] sm:$0xff]
    %v378 = vld [vmem:[#allocation5 + $0x670] sm:$0xf]
    %v379 = vld [vmem:[#allocation5 + $0x674] sm:$0xff]
    %v380 = vld [vmem:[#allocation5 + $0x67c] sm:$0xff]
    %v381 = vld [vmem:[#allocation5 + $0x684] sm:$0xff]
    %v382 = vld [vmem:[#allocation5 + $0x68c] sm:$0xf]
    %v383 = vld [vmem:[#allocation5 + $0x690] sm:$0xff]
    %v384 = vld [vmem:[#allocation5 + $0x698] sm:$0xff]
    %v385 = vld [vmem:[#allocation5 + $0x6a0] sm:$0xff]
    %v386 = vld [vmem:[#allocation5 + $0x6a8] sm:$0xf]
    %v387 = vld [vmem:[#allocation5 + $0x6ac] sm:$0xff]
    %v388 = vld [vmem:[#allocation5 + $0x6b4] sm:$0xff]
    %v389 = vld [vmem:[#allocation5 + $0x6bc] sm:$0xff]
    %v390 = vld [vmem:[#allocation5 + $0x6c4] sm:$0xf]
    %v391 = vld [vmem:[#allocation5 + $0x6c8] sm:$0xff]
    %v392 = vld [vmem:[#allocation5 + $0x6d0] sm:$0xff]
    %v393 = vld [vmem:[#allocation5 + $0x6d8] sm:$0xff]
    %v394 = vld [vmem:[#allocation5 + $0x6e0] sm:$0xf]
    %v395 = vld [vmem:[#allocation5 + $0x6e4] sm:$0xff]
    %v396 = vld [vmem:[#allocation5 + $0x6ec] sm:$0xff]
    %v397 = vld [vmem:[#allocation5 + $0x6f4] sm:$0xff]
    %v398 = vld [vmem:[#allocation5 + $0x6fc] sm:$0xf]
    %v399 = vld [vmem:[#allocation5 + $0x700] sm:$0xff]
    %v400 = vld [vmem:[#allocation5 + $0x708] sm:$0xff]
    %v401 = vld [vmem:[#allocation5 + $0x710] sm:$0xff]
    %v402 = vld [vmem:[#allocation5 + $0x718] sm:$0xf]
    %v403 = vld [vmem:[#allocation5 + $0x71c] sm:$0xff]
    %v404 = vld [vmem:[#allocation5 + $0x724] sm:$0xff]
    %v405 = vld [vmem:[#allocation5 + $0x72c] sm:$0xff]
    %v406 = vld [vmem:[#allocation5 + $0x734] sm:$0xf]
    %v407 = vld [vmem:[#allocation5 + $0x738] sm:$0xff]
    %v408 = vld [vmem:[#allocation5 + $0x740] sm:$0xff]
    %v409 = vld [vmem:[#allocation5 + $0x748] sm:$0xff]
    %v410 = vld [vmem:[#allocation5 + $0x750] sm:$0xf]
    %v411 = vld [vmem:[#allocation5 + $0x754] sm:$0xff]
    %v412 = vld [vmem:[#allocation5 + $0x75c] sm:$0xff]
    %v413 = vld [vmem:[#allocation5 + $0x764] sm:$0xff]
    %v414 = vld [vmem:[#allocation5 + $0x76c] sm:$0xf]
    %v415 = vld [vmem:[#allocation5 + $0x770] sm:$0xff]
    %v416 = vld [vmem:[#allocation5 + $0x778] sm:$0xff]
    %v417 = vld [vmem:[#allocation5 + $0x780] sm:$0xff]
    %v418 = vld [vmem:[#allocation5 + $0x788] sm:$0xf]
    %v419 = vld [vmem:[#allocation5 + $0x78c] sm:$0xff]
    %v420 = vld [vmem:[#allocation5 + $0x794] sm:$0xff]
    %v421 = vld [vmem:[#allocation5 + $0x79c] sm:$0xff]
    %v422 = vld [vmem:[#allocation5 + $0x7a4] sm:$0xf]
    %v423 = vld [vmem:[#allocation5 + $0x7a8] sm:$0xff]
    %v424 = vld [vmem:[#allocation5 + $0x7b0] sm:$0xff]
    %v425 = vld [vmem:[#allocation5 + $0x7b8] sm:$0xff]
    %v426 = vld [vmem:[#allocation5 + $0x7c0] sm:$0xf]
    %v427 = vld [vmem:[#allocation5 + $0x7c4] sm:$0xff]
    %v428 = vld [vmem:[#allocation5 + $0x7cc] sm:$0xff]
    %v429 = vld [vmem:[#allocation5 + $0x7d4] sm:$0xff]
    %v430 = vld [vmem:[#allocation5 + $0x7dc] sm:$0xf]
    %v431 = vld [vmem:[#allocation5 + $0x7e0] sm:$0xff]
    %v432 = vld [vmem:[#allocation5 + $0x7e8] sm:$0xff]
    %v433 = vld [vmem:[#allocation5 + $0x7f0] sm:$0xff]
    %v434 = vld [vmem:[#allocation5 + $0x7f8] sm:$0xf]
    %v435 = vld [vmem:[#allocation5 + $0x7fc] sm:$0xff]
    %v436 = vld [vmem:[#allocation5 + $0x804] sm:$0xff]
    %v437 = vld [vmem:[#allocation5 + $0x80c] sm:$0xff]
    %v438 = vld [vmem:[#allocation5 + $0x814] sm:$0xf]
    %v439 = vld [vmem:[#allocation5 + $0x818] sm:$0xff]
    %v440 = vld [vmem:[#allocation5 + $0x820] sm:$0xff]
    %v441 = vld [vmem:[#allocation5 + $0x828] sm:$0xff]
    %v442 = vld [vmem:[#allocation5 + $0x830] sm:$0xf]
    %v443 = vld [vmem:[#allocation5 + $0x834] sm:$0xff]
    %v444 = vld [vmem:[#allocation5 + $0x83c] sm:$0xff]
    %v445 = vld [vmem:[#allocation5 + $0x844] sm:$0xff]
    %v446 = vld [vmem:[#allocation5 + $0x84c] sm:$0xf]
    %v447 = vld [vmem:[#allocation5 + $0x850] sm:$0xff]
    %v448 = vld [vmem:[#allocation5 + $0x858] sm:$0xff]
    %v449 = vld [vmem:[#allocation5 + $0x860] sm:$0xff]
    %v450 = vld [vmem:[#allocation5 + $0x868] sm:$0xf]
    %v451 = vld [vmem:[#allocation5 + $0x86c] sm:$0xff]
    %v452 = vld [vmem:[#allocation5 + $0x874] sm:$0xff]
    %v453 = vld [vmem:[#allocation5 + $0x87c] sm:$0xff]
    %v454 = vld [vmem:[#allocation5 + $0x884] sm:$0xf]
    %v455 = vld [vmem:[#allocation5 + $0x888] sm:$0xff]
    %v456 = vld [vmem:[#allocation5 + $0x890] sm:$0xff]
    %v457 = vld [vmem:[#allocation5 + $0x898] sm:$0xff]
    %v458 = vld [vmem:[#allocation5 + $0x8a0] sm:$0xf]
    %v459 = vld [vmem:[#allocation5 + $0x8a4] sm:$0xff]
    %v460 = vld [vmem:[#allocation5 + $0x8ac] sm:$0xff]
    %v461 = vld [vmem:[#allocation5 + $0x8b4] sm:$0xff]
    %v462 = vld [vmem:[#allocation5 + $0x8bc] sm:$0xf]
    %v463 = vld [vmem:[#allocation5 + $0x8c0] sm:$0xff]
    %v464 = vld [vmem:[#allocation5 + $0x8c8] sm:$0xff]
    %v465 = vld [vmem:[#allocation5 + $0x8d0] sm:$0xff]
    %v466 = vld [vmem:[#allocation5 + $0x8d8] sm:$0xf]
    %v467 = vld [vmem:[#allocation5 + $0x8dc] sm:$0xff]
    %v468 = vld [vmem:[#allocation5 + $0x8e4] sm:$0xff]
    %v469 = vld [vmem:[#allocation5 + $0x8ec] sm:$0xff]
    %v470 = vld [vmem:[#allocation5 + $0x8f4] sm:$0xf]
    %v471 = vld [vmem:[#allocation5 + $0x8f8] sm:$0xff]
    %v472 = vld [vmem:[#allocation5 + $0x900] sm:$0xff]
    %v473 = vld [vmem:[#allocation5 + $0x908] sm:$0xff]
    %v474 = vld [vmem:[#allocation5 + $0x910] sm:$0xf]
    %v475 = vld [vmem:[#allocation5 + $0x914] sm:$0xff]
    %v476 = vld [vmem:[#allocation5 + $0x91c] sm:$0xff]
    %v477 = vld [vmem:[#allocation5 + $0x924] sm:$0xff]
    %v478 = vld [vmem:[#allocation5 + $0x92c] sm:$0xf]
    %v479 = vld [vmem:[#allocation5 + $0x930] sm:$0xff]
    %v480 = vld [vmem:[#allocation5 + $0x938] sm:$0xff]
    %v481 = vld [vmem:[#allocation5 + $0x940] sm:$0xff]
    %v482 = vld [vmem:[#allocation5 + $0x948] sm:$0xf]
    %v483 = vld [vmem:[#allocation5 + $0x94c] sm:$0xff]
    %v484 = vld [vmem:[#allocation5 + $0x954] sm:$0xff]
    %v485 = vld [vmem:[#allocation5 + $0x95c] sm:$0xff]
    %v486 = vld [vmem:[#allocation5 + $0x964] sm:$0xf]
    %v487 = vld [vmem:[#allocation5 + $0x968] sm:$0xff]
    %v488 = vld [vmem:[#allocation5 + $0x970] sm:$0xff]
    %v489 = vld [vmem:[#allocation5 + $0x978] sm:$0xff]
    %v490 = vld [vmem:[#allocation5 + $0x980] sm:$0xf]
    %v491 = vld [vmem:[#allocation5 + $0x984] sm:$0xff]
    %v492 = vld [vmem:[#allocation5 + $0x98c] sm:$0xff]
    %v493 = vld [vmem:[#allocation5 + $0x994] sm:$0xff]
    %v494 = vld [vmem:[#allocation5 + $0x99c] sm:$0xf]
    %v495 = vld [vmem:[#allocation5 + $0x9a0] sm:$0xff]
    %v496 = vld [vmem:[#allocation5 + $0x9a8] sm:$0xff]
    %v497 = vld [vmem:[#allocation5 + $0x9b0] sm:$0xff]
    %v498 = vld [vmem:[#allocation5 + $0x9b8] sm:$0xf]
    %v499 = vld [vmem:[#allocation5 + $0x9bc] sm:$0xff]
    %v500 = vld [vmem:[#allocation5 + $0x9c4] sm:$0xff]
    %v501 = vld [vmem:[#allocation5 + $0x9cc] sm:$0xff]
    %v502 = vld [vmem:[#allocation5 + $0x9d4] sm:$0xf]
    %v503 = vld [vmem:[#allocation5 + $0x9d8] sm:$0xff]
    %v504 = vld [vmem:[#allocation5 + $0x9e0] sm:$0xff]
    %v505 = vld [vmem:[#allocation5 + $0x9e8] sm:$0xff]
    %v506 = vld [vmem:[#allocation5 + $0x9f0] sm:$0xf]
    %v507 = vld [vmem:[#allocation5 + $0x9f4] sm:$0xff]
    %v508 = vld [vmem:[#allocation5 + $0x9fc] sm:$0xff]
    %v509 = vld [vmem:[#allocation5 + $0xa04] sm:$0xff]
    %v510 = vld [vmem:[#allocation5 + $0xa0c] sm:$0xf]
    %v511 = vld [vmem:[#allocation5 + $0xa10] sm:$0xff]
    %v512 = vld [vmem:[#allocation5 + $0xa18] sm:$0xff]
    %v513 = vld [vmem:[#allocation5 + $0xa20] sm:$0xff]
    %v514 = vld [vmem:[#allocation5 + $0xa28] sm:$0xf]
    %v515 = vld [vmem:[#allocation5 + $0xa2c] sm:$0xff]
    %v516 = vld [vmem:[#allocation5 + $0xa34] sm:$0xff]
    %v517 = vld [vmem:[#allocation5 + $0xa3c] sm:$0xff]
    %v518 = vld [vmem:[#allocation5 + $0xa44] sm:$0xf]
    %v519 = vld [vmem:[#allocation5 + $0xa48] sm:$0xff]
    %v520 = vld [vmem:[#allocation5 + $0xa50] sm:$0xff]
    %v521 = vld [vmem:[#allocation5 + $0xa58] sm:$0xff]
    %v522 = vld [vmem:[#allocation5 + $0xa60] sm:$0xf]
    %v523 = vld [vmem:[#allocation5 + $0xa64] sm:$0xff]
    %v524 = vld [vmem:[#allocation5 + $0xa6c] sm:$0xff]
    %v525 = vld [vmem:[#allocation5 + $0xa74] sm:$0xff]
    %v526 = vld [vmem:[#allocation5 + $0xa7c] sm:$0xf]
    %v527 = vld [vmem:[#allocation5 + $0xa80] sm:$0xff]
    %v528 = vld [vmem:[#allocation5 + $0xa88] sm:$0xff]
    %v529 = vld [vmem:[#allocation5 + $0xa90] sm:$0xff]
    %v530 = vld [vmem:[#allocation5 + $0xa98] sm:$0xf]
    %v531 = vld [vmem:[#allocation5 + $0xa9c] sm:$0xff]
    %v532 = vld [vmem:[#allocation5 + $0xaa4] sm:$0xff]
    %v533 = vld [vmem:[#allocation5 + $0xaac] sm:$0xff]
    %v534 = vld [vmem:[#allocation5 + $0xab4] sm:$0xf]
    %v535 = vld [vmem:[#allocation7] sm:$0xff]
    %v537 = vperm.slane %v535, 0
    %v538 = vperm.slane %v535, 1
    %v539 = vperm.slane %v535, 2
    %v540 = vperm.slane %v535, 3
    %v541 = vperm.slane %v535, 4
    %v542 = vperm.slane %v535, 5
    %v543 = vperm.slane %v535, 6
    %v943 = vunpack.c.l.b16 %v143
    %v944 = vunpack.c.h.b16 %v143
    %v945 = vunpack.c.l.b16 %v144
    %v946 = vunpack.c.h.b16 %v144
    %v947 = vunpack.c.l.b16 %v145
    %v948 = vunpack.c.h.b16 %v145
    %v949 = vunpack.c.l.b16 %v146
    %v950 = vunpack.c.l.b16 %v147
    %v951 = vunpack.c.h.b16 %v147
    %v952 = vunpack.c.l.b16 %v148
    %v953 = vunpack.c.h.b16 %v148
    %v954 = vunpack.c.l.b16 %v149
    %v955 = vunpack.c.h.b16 %v149
    %v956 = vunpack.c.l.b16 %v150
    %v957 = vunpack.c.l.b16 %v151
    %v958 = vunpack.c.h.b16 %v151
    %v959 = vunpack.c.l.b16 %v152
    %v960 = vunpack.c.h.b16 %v152
    %v961 = vunpack.c.l.b16 %v153
    %v962 = vunpack.c.h.b16 %v153
    %v963 = vunpack.c.l.b16 %v154
    %v964 = vunpack.c.l.b16 %v155
    %v965 = vunpack.c.h.b16 %v155
    %v966 = vunpack.c.l.b16 %v156
    %v967 = vunpack.c.h.b16 %v156
    %v968 = vunpack.c.l.b16 %v157
    %v969 = vunpack.c.h.b16 %v157
    %v970 = vunpack.c.l.b16 %v158
    %v971 = vunpack.c.l.b16 %v159
    %v972 = vunpack.c.h.b16 %v159
    %v973 = vunpack.c.l.b16 %v160
    %v974 = vunpack.c.h.b16 %v160
    %v975 = vunpack.c.l.b16 %v161
    %v976 = vunpack.c.h.b16 %v161
    %v977 = vunpack.c.l.b16 %v162
    %v978 = vunpack.c.l.b16 %v163
    %v979 = vunpack.c.h.b16 %v163
    %v980 = vunpack.c.l.b16 %v164
    %v981 = vunpack.c.h.b16 %v164
    %v982 = vunpack.c.l.b16 %v165
    %v983 = vunpack.c.h.b16 %v165
    %v984 = vunpack.c.l.b16 %v166
    %v985 = vunpack.c.l.b16 %v167
    %v986 = vunpack.c.h.b16 %v167
    %v987 = vunpack.c.l.b16 %v168
    %v988 = vunpack.c.h.b16 %v168
    %v989 = vunpack.c.l.b16 %v169
    %v990 = vunpack.c.h.b16 %v169
    %v991 = vunpack.c.l.b16 %v170
    %v992 = vunpack.c.l.b16 %v171
    %v993 = vunpack.c.h.b16 %v171
    %v994 = vunpack.c.l.b16 %v172
    %v995 = vunpack.c.h.b16 %v172
    %v996 = vunpack.c.l.b16 %v173
    %v997 = vunpack.c.h.b16 %v173
    %v998 = vunpack.c.l.b16 %v174
    %v999 = vunpack.c.l.b16 %v175
    %v1000 = vunpack.c.h.b16 %v175
    %v1001 = vunpack.c.l.b16 %v176
    %v1002 = vunpack.c.h.b16 %v176
    %v1003 = vunpack.c.l.b16 %v177
    %v1004 = vunpack.c.h.b16 %v177
    %v1005 = vunpack.c.l.b16 %v178
    %v1006 = vunpack.c.l.b16 %v179
    %v1007 = vunpack.c.h.b16 %v179
    %v1008 = vunpack.c.l.b16 %v180
    %v1009 = vunpack.c.h.b16 %v180
    %v1010 = vunpack.c.l.b16 %v181
    %v1011 = vunpack.c.h.b16 %v181
    %v1012 = vunpack.c.l.b16 %v182
    %v1013 = vunpack.c.l.b16 %v183
    %v1014 = vunpack.c.h.b16 %v183
    %v1015 = vunpack.c.l.b16 %v184
    %v1016 = vunpack.c.h.b16 %v184
    %v1017 = vunpack.c.l.b16 %v185
    %v1018 = vunpack.c.h.b16 %v185
    %v1019 = vunpack.c.l.b16 %v186
    %v1020 = vunpack.c.l.b16 %v187
    %v1021 = vunpack.c.h.b16 %v187
    %v1022 = vunpack.c.l.b16 %v188
    %v1023 = vunpack.c.h.b16 %v188
    %v1024 = vunpack.c.l.b16 %v189
    %v1025 = vunpack.c.h.b16 %v189
    %v1026 = vunpack.c.l.b16 %v190
    %v1027 = vunpack.c.l.b16 %v191
    %v1028 = vunpack.c.h.b16 %v191
    %v1029 = vunpack.c.l.b16 %v192
    %v1030 = vunpack.c.h.b16 %v192
    %v1031 = vunpack.c.l.b16 %v193
    %v1032 = vunpack.c.h.b16 %v193
    %v1033 = vunpack.c.l.b16 %v194
    %v1034 = vunpack.c.l.b16 %v195
    %v1035 = vunpack.c.h.b16 %v195
    %v1036 = vunpack.c.l.b16 %v196
    %v1037 = vunpack.c.h.b16 %v196
    %v1038 = vunpack.c.l.b16 %v197
    %v1039 = vunpack.c.h.b16 %v197
    %v1040 = vunpack.c.l.b16 %v198
    %v1041 = vunpack.c.l.b16 %v199
    %v1042 = vunpack.c.h.b16 %v199
    %v1043 = vunpack.c.l.b16 %v200
    %v1044 = vunpack.c.h.b16 %v200
    %v1045 = vunpack.c.l.b16 %v201
    %v1046 = vunpack.c.h.b16 %v201
    %v1047 = vunpack.c.l.b16 %v202
    %v1048 = vunpack.c.l.b16 %v203
    %v1049 = vunpack.c.h.b16 %v203
    %v1050 = vunpack.c.l.b16 %v204
    %v1051 = vunpack.c.h.b16 %v204
    %v1052 = vunpack.c.l.b16 %v205
    %v1053 = vunpack.c.h.b16 %v205
    %v1054 = vunpack.c.l.b16 %v206
    %v1055 = vunpack.c.l.b16 %v207
    %v1056 = vunpack.c.h.b16 %v207
    %v1057 = vunpack.c.l.b16 %v208
    %v1058 = vunpack.c.h.b16 %v208
    %v1059 = vunpack.c.l.b16 %v209
    %v1060 = vunpack.c.h.b16 %v209
    %v1061 = vunpack.c.l.b16 %v210
    %v1062 = vunpack.c.l.b16 %v211
    %v1063 = vunpack.c.h.b16 %v211
    %v1064 = vunpack.c.l.b16 %v212
    %v1065 = vunpack.c.h.b16 %v212
    %v1066 = vunpack.c.l.b16 %v213
    %v1067 = vunpack.c.h.b16 %v213
    %v1068 = vunpack.c.l.b16 %v214
    %v1069 = vunpack.c.l.b16 %v215
    %v1070 = vunpack.c.h.b16 %v215
    %v1071 = vunpack.c.l.b16 %v216
    %v1072 = vunpack.c.h.b16 %v216
    %v1073 = vunpack.c.l.b16 %v217
    %v1074 = vunpack.c.h.b16 %v217
    %v1075 = vunpack.c.l.b16 %v218
    %v1076 = vunpack.c.l.b16 %v219
    %v1077 = vunpack.c.h.b16 %v219
    %v1078 = vunpack.c.l.b16 %v220
    %v1079 = vunpack.c.h.b16 %v220
    %v1080 = vunpack.c.l.b16 %v221
    %v1081 = vunpack.c.h.b16 %v221
    %v1082 = vunpack.c.l.b16 %v222
    %v1083 = vunpack.c.l.b16 %v223
    %v1084 = vunpack.c.h.b16 %v223
    %v1085 = vunpack.c.l.b16 %v224
    %v1086 = vunpack.c.h.b16 %v224
    %v1087 = vunpack.c.l.b16 %v225
    %v1088 = vunpack.c.h.b16 %v225
    %v1089 = vunpack.c.l.b16 %v226
    %v1090 = vunpack.c.l.b16 %v227
    %v1091 = vunpack.c.h.b16 %v227
    %v1092 = vunpack.c.l.b16 %v228
    %v1093 = vunpack.c.h.b16 %v228
    %v1094 = vunpack.c.l.b16 %v229
    %v1095 = vunpack.c.h.b16 %v229
    %v1096 = vunpack.c.l.b16 %v230
    %v1097 = vunpack.c.l.b16 %v231
    %v1098 = vunpack.c.h.b16 %v231
    %v1099 = vunpack.c.l.b16 %v232
    %v1100 = vunpack.c.h.b16 %v232
    %v1101 = vunpack.c.l.b16 %v233
    %v1102 = vunpack.c.h.b16 %v233
    %v1103 = vunpack.c.l.b16 %v234
    %v1104 = vunpack.c.l.b16 %v235
    %v1105 = vunpack.c.h.b16 %v235
    %v1106 = vunpack.c.l.b16 %v236
    %v1107 = vunpack.c.h.b16 %v236
    %v1108 = vunpack.c.l.b16 %v237
    %v1109 = vunpack.c.h.b16 %v237
    %v1110 = vunpack.c.l.b16 %v238
    %v1111 = vunpack.c.l.b16 %v239
    %v1112 = vunpack.c.h.b16 %v239
    %v1113 = vunpack.c.l.b16 %v240
    %v1114 = vunpack.c.h.b16 %v240
    %v1115 = vunpack.c.l.b16 %v241
    %v1116 = vunpack.c.h.b16 %v241
    %v1117 = vunpack.c.l.b16 %v242
    %v1118 = vunpack.c.l.b16 %v243
    %v1119 = vunpack.c.h.b16 %v243
    %v1120 = vunpack.c.l.b16 %v244
    %v1121 = vunpack.c.h.b16 %v244
    %v1122 = vunpack.c.l.b16 %v245
    %v1123 = vunpack.c.h.b16 %v245
    %v1124 = vunpack.c.l.b16 %v246
    %v1125 = vunpack.c.l.b16 %v247
    %v1126 = vunpack.c.h.b16 %v247
    %v1127 = vunpack.c.l.b16 %v248
    %v1128 = vunpack.c.h.b16 %v248
    %v1129 = vunpack.c.l.b16 %v249
    %v1130 = vunpack.c.h.b16 %v249
    %v1131 = vunpack.c.l.b16 %v250
    %v1132 = vunpack.c.l.b16 %v251
    %v1133 = vunpack.c.h.b16 %v251
    %v1134 = vunpack.c.l.b16 %v252
    %v1135 = vunpack.c.h.b16 %v252
    %v1136 = vunpack.c.l.b16 %v253
    %v1137 = vunpack.c.h.b16 %v253
    %v1138 = vunpack.c.l.b16 %v254
    %v1139 = vunpack.c.l.b16 %v255
    %v1140 = vunpack.c.h.b16 %v255
    %v1141 = vunpack.c.l.b16 %v256
    %v1142 = vunpack.c.h.b16 %v256
    %v1143 = vunpack.c.l.b16 %v257
    %v1144 = vunpack.c.h.b16 %v257
    %v1145 = vunpack.c.l.b16 %v258
    %v1146 = vunpack.c.l.b16 %v259
    %v1147 = vunpack.c.h.b16 %v259
    %v1148 = vunpack.c.l.b16 %v260
    %v1149 = vunpack.c.h.b16 %v260
    %v1150 = vunpack.c.l.b16 %v261
    %v1151 = vunpack.c.h.b16 %v261
    %v1152 = vunpack.c.l.b16 %v262
    %v1153 = vunpack.c.l.b16 %v263
    %v1154 = vunpack.c.h.b16 %v263
    %v1155 = vunpack.c.l.b16 %v264
    %v1156 = vunpack.c.h.b16 %v264
    %v1157 = vunpack.c.l.b16 %v265
    %v1158 = vunpack.c.h.b16 %v265
    %v1159 = vunpack.c.l.b16 %v266
    %v1160 = vunpack.c.l.b16 %v267
    %v1161 = vunpack.c.h.b16 %v267
    %v1162 = vunpack.c.l.b16 %v268
    %v1163 = vunpack.c.h.b16 %v268
    %v1164 = vunpack.c.l.b16 %v269
    %v1165 = vunpack.c.h.b16 %v269
    %v1166 = vunpack.c.l.b16 %v270
    %v1167 = vunpack.c.l.b16 %v271
    %v1168 = vunpack.c.h.b16 %v271
    %v1169 = vunpack.c.l.b16 %v272
    %v1170 = vunpack.c.h.b16 %v272
    %v1171 = vunpack.c.l.b16 %v273
    %v1172 = vunpack.c.h.b16 %v273
    %v1173 = vunpack.c.l.b16 %v274
    %v1174 = vunpack.c.l.b16 %v275
    %v1175 = vunpack.c.h.b16 %v275
    %v1176 = vunpack.c.l.b16 %v276
    %v1177 = vunpack.c.h.b16 %v276
    %v1178 = vunpack.c.l.b16 %v277
    %v1179 = vunpack.c.h.b16 %v277
    %v1180 = vunpack.c.l.b16 %v278
    %v1181 = vunpack.c.l.b16 %v279
    %v1182 = vunpack.c.h.b16 %v279
    %v1183 = vunpack.c.l.b16 %v280
    %v1184 = vunpack.c.h.b16 %v280
    %v1185 = vunpack.c.l.b16 %v281
    %v1186 = vunpack.c.h.b16 %v281
    %v1187 = vunpack.c.l.b16 %v282
    %v1188 = vunpack.c.l.b16 %v283
    %v1189 = vunpack.c.h.b16 %v283
    %v1190 = vunpack.c.l.b16 %v284
    %v1191 = vunpack.c.h.b16 %v284
    %v1192 = vunpack.c.l.b16 %v285
    %v1193 = vunpack.c.h.b16 %v285
    %v1194 = vunpack.c.l.b16 %v286
    %v1195 = vunpack.c.l.b16 %v287
    %v1196 = vunpack.c.h.b16 %v287
    %v1197 = vunpack.c.l.b16 %v288
    %v1198 = vunpack.c.h.b16 %v288
    %v1199 = vunpack.c.l.b16 %v289
    %v1200 = vunpack.c.h.b16 %v289
    %v1201 = vunpack.c.l.b16 %v290
    %v1202 = vunpack.c.l.b16 %v291
    %v1203 = vunpack.c.h.b16 %v291
    %v1204 = vunpack.c.l.b16 %v292
    %v1205 = vunpack.c.h.b16 %v292
    %v1206 = vunpack.c.l.b16 %v293
    %v1207 = vunpack.c.h.b16 %v293
    %v1208 = vunpack.c.l.b16 %v294
    %v1209 = vunpack.c.l.b16 %v295
    %v1210 = vunpack.c.h.b16 %v295
    %v1211 = vunpack.c.l.b16 %v296
    %v1212 = vunpack.c.h.b16 %v296
    %v1213 = vunpack.c.l.b16 %v297
    %v1214 = vunpack.c.h.b16 %v297
    %v1215 = vunpack.c.l.b16 %v298
    %v1216 = vunpack.c.l.b16 %v299
    %v1217 = vunpack.c.h.b16 %v299
    %v1218 = vunpack.c.l.b16 %v300
    %v1219 = vunpack.c.h.b16 %v300
    %v1220 = vunpack.c.l.b16 %v301
    %v1221 = vunpack.c.h.b16 %v301
    %v1222 = vunpack.c.l.b16 %v302
    %v1223 = vunpack.c.l.b16 %v303
    %v1224 = vunpack.c.h.b16 %v303
    %v1225 = vunpack.c.l.b16 %v304
    %v1226 = vunpack.c.h.b16 %v304
    %v1227 = vunpack.c.l.b16 %v305
    %v1228 = vunpack.c.h.b16 %v305
    %v1229 = vunpack.c.l.b16 %v306
    %v1230 = vunpack.c.l.b16 %v307
    %v1231 = vunpack.c.h.b16 %v307
    %v1232 = vunpack.c.l.b16 %v308
    %v1233 = vunpack.c.h.b16 %v308
    %v1234 = vunpack.c.l.b16 %v309
    %v1235 = vunpack.c.h.b16 %v309
    %v1236 = vunpack.c.l.b16 %v310
    %v1237 = vunpack.c.l.b16 %v311
    %v1238 = vunpack.c.h.b16 %v311
    %v1239 = vunpack.c.l.b16 %v312
    %v1240 = vunpack.c.h.b16 %v312
    %v1241 = vunpack.c.l.b16 %v313
    %v1242 = vunpack.c.h.b16 %v313
    %v1243 = vunpack.c.l.b16 %v314
    %v1244 = vunpack.c.l.b16 %v315
    %v1245 = vunpack.c.h.b16 %v315
    %v1246 = vunpack.c.l.b16 %v316
    %v1247 = vunpack.c.h.b16 %v316
    %v1248 = vunpack.c.l.b16 %v317
    %v1249 = vunpack.c.h.b16 %v317
    %v1250 = vunpack.c.l.b16 %v318
    %v1251 = vunpack.c.l.b16 %v319
    %v1252 = vunpack.c.h.b16 %v319
    %v1253 = vunpack.c.l.b16 %v320
    %v1254 = vunpack.c.h.b16 %v320
    %v1255 = vunpack.c.l.b16 %v321
    %v1256 = vunpack.c.h.b16 %v321
    %v1257 = vunpack.c.l.b16 %v322
    %v1258 = vunpack.c.l.b16 %v323
    %v1259 = vunpack.c.h.b16 %v323
    %v1260 = vunpack.c.l.b16 %v324
    %v1261 = vunpack.c.h.b16 %v324
    %v1262 = vunpack.c.l.b16 %v325
    %v1263 = vunpack.c.h.b16 %v325
    %v1264 = vunpack.c.l.b16 %v326
    %v1265 = vunpack.c.l.b16 %v327
    %v1266 = vunpack.c.h.b16 %v327
    %v1267 = vunpack.c.l.b16 %v328
    %v1268 = vunpack.c.h.b16 %v328
    %v1269 = vunpack.c.l.b16 %v329
    %v1270 = vunpack.c.h.b16 %v329
    %v1271 = vunpack.c.l.b16 %v330
    %v1272 = vunpack.c.l.b16 %v331
    %v1273 = vunpack.c.h.b16 %v331
    %v1274 = vunpack.c.l.b16 %v332
    %v1275 = vunpack.c.h.b16 %v332
    %v1276 = vunpack.c.l.b16 %v333
    %v1277 = vunpack.c.h.b16 %v333
    %v1278 = vunpack.c.l.b16 %v334
    %v1279 = vunpack.c.l.b16 %v335
    %v1280 = vunpack.c.h.b16 %v335
    %v1281 = vunpack.c.l.b16 %v336
    %v1282 = vunpack.c.h.b16 %v336
    %v1283 = vunpack.c.l.b16 %v337
    %v1284 = vunpack.c.h.b16 %v337
    %v1285 = vunpack.c.l.b16 %v338
    %v1286 = vunpack.c.l.b16 %v339
    %v1287 = vunpack.c.h.b16 %v339
    %v1288 = vunpack.c.l.b16 %v340
    %v1289 = vunpack.c.h.b16 %v340
    %v1290 = vunpack.c.l.b16 %v341
    %v1291 = vunpack.c.h.b16 %v341
    %v1292 = vunpack.c.l.b16 %v342
    %v1293 = vunpack.c.l.b16 %v343
    %v1294 = vunpack.c.h.b16 %v343
    %v1295 = vunpack.c.l.b16 %v344
    %v1296 = vunpack.c.h.b16 %v344
    %v1297 = vunpack.c.l.b16 %v345
    %v1298 = vunpack.c.h.b16 %v345
    %v1299 = vunpack.c.l.b16 %v346
    %v1300 = vunpack.c.l.b16 %v347
    %v1301 = vunpack.c.h.b16 %v347
    %v1302 = vunpack.c.l.b16 %v348
    %v1303 = vunpack.c.h.b16 %v348
    %v1304 = vunpack.c.l.b16 %v349
    %v1305 = vunpack.c.h.b16 %v349
    %v1306 = vunpack.c.l.b16 %v350
    %v1307 = vunpack.c.l.b16 %v351
    %v1308 = vunpack.c.h.b16 %v351
    %v1309 = vunpack.c.l.b16 %v352
    %v1310 = vunpack.c.h.b16 %v352
    %v1311 = vunpack.c.l.b16 %v353
    %v1312 = vunpack.c.h.b16 %v353
    %v1313 = vunpack.c.l.b16 %v354
    %v1314 = vunpack.c.l.b16 %v355
    %v1315 = vunpack.c.h.b16 %v355
    %v1316 = vunpack.c.l.b16 %v356
    %v1317 = vunpack.c.h.b16 %v356
    %v1318 = vunpack.c.l.b16 %v357
    %v1319 = vunpack.c.h.b16 %v357
    %v1320 = vunpack.c.l.b16 %v358
    %v1321 = vunpack.c.l.b16 %v359
    %v1322 = vunpack.c.h.b16 %v359
    %v1323 = vunpack.c.l.b16 %v360
    %v1324 = vunpack.c.h.b16 %v360
    %v1325 = vunpack.c.l.b16 %v361
    %v1326 = vunpack.c.h.b16 %v361
    %v1327 = vunpack.c.l.b16 %v362
    %v1328 = vunpack.c.l.b16 %v363
    %v1329 = vunpack.c.h.b16 %v363
    %v1330 = vunpack.c.l.b16 %v364
    %v1331 = vunpack.c.h.b16 %v364
    %v1332 = vunpack.c.l.b16 %v365
    %v1333 = vunpack.c.h.b16 %v365
    %v1334 = vunpack.c.l.b16 %v366
    %v1335 = vunpack.c.l.b16 %v367
    %v1336 = vunpack.c.h.b16 %v367
    %v1337 = vunpack.c.l.b16 %v368
    %v1338 = vunpack.c.h.b16 %v368
    %v1339 = vunpack.c.l.b16 %v369
    %v1340 = vunpack.c.h.b16 %v369
    %v1341 = vunpack.c.l.b16 %v370
    %v1342 = vunpack.c.l.b16 %v371
    %v1343 = vunpack.c.h.b16 %v371
    %v1344 = vunpack.c.l.b16 %v372
    %v1345 = vunpack.c.h.b16 %v372
    %v1346 = vunpack.c.l.b16 %v373
    %v1347 = vunpack.c.h.b16 %v373
    %v1348 = vunpack.c.l.b16 %v374
    %v1349 = vunpack.c.l.b16 %v375
    %v1350 = vunpack.c.h.b16 %v375
    %v1351 = vunpack.c.l.b16 %v376
    %v1352 = vunpack.c.h.b16 %v376
    %v1353 = vunpack.c.l.b16 %v377
    %v1354 = vunpack.c.h.b16 %v377
    %v1355 = vunpack.c.l.b16 %v378
    %v1356 = vunpack.c.l.b16 %v379
    %v1357 = vunpack.c.h.b16 %v379
    %v1358 = vunpack.c.l.b16 %v380
    %v1359 = vunpack.c.h.b16 %v380
    %v1360 = vunpack.c.l.b16 %v381
    %v1361 = vunpack.c.h.b16 %v381
    %v1362 = vunpack.c.l.b16 %v382
    %v1363 = vunpack.c.l.b16 %v383
    %v1364 = vunpack.c.h.b16 %v383
    %v1365 = vunpack.c.l.b16 %v384
    %v1366 = vunpack.c.h.b16 %v384
    %v1367 = vunpack.c.l.b16 %v385
    %v1368 = vunpack.c.h.b16 %v385
    %v1369 = vunpack.c.l.b16 %v386
    %v1370 = vunpack.c.l.b16 %v387
    %v1371 = vunpack.c.h.b16 %v387
    %v1372 = vunpack.c.l.b16 %v388
    %v1373 = vunpack.c.h.b16 %v388
    %v1374 = vunpack.c.l.b16 %v389
    %v1375 = vunpack.c.h.b16 %v389
    %v1376 = vunpack.c.l.b16 %v390
    %v1377 = vunpack.c.l.b16 %v391
    %v1378 = vunpack.c.h.b16 %v391
    %v1379 = vunpack.c.l.b16 %v392
    %v1380 = vunpack.c.h.b16 %v392
    %v1381 = vunpack.c.l.b16 %v393
    %v1382 = vunpack.c.h.b16 %v393
    %v1383 = vunpack.c.l.b16 %v394
    %v1384 = vunpack.c.l.b16 %v395
    %v1385 = vunpack.c.h.b16 %v395
    %v1386 = vunpack.c.l.b16 %v396
    %v1387 = vunpack.c.h.b16 %v396
    %v1388 = vunpack.c.l.b16 %v397
    %v1389 = vunpack.c.h.b16 %v397
    %v1390 = vunpack.c.l.b16 %v398
    %v1391 = vunpack.c.l.b16 %v399
    %v1392 = vunpack.c.h.b16 %v399
    %v1393 = vunpack.c.l.b16 %v400
    %v1394 = vunpack.c.h.b16 %v400
    %v1395 = vunpack.c.l.b16 %v401
    %v1396 = vunpack.c.h.b16 %v401
    %v1397 = vunpack.c.l.b16 %v402
    %v1398 = vunpack.c.l.b16 %v403
    %v1399 = vunpack.c.h.b16 %v403
    %v1400 = vunpack.c.l.b16 %v404
    %v1401 = vunpack.c.h.b16 %v404
    %v1402 = vunpack.c.l.b16 %v405
    %v1403 = vunpack.c.h.b16 %v405
    %v1404 = vunpack.c.l.b16 %v406
    %v1405 = vunpack.c.l.b16 %v407
    %v1406 = vunpack.c.h.b16 %v407
    %v1407 = vunpack.c.l.b16 %v408
    %v1408 = vunpack.c.h.b16 %v408
    %v1409 = vunpack.c.l.b16 %v409
    %v1410 = vunpack.c.h.b16 %v409
    %v1411 = vunpack.c.l.b16 %v410
    %v1412 = vunpack.c.l.b16 %v411
    %v1413 = vunpack.c.h.b16 %v411
    %v1414 = vunpack.c.l.b16 %v412
    %v1415 = vunpack.c.h.b16 %v412
    %v1416 = vunpack.c.l.b16 %v413
    %v1417 = vunpack.c.h.b16 %v413
    %v1418 = vunpack.c.l.b16 %v414
    %v1419 = vunpack.c.l.b16 %v415
    %v1420 = vunpack.c.h.b16 %v415
    %v1421 = vunpack.c.l.b16 %v416
    %v1422 = vunpack.c.h.b16 %v416
    %v1423 = vunpack.c.l.b16 %v417
    %v1424 = vunpack.c.h.b16 %v417
    %v1425 = vunpack.c.l.b16 %v418
    %v1426 = vunpack.c.l.b16 %v419
    %v1427 = vunpack.c.h.b16 %v419
    %v1428 = vunpack.c.l.b16 %v420
    %v1429 = vunpack.c.h.b16 %v420
    %v1430 = vunpack.c.l.b16 %v421
    %v1431 = vunpack.c.h.b16 %v421
    %v1432 = vunpack.c.l.b16 %v422
    %v1433 = vunpack.c.l.b16 %v423
    %v1434 = vunpack.c.h.b16 %v423
    %v1435 = vunpack.c.l.b16 %v424
    %v1436 = vunpack.c.h.b16 %v424
    %v1437 = vunpack.c.l.b16 %v425
    %v1438 = vunpack.c.h.b16 %v425
    %v1439 = vunpack.c.l.b16 %v426
    %v1440 = vunpack.c.l.b16 %v427
    %v1441 = vunpack.c.h.b16 %v427
    %v1442 = vunpack.c.l.b16 %v428
    %v1443 = vunpack.c.h.b16 %v428
    %v1444 = vunpack.c.l.b16 %v429
    %v1445 = vunpack.c.h.b16 %v429
    %v1446 = vunpack.c.l.b16 %v430
    %v1447 = vunpack.c.l.b16 %v431
    %v1448 = vunpack.c.h.b16 %v431
    %v1449 = vunpack.c.l.b16 %v432
    %v1450 = vunpack.c.h.b16 %v432
    %v1451 = vunpack.c.l.b16 %v433
    %v1452 = vunpack.c.h.b16 %v433
    %v1453 = vunpack.c.l.b16 %v434
    %v1454 = vunpack.c.l.b16 %v435
    %v1455 = vunpack.c.h.b16 %v435
    %v1456 = vunpack.c.l.b16 %v436
    %v1457 = vunpack.c.h.b16 %v436
    %v1458 = vunpack.c.l.b16 %v437
    %v1459 = vunpack.c.h.b16 %v437
    %v1460 = vunpack.c.l.b16 %v438
    %v1461 = vunpack.c.l.b16 %v439
    %v1462 = vunpack.c.h.b16 %v439
    %v1463 = vunpack.c.l.b16 %v440
    %v1464 = vunpack.c.h.b16 %v440
    %v1465 = vunpack.c.l.b16 %v441
    %v1466 = vunpack.c.h.b16 %v441
    %v1467 = vunpack.c.l.b16 %v442
    %v1468 = vunpack.c.l.b16 %v443
    %v1469 = vunpack.c.h.b16 %v443
    %v1470 = vunpack.c.l.b16 %v444
    %v1471 = vunpack.c.h.b16 %v444
    %v1472 = vunpack.c.l.b16 %v445
    %v1473 = vunpack.c.h.b16 %v445
    %v1474 = vunpack.c.l.b16 %v446
    %v1475 = vunpack.c.l.b16 %v447
    %v1476 = vunpack.c.h.b16 %v447
    %v1477 = vunpack.c.l.b16 %v448
    %v1478 = vunpack.c.h.b16 %v448
    %v1479 = vunpack.c.l.b16 %v449
    %v1480 = vunpack.c.h.b16 %v449
    %v1481 = vunpack.c.l.b16 %v450
    %v1482 = vunpack.c.l.b16 %v451
    %v1483 = vunpack.c.h.b16 %v451
    %v1484 = vunpack.c.l.b16 %v452
    %v1485 = vunpack.c.h.b16 %v452
    %v1486 = vunpack.c.l.b16 %v453
    %v1487 = vunpack.c.h.b16 %v453
    %v1488 = vunpack.c.l.b16 %v454
    %v1489 = vunpack.c.l.b16 %v455
    %v1490 = vunpack.c.h.b16 %v455
    %v1491 = vunpack.c.l.b16 %v456
    %v1492 = vunpack.c.h.b16 %v456
    %v1493 = vunpack.c.l.b16 %v457
    %v1494 = vunpack.c.h.b16 %v457
    %v1495 = vunpack.c.l.b16 %v458
    %v1496 = vunpack.c.l.b16 %v459
    %v1497 = vunpack.c.h.b16 %v459
    %v1498 = vunpack.c.l.b16 %v460
    %v1499 = vunpack.c.h.b16 %v460
    %v1500 = vunpack.c.l.b16 %v461
    %v1501 = vunpack.c.h.b16 %v461
    %v1502 = vunpack.c.l.b16 %v462
    %v1503 = vunpack.c.l.b16 %v463
    %v1504 = vunpack.c.h.b16 %v463
    %v1505 = vunpack.c.l.b16 %v464
    %v1506 = vunpack.c.h.b16 %v464
    %v1507 = vunpack.c.l.b16 %v465
    %v1508 = vunpack.c.h.b16 %v465
    %v1509 = vunpack.c.l.b16 %v466
    %v1510 = vunpack.c.l.b16 %v467
    %v1511 = vunpack.c.h.b16 %v467
    %v1512 = vunpack.c.l.b16 %v468
    %v1513 = vunpack.c.h.b16 %v468
    %v1514 = vunpack.c.l.b16 %v469
    %v1515 = vunpack.c.h.b16 %v469
    %v1516 = vunpack.c.l.b16 %v470
    %v1517 = vunpack.c.l.b16 %v471
    %v1518 = vunpack.c.h.b16 %v471
    %v1519 = vunpack.c.l.b16 %v472
    %v1520 = vunpack.c.h.b16 %v472
    %v1521 = vunpack.c.l.b16 %v473
    %v1522 = vunpack.c.h.b16 %v473
    %v1523 = vunpack.c.l.b16 %v474
    %v1524 = vunpack.c.l.b16 %v475
    %v1525 = vunpack.c.h.b16 %v475
    %v1526 = vunpack.c.l.b16 %v476
    %v1527 = vunpack.c.h.b16 %v476
    %v1528 = vunpack.c.l.b16 %v477
    %v1529 = vunpack.c.h.b16 %v477
    %v1530 = vunpack.c.l.b16 %v478
    %v1531 = vunpack.c.l.b16 %v479
    %v1532 = vunpack.c.h.b16 %v479
    %v1533 = vunpack.c.l.b16 %v480
    %v1534 = vunpack.c.h.b16 %v480
    %v1535 = vunpack.c.l.b16 %v481
    %v1536 = vunpack.c.h.b16 %v481
    %v1537 = vunpack.c.l.b16 %v482
    %v1538 = vunpack.c.l.b16 %v483
    %v1539 = vunpack.c.h.b16 %v483
    %v1540 = vunpack.c.l.b16 %v484
    %v1541 = vunpack.c.h.b16 %v484
    %v1542 = vunpack.c.l.b16 %v485
    %v1543 = vunpack.c.h.b16 %v485
    %v1544 = vunpack.c.l.b16 %v486
    %v1545 = vunpack.c.l.b16 %v487
    %v1546 = vunpack.c.h.b16 %v487
    %v1547 = vunpack.c.l.b16 %v488
    %v1548 = vunpack.c.h.b16 %v488
    %v1549 = vunpack.c.l.b16 %v489
    %v1550 = vunpack.c.h.b16 %v489
    %v1551 = vunpack.c.l.b16 %v490
    %v1552 = vunpack.c.l.b16 %v491
    %v1553 = vunpack.c.h.b16 %v491
    %v1554 = vunpack.c.l.b16 %v492
    %v1555 = vunpack.c.h.b16 %v492
    %v1556 = vunpack.c.l.b16 %v493
    %v1557 = vunpack.c.h.b16 %v493
    %v1558 = vunpack.c.l.b16 %v494
    %v1559 = vunpack.c.l.b16 %v495
    %v1560 = vunpack.c.h.b16 %v495
    %v1561 = vunpack.c.l.b16 %v496
    %v1562 = vunpack.c.h.b16 %v496
    %v1563 = vunpack.c.l.b16 %v497
    %v1564 = vunpack.c.h.b16 %v497
    %v1565 = vunpack.c.l.b16 %v498
    %v1566 = vunpack.c.l.b16 %v499
    %v1567 = vunpack.c.h.b16 %v499
    %v1568 = vunpack.c.l.b16 %v500
    %v1569 = vunpack.c.h.b16 %v500
    %v1570 = vunpack.c.l.b16 %v501
    %v1571 = vunpack.c.h.b16 %v501
    %v1572 = vunpack.c.l.b16 %v502
    %v1573 = vunpack.c.l.b16 %v503
    %v1574 = vunpack.c.h.b16 %v503
    %v1575 = vunpack.c.l.b16 %v504
    %v1576 = vunpack.c.h.b16 %v504
    %v1577 = vunpack.c.l.b16 %v505
    %v1578 = vunpack.c.h.b16 %v505
    %v1579 = vunpack.c.l.b16 %v506
    %v1580 = vunpack.c.l.b16 %v507
    %v1581 = vunpack.c.h.b16 %v507
    %v1582 = vunpack.c.l.b16 %v508
    %v1583 = vunpack.c.h.b16 %v508
    %v1584 = vunpack.c.l.b16 %v509
    %v1585 = vunpack.c.h.b16 %v509
    %v1586 = vunpack.c.l.b16 %v510
    %v1587 = vunpack.c.l.b16 %v511
    %v1588 = vunpack.c.h.b16 %v511
    %v1589 = vunpack.c.l.b16 %v512
    %v1590 = vunpack.c.h.b16 %v512
    %v1591 = vunpack.c.l.b16 %v513
    %v1592 = vunpack.c.h.b16 %v513
    %v1593 = vunpack.c.l.b16 %v514
    %v1594 = vunpack.c.l.b16 %v515
    %v1595 = vunpack.c.h.b16 %v515
    %v1596 = vunpack.c.l.b16 %v516
    %v1597 = vunpack.c.h.b16 %v516
    %v1598 = vunpack.c.l.b16 %v517
    %v1599 = vunpack.c.h.b16 %v517
    %v1600 = vunpack.c.l.b16 %v518
    %v1601 = vunpack.c.l.b16 %v519
    %v1602 = vunpack.c.h.b16 %v519
    %v1603 = vunpack.c.l.b16 %v520
    %v1604 = vunpack.c.h.b16 %v520
    %v1605 = vunpack.c.l.b16 %v521
    %v1606 = vunpack.c.h.b16 %v521
    %v1607 = vunpack.c.l.b16 %v522
    %v1608 = vunpack.c.l.b16 %v523
    %v1609 = vunpack.c.h.b16 %v523
    %v1610 = vunpack.c.l.b16 %v524
    %v1611 = vunpack.c.h.b16 %v524
    %v1612 = vunpack.c.l.b16 %v525
    %v1613 = vunpack.c.h.b16 %v525
    %v1614 = vunpack.c.l.b16 %v526
    %v1615 = vunpack.c.l.b16 %v527
    %v1616 = vunpack.c.h.b16 %v527
    %v1617 = vunpack.c.l.b16 %v528
    %v1618 = vunpack.c.h.b16 %v528
    %v1619 = vunpack.c.l.b16 %v529
    %v1620 = vunpack.c.h.b16 %v529
    %v1621 = vunpack.c.l.b16 %v530
    %v1622 = vunpack.c.l.b16 %v531
    %v1623 = vunpack.c.h.b16 %v531
    %v1624 = vunpack.c.l.b16 %v532
    %v1625 = vunpack.c.h.b16 %v532
    %v1626 = vunpack.c.l.b16 %v533
    %v1627 = vunpack.c.h.b16 %v533
    %v1628 = vunpack.c.l.b16 %v534
    %v1629 = vpack.c.b16 %v950, %v943
    %v1630 = vpack.c.b16 %v951, %v944
    %v1631 = vpack.c.b16 %v952, %v945
    %v1632 = vpack.c.b16 %v953, %v946
    %v1633 = vpack.c.b16 %v954, %v947
    %v1634 = vpack.c.b16 %v955, %v948
    %v1635 = vpack.c.b16 %v956, %v949
    %v1636 = vpack.c.b16 %v964, %v957
    %v1637 = vpack.c.b16 %v965, %v958
    %v1638 = vpack.c.b16 %v966, %v959
    %v1639 = vpack.c.b16 %v967, %v960
    %v1640 = vpack.c.b16 %v968, %v961
    %v1641 = vpack.c.b16 %v969, %v962
    %v1642 = vpack.c.b16 %v970, %v963
    %v1643 = vpack.c.b16 %v978, %v971
    %v1644 = vpack.c.b16 %v979, %v972
    %v1645 = vpack.c.b16 %v980, %v973
    %v1646 = vpack.c.b16 %v981, %v974
    %v1647 = vpack.c.b16 %v982, %v975
    %v1648 = vpack.c.b16 %v983, %v976
    %v1649 = vpack.c.b16 %v984, %v977
    %v1650 = vpack.c.b16 %v992, %v985
    %v1651 = vpack.c.b16 %v993, %v986
    %v1652 = vpack.c.b16 %v994, %v987
    %v1653 = vpack.c.b16 %v995, %v988
    %v1654 = vpack.c.b16 %v996, %v989
    %v1655 = vpack.c.b16 %v997, %v990
    %v1656 = vpack.c.b16 %v998, %v991
    %v1657 = vpack.c.b16 %v1006, %v999
    %v1658 = vpack.c.b16 %v1007, %v1000
    %v1659 = vpack.c.b16 %v1008, %v1001
    %v1660 = vpack.c.b16 %v1009, %v1002
    %v1661 = vpack.c.b16 %v1010, %v1003
    %v1662 = vpack.c.b16 %v1011, %v1004
    %v1663 = vpack.c.b16 %v1012, %v1005
    %v1664 = vpack.c.b16 %v1020, %v1013
    %v1665 = vpack.c.b16 %v1021, %v1014
    %v1666 = vpack.c.b16 %v1022, %v1015
    %v1667 = vpack.c.b16 %v1023, %v1016
    %v1668 = vpack.c.b16 %v1024, %v1017
    %v1669 = vpack.c.b16 %v1025, %v1018
    %v1670 = vpack.c.b16 %v1026, %v1019
    %v1671 = vpack.c.b16 %v1034, %v1027
    %v1672 = vpack.c.b16 %v1035, %v1028
    %v1673 = vpack.c.b16 %v1036, %v1029
    %v1674 = vpack.c.b16 %v1037, %v1030
    %v1675 = vpack.c.b16 %v1038, %v1031
    %v1676 = vpack.c.b16 %v1039, %v1032
    %v1677 = vpack.c.b16 %v1040, %v1033
    %v1678 = vpack.c.b16 %v1048, %v1041
    %v1679 = vpack.c.b16 %v1049, %v1042
    %v1680 = vpack.c.b16 %v1050, %v1043
    %v1681 = vpack.c.b16 %v1051, %v1044
    %v1682 = vpack.c.b16 %v1052, %v1045
    %v1683 = vpack.c.b16 %v1053, %v1046
    %v1684 = vpack.c.b16 %v1054, %v1047
    %v1685 = vpack.c.b16 %v1062, %v1055
    %v1686 = vpack.c.b16 %v1063, %v1056
    %v1687 = vpack.c.b16 %v1064, %v1057
    %v1688 = vpack.c.b16 %v1065, %v1058
    %v1689 = vpack.c.b16 %v1066, %v1059
    %v1690 = vpack.c.b16 %v1067, %v1060
    %v1691 = vpack.c.b16 %v1068, %v1061
    %v1692 = vpack.c.b16 %v1076, %v1069
    %v1693 = vpack.c.b16 %v1077, %v1070
    %v1694 = vpack.c.b16 %v1078, %v1071
    %v1695 = vpack.c.b16 %v1079, %v1072
    %v1696 = vpack.c.b16 %v1080, %v1073
    %v1697 = vpack.c.b16 %v1081, %v1074
    %v1698 = vpack.c.b16 %v1082, %v1075
    %v1699 = vpack.c.b16 %v1090, %v1083
    %v1700 = vpack.c.b16 %v1091, %v1084
    %v1701 = vpack.c.b16 %v1092, %v1085
    %v1702 = vpack.c.b16 %v1093, %v1086
    %v1703 = vpack.c.b16 %v1094, %v1087
    %v1704 = vpack.c.b16 %v1095, %v1088
    %v1705 = vpack.c.b16 %v1096, %v1089
    %v1706 = vpack.c.b16 %v1104, %v1097
    %v1707 = vpack.c.b16 %v1105, %v1098
    %v1708 = vpack.c.b16 %v1106, %v1099
    %v1709 = vpack.c.b16 %v1107, %v1100
    %v1710 = vpack.c.b16 %v1108, %v1101
    %v1711 = vpack.c.b16 %v1109, %v1102
    %v1712 = vpack.c.b16 %v1110, %v1103
    %v1713 = vpack.c.b16 %v1118, %v1111
    %v1714 = vpack.c.b16 %v1119, %v1112
    %v1715 = vpack.c.b16 %v1120, %v1113
    %v1716 = vpack.c.b16 %v1121, %v1114
    %v1717 = vpack.c.b16 %v1122, %v1115
    %v1718 = vpack.c.b16 %v1123, %v1116
    %v1719 = vpack.c.b16 %v1124, %v1117
    %v1720 = vpack.c.b16 %v1132, %v1125
    %v1721 = vpack.c.b16 %v1133, %v1126
    %v1722 = vpack.c.b16 %v1134, %v1127
    %v1723 = vpack.c.b16 %v1135, %v1128
    %v1724 = vpack.c.b16 %v1136, %v1129
    %v1725 = vpack.c.b16 %v1137, %v1130
    %v1726 = vpack.c.b16 %v1138, %v1131
    %v1727 = vpack.c.b16 %v1146, %v1139
    %v1728 = vpack.c.b16 %v1147, %v1140
    %v1729 = vpack.c.b16 %v1148, %v1141
    %v1730 = vpack.c.b16 %v1149, %v1142
    %v1731 = vpack.c.b16 %v1150, %v1143
    %v1732 = vpack.c.b16 %v1151, %v1144
    %v1733 = vpack.c.b16 %v1152, %v1145
    %v1734 = vpack.c.b16 %v1160, %v1153
    %v1735 = vpack.c.b16 %v1161, %v1154
    %v1736 = vpack.c.b16 %v1162, %v1155
    %v1737 = vpack.c.b16 %v1163, %v1156
    %v1738 = vpack.c.b16 %v1164, %v1157
    %v1739 = vpack.c.b16 %v1165, %v1158
    %v1740 = vpack.c.b16 %v1166, %v1159
    %v1741 = vpack.c.b16 %v1174, %v1167
    %v1742 = vpack.c.b16 %v1175, %v1168
    %v1743 = vpack.c.b16 %v1176, %v1169
    %v1744 = vpack.c.b16 %v1177, %v1170
    %v1745 = vpack.c.b16 %v1178, %v1171
    %v1746 = vpack.c.b16 %v1179, %v1172
    %v1747 = vpack.c.b16 %v1180, %v1173
    %v1748 = vpack.c.b16 %v1188, %v1181
    %v1749 = vpack.c.b16 %v1189, %v1182
    %v1750 = vpack.c.b16 %v1190, %v1183
    %v1751 = vpack.c.b16 %v1191, %v1184
    %v1752 = vpack.c.b16 %v1192, %v1185
    %v1753 = vpack.c.b16 %v1193, %v1186
    %v1754 = vpack.c.b16 %v1194, %v1187
    %v1755 = vpack.c.b16 %v1202, %v1195
    %v1756 = vpack.c.b16 %v1203, %v1196
    %v1757 = vpack.c.b16 %v1204, %v1197
    %v1758 = vpack.c.b16 %v1205, %v1198
    %v1759 = vpack.c.b16 %v1206, %v1199
    %v1760 = vpack.c.b16 %v1207, %v1200
    %v1761 = vpack.c.b16 %v1208, %v1201
    %v1762 = vpack.c.b16 %v1216, %v1209
    %v1763 = vpack.c.b16 %v1217, %v1210
    %v1764 = vpack.c.b16 %v1218, %v1211
    %v1765 = vpack.c.b16 %v1219, %v1212
    %v1766 = vpack.c.b16 %v1220, %v1213
    %v1767 = vpack.c.b16 %v1221, %v1214
    %v1768 = vpack.c.b16 %v1222, %v1215
    %v1769 = vpack.c.b16 %v1230, %v1223
    %v1770 = vpack.c.b16 %v1231, %v1224
    %v1771 = vpack.c.b16 %v1232, %v1225
    %v1772 = vpack.c.b16 %v1233, %v1226
    %v1773 = vpack.c.b16 %v1234, %v1227
    %v1774 = vpack.c.b16 %v1235, %v1228
    %v1775 = vpack.c.b16 %v1236, %v1229
    %v1776 = vpack.c.b16 %v1244, %v1237
    %v1777 = vpack.c.b16 %v1245, %v1238
    %v1778 = vpack.c.b16 %v1246, %v1239
    %v1779 = vpack.c.b16 %v1247, %v1240
    %v1780 = vpack.c.b16 %v1248, %v1241
    %v1781 = vpack.c.b16 %v1249, %v1242
    %v1782 = vpack.c.b16 %v1250, %v1243
    %v1783 = vpack.c.b16 %v1258, %v1251
    %v1784 = vpack.c.b16 %v1259, %v1252
    %v1785 = vpack.c.b16 %v1260, %v1253
    %v1786 = vpack.c.b16 %v1261, %v1254
    %v1787 = vpack.c.b16 %v1262, %v1255
    %v1788 = vpack.c.b16 %v1263, %v1256
    %v1789 = vpack.c.b16 %v1264, %v1257
    %v1790 = vpack.c.b16 %v1272, %v1265
    %v1791 = vpack.c.b16 %v1273, %v1266
    %v1792 = vpack.c.b16 %v1274, %v1267
    %v1793 = vpack.c.b16 %v1275, %v1268
    %v1794 = vpack.c.b16 %v1276, %v1269
    %v1795 = vpack.c.b16 %v1277, %v1270
    %v1796 = vpack.c.b16 %v1278, %v1271
    %v1797 = vpack.c.b16 %v1286, %v1279
    %v1798 = vpack.c.b16 %v1287, %v1280
    %v1799 = vpack.c.b16 %v1288, %v1281
    %v1800 = vpack.c.b16 %v1289, %v1282
    %v1801 = vpack.c.b16 %v1290, %v1283
    %v1802 = vpack.c.b16 %v1291, %v1284
    %v1803 = vpack.c.b16 %v1292, %v1285
    %v1804 = vpack.c.b16 %v1300, %v1293
    %v1805 = vpack.c.b16 %v1301, %v1294
    %v1806 = vpack.c.b16 %v1302, %v1295
    %v1807 = vpack.c.b16 %v1303, %v1296
    %v1808 = vpack.c.b16 %v1304, %v1297
    %v1809 = vpack.c.b16 %v1305, %v1298
    %v1810 = vpack.c.b16 %v1306, %v1299
    %v1811 = vpack.c.b16 %v1314, %v1307
    %v1812 = vpack.c.b16 %v1315, %v1308
    %v1813 = vpack.c.b16 %v1316, %v1309
    %v1814 = vpack.c.b16 %v1317, %v1310
    %v1815 = vpack.c.b16 %v1318, %v1311
    %v1816 = vpack.c.b16 %v1319, %v1312
    %v1817 = vpack.c.b16 %v1320, %v1313
    %v1818 = vpack.c.b16 %v1328, %v1321
    %v1819 = vpack.c.b16 %v1329, %v1322
    %v1820 = vpack.c.b16 %v1330, %v1323
    %v1821 = vpack.c.b16 %v1331, %v1324
    %v1822 = vpack.c.b16 %v1332, %v1325
    %v1823 = vpack.c.b16 %v1333, %v1326
    %v1824 = vpack.c.b16 %v1334, %v1327
    %v1825 = vpack.c.b16 %v1342, %v1335
    %v1826 = vpack.c.b16 %v1343, %v1336
    %v1827 = vpack.c.b16 %v1344, %v1337
    %v1828 = vpack.c.b16 %v1345, %v1338
    %v1829 = vpack.c.b16 %v1346, %v1339
    %v1830 = vpack.c.b16 %v1347, %v1340
    %v1831 = vpack.c.b16 %v1348, %v1341
    %v1832 = vpack.c.b16 %v1356, %v1349
    %v1833 = vpack.c.b16 %v1357, %v1350
    %v1834 = vpack.c.b16 %v1358, %v1351
    %v1835 = vpack.c.b16 %v1359, %v1352
    %v1836 = vpack.c.b16 %v1360, %v1353
    %v1837 = vpack.c.b16 %v1361, %v1354
    %v1838 = vpack.c.b16 %v1362, %v1355
    %v1839 = vpack.c.b16 %v1370, %v1363
    %v1840 = vpack.c.b16 %v1371, %v1364
    %v1841 = vpack.c.b16 %v1372, %v1365
    %v1842 = vpack.c.b16 %v1373, %v1366
    %v1843 = vpack.c.b16 %v1374, %v1367
    %v1844 = vpack.c.b16 %v1375, %v1368
    %v1845 = vpack.c.b16 %v1376, %v1369
    %v1846 = vpack.c.b16 %v1384, %v1377
    %v1847 = vpack.c.b16 %v1385, %v1378
    %v1848 = vpack.c.b16 %v1386, %v1379
    %v1849 = vpack.c.b16 %v1387, %v1380
    %v1850 = vpack.c.b16 %v1388, %v1381
    %v1851 = vpack.c.b16 %v1389, %v1382
    %v1852 = vpack.c.b16 %v1390, %v1383
    %v1853 = vpack.c.b16 %v1398, %v1391
    %v1854 = vpack.c.b16 %v1399, %v1392
    %v1855 = vpack.c.b16 %v1400, %v1393
    %v1856 = vpack.c.b16 %v1401, %v1394
    %v1857 = vpack.c.b16 %v1402, %v1395
    %v1858 = vpack.c.b16 %v1403, %v1396
    %v1859 = vpack.c.b16 %v1404, %v1397
    %v1860 = vpack.c.b16 %v1412, %v1405
    %v1861 = vpack.c.b16 %v1413, %v1406
    %v1862 = vpack.c.b16 %v1414, %v1407
    %v1863 = vpack.c.b16 %v1415, %v1408
    %v1864 = vpack.c.b16 %v1416, %v1409
    %v1865 = vpack.c.b16 %v1417, %v1410
    %v1866 = vpack.c.b16 %v1418, %v1411
    %v1867 = vpack.c.b16 %v1426, %v1419
    %v1868 = vpack.c.b16 %v1427, %v1420
    %v1869 = vpack.c.b16 %v1428, %v1421
    %v1870 = vpack.c.b16 %v1429, %v1422
    %v1871 = vpack.c.b16 %v1430, %v1423
    %v1872 = vpack.c.b16 %v1431, %v1424
    %v1873 = vpack.c.b16 %v1432, %v1425
    %v1874 = vpack.c.b16 %v1440, %v1433
    %v1875 = vpack.c.b16 %v1441, %v1434
    %v1876 = vpack.c.b16 %v1442, %v1435
    %v1877 = vpack.c.b16 %v1443, %v1436
    %v1878 = vpack.c.b16 %v1444, %v1437
    %v1879 = vpack.c.b16 %v1445, %v1438
    %v1880 = vpack.c.b16 %v1446, %v1439
    %v1881 = vpack.c.b16 %v1454, %v1447
    %v1882 = vpack.c.b16 %v1455, %v1448
    %v1883 = vpack.c.b16 %v1456, %v1449
    %v1884 = vpack.c.b16 %v1457, %v1450
    %v1885 = vpack.c.b16 %v1458, %v1451
    %v1886 = vpack.c.b16 %v1459, %v1452
    %v1887 = vpack.c.b16 %v1460, %v1453
    %v1888 = vpack.c.b16 %v1468, %v1461
    %v1889 = vpack.c.b16 %v1469, %v1462
    %v1890 = vpack.c.b16 %v1470, %v1463
    %v1891 = vpack.c.b16 %v1471, %v1464
    %v1892 = vpack.c.b16 %v1472, %v1465
    %v1893 = vpack.c.b16 %v1473, %v1466
    %v1894 = vpack.c.b16 %v1474, %v1467
    %v1895 = vpack.c.b16 %v1482, %v1475
    %v1896 = vpack.c.b16 %v1483, %v1476
    %v1897 = vpack.c.b16 %v1484, %v1477
    %v1898 = vpack.c.b16 %v1485, %v1478
    %v1899 = vpack.c.b16 %v1486, %v1479
    %v1900 = vpack.c.b16 %v1487, %v1480
    %v1901 = vpack.c.b16 %v1488, %v1481
    %v1902 = vpack.c.b16 %v1496, %v1489
    %v1903 = vpack.c.b16 %v1497, %v1490
    %v1904 = vpack.c.b16 %v1498, %v1491
    %v1905 = vpack.c.b16 %v1499, %v1492
    %v1906 = vpack.c.b16 %v1500, %v1493
    %v1907 = vpack.c.b16 %v1501, %v1494
    %v1908 = vpack.c.b16 %v1502, %v1495
    %v1909 = vpack.c.b16 %v1510, %v1503
    %v1910 = vpack.c.b16 %v1511, %v1504
    %v1911 = vpack.c.b16 %v1512, %v1505
    %v1912 = vpack.c.b16 %v1513, %v1506
    %v1913 = vpack.c.b16 %v1514, %v1507
    %v1914 = vpack.c.b16 %v1515, %v1508
    %v1915 = vpack.c.b16 %v1516, %v1509
    %v1916 = vpack.c.b16 %v1524, %v1517
    %v1917 = vpack.c.b16 %v1525, %v1518
    %v1918 = vpack.c.b16 %v1526, %v1519
    %v1919 = vpack.c.b16 %v1527, %v1520
    %v1920 = vpack.c.b16 %v1528, %v1521
    %v1921 = vpack.c.b16 %v1529, %v1522
    %v1922 = vpack.c.b16 %v1530, %v1523
    %v1923 = vpack.c.b16 %v1538, %v1531
    %v1924 = vpack.c.b16 %v1539, %v1532
    %v1925 = vpack.c.b16 %v1540, %v1533
    %v1926 = vpack.c.b16 %v1541, %v1534
    %v1927 = vpack.c.b16 %v1542, %v1535
    %v1928 = vpack.c.b16 %v1543, %v1536
    %v1929 = vpack.c.b16 %v1544, %v1537
    %v1930 = vpack.c.b16 %v1552, %v1545
    %v1931 = vpack.c.b16 %v1553, %v1546
    %v1932 = vpack.c.b16 %v1554, %v1547
    %v1933 = vpack.c.b16 %v1555, %v1548
    %v1934 = vpack.c.b16 %v1556, %v1549
    %v1935 = vpack.c.b16 %v1557, %v1550
    %v1936 = vpack.c.b16 %v1558, %v1551
    %v1937 = vpack.c.b16 %v1566, %v1559
    %v1938 = vpack.c.b16 %v1567, %v1560
    %v1939 = vpack.c.b16 %v1568, %v1561
    %v1940 = vpack.c.b16 %v1569, %v1562
    %v1941 = vpack.c.b16 %v1570, %v1563
    %v1942 = vpack.c.b16 %v1571, %v1564
    %v1943 = vpack.c.b16 %v1572, %v1565
    %v1944 = vpack.c.b16 %v1580, %v1573
    %v1945 = vpack.c.b16 %v1581, %v1574
    %v1946 = vpack.c.b16 %v1582, %v1575
    %v1947 = vpack.c.b16 %v1583, %v1576
    %v1948 = vpack.c.b16 %v1584, %v1577
    %v1949 = vpack.c.b16 %v1585, %v1578
    %v1950 = vpack.c.b16 %v1586, %v1579
    %v1951 = vpack.c.b16 %v1594, %v1587
    %v1952 = vpack.c.b16 %v1595, %v1588
    %v1953 = vpack.c.b16 %v1596, %v1589
    %v1954 = vpack.c.b16 %v1597, %v1590
    %v1955 = vpack.c.b16 %v1598, %v1591
    %v1956 = vpack.c.b16 %v1599, %v1592
    %v1957 = vpack.c.b16 %v1600, %v1593
    %v1958 = vpack.c.b16 %v1608, %v1601
    %v1959 = vpack.c.b16 %v1609, %v1602
    %v1960 = vpack.c.b16 %v1610, %v1603
    %v1961 = vpack.c.b16 %v1611, %v1604
    %v1962 = vpack.c.b16 %v1612, %v1605
    %v1963 = vpack.c.b16 %v1613, %v1606
    %v1964 = vpack.c.b16 %v1614, %v1607
    %v1965 = vpack.c.b16 %v1622, %v1615
    %v1966 = vpack.c.b16 %v1623, %v1616
    %v1967 = vpack.c.b16 %v1624, %v1617
    %v1968 = vpack.c.b16 %v1625, %v1618
    %v1969 = vpack.c.b16 %v1626, %v1619
    %v1970 = vpack.c.b16 %v1627, %v1620
    %v1971 = vpack.c.b16 %v1628, %v1621
    %vm2315 = vcmask 130048
    %v2317 = vsel %vm2315, %v142, 0
    %2319 = vmatpush.bf16.msra.mxu0 %v1678
    %2320 = vmatpush.bf16.msra.mxu0 %v1671
    %2321 = vmatpush.bf16.msra.mxu0 %v1664
    %2322 = vmatpush.bf16.msra.mxu0 %v1657
    %2323 = vmatpush.bf16.msra.mxu0 %v1650
    %2324 = vmatpush.bf16.msra.mxu0 %v1643
    %2325 = vmatpush.bf16.msra.mxu0 %v1636
    %2326 = vmatpush.bf16.msra.mxu0 %v1629
    %2327 = vmatmul.bf16.gmra.mxu0 %v136
    %v2328 = vpop.f32.mrf.mxu0
    %v2329 = vadd.f32 %v537, %v2328
    %v2330 = vpop.f32.mrf.mxu0
    %2331 = vdwg.mxu0
    %2332 = vmatpush.bf16.msra.mxu0 %v1734
    %2333 = vmatpush.bf16.msra.mxu0 %v1727
    %2334 = vmatpush.bf16.msra.mxu0 %v1720
    %2335 = vmatpush.bf16.msra.mxu0 %v1713
    %2336 = vmatpush.bf16.msra.mxu0 %v1706
    %2337 = vmatpush.bf16.msra.mxu0 %v1699
    %2338 = vmatpush.bf16.msra.mxu0 %v1692
    %2339 = vmatpush.bf16.msra.mxu0 %v1685
    %2340 = vmatmul.bf16.gmra.mxu0 %v137
    %v2341 = vpop.f32.mrf.mxu0
    %v2342 = vadd.f32 %v2329, %v2341
    %v2343 = vpop.f32.mrf.mxu0
    %2344 = vdwg.mxu0
    %2345 = vmatpush.bf16.msra.mxu0 %v1790
    %2346 = vmatpush.bf16.msra.mxu0 %v1783
    %2347 = vmatpush.bf16.msra.mxu0 %v1776
    %2348 = vmatpush.bf16.msra.mxu0 %v1769
    %2349 = vmatpush.bf16.msra.mxu0 %v1762
    %2350 = vmatpush.bf16.msra.mxu0 %v1755
    %2351 = vmatpush.bf16.msra.mxu0 %v1748
    %2352 = vmatpush.bf16.msra.mxu0 %v1741
    %2353 = vmatmul.bf16.gmra.mxu0 %v138
    %v2354 = vpop.f32.mrf.mxu0
    %v2355 = vadd.f32 %v2342, %v2354
    %v2356 = vpop.f32.mrf.mxu0
    %2357 = vdwg.mxu0
    %2358 = vmatpush.bf16.msra.mxu0 %v1846
    %2359 = vmatpush.bf16.msra.mxu0 %v1839
    %2360 = vmatpush.bf16.msra.mxu0 %v1832
    %2361 = vmatpush.bf16.msra.mxu0 %v1825
    %2362 = vmatpush.bf16.msra.mxu0 %v1818
    %2363 = vmatpush.bf16.msra.mxu0 %v1811
    %2364 = vmatpush.bf16.msra.mxu0 %v1804
    %2365 = vmatpush.bf16.msra.mxu0 %v1797
    %2366 = vmatmul.bf16.gmra.mxu0 %v139
    %v2367 = vpop.f32.mrf.mxu0
    %v2368 = vadd.f32 %v2355, %v2367
    %v2369 = vpop.f32.mrf.mxu0
    %2370 = vdwg.mxu0
    %2371 = vmatpush.bf16.msra.mxu0 %v1902
    %2372 = vmatpush.bf16.msra.mxu0 %v1895
    %2373 = vmatpush.bf16.msra.mxu0 %v1888
    %2374 = vmatpush.bf16.msra.mxu0 %v1881
    %2375 = vmatpush.bf16.msra.mxu0 %v1874
    %2376 = vmatpush.bf16.msra.mxu0 %v1867
    %2377 = vmatpush.bf16.msra.mxu0 %v1860
    %2378 = vmatpush.bf16.msra.mxu0 %v1853
    %2379 = vmatmul.bf16.gmra.mxu0 %v140
    %v2380 = vpop.f32.mrf.mxu0
    %v2381 = vadd.f32 %v2368, %v2380
    %v2382 = vpop.f32.mrf.mxu0
    %2383 = vdwg.mxu0
    %2384 = vmatpush.bf16.msra.mxu0 %v1958
    %2385 = vmatpush.bf16.msra.mxu0 %v1951
    %2386 = vmatpush.bf16.msra.mxu0 %v1944
    %2387 = vmatpush.bf16.msra.mxu0 %v1937
    %2388 = vmatpush.bf16.msra.mxu0 %v1930
    %2389 = vmatpush.bf16.msra.mxu0 %v1923
    %2390 = vmatpush.bf16.msra.mxu0 %v1916
    %2391 = vmatpush.bf16.msra.mxu0 %v1909
    %2392 = vmatmul.bf16.gmra.mxu0 %v141
    %v2393 = vpop.f32.mrf.mxu0
    %v2394 = vadd.f32 %v2381, %v2393
    %v2395 = vpop.f32.mrf.mxu0
    %2396 = vdwg.mxu0
    %2397 = vmatpush.bf16.msra.mxu0 0
    %2398 = vmatpush.bf16.msra.mxu0 0
    %2399 = vmatpush.bf16.msra.mxu0 0
    %2400 = vmatpush.bf16.msra.mxu0 0
    %2401 = vmatpush.bf16.msra.mxu0 0
    %2402 = vmatpush.bf16.msra.mxu0 0
    %2403 = vmatpush.bf16.msra.mxu0 0
    %2404 = vmatpush.bf16.msra.mxu0 %v1965
    %2405 = vmatmul.bf16.gmra.mxu0 %v2317
    %v2406 = vpop.f32.mrf.mxu0
    %v2407 = vadd.f32 %v2394, %v2406
    %v2408 = vpop.f32.mrf.mxu0
    %2409 = vdwg.mxu0
    %2410 = vmatpush.bf16.msra.mxu0 %v1679
    %2411 = vmatpush.bf16.msra.mxu0 %v1672
    %2412 = vmatpush.bf16.msra.mxu0 %v1665
    %2413 = vmatpush.bf16.msra.mxu0 %v1658
    %2414 = vmatpush.bf16.msra.mxu0 %v1651
    %2415 = vmatpush.bf16.msra.mxu0 %v1644
    %2416 = vmatpush.bf16.msra.mxu0 %v1637
    %2417 = vmatpush.bf16.msra.mxu0 %v1630
    %2418 = vmatmul.bf16.gmra.mxu0 %v136
    %v2419 = vpop.f32.mrf.mxu0
    %v2420 = vadd.f32 %v538, %v2419
    %v2421 = vpop.f32.mrf.mxu0
    %2422 = vdwg.mxu0
    %2423 = vmatpush.bf16.msra.mxu0 %v1735
    %2424 = vmatpush.bf16.msra.mxu0 %v1728
    %2425 = vmatpush.bf16.msra.mxu0 %v1721
    %2426 = vmatpush.bf16.msra.mxu0 %v1714
    %2427 = vmatpush.bf16.msra.mxu0 %v1707
    %2428 = vmatpush.bf16.msra.mxu0 %v1700
    %2429 = vmatpush.bf16.msra.mxu0 %v1693
    %2430 = vmatpush.bf16.msra.mxu0 %v1686
    %2431 = vmatmul.bf16.gmra.mxu0 %v137
    %v2432 = vpop.f32.mrf.mxu0
    %v2433 = vadd.f32 %v2420, %v2432
    %v2434 = vpop.f32.mrf.mxu0
    %2435 = vdwg.mxu0
    %2436 = vmatpush.bf16.msra.mxu0 %v1791
    %2437 = vmatpush.bf16.msra.mxu0 %v1784
    %2438 = vmatpush.bf16.msra.mxu0 %v1777
    %2439 = vmatpush.bf16.msra.mxu0 %v1770
    %2440 = vmatpush.bf16.msra.mxu0 %v1763
    %2441 = vmatpush.bf16.msra.mxu0 %v1756
    %2442 = vmatpush.bf16.msra.mxu0 %v1749
    %2443 = vmatpush.bf16.msra.mxu0 %v1742
    %2444 = vmatmul.bf16.gmra.mxu0 %v138
    %v2445 = vpop.f32.mrf.mxu0
    %v2446 = vadd.f32 %v2433, %v2445
    %v2447 = vpop.f32.mrf.mxu0
    %2448 = vdwg.mxu0
    %2449 = vmatpush.bf16.msra.mxu0 %v1847
    %2450 = vmatpush.bf16.msra.mxu0 %v1840
    %2451 = vmatpush.bf16.msra.mxu0 %v1833
    %2452 = vmatpush.bf16.msra.mxu0 %v1826
    %2453 = vmatpush.bf16.msra.mxu0 %v1819
    %2454 = vmatpush.bf16.msra.mxu0 %v1812
    %2455 = vmatpush.bf16.msra.mxu0 %v1805
    %2456 = vmatpush.bf16.msra.mxu0 %v1798
    %2457 = vmatmul.bf16.gmra.mxu0 %v139
    %v2458 = vpop.f32.mrf.mxu0
    %v2459 = vadd.f32 %v2446, %v2458
    %v2460 = vpop.f32.mrf.mxu0
    %2461 = vdwg.mxu0
    %2462 = vmatpush.bf16.msra.mxu0 %v1903
    %2463 = vmatpush.bf16.msra.mxu0 %v1896
    %2464 = vmatpush.bf16.msra.mxu0 %v1889
    %2465 = vmatpush.bf16.msra.mxu0 %v1882
    %2466 = vmatpush.bf16.msra.mxu0 %v1875
    %2467 = vmatpush.bf16.msra.mxu0 %v1868
    %2468 = vmatpush.bf16.msra.mxu0 %v1861
    %2469 = vmatpush.bf16.msra.mxu0 %v1854
    %2470 = vmatmul.bf16.gmra.mxu0 %v140
    %v2471 = vpop.f32.mrf.mxu0
    %v2472 = vadd.f32 %v2459, %v2471
    %v2473 = vpop.f32.mrf.mxu0
    %2474 = vdwg.mxu0
    %2475 = vmatpush.bf16.msra.mxu0 %v1959
    %2476 = vmatpush.bf16.msra.mxu0 %v1952
    %2477 = vmatpush.bf16.msra.mxu0 %v1945
    %2478 = vmatpush.bf16.msra.mxu0 %v1938
    %2479 = vmatpush.bf16.msra.mxu0 %v1931
    %2480 = vmatpush.bf16.msra.mxu0 %v1924
    %2481 = vmatpush.bf16.msra.mxu0 %v1917
    %2482 = vmatpush.bf16.msra.mxu0 %v1910
    %2483 = vmatmul.bf16.gmra.mxu0 %v141
    %v2484 = vpop.f32.mrf.mxu0
    %v2485 = vadd.f32 %v2472, %v2484
    %v2486 = vpop.f32.mrf.mxu0
    %2487 = vdwg.mxu0
    %2488 = vmatpush.bf16.msra.mxu0 0
    %2489 = vmatpush.bf16.msra.mxu0 0
    %2490 = vmatpush.bf16.msra.mxu0 0
    %2491 = vmatpush.bf16.msra.mxu0 0
    %2492 = vmatpush.bf16.msra.mxu0 0
    %2493 = vmatpush.bf16.msra.mxu0 0
    %2494 = vmatpush.bf16.msra.mxu0 0
    %2495 = vmatpush.bf16.msra.mxu0 %v1966
    %2496 = vmatmul.bf16.gmra.mxu0 %v2317
    %v2497 = vpop.f32.mrf.mxu0
    %v2498 = vadd.f32 %v2485, %v2497
    %v2499 = vpop.f32.mrf.mxu0
    %2500 = vdwg.mxu0
    %2501 = vmatpush.bf16.msra.mxu0 %v1680
    %2502 = vmatpush.bf16.msra.mxu0 %v1673
    %2503 = vmatpush.bf16.msra.mxu0 %v1666
    %2504 = vmatpush.bf16.msra.mxu0 %v1659
    %2505 = vmatpush.bf16.msra.mxu0 %v1652
    %2506 = vmatpush.bf16.msra.mxu0 %v1645
    %2507 = vmatpush.bf16.msra.mxu0 %v1638
    %2508 = vmatpush.bf16.msra.mxu0 %v1631
    %2509 = vmatmul.bf16.gmra.mxu0 %v136
    %v2510 = vpop.f32.mrf.mxu0
    %v2511 = vadd.f32 %v539, %v2510
    %v2512 = vpop.f32.mrf.mxu0
    %2513 = vdwg.mxu0
    %2514 = vmatpush.bf16.msra.mxu0 %v1736
    %2515 = vmatpush.bf16.msra.mxu0 %v1729
    %2516 = vmatpush.bf16.msra.mxu0 %v1722
    %2517 = vmatpush.bf16.msra.mxu0 %v1715
    %2518 = vmatpush.bf16.msra.mxu0 %v1708
    %2519 = vmatpush.bf16.msra.mxu0 %v1701
    %2520 = vmatpush.bf16.msra.mxu0 %v1694
    %2521 = vmatpush.bf16.msra.mxu0 %v1687
    %2522 = vmatmul.bf16.gmra.mxu0 %v137
    %v2523 = vpop.f32.mrf.mxu0
    %v2524 = vadd.f32 %v2511, %v2523
    %v2525 = vpop.f32.mrf.mxu0
    %2526 = vdwg.mxu0
    %2527 = vmatpush.bf16.msra.mxu0 %v1792
    %2528 = vmatpush.bf16.msra.mxu0 %v1785
    %2529 = vmatpush.bf16.msra.mxu0 %v1778
    %2530 = vmatpush.bf16.msra.mxu0 %v1771
    %2531 = vmatpush.bf16.msra.mxu0 %v1764
    %2532 = vmatpush.bf16.msra.mxu0 %v1757
    %2533 = vmatpush.bf16.msra.mxu0 %v1750
    %2534 = vmatpush.bf16.msra.mxu0 %v1743
    %2535 = vmatmul.bf16.gmra.mxu0 %v138
    %v2536 = vpop.f32.mrf.mxu0
    %v2537 = vadd.f32 %v2524, %v2536
    %v2538 = vpop.f32.mrf.mxu0
    %2539 = vdwg.mxu0
    %2540 = vmatpush.bf16.msra.mxu0 %v1848
    %2541 = vmatpush.bf16.msra.mxu0 %v1841
    %2542 = vmatpush.bf16.msra.mxu0 %v1834
    %2543 = vmatpush.bf16.msra.mxu0 %v1827
    %2544 = vmatpush.bf16.msra.mxu0 %v1820
    %2545 = vmatpush.bf16.msra.mxu0 %v1813
    %2546 = vmatpush.bf16.msra.mxu0 %v1806
    %2547 = vmatpush.bf16.msra.mxu0 %v1799
    %2548 = vmatmul.bf16.gmra.mxu0 %v139
    %v2549 = vpop.f32.mrf.mxu0
    %v2550 = vadd.f32 %v2537, %v2549
    %v2551 = vpop.f32.mrf.mxu0
    %2552 = vdwg.mxu0
    %2553 = vmatpush.bf16.msra.mxu0 %v1904
    %2554 = vmatpush.bf16.msra.mxu0 %v1897
    %2555 = vmatpush.bf16.msra.mxu0 %v1890
    %2556 = vmatpush.bf16.msra.mxu0 %v1883
    %2557 = vmatpush.bf16.msra.mxu0 %v1876
    %2558 = vmatpush.bf16.msra.mxu0 %v1869
    %2559 = vmatpush.bf16.msra.mxu0 %v1862
    %2560 = vmatpush.bf16.msra.mxu0 %v1855
    %2561 = vmatmul.bf16.gmra.mxu0 %v140
    %v2562 = vpop.f32.mrf.mxu0
    %v2563 = vadd.f32 %v2550, %v2562
    %v2564 = vpop.f32.mrf.mxu0
    %2565 = vdwg.mxu0
    %2566 = vmatpush.bf16.msra.mxu0 %v1960
    %2567 = vmatpush.bf16.msra.mxu0 %v1953
    %2568 = vmatpush.bf16.msra.mxu0 %v1946
    %2569 = vmatpush.bf16.msra.mxu0 %v1939
    %2570 = vmatpush.bf16.msra.mxu0 %v1932
    %2571 = vmatpush.bf16.msra.mxu0 %v1925
    %2572 = vmatpush.bf16.msra.mxu0 %v1918
    %2573 = vmatpush.bf16.msra.mxu0 %v1911
    %2574 = vmatmul.bf16.gmra.mxu0 %v141
    %v2575 = vpop.f32.mrf.mxu0
    %v2576 = vadd.f32 %v2563, %v2575
    %v2577 = vpop.f32.mrf.mxu0
    %2578 = vdwg.mxu0
    %2579 = vmatpush.bf16.msra.mxu0 0
    %2580 = vmatpush.bf16.msra.mxu0 0
    %2581 = vmatpush.bf16.msra.mxu0 0
    %2582 = vmatpush.bf16.msra.mxu0 0
    %2583 = vmatpush.bf16.msra.mxu0 0
    %2584 = vmatpush.bf16.msra.mxu0 0
    %2585 = vmatpush.bf16.msra.mxu0 0
    %2586 = vmatpush.bf16.msra.mxu0 %v1967
    %2587 = vmatmul.bf16.gmra.mxu0 %v2317
    %v2588 = vpop.f32.mrf.mxu0
    %v2589 = vadd.f32 %v2576, %v2588
    %v2590 = vpop.f32.mrf.mxu0
    %2591 = vdwg.mxu0
    %2592 = vmatpush.bf16.msra.mxu0 %v1681
    %2593 = vmatpush.bf16.msra.mxu0 %v1674
    %2594 = vmatpush.bf16.msra.mxu0 %v1667
    %2595 = vmatpush.bf16.msra.mxu0 %v1660
    %2596 = vmatpush.bf16.msra.mxu0 %v1653
    %2597 = vmatpush.bf16.msra.mxu0 %v1646
    %2598 = vmatpush.bf16.msra.mxu0 %v1639
    %2599 = vmatpush.bf16.msra.mxu0 %v1632
    %2600 = vmatmul.bf16.gmra.mxu0 %v136
    %v2601 = vpop.f32.mrf.mxu0
    %v2602 = vadd.f32 %v540, %v2601
    %v2603 = vpop.f32.mrf.mxu0
    %2604 = vdwg.mxu0
    %2605 = vmatpush.bf16.msra.mxu0 %v1737
    %2606 = vmatpush.bf16.msra.mxu0 %v1730
    %2607 = vmatpush.bf16.msra.mxu0 %v1723
    %2608 = vmatpush.bf16.msra.mxu0 %v1716
    %2609 = vmatpush.bf16.msra.mxu0 %v1709
    %2610 = vmatpush.bf16.msra.mxu0 %v1702
    %2611 = vmatpush.bf16.msra.mxu0 %v1695
    %2612 = vmatpush.bf16.msra.mxu0 %v1688
    %2613 = vmatmul.bf16.gmra.mxu0 %v137
    %v2614 = vpop.f32.mrf.mxu0
    %v2615 = vadd.f32 %v2602, %v2614
    %v2616 = vpop.f32.mrf.mxu0
    %2617 = vdwg.mxu0
    %2618 = vmatpush.bf16.msra.mxu0 %v1793
    %2619 = vmatpush.bf16.msra.mxu0 %v1786
    %2620 = vmatpush.bf16.msra.mxu0 %v1779
    %2621 = vmatpush.bf16.msra.mxu0 %v1772
    %2622 = vmatpush.bf16.msra.mxu0 %v1765
    %2623 = vmatpush.bf16.msra.mxu0 %v1758
    %2624 = vmatpush.bf16.msra.mxu0 %v1751
    %2625 = vmatpush.bf16.msra.mxu0 %v1744
    %2626 = vmatmul.bf16.gmra.mxu0 %v138
    %v2627 = vpop.f32.mrf.mxu0
    %v2628 = vadd.f32 %v2615, %v2627
    %v2629 = vpop.f32.mrf.mxu0
    %2630 = vdwg.mxu0
    %2631 = vmatpush.bf16.msra.mxu0 %v1849
    %2632 = vmatpush.bf16.msra.mxu0 %v1842
    %2633 = vmatpush.bf16.msra.mxu0 %v1835
    %2634 = vmatpush.bf16.msra.mxu0 %v1828
    %2635 = vmatpush.bf16.msra.mxu0 %v1821
    %2636 = vmatpush.bf16.msra.mxu0 %v1814
    %2637 = vmatpush.bf16.msra.mxu0 %v1807
    %2638 = vmatpush.bf16.msra.mxu0 %v1800
    %2639 = vmatmul.bf16.gmra.mxu0 %v139
    %v2640 = vpop.f32.mrf.mxu0
    %v2641 = vadd.f32 %v2628, %v2640
    %v2642 = vpop.f32.mrf.mxu0
    %2643 = vdwg.mxu0
    %2644 = vmatpush.bf16.msra.mxu0 %v1905
    %2645 = vmatpush.bf16.msra.mxu0 %v1898
    %2646 = vmatpush.bf16.msra.mxu0 %v1891
    %2647 = vmatpush.bf16.msra.mxu0 %v1884
    %2648 = vmatpush.bf16.msra.mxu0 %v1877
    %2649 = vmatpush.bf16.msra.mxu0 %v1870
    %2650 = vmatpush.bf16.msra.mxu0 %v1863
    %2651 = vmatpush.bf16.msra.mxu0 %v1856
    %2652 = vmatmul.bf16.gmra.mxu0 %v140
    %v2653 = vpop.f32.mrf.mxu0
    %v2654 = vadd.f32 %v2641, %v2653
    %v2655 = vpop.f32.mrf.mxu0
    %2656 = vdwg.mxu0
    %2657 = vmatpush.bf16.msra.mxu0 %v1961
    %2658 = vmatpush.bf16.msra.mxu0 %v1954
    %2659 = vmatpush.bf16.msra.mxu0 %v1947
    %2660 = vmatpush.bf16.msra.mxu0 %v1940
    %2661 = vmatpush.bf16.msra.mxu0 %v1933
    %2662 = vmatpush.bf16.msra.mxu0 %v1926
    %2663 = vmatpush.bf16.msra.mxu0 %v1919
    %2664 = vmatpush.bf16.msra.mxu0 %v1912
    %2665 = vmatmul.bf16.gmra.mxu0 %v141
    %v2666 = vpop.f32.mrf.mxu0
    %v2667 = vadd.f32 %v2654, %v2666
    %v2668 = vpop.f32.mrf.mxu0
    %2669 = vdwg.mxu0
    %2670 = vmatpush.bf16.msra.mxu0 0
    %2671 = vmatpush.bf16.msra.mxu0 0
    %2672 = vmatpush.bf16.msra.mxu0 0
    %2673 = vmatpush.bf16.msra.mxu0 0
    %2674 = vmatpush.bf16.msra.mxu0 0
    %2675 = vmatpush.bf16.msra.mxu0 0
    %2676 = vmatpush.bf16.msra.mxu0 0
    %2677 = vmatpush.bf16.msra.mxu0 %v1968
    %2678 = vmatmul.bf16.gmra.mxu0 %v2317
    %v2679 = vpop.f32.mrf.mxu0
    %v2680 = vadd.f32 %v2667, %v2679
    %v2681 = vpop.f32.mrf.mxu0
    %2682 = vdwg.mxu0
    %2683 = vmatpush.bf16.msra.mxu0 %v1682
    %2684 = vmatpush.bf16.msra.mxu0 %v1675
    %2685 = vmatpush.bf16.msra.mxu0 %v1668
    %2686 = vmatpush.bf16.msra.mxu0 %v1661
    %2687 = vmatpush.bf16.msra.mxu0 %v1654
    %2688 = vmatpush.bf16.msra.mxu0 %v1647
    %2689 = vmatpush.bf16.msra.mxu0 %v1640
    %2690 = vmatpush.bf16.msra.mxu0 %v1633
    %2691 = vmatmul.bf16.gmra.mxu0 %v136
    %v2692 = vpop.f32.mrf.mxu0
    %v2693 = vadd.f32 %v541, %v2692
    %v2694 = vpop.f32.mrf.mxu0
    %2695 = vdwg.mxu0
    %2696 = vmatpush.bf16.msra.mxu0 %v1738
    %2697 = vmatpush.bf16.msra.mxu0 %v1731
    %2698 = vmatpush.bf16.msra.mxu0 %v1724
    %2699 = vmatpush.bf16.msra.mxu0 %v1717
    %2700 = vmatpush.bf16.msra.mxu0 %v1710
    %2701 = vmatpush.bf16.msra.mxu0 %v1703
    %2702 = vmatpush.bf16.msra.mxu0 %v1696
    %2703 = vmatpush.bf16.msra.mxu0 %v1689
    %2704 = vmatmul.bf16.gmra.mxu0 %v137
    %v2705 = vpop.f32.mrf.mxu0
    %v2706 = vadd.f32 %v2693, %v2705
    %v2707 = vpop.f32.mrf.mxu0
    %2708 = vdwg.mxu0
    %2709 = vmatpush.bf16.msra.mxu0 %v1794
    %2710 = vmatpush.bf16.msra.mxu0 %v1787
    %2711 = vmatpush.bf16.msra.mxu0 %v1780
    %2712 = vmatpush.bf16.msra.mxu0 %v1773
    %2713 = vmatpush.bf16.msra.mxu0 %v1766
    %2714 = vmatpush.bf16.msra.mxu0 %v1759
    %2715 = vmatpush.bf16.msra.mxu0 %v1752
    %2716 = vmatpush.bf16.msra.mxu0 %v1745
    %2717 = vmatmul.bf16.gmra.mxu0 %v138
    %v2718 = vpop.f32.mrf.mxu0
    %v2719 = vadd.f32 %v2706, %v2718
    %v2720 = vpop.f32.mrf.mxu0
    %2721 = vdwg.mxu0
    %2722 = vmatpush.bf16.msra.mxu0 %v1850
    %2723 = vmatpush.bf16.msra.mxu0 %v1843
    %2724 = vmatpush.bf16.msra.mxu0 %v1836
    %2725 = vmatpush.bf16.msra.mxu0 %v1829
    %2726 = vmatpush.bf16.msra.mxu0 %v1822
    %2727 = vmatpush.bf16.msra.mxu0 %v1815
    %2728 = vmatpush.bf16.msra.mxu0 %v1808
    %2729 = vmatpush.bf16.msra.mxu0 %v1801
    %2730 = vmatmul.bf16.gmra.mxu0 %v139
    %v2731 = vpop.f32.mrf.mxu0
    %v2732 = vadd.f32 %v2719, %v2731
    %v2733 = vpop.f32.mrf.mxu0
    %2734 = vdwg.mxu0
    %2735 = vmatpush.bf16.msra.mxu0 %v1906
    %2736 = vmatpush.bf16.msra.mxu0 %v1899
    %2737 = vmatpush.bf16.msra.mxu0 %v1892
    %2738 = vmatpush.bf16.msra.mxu0 %v1885
    %2739 = vmatpush.bf16.msra.mxu0 %v1878
    %2740 = vmatpush.bf16.msra.mxu0 %v1871
    %2741 = vmatpush.bf16.msra.mxu0 %v1864
    %2742 = vmatpush.bf16.msra.mxu0 %v1857
    %2743 = vmatmul.bf16.gmra.mxu0 %v140
    %v2744 = vpop.f32.mrf.mxu0
    %v2745 = vadd.f32 %v2732, %v2744
    %v2746 = vpop.f32.mrf.mxu0
    %2747 = vdwg.mxu0
    %2748 = vmatpush.bf16.msra.mxu0 %v1962
    %2749 = vmatpush.bf16.msra.mxu0 %v1955
    %2750 = vmatpush.bf16.msra.mxu0 %v1948
    %2751 = vmatpush.bf16.msra.mxu0 %v1941
    %2752 = vmatpush.bf16.msra.mxu0 %v1934
    %2753 = vmatpush.bf16.msra.mxu0 %v1927
    %2754 = vmatpush.bf16.msra.mxu0 %v1920
    %2755 = vmatpush.bf16.msra.mxu0 %v1913
    %2756 = vmatmul.bf16.gmra.mxu0 %v141
    %v2757 = vpop.f32.mrf.mxu0
    %v2758 = vadd.f32 %v2745, %v2757
    %v2759 = vpop.f32.mrf.mxu0
    %2760 = vdwg.mxu0
    %2761 = vmatpush.bf16.msra.mxu0 0
    %2762 = vmatpush.bf16.msra.mxu0 0
    %2763 = vmatpush.bf16.msra.mxu0 0
    %2764 = vmatpush.bf16.msra.mxu0 0
    %2765 = vmatpush.bf16.msra.mxu0 0
    %2766 = vmatpush.bf16.msra.mxu0 0
    %2767 = vmatpush.bf16.msra.mxu0 0
    %2768 = vmatpush.bf16.msra.mxu0 %v1969
    %2769 = vmatmul.bf16.gmra.mxu0 %v2317
    %v2770 = vpop.f32.mrf.mxu0
    %v2771 = vadd.f32 %v2758, %v2770
    %v2772 = vpop.f32.mrf.mxu0
    %2773 = vdwg.mxu0
    %2774 = vmatpush.bf16.msra.mxu0 %v1683
    %2775 = vmatpush.bf16.msra.mxu0 %v1676
    %2776 = vmatpush.bf16.msra.mxu0 %v1669
    %2777 = vmatpush.bf16.msra.mxu0 %v1662
    %2778 = vmatpush.bf16.msra.mxu0 %v1655
    %2779 = vmatpush.bf16.msra.mxu0 %v1648
    %2780 = vmatpush.bf16.msra.mxu0 %v1641
    %2781 = vmatpush.bf16.msra.mxu0 %v1634
    %2782 = vmatmul.bf16.gmra.mxu0 %v136
    %v2783 = vpop.f32.mrf.mxu0
    %v2784 = vadd.f32 %v542, %v2783
    %v2785 = vpop.f32.mrf.mxu0
    %2786 = vdwg.mxu0
    %2787 = vmatpush.bf16.msra.mxu0 %v1739
    %2788 = vmatpush.bf16.msra.mxu0 %v1732
    %2789 = vmatpush.bf16.msra.mxu0 %v1725
    %2790 = vmatpush.bf16.msra.mxu0 %v1718
    %2791 = vmatpush.bf16.msra.mxu0 %v1711
    %2792 = vmatpush.bf16.msra.mxu0 %v1704
    %2793 = vmatpush.bf16.msra.mxu0 %v1697
    %2794 = vmatpush.bf16.msra.mxu0 %v1690
    %2795 = vmatmul.bf16.gmra.mxu0 %v137
    %v2796 = vpop.f32.mrf.mxu0
    %v2797 = vadd.f32 %v2784, %v2796
    %v2798 = vpop.f32.mrf.mxu0
    %2799 = vdwg.mxu0
    %2800 = vmatpush.bf16.msra.mxu0 %v1795
    %2801 = vmatpush.bf16.msra.mxu0 %v1788
    %2802 = vmatpush.bf16.msra.mxu0 %v1781
    %2803 = vmatpush.bf16.msra.mxu0 %v1774
    %2804 = vmatpush.bf16.msra.mxu0 %v1767
    %2805 = vmatpush.bf16.msra.mxu0 %v1760
    %2806 = vmatpush.bf16.msra.mxu0 %v1753
    %2807 = vmatpush.bf16.msra.mxu0 %v1746
    %2808 = vmatmul.bf16.gmra.mxu0 %v138
    %v2809 = vpop.f32.mrf.mxu0
    %v2810 = vadd.f32 %v2797, %v2809
    %v2811 = vpop.f32.mrf.mxu0
    %2812 = vdwg.mxu0
    %2813 = vmatpush.bf16.msra.mxu0 %v1851
    %2814 = vmatpush.bf16.msra.mxu0 %v1844
    %2815 = vmatpush.bf16.msra.mxu0 %v1837
    %2816 = vmatpush.bf16.msra.mxu0 %v1830
    %2817 = vmatpush.bf16.msra.mxu0 %v1823
    %2818 = vmatpush.bf16.msra.mxu0 %v1816
    %2819 = vmatpush.bf16.msra.mxu0 %v1809
    %2820 = vmatpush.bf16.msra.mxu0 %v1802
    %2821 = vmatmul.bf16.gmra.mxu0 %v139
    %v2822 = vpop.f32.mrf.mxu0
    %v2823 = vadd.f32 %v2810, %v2822
    %v2824 = vpop.f32.mrf.mxu0
    %2825 = vdwg.mxu0
    %2826 = vmatpush.bf16.msra.mxu0 %v1907
    %2827 = vmatpush.bf16.msra.mxu0 %v1900
    %2828 = vmatpush.bf16.msra.mxu0 %v1893
    %2829 = vmatpush.bf16.msra.mxu0 %v1886
    %2830 = vmatpush.bf16.msra.mxu0 %v1879
    %2831 = vmatpush.bf16.msra.mxu0 %v1872
    %2832 = vmatpush.bf16.msra.mxu0 %v1865
    %2833 = vmatpush.bf16.msra.mxu0 %v1858
    %2834 = vmatmul.bf16.gmra.mxu0 %v140
    %v2835 = vpop.f32.mrf.mxu0
    %v2836 = vadd.f32 %v2823, %v2835
    %v2837 = vpop.f32.mrf.mxu0
    %2838 = vdwg.mxu0
    %2839 = vmatpush.bf16.msra.mxu0 %v1963
    %2840 = vmatpush.bf16.msra.mxu0 %v1956
    %2841 = vmatpush.bf16.msra.mxu0 %v1949
    %2842 = vmatpush.bf16.msra.mxu0 %v1942
    %2843 = vmatpush.bf16.msra.mxu0 %v1935
    %2844 = vmatpush.bf16.msra.mxu0 %v1928
    %2845 = vmatpush.bf16.msra.mxu0 %v1921
    %2846 = vmatpush.bf16.msra.mxu0 %v1914
    %2847 = vmatmul.bf16.gmra.mxu0 %v141
    %v2848 = vpop.f32.mrf.mxu0
    %v2849 = vadd.f32 %v2836, %v2848
    %v2850 = vpop.f32.mrf.mxu0
    %2851 = vdwg.mxu0
    %2852 = vmatpush.bf16.msra.mxu0 0
    %2853 = vmatpush.bf16.msra.mxu0 0
    %2854 = vmatpush.bf16.msra.mxu0 0
    %2855 = vmatpush.bf16.msra.mxu0 0
    %2856 = vmatpush.bf16.msra.mxu0 0
    %2857 = vmatpush.bf16.msra.mxu0 0
    %2858 = vmatpush.bf16.msra.mxu0 0
    %2859 = vmatpush.bf16.msra.mxu0 %v1970
    %2860 = vmatmul.bf16.gmra.mxu0 %v2317
    %v2861 = vpop.f32.mrf.mxu0
    %v2862 = vadd.f32 %v2849, %v2861
    %v2863 = vpop.f32.mrf.mxu0
    %2864 = vdwg.mxu0
    %2865 = vmatpush.bf16.msra.mxu0 %v1684
    %2866 = vmatpush.bf16.msra.mxu0 %v1677
    %2867 = vmatpush.bf16.msra.mxu0 %v1670
    %2868 = vmatpush.bf16.msra.mxu0 %v1663
    %2869 = vmatpush.bf16.msra.mxu0 %v1656
    %2870 = vmatpush.bf16.msra.mxu0 %v1649
    %2871 = vmatpush.bf16.msra.mxu0 %v1642
    %2872 = vmatpush.bf16.msra.mxu0 %v1635
    %2873 = vmatmul.bf16.gmra.mxu0 %v136
    %v2874 = vpop.f32.mrf.mxu0
    %v2875 = vadd.f32 %v543, %v2874
    %v2876 = vpop.f32.mrf.mxu0
    %2877 = vdwg.mxu0
    %2878 = vmatpush.bf16.msra.mxu0 %v1740
    %2879 = vmatpush.bf16.msra.mxu0 %v1733
    %2880 = vmatpush.bf16.msra.mxu0 %v1726
    %2881 = vmatpush.bf16.msra.mxu0 %v1719
    %2882 = vmatpush.bf16.msra.mxu0 %v1712
    %2883 = vmatpush.bf16.msra.mxu0 %v1705
    %2884 = vmatpush.bf16.msra.mxu0 %v1698
    %2885 = vmatpush.bf16.msra.mxu0 %v1691
    %2886 = vmatmul.bf16.gmra.mxu0 %v137
    %v2887 = vpop.f32.mrf.mxu0
    %v2888 = vadd.f32 %v2875, %v2887
    %v2889 = vpop.f32.mrf.mxu0
    %2890 = vdwg.mxu0
    %2891 = vmatpush.bf16.msra.mxu0 %v1796
    %2892 = vmatpush.bf16.msra.mxu0 %v1789
    %2893 = vmatpush.bf16.msra.mxu0 %v1782
    %2894 = vmatpush.bf16.msra.mxu0 %v1775
    %2895 = vmatpush.bf16.msra.mxu0 %v1768
    %2896 = vmatpush.bf16.msra.mxu0 %v1761
    %2897 = vmatpush.bf16.msra.mxu0 %v1754
    %2898 = vmatpush.bf16.msra.mxu0 %v1747
    %2899 = vmatmul.bf16.gmra.mxu0 %v138
    %v2900 = vpop.f32.mrf.mxu0
    %v2901 = vadd.f32 %v2888, %v2900
    %v2902 = vpop.f32.mrf.mxu0
    %2903 = vdwg.mxu0
    %2904 = vmatpush.bf16.msra.mxu0 %v1852
    %2905 = vmatpush.bf16.msra.mxu0 %v1845
    %2906 = vmatpush.bf16.msra.mxu0 %v1838
    %2907 = vmatpush.bf16.msra.mxu0 %v1831
    %2908 = vmatpush.bf16.msra.mxu0 %v1824
    %2909 = vmatpush.bf16.msra.mxu0 %v1817
    %2910 = vmatpush.bf16.msra.mxu0 %v1810
    %2911 = vmatpush.bf16.msra.mxu0 %v1803
    %2912 = vmatmul.bf16.gmra.mxu0 %v139
    %v2913 = vpop.f32.mrf.mxu0
    %v2914 = vadd.f32 %v2901, %v2913
    %v2915 = vpop.f32.mrf.mxu0
    %2916 = vdwg.mxu0
    %2917 = vmatpush.bf16.msra.mxu0 %v1908
    %2918 = vmatpush.bf16.msra.mxu0 %v1901
    %2919 = vmatpush.bf16.msra.mxu0 %v1894
    %2920 = vmatpush.bf16.msra.mxu0 %v1887
    %2921 = vmatpush.bf16.msra.mxu0 %v1880
    %2922 = vmatpush.bf16.msra.mxu0 %v1873
    %2923 = vmatpush.bf16.msra.mxu0 %v1866
    %2924 = vmatpush.bf16.msra.mxu0 %v1859
    %2925 = vmatmul.bf16.gmra.mxu0 %v140
    %v2926 = vpop.f32.mrf.mxu0
    %v2927 = vadd.f32 %v2914, %v2926
    %v2928 = vpop.f32.mrf.mxu0
    %2929 = vdwg.mxu0
    %2930 = vmatpush.bf16.msra.mxu0 %v1964
    %2931 = vmatpush.bf16.msra.mxu0 %v1957
    %2932 = vmatpush.bf16.msra.mxu0 %v1950
    %2933 = vmatpush.bf16.msra.mxu0 %v1943
    %2934 = vmatpush.bf16.msra.mxu0 %v1936
    %2935 = vmatpush.bf16.msra.mxu0 %v1929
    %2936 = vmatpush.bf16.msra.mxu0 %v1922
    %2937 = vmatpush.bf16.msra.mxu0 %v1915
    %2938 = vmatmul.bf16.gmra.mxu0 %v141
    %v2939 = vpop.f32.mrf.mxu0
    %v2940 = vadd.f32 %v2927, %v2939
    %v2941 = vpop.f32.mrf.mxu0
    %2942 = vdwg.mxu0
    %2943 = vmatpush.bf16.msra.mxu0 0
    %2944 = vmatpush.bf16.msra.mxu0 0
    %2945 = vmatpush.bf16.msra.mxu0 0
    %2946 = vmatpush.bf16.msra.mxu0 0
    %2947 = vmatpush.bf16.msra.mxu0 0
    %2948 = vmatpush.bf16.msra.mxu0 0
    %2949 = vmatpush.bf16.msra.mxu0 0
    %2950 = vmatpush.bf16.msra.mxu0 %v1971
    %2951 = vmatmul.bf16.gmra.mxu0 %v2317
    %v2952 = vpop.f32.mrf.mxu0
    %v2953 = vadd.f32 %v2940, %v2952
    %v2954 = vpop.f32.mrf.mxu0
    %2955 = vdwg.mxu0
    %v2956 = vmax.f32 %v2407, 0.0
    %v2957 = vmax.f32 %v2498, 0.0
    %v2958 = vmax.f32 %v2589, 0.0
    %v2959 = vmax.f32 %v2680, 0.0
    %v2960 = vmax.f32 %v2771, 0.0
    %v2961 = vmax.f32 %v2862, 0.0
    %v2962 = vmax.f32 %v2953, 0.0
    %v2963 = vpack.c.bf16 %v2956, %v2956
    %v2964 = vpack.c.bf16 %v2957, %v2957
    %v2965 = vpack.c.bf16 %v2958, %v2958
    %v2966 = vpack.c.bf16 %v2959, %v2959
    %v2967 = vpack.c.bf16 %v2960, %v2960
    %v2968 = vpack.c.bf16 %v2961, %v2961
    %v2969 = vpack.c.bf16 %v2962, %v2962
    %v2970 = vld [vmem:[#allocation8] sm:$0xff]
    %v2971 = vld [vmem:[#allocation8 + $0x8] sm:$0xff]
    %v2972 = vld [vmem:[#allocation8 + $0x10] sm:$0xff]
    %v2973 = vld [vmem:[#allocation8 + $0x18] sm:$0xf]
    %v2974 = vld [vmem:[#allocation8 + $0x1c] sm:$0xff]
    %v2975 = vld [vmem:[#allocation8 + $0x24] sm:$0xff]
    %v2976 = vld [vmem:[#allocation8 + $0x2c] sm:$0xff]
    %v2977 = vld [vmem:[#allocation8 + $0x34] sm:$0xf]
    %v2978 = vld [vmem:[#allocation8 + $0x38] sm:$0xff]
    %v2979 = vld [vmem:[#allocation8 + $0x40] sm:$0xff]
    %v2980 = vld [vmem:[#allocation8 + $0x48] sm:$0xff]
    %v2981 = vld [vmem:[#allocation8 + $0x50] sm:$0xf]
    %v2982 = vld [vmem:[#allocation8 + $0x54] sm:$0xff]
    %v2983 = vld [vmem:[#allocation8 + $0x5c] sm:$0xff]
    %v2984 = vld [vmem:[#allocation8 + $0x64] sm:$0xff]
    %v2985 = vld [vmem:[#allocation8 + $0x6c] sm:$0xf]
    %v2986 = vld [vmem:[#allocation8 + $0x70] sm:$0xff]
    %v2987 = vld [vmem:[#allocation8 + $0x78] sm:$0xff]
    %v2988 = vld [vmem:[#allocation8 + $0x80] sm:$0xff]
    %v2989 = vld [vmem:[#allocation8 + $0x88] sm:$0xf]
    %v2990 = vld [vmem:[#allocation8 + $0x8c] sm:$0xff]
    %v2991 = vld [vmem:[#allocation8 + $0x94] sm:$0xff]
    %v2992 = vld [vmem:[#allocation8 + $0x9c] sm:$0xff]
    %v2993 = vld [vmem:[#allocation8 + $0xa4] sm:$0xf]
    %v2994 = vld [vmem:[#allocation8 + $0xa8] sm:$0xff]
    %v2995 = vld [vmem:[#allocation8 + $0xb0] sm:$0xff]
    %v2996 = vld [vmem:[#allocation8 + $0xb8] sm:$0xff]
    %v2997 = vld [vmem:[#allocation8 + $0xc0] sm:$0xf]
    %v2998 = vld [vmem:[#allocation8 + $0xc4] sm:$0xff]
    %v2999 = vld [vmem:[#allocation8 + $0xcc] sm:$0xff]
    %v3000 = vld [vmem:[#allocation8 + $0xd4] sm:$0xff]
    %v3001 = vld [vmem:[#allocation8 + $0xdc] sm:$0xf]
    %v3002 = vld [vmem:[#allocation8 + $0xe0] sm:$0xff]
    %v3003 = vld [vmem:[#allocation8 + $0xe8] sm:$0xff]
    %v3004 = vld [vmem:[#allocation8 + $0xf0] sm:$0xff]
    %v3005 = vld [vmem:[#allocation8 + $0xf8] sm:$0xf]
    %v3006 = vld [vmem:[#allocation8 + $0xfc] sm:$0xff]
    %v3007 = vld [vmem:[#allocation8 + $0x104] sm:$0xff]
    %v3008 = vld [vmem:[#allocation8 + $0x10c] sm:$0xff]
    %v3009 = vld [vmem:[#allocation8 + $0x114] sm:$0xf]
    %v3010 = vld [vmem:[#allocation8 + $0x118] sm:$0xff]
    %v3011 = vld [vmem:[#allocation8 + $0x120] sm:$0xff]
    %v3012 = vld [vmem:[#allocation8 + $0x128] sm:$0xff]
    %v3013 = vld [vmem:[#allocation8 + $0x130] sm:$0xf]
    %v3014 = vld [vmem:[#allocation8 + $0x134] sm:$0xff]
    %v3015 = vld [vmem:[#allocation8 + $0x13c] sm:$0xff]
    %v3016 = vld [vmem:[#allocation8 + $0x144] sm:$0xff]
    %v3017 = vld [vmem:[#allocation8 + $0x14c] sm:$0xf]
    %v3018 = vld [vmem:[#allocation8 + $0x150] sm:$0xff]
    %v3019 = vld [vmem:[#allocation8 + $0x158] sm:$0xff]
    %v3020 = vld [vmem:[#allocation8 + $0x160] sm:$0xff]
    %v3021 = vld [vmem:[#allocation8 + $0x168] sm:$0xf]
    %v3022 = vld [vmem:[#allocation8 + $0x16c] sm:$0xff]
    %v3023 = vld [vmem:[#allocation8 + $0x174] sm:$0xff]
    %v3024 = vld [vmem:[#allocation8 + $0x17c] sm:$0xff]
    %v3025 = vld [vmem:[#allocation8 + $0x184] sm:$0xf]
    %v3026 = vld [vmem:[#allocation8 + $0x188] sm:$0xff]
    %v3027 = vld [vmem:[#allocation8 + $0x190] sm:$0xff]
    %v3028 = vld [vmem:[#allocation8 + $0x198] sm:$0xff]
    %v3029 = vld [vmem:[#allocation8 + $0x1a0] sm:$0xf]
    %v3030 = vld [vmem:[#allocation8 + $0x1a4] sm:$0xff]
    %v3031 = vld [vmem:[#allocation8 + $0x1ac] sm:$0xff]
    %v3032 = vld [vmem:[#allocation8 + $0x1b4] sm:$0xff]
    %v3033 = vld [vmem:[#allocation8 + $0x1bc] sm:$0xf]
    %v3034 = vld [vmem:[#allocation8 + $0x1c0] sm:$0xff]
    %v3035 = vld [vmem:[#allocation8 + $0x1c8] sm:$0xff]
    %v3036 = vld [vmem:[#allocation8 + $0x1d0] sm:$0xff]
    %v3037 = vld [vmem:[#allocation8 + $0x1d8] sm:$0xf]
    %v3038 = vld [vmem:[#allocation8 + $0x1dc] sm:$0xff]
    %v3039 = vld [vmem:[#allocation8 + $0x1e4] sm:$0xff]
    %v3040 = vld [vmem:[#allocation8 + $0x1ec] sm:$0xff]
    %v3041 = vld [vmem:[#allocation8 + $0x1f4] sm:$0xf]
    %v3042 = vld [vmem:[#allocation8 + $0x1f8] sm:$0xff]
    %v3043 = vld [vmem:[#allocation8 + $0x200] sm:$0xff]
    %v3044 = vld [vmem:[#allocation8 + $0x208] sm:$0xff]
    %v3045 = vld [vmem:[#allocation8 + $0x210] sm:$0xf]
    %v3046 = vld [vmem:[#allocation8 + $0x214] sm:$0xff]
    %v3047 = vld [vmem:[#allocation8 + $0x21c] sm:$0xff]
    %v3048 = vld [vmem:[#allocation8 + $0x224] sm:$0xff]
    %v3049 = vld [vmem:[#allocation8 + $0x22c] sm:$0xf]
    %v3050 = vld [vmem:[#allocation8 + $0x230] sm:$0xff]
    %v3051 = vld [vmem:[#allocation8 + $0x238] sm:$0xff]
    %v3052 = vld [vmem:[#allocation8 + $0x240] sm:$0xff]
    %v3053 = vld [vmem:[#allocation8 + $0x248] sm:$0xf]
    %v3054 = vld [vmem:[#allocation8 + $0x24c] sm:$0xff]
    %v3055 = vld [vmem:[#allocation8 + $0x254] sm:$0xff]
    %v3056 = vld [vmem:[#allocation8 + $0x25c] sm:$0xff]
    %v3057 = vld [vmem:[#allocation8 + $0x264] sm:$0xf]
    %v3058 = vld [vmem:[#allocation8 + $0x268] sm:$0xff]
    %v3059 = vld [vmem:[#allocation8 + $0x270] sm:$0xff]
    %v3060 = vld [vmem:[#allocation8 + $0x278] sm:$0xff]
    %v3061 = vld [vmem:[#allocation8 + $0x280] sm:$0xf]
    %v3062 = vld [vmem:[#allocation8 + $0x284] sm:$0xff]
    %v3063 = vld [vmem:[#allocation8 + $0x28c] sm:$0xff]
    %v3064 = vld [vmem:[#allocation8 + $0x294] sm:$0xff]
    %v3065 = vld [vmem:[#allocation8 + $0x29c] sm:$0xf]
    %v3066 = vld [vmem:[#allocation8 + $0x2a0] sm:$0xff]
    %v3067 = vld [vmem:[#allocation8 + $0x2a8] sm:$0xff]
    %v3068 = vld [vmem:[#allocation8 + $0x2b0] sm:$0xff]
    %v3069 = vld [vmem:[#allocation8 + $0x2b8] sm:$0xf]
    %v3070 = vld [vmem:[#allocation8 + $0x2bc] sm:$0xff]
    %v3071 = vld [vmem:[#allocation8 + $0x2c4] sm:$0xff]
    %v3072 = vld [vmem:[#allocation8 + $0x2cc] sm:$0xff]
    %v3073 = vld [vmem:[#allocation8 + $0x2d4] sm:$0xf]
    %v3074 = vld [vmem:[#allocation8 + $0x2d8] sm:$0xff]
    %v3075 = vld [vmem:[#allocation8 + $0x2e0] sm:$0xff]
    %v3076 = vld [vmem:[#allocation8 + $0x2e8] sm:$0xff]
    %v3077 = vld [vmem:[#allocation8 + $0x2f0] sm:$0xf]
    %v3078 = vld [vmem:[#allocation8 + $0x2f4] sm:$0xff]
    %v3079 = vld [vmem:[#allocation8 + $0x2fc] sm:$0xff]
    %v3080 = vld [vmem:[#allocation8 + $0x304] sm:$0xff]
    %v3081 = vld [vmem:[#allocation8 + $0x30c] sm:$0xf]
    %v3082 = vld [vmem:[#allocation8 + $0x310] sm:$0xff]
    %v3083 = vld [vmem:[#allocation8 + $0x318] sm:$0xff]
    %v3084 = vld [vmem:[#allocation8 + $0x320] sm:$0xff]
    %v3085 = vld [vmem:[#allocation8 + $0x328] sm:$0xf]
    %v3086 = vld [vmem:[#allocation8 + $0x32c] sm:$0xff]
    %v3087 = vld [vmem:[#allocation8 + $0x334] sm:$0xff]
    %v3088 = vld [vmem:[#allocation8 + $0x33c] sm:$0xff]
    %v3089 = vld [vmem:[#allocation8 + $0x344] sm:$0xf]
    %v3090 = vld [vmem:[#allocation8 + $0x348] sm:$0xff]
    %v3091 = vld [vmem:[#allocation8 + $0x350] sm:$0xff]
    %v3092 = vld [vmem:[#allocation8 + $0x358] sm:$0xff]
    %v3093 = vld [vmem:[#allocation8 + $0x360] sm:$0xf]
    %v3094 = vld [vmem:[#allocation8 + $0x364] sm:$0xff]
    %v3095 = vld [vmem:[#allocation8 + $0x36c] sm:$0xff]
    %v3096 = vld [vmem:[#allocation8 + $0x374] sm:$0xff]
    %v3097 = vld [vmem:[#allocation8 + $0x37c] sm:$0xf]
    %v3098 = vld [vmem:[#allocation8 + $0x380] sm:$0xff]
    %v3099 = vld [vmem:[#allocation8 + $0x388] sm:$0xff]
    %v3100 = vld [vmem:[#allocation8 + $0x390] sm:$0xff]
    %v3101 = vld [vmem:[#allocation8 + $0x398] sm:$0xf]
    %v3102 = vld [vmem:[#allocation8 + $0x39c] sm:$0xff]
    %v3103 = vld [vmem:[#allocation8 + $0x3a4] sm:$0xff]
    %v3104 = vld [vmem:[#allocation8 + $0x3ac] sm:$0xff]
    %v3105 = vld [vmem:[#allocation8 + $0x3b4] sm:$0xf]
    %v3106 = vld [vmem:[#allocation8 + $0x3b8] sm:$0xff]
    %v3107 = vld [vmem:[#allocation8 + $0x3c0] sm:$0xff]
    %v3108 = vld [vmem:[#allocation8 + $0x3c8] sm:$0xff]
    %v3109 = vld [vmem:[#allocation8 + $0x3d0] sm:$0xf]
    %v3110 = vld [vmem:[#allocation8 + $0x3d4] sm:$0xff]
    %v3111 = vld [vmem:[#allocation8 + $0x3dc] sm:$0xff]
    %v3112 = vld [vmem:[#allocation8 + $0x3e4] sm:$0xff]
    %v3113 = vld [vmem:[#allocation8 + $0x3ec] sm:$0xf]
    %v3114 = vld [vmem:[#allocation8 + $0x3f0] sm:$0xff]
    %v3115 = vld [vmem:[#allocation8 + $0x3f8] sm:$0xff]
    %v3116 = vld [vmem:[#allocation8 + $0x400] sm:$0xff]
    %v3117 = vld [vmem:[#allocation8 + $0x408] sm:$0xf]
    %v3118 = vld [vmem:[#allocation8 + $0x40c] sm:$0xff]
    %v3119 = vld [vmem:[#allocation8 + $0x414] sm:$0xff]
    %v3120 = vld [vmem:[#allocation8 + $0x41c] sm:$0xff]
    %v3121 = vld [vmem:[#allocation8 + $0x424] sm:$0xf]
    %v3122 = vld [vmem:[#allocation8 + $0x428] sm:$0xff]
    %v3123 = vld [vmem:[#allocation8 + $0x430] sm:$0xff]
    %v3124 = vld [vmem:[#allocation8 + $0x438] sm:$0xff]
    %v3125 = vld [vmem:[#allocation8 + $0x440] sm:$0xf]
    %v3126 = vld [vmem:[#allocation8 + $0x444] sm:$0xff]
    %v3127 = vld [vmem:[#allocation8 + $0x44c] sm:$0xff]
    %v3128 = vld [vmem:[#allocation8 + $0x454] sm:$0xff]
    %v3129 = vld [vmem:[#allocation8 + $0x45c] sm:$0xf]
    %v3130 = vld [vmem:[#allocation8 + $0x460] sm:$0xff]
    %v3131 = vld [vmem:[#allocation8 + $0x468] sm:$0xff]
    %v3132 = vld [vmem:[#allocation8 + $0x470] sm:$0xff]
    %v3133 = vld [vmem:[#allocation8 + $0x478] sm:$0xf]
    %v3134 = vld [vmem:[#allocation8 + $0x47c] sm:$0xff]
    %v3135 = vld [vmem:[#allocation8 + $0x484] sm:$0xff]
    %v3136 = vld [vmem:[#allocation8 + $0x48c] sm:$0xff]
    %v3137 = vld [vmem:[#allocation8 + $0x494] sm:$0xf]
    %v3138 = vld [vmem:[#allocation8 + $0x498] sm:$0xff]
    %v3139 = vld [vmem:[#allocation8 + $0x4a0] sm:$0xff]
    %v3140 = vld [vmem:[#allocation8 + $0x4a8] sm:$0xff]
    %v3141 = vld [vmem:[#allocation8 + $0x4b0] sm:$0xf]
    %v3142 = vld [vmem:[#allocation8 + $0x4b4] sm:$0xff]
    %v3143 = vld [vmem:[#allocation8 + $0x4bc] sm:$0xff]
    %v3144 = vld [vmem:[#allocation8 + $0x4c4] sm:$0xff]
    %v3145 = vld [vmem:[#allocation8 + $0x4cc] sm:$0xf]
    %v3146 = vld [vmem:[#allocation8 + $0x4d0] sm:$0xff]
    %v3147 = vld [vmem:[#allocation8 + $0x4d8] sm:$0xff]
    %v3148 = vld [vmem:[#allocation8 + $0x4e0] sm:$0xff]
    %v3149 = vld [vmem:[#allocation8 + $0x4e8] sm:$0xf]
    %v3150 = vld [vmem:[#allocation8 + $0x4ec] sm:$0xff]
    %v3151 = vld [vmem:[#allocation8 + $0x4f4] sm:$0xff]
    %v3152 = vld [vmem:[#allocation8 + $0x4fc] sm:$0xff]
    %v3153 = vld [vmem:[#allocation8 + $0x504] sm:$0xf]
    %v3154 = vld [vmem:[#allocation8 + $0x508] sm:$0xff]
    %v3155 = vld [vmem:[#allocation8 + $0x510] sm:$0xff]
    %v3156 = vld [vmem:[#allocation8 + $0x518] sm:$0xff]
    %v3157 = vld [vmem:[#allocation8 + $0x520] sm:$0xf]
    %v3158 = vld [vmem:[#allocation8 + $0x524] sm:$0xff]
    %v3159 = vld [vmem:[#allocation8 + $0x52c] sm:$0xff]
    %v3160 = vld [vmem:[#allocation8 + $0x534] sm:$0xff]
    %v3161 = vld [vmem:[#allocation8 + $0x53c] sm:$0xf]
    %v3162 = vld [vmem:[#allocation8 + $0x540] sm:$0xff]
    %v3163 = vld [vmem:[#allocation8 + $0x548] sm:$0xff]
    %v3164 = vld [vmem:[#allocation8 + $0x550] sm:$0xff]
    %v3165 = vld [vmem:[#allocation8 + $0x558] sm:$0xf]
    %v3166 = vld [vmem:[#allocation8 + $0x55c] sm:$0xff]
    %v3167 = vld [vmem:[#allocation8 + $0x564] sm:$0xff]
    %v3168 = vld [vmem:[#allocation8 + $0x56c] sm:$0xff]
    %v3169 = vld [vmem:[#allocation8 + $0x574] sm:$0xf]
    %v3170 = vld [vmem:[#allocation8 + $0x578] sm:$0xff]
    %v3171 = vld [vmem:[#allocation8 + $0x580] sm:$0xff]
    %v3172 = vld [vmem:[#allocation8 + $0x588] sm:$0xff]
    %v3173 = vld [vmem:[#allocation8 + $0x590] sm:$0xf]
    %v3174 = vld [vmem:[#allocation8 + $0x594] sm:$0xff]
    %v3175 = vld [vmem:[#allocation8 + $0x59c] sm:$0xff]
    %v3176 = vld [vmem:[#allocation8 + $0x5a4] sm:$0xff]
    %v3177 = vld [vmem:[#allocation8 + $0x5ac] sm:$0xf]
    %v3178 = vld [vmem:[#allocation8 + $0x5b0] sm:$0xff]
    %v3179 = vld [vmem:[#allocation8 + $0x5b8] sm:$0xff]
    %v3180 = vld [vmem:[#allocation8 + $0x5c0] sm:$0xff]
    %v3181 = vld [vmem:[#allocation8 + $0x5c8] sm:$0xf]
    %v3182 = vld [vmem:[#allocation8 + $0x5cc] sm:$0xff]
    %v3183 = vld [vmem:[#allocation8 + $0x5d4] sm:$0xff]
    %v3184 = vld [vmem:[#allocation8 + $0x5dc] sm:$0xff]
    %v3185 = vld [vmem:[#allocation8 + $0x5e4] sm:$0xf]
    %v3186 = vld [vmem:[#allocation8 + $0x5e8] sm:$0xff]
    %v3187 = vld [vmem:[#allocation8 + $0x5f0] sm:$0xff]
    %v3188 = vld [vmem:[#allocation8 + $0x5f8] sm:$0xff]
    %v3189 = vld [vmem:[#allocation8 + $0x600] sm:$0xf]
    %v3190 = vld [vmem:[#allocation8 + $0x604] sm:$0xff]
    %v3191 = vld [vmem:[#allocation8 + $0x60c] sm:$0xff]
    %v3192 = vld [vmem:[#allocation8 + $0x614] sm:$0xff]
    %v3193 = vld [vmem:[#allocation8 + $0x61c] sm:$0xf]
    %v3194 = vld [vmem:[#allocation8 + $0x620] sm:$0xff]
    %v3195 = vld [vmem:[#allocation8 + $0x628] sm:$0xff]
    %v3196 = vld [vmem:[#allocation8 + $0x630] sm:$0xff]
    %v3197 = vld [vmem:[#allocation8 + $0x638] sm:$0xf]
    %v3198 = vld [vmem:[#allocation8 + $0x63c] sm:$0xff]
    %v3199 = vld [vmem:[#allocation8 + $0x644] sm:$0xff]
    %v3200 = vld [vmem:[#allocation8 + $0x64c] sm:$0xff]
    %v3201 = vld [vmem:[#allocation8 + $0x654] sm:$0xf]
    %v3202 = vld [vmem:[#allocation8 + $0x658] sm:$0xff]
    %v3203 = vld [vmem:[#allocation8 + $0x660] sm:$0xff]
    %v3204 = vld [vmem:[#allocation8 + $0x668] sm:$0xff]
    %v3205 = vld [vmem:[#allocation8 + $0x670] sm:$0xf]
    %v3206 = vld [vmem:[#allocation8 + $0x674] sm:$0xff]
    %v3207 = vld [vmem:[#allocation8 + $0x67c] sm:$0xff]
    %v3208 = vld [vmem:[#allocation8 + $0x684] sm:$0xff]
    %v3209 = vld [vmem:[#allocation8 + $0x68c] sm:$0xf]
    %v3210 = vld [vmem:[#allocation8 + $0x690] sm:$0xff]
    %v3211 = vld [vmem:[#allocation8 + $0x698] sm:$0xff]
    %v3212 = vld [vmem:[#allocation8 + $0x6a0] sm:$0xff]
    %v3213 = vld [vmem:[#allocation8 + $0x6a8] sm:$0xf]
    %v3214 = vld [vmem:[#allocation8 + $0x6ac] sm:$0xff]
    %v3215 = vld [vmem:[#allocation8 + $0x6b4] sm:$0xff]
    %v3216 = vld [vmem:[#allocation8 + $0x6bc] sm:$0xff]
    %v3217 = vld [vmem:[#allocation8 + $0x6c4] sm:$0xf]
    %v3218 = vld [vmem:[#allocation8 + $0x6c8] sm:$0xff]
    %v3219 = vld [vmem:[#allocation8 + $0x6d0] sm:$0xff]
    %v3220 = vld [vmem:[#allocation8 + $0x6d8] sm:$0xff]
    %v3221 = vld [vmem:[#allocation8 + $0x6e0] sm:$0xf]
    %v3222 = vld [vmem:[#allocation8 + $0x6e4] sm:$0xff]
    %v3223 = vld [vmem:[#allocation8 + $0x6ec] sm:$0xff]
    %v3224 = vld [vmem:[#allocation8 + $0x6f4] sm:$0xff]
    %v3225 = vld [vmem:[#allocation8 + $0x6fc] sm:$0xf]
    %v3226 = vld [vmem:[#allocation8 + $0x700] sm:$0xff]
    %v3227 = vld [vmem:[#allocation8 + $0x708] sm:$0xff]
    %v3228 = vld [vmem:[#allocation8 + $0x710] sm:$0xff]
    %v3229 = vld [vmem:[#allocation8 + $0x718] sm:$0xf]
    %v3230 = vld [vmem:[#allocation8 + $0x71c] sm:$0xff]
    %v3231 = vld [vmem:[#allocation8 + $0x724] sm:$0xff]
    %v3232 = vld [vmem:[#allocation8 + $0x72c] sm:$0xff]
    %v3233 = vld [vmem:[#allocation8 + $0x734] sm:$0xf]
    %v3234 = vld [vmem:[#allocation8 + $0x738] sm:$0xff]
    %v3235 = vld [vmem:[#allocation8 + $0x740] sm:$0xff]
    %v3236 = vld [vmem:[#allocation8 + $0x748] sm:$0xff]
    %v3237 = vld [vmem:[#allocation8 + $0x750] sm:$0xf]
    %v3238 = vld [vmem:[#allocation8 + $0x754] sm:$0xff]
    %v3239 = vld [vmem:[#allocation8 + $0x75c] sm:$0xff]
    %v3240 = vld [vmem:[#allocation8 + $0x764] sm:$0xff]
    %v3241 = vld [vmem:[#allocation8 + $0x76c] sm:$0xf]
    %v3242 = vld [vmem:[#allocation8 + $0x770] sm:$0xff]
    %v3243 = vld [vmem:[#allocation8 + $0x778] sm:$0xff]
    %v3244 = vld [vmem:[#allocation8 + $0x780] sm:$0xff]
    %v3245 = vld [vmem:[#allocation8 + $0x788] sm:$0xf]
    %v3246 = vld [vmem:[#allocation8 + $0x78c] sm:$0xff]
    %v3247 = vld [vmem:[#allocation8 + $0x794] sm:$0xff]
    %v3248 = vld [vmem:[#allocation8 + $0x79c] sm:$0xff]
    %v3249 = vld [vmem:[#allocation8 + $0x7a4] sm:$0xf]
    %v3250 = vld [vmem:[#allocation8 + $0x7a8] sm:$0xff]
    %v3251 = vld [vmem:[#allocation8 + $0x7b0] sm:$0xff]
    %v3252 = vld [vmem:[#allocation8 + $0x7b8] sm:$0xff]
    %v3253 = vld [vmem:[#allocation8 + $0x7c0] sm:$0xf]
    %v3254 = vld [vmem:[#allocation8 + $0x7c4] sm:$0xff]
    %v3255 = vld [vmem:[#allocation8 + $0x7cc] sm:$0xff]
    %v3256 = vld [vmem:[#allocation8 + $0x7d4] sm:$0xff]
    %v3257 = vld [vmem:[#allocation8 + $0x7dc] sm:$0xf]
    %v3258 = vld [vmem:[#allocation8 + $0x7e0] sm:$0xff]
    %v3259 = vld [vmem:[#allocation8 + $0x7e8] sm:$0xff]
    %v3260 = vld [vmem:[#allocation8 + $0x7f0] sm:$0xff]
    %v3261 = vld [vmem:[#allocation8 + $0x7f8] sm:$0xf]
    %v3262 = vld [vmem:[#allocation8 + $0x7fc] sm:$0xff]
    %v3263 = vld [vmem:[#allocation8 + $0x804] sm:$0xff]
    %v3264 = vld [vmem:[#allocation8 + $0x80c] sm:$0xff]
    %v3265 = vld [vmem:[#allocation8 + $0x814] sm:$0xf]
    %v3266 = vld [vmem:[#allocation8 + $0x818] sm:$0xff]
    %v3267 = vld [vmem:[#allocation8 + $0x820] sm:$0xff]
    %v3268 = vld [vmem:[#allocation8 + $0x828] sm:$0xff]
    %v3269 = vld [vmem:[#allocation8 + $0x830] sm:$0xf]
    %v3270 = vld [vmem:[#allocation8 + $0x834] sm:$0xff]
    %v3271 = vld [vmem:[#allocation8 + $0x83c] sm:$0xff]
    %v3272 = vld [vmem:[#allocation8 + $0x844] sm:$0xff]
    %v3273 = vld [vmem:[#allocation8 + $0x84c] sm:$0xf]
    %v3274 = vld [vmem:[#allocation8 + $0x850] sm:$0xff]
    %v3275 = vld [vmem:[#allocation8 + $0x858] sm:$0xff]
    %v3276 = vld [vmem:[#allocation8 + $0x860] sm:$0xff]
    %v3277 = vld [vmem:[#allocation8 + $0x868] sm:$0xf]
    %v3278 = vld [vmem:[#allocation8 + $0x86c] sm:$0xff]
    %v3279 = vld [vmem:[#allocation8 + $0x874] sm:$0xff]
    %v3280 = vld [vmem:[#allocation8 + $0x87c] sm:$0xff]
    %v3281 = vld [vmem:[#allocation8 + $0x884] sm:$0xf]
    %v3282 = vld [vmem:[#allocation8 + $0x888] sm:$0xff]
    %v3283 = vld [vmem:[#allocation8 + $0x890] sm:$0xff]
    %v3284 = vld [vmem:[#allocation8 + $0x898] sm:$0xff]
    %v3285 = vld [vmem:[#allocation8 + $0x8a0] sm:$0xf]
    %v3286 = vld [vmem:[#allocation8 + $0x8a4] sm:$0xff]
    %v3287 = vld [vmem:[#allocation8 + $0x8ac] sm:$0xff]
    %v3288 = vld [vmem:[#allocation8 + $0x8b4] sm:$0xff]
    %v3289 = vld [vmem:[#allocation8 + $0x8bc] sm:$0xf]
    %v3290 = vld [vmem:[#allocation8 + $0x8c0] sm:$0xff]
    %v3291 = vld [vmem:[#allocation8 + $0x8c8] sm:$0xff]
    %v3292 = vld [vmem:[#allocation8 + $0x8d0] sm:$0xff]
    %v3293 = vld [vmem:[#allocation8 + $0x8d8] sm:$0xf]
    %v3294 = vld [vmem:[#allocation8 + $0x8dc] sm:$0xff]
    %v3295 = vld [vmem:[#allocation8 + $0x8e4] sm:$0xff]
    %v3296 = vld [vmem:[#allocation8 + $0x8ec] sm:$0xff]
    %v3297 = vld [vmem:[#allocation8 + $0x8f4] sm:$0xf]
    %v3298 = vld [vmem:[#allocation8 + $0x8f8] sm:$0xff]
    %v3299 = vld [vmem:[#allocation8 + $0x900] sm:$0xff]
    %v3300 = vld [vmem:[#allocation8 + $0x908] sm:$0xff]
    %v3301 = vld [vmem:[#allocation8 + $0x910] sm:$0xf]
    %v3302 = vld [vmem:[#allocation8 + $0x914] sm:$0xff]
    %v3303 = vld [vmem:[#allocation8 + $0x91c] sm:$0xff]
    %v3304 = vld [vmem:[#allocation8 + $0x924] sm:$0xff]
    %v3305 = vld [vmem:[#allocation8 + $0x92c] sm:$0xf]
    %v3306 = vld [vmem:[#allocation8 + $0x930] sm:$0xff]
    %v3307 = vld [vmem:[#allocation8 + $0x938] sm:$0xff]
    %v3308 = vld [vmem:[#allocation8 + $0x940] sm:$0xff]
    %v3309 = vld [vmem:[#allocation8 + $0x948] sm:$0xf]
    %v3310 = vld [vmem:[#allocation8 + $0x94c] sm:$0xff]
    %v3311 = vld [vmem:[#allocation8 + $0x954] sm:$0xff]
    %v3312 = vld [vmem:[#allocation8 + $0x95c] sm:$0xff]
    %v3313 = vld [vmem:[#allocation8 + $0x964] sm:$0xf]
    %v3314 = vld [vmem:[#allocation8 + $0x968] sm:$0xff]
    %v3315 = vld [vmem:[#allocation8 + $0x970] sm:$0xff]
    %v3316 = vld [vmem:[#allocation8 + $0x978] sm:$0xff]
    %v3317 = vld [vmem:[#allocation8 + $0x980] sm:$0xf]
    %v3318 = vld [vmem:[#allocation8 + $0x984] sm:$0xff]
    %v3319 = vld [vmem:[#allocation8 + $0x98c] sm:$0xff]
    %v3320 = vld [vmem:[#allocation8 + $0x994] sm:$0xff]
    %v3321 = vld [vmem:[#allocation8 + $0x99c] sm:$0xf]
    %v3322 = vld [vmem:[#allocation8 + $0x9a0] sm:$0xff]
    %v3323 = vld [vmem:[#allocation8 + $0x9a8] sm:$0xff]
    %v3324 = vld [vmem:[#allocation8 + $0x9b0] sm:$0xff]
    %v3325 = vld [vmem:[#allocation8 + $0x9b8] sm:$0xf]
    %v3326 = vld [vmem:[#allocation8 + $0x9bc] sm:$0xff]
    %v3327 = vld [vmem:[#allocation8 + $0x9c4] sm:$0xff]
    %v3328 = vld [vmem:[#allocation8 + $0x9cc] sm:$0xff]
    %v3329 = vld [vmem:[#allocation8 + $0x9d4] sm:$0xf]
    %v3330 = vld [vmem:[#allocation8 + $0x9d8] sm:$0xff]
    %v3331 = vld [vmem:[#allocation8 + $0x9e0] sm:$0xff]
    %v3332 = vld [vmem:[#allocation8 + $0x9e8] sm:$0xff]
    %v3333 = vld [vmem:[#allocation8 + $0x9f0] sm:$0xf]
    %v3334 = vld [vmem:[#allocation8 + $0x9f4] sm:$0xff]
    %v3335 = vld [vmem:[#allocation8 + $0x9fc] sm:$0xff]
    %v3336 = vld [vmem:[#allocation8 + $0xa04] sm:$0xff]
    %v3337 = vld [vmem:[#allocation8 + $0xa0c] sm:$0xf]
    %v3338 = vld [vmem:[#allocation8 + $0xa10] sm:$0xff]
    %v3339 = vld [vmem:[#allocation8 + $0xa18] sm:$0xff]
    %v3340 = vld [vmem:[#allocation8 + $0xa20] sm:$0xff]
    %v3341 = vld [vmem:[#allocation8 + $0xa28] sm:$0xf]
    %v3342 = vld [vmem:[#allocation8 + $0xa2c] sm:$0xff]
    %v3343 = vld [vmem:[#allocation8 + $0xa34] sm:$0xff]
    %v3344 = vld [vmem:[#allocation8 + $0xa3c] sm:$0xff]
    %v3345 = vld [vmem:[#allocation8 + $0xa44] sm:$0xf]
    %v3346 = vld [vmem:[#allocation8 + $0xa48] sm:$0xff]
    %v3347 = vld [vmem:[#allocation8 + $0xa50] sm:$0xff]
    %v3348 = vld [vmem:[#allocation8 + $0xa58] sm:$0xff]
    %v3349 = vld [vmem:[#allocation8 + $0xa60] sm:$0xf]
    %v3350 = vld [vmem:[#allocation8 + $0xa64] sm:$0xff]
    %v3351 = vld [vmem:[#allocation8 + $0xa6c] sm:$0xff]
    %v3352 = vld [vmem:[#allocation8 + $0xa74] sm:$0xff]
    %v3353 = vld [vmem:[#allocation8 + $0xa7c] sm:$0xf]
    %v3354 = vld [vmem:[#allocation8 + $0xa80] sm:$0xff]
    %v3355 = vld [vmem:[#allocation8 + $0xa88] sm:$0xff]
    %v3356 = vld [vmem:[#allocation8 + $0xa90] sm:$0xff]
    %v3357 = vld [vmem:[#allocation8 + $0xa98] sm:$0xf]
    %v3358 = vld [vmem:[#allocation8 + $0xa9c] sm:$0xff]
    %v3359 = vld [vmem:[#allocation8 + $0xaa4] sm:$0xff]
    %v3360 = vld [vmem:[#allocation8 + $0xaac] sm:$0xff]
    %v3361 = vld [vmem:[#allocation8 + $0xab4] sm:$0xf]
    %v3362 = vld [vmem:[#allocation8 + $0xab8] sm:$0xff]
    %v3363 = vld [vmem:[#allocation8 + $0xac0] sm:$0xff]
    %v3364 = vld [vmem:[#allocation8 + $0xac8] sm:$0xff]
    %v3365 = vld [vmem:[#allocation8 + $0xad0] sm:$0xf]
    %v3366 = vld [vmem:[#allocation8 + $0xad4] sm:$0xff]
    %v3367 = vld [vmem:[#allocation8 + $0xadc] sm:$0xff]
    %v3368 = vld [vmem:[#allocation8 + $0xae4] sm:$0xff]
    %v3369 = vld [vmem:[#allocation8 + $0xaec] sm:$0xf]
    %v3370 = vld [vmem:[#allocation8 + $0xaf0] sm:$0xff]
    %v3371 = vld [vmem:[#allocation8 + $0xaf8] sm:$0xff]
    %v3372 = vld [vmem:[#allocation8 + $0xb00] sm:$0xff]
    %v3373 = vld [vmem:[#allocation8 + $0xb08] sm:$0xf]
    %v3374 = vld [vmem:[#allocation8 + $0xb0c] sm:$0xff]
    %v3375 = vld [vmem:[#allocation8 + $0xb14] sm:$0xff]
    %v3376 = vld [vmem:[#allocation8 + $0xb1c] sm:$0xff]
    %v3377 = vld [vmem:[#allocation8 + $0xb24] sm:$0xf]
    %v3378 = vld [vmem:[#allocation8 + $0xb28] sm:$0xff]
    %v3379 = vld [vmem:[#allocation8 + $0xb30] sm:$0xff]
    %v3380 = vld [vmem:[#allocation8 + $0xb38] sm:$0xff]
    %v3381 = vld [vmem:[#allocation8 + $0xb40] sm:$0xf]
    %v3382 = vld [vmem:[#allocation8 + $0xb44] sm:$0xff]
    %v3383 = vld [vmem:[#allocation8 + $0xb4c] sm:$0xff]
    %v3384 = vld [vmem:[#allocation8 + $0xb54] sm:$0xff]
    %v3385 = vld [vmem:[#allocation8 + $0xb5c] sm:$0xf]
    %v3386 = vld [vmem:[#allocation8 + $0xb60] sm:$0xff]
    %v3387 = vld [vmem:[#allocation8 + $0xb68] sm:$0xff]
    %v3388 = vld [vmem:[#allocation8 + $0xb70] sm:$0xff]
    %v3389 = vld [vmem:[#allocation8 + $0xb78] sm:$0xf]
    %v3390 = vld [vmem:[#allocation8 + $0xb7c] sm:$0xff]
    %v3391 = vld [vmem:[#allocation8 + $0xb84] sm:$0xff]
    %v3392 = vld [vmem:[#allocation8 + $0xb8c] sm:$0xff]
    %v3393 = vld [vmem:[#allocation8 + $0xb94] sm:$0xf]
    %v3394 = vld [vmem:[#allocation8 + $0xb98] sm:$0xff]
    %v3395 = vld [vmem:[#allocation8 + $0xba0] sm:$0xff]
    %v3396 = vld [vmem:[#allocation8 + $0xba8] sm:$0xff]
    %v3397 = vld [vmem:[#allocation8 + $0xbb0] sm:$0xf]
    %v3398 = vld [vmem:[#allocation8 + $0xbb4] sm:$0xff]
    %v3399 = vld [vmem:[#allocation8 + $0xbbc] sm:$0xff]
    %v3400 = vld [vmem:[#allocation8 + $0xbc4] sm:$0xff]
    %v3401 = vld [vmem:[#allocation8 + $0xbcc] sm:$0xf]
    %v3402 = vld [vmem:[#allocation8 + $0xbd0] sm:$0xff]
    %v3403 = vld [vmem:[#allocation8 + $0xbd8] sm:$0xff]
    %v3404 = vld [vmem:[#allocation8 + $0xbe0] sm:$0xff]
    %v3405 = vld [vmem:[#allocation8 + $0xbe8] sm:$0xf]
    %v3406 = vld [vmem:[#allocation8 + $0xbec] sm:$0xff]
    %v3407 = vld [vmem:[#allocation8 + $0xbf4] sm:$0xff]
    %v3408 = vld [vmem:[#allocation8 + $0xbfc] sm:$0xff]
    %v3409 = vld [vmem:[#allocation8 + $0xc04] sm:$0xf]
    %v3410 = vld [vmem:[#allocation8 + $0xc08] sm:$0xff]
    %v3411 = vld [vmem:[#allocation8 + $0xc10] sm:$0xff]
    %v3412 = vld [vmem:[#allocation8 + $0xc18] sm:$0xff]
    %v3413 = vld [vmem:[#allocation8 + $0xc20] sm:$0xf]
    %v3414 = vld [vmem:[#allocation8 + $0xc24] sm:$0xff]
    %v3415 = vld [vmem:[#allocation8 + $0xc2c] sm:$0xff]
    %v3416 = vld [vmem:[#allocation8 + $0xc34] sm:$0xff]
    %v3417 = vld [vmem:[#allocation8 + $0xc3c] sm:$0xf]
    %v3418 = vld [vmem:[#allocation10] sm:$0xff]
    %v3420 = vperm.slane %v3418, 0
    %v3421 = vperm.slane %v3418, 1
    %v3422 = vperm.slane %v3418, 2
    %v3423 = vperm.slane %v3418, 3
    %v3424 = vperm.slane %v3418, 4
    %v3425 = vperm.slane %v3418, 5
    %v3426 = vperm.slane %v3418, 6
    %v3882 = vunpack.c.l.b16 %v2970
    %v3883 = vunpack.c.h.b16 %v2970
    %v3884 = vunpack.c.l.b16 %v2971
    %v3885 = vunpack.c.h.b16 %v2971
    %v3886 = vunpack.c.l.b16 %v2972
    %v3887 = vunpack.c.h.b16 %v2972
    %v3888 = vunpack.c.l.b16 %v2973
    %v3889 = vunpack.c.l.b16 %v2974
    %v3890 = vunpack.c.h.b16 %v2974
    %v3891 = vunpack.c.l.b16 %v2975
    %v3892 = vunpack.c.h.b16 %v2975
    %v3893 = vunpack.c.l.b16 %v2976
    %v3894 = vunpack.c.h.b16 %v2976
    %v3895 = vunpack.c.l.b16 %v2977
    %v3896 = vunpack.c.l.b16 %v2978
    %v3897 = vunpack.c.h.b16 %v2978
    %v3898 = vunpack.c.l.b16 %v2979
    %v3899 = vunpack.c.h.b16 %v2979
    %v3900 = vunpack.c.l.b16 %v2980
    %v3901 = vunpack.c.h.b16 %v2980
    %v3902 = vunpack.c.l.b16 %v2981
    %v3903 = vunpack.c.l.b16 %v2982
    %v3904 = vunpack.c.h.b16 %v2982
    %v3905 = vunpack.c.l.b16 %v2983
    %v3906 = vunpack.c.h.b16 %v2983
    %v3907 = vunpack.c.l.b16 %v2984
    %v3908 = vunpack.c.h.b16 %v2984
    %v3909 = vunpack.c.l.b16 %v2985
    %v3910 = vunpack.c.l.b16 %v2986
    %v3911 = vunpack.c.h.b16 %v2986
    %v3912 = vunpack.c.l.b16 %v2987
    %v3913 = vunpack.c.h.b16 %v2987
    %v3914 = vunpack.c.l.b16 %v2988
    %v3915 = vunpack.c.h.b16 %v2988
    %v3916 = vunpack.c.l.b16 %v2989
    %v3917 = vunpack.c.l.b16 %v2990
    %v3918 = vunpack.c.h.b16 %v2990
    %v3919 = vunpack.c.l.b16 %v2991
    %v3920 = vunpack.c.h.b16 %v2991
    %v3921 = vunpack.c.l.b16 %v2992
    %v3922 = vunpack.c.h.b16 %v2992
    %v3923 = vunpack.c.l.b16 %v2993
    %v3924 = vunpack.c.l.b16 %v2994
    %v3925 = vunpack.c.h.b16 %v2994
    %v3926 = vunpack.c.l.b16 %v2995
    %v3927 = vunpack.c.h.b16 %v2995
    %v3928 = vunpack.c.l.b16 %v2996
    %v3929 = vunpack.c.h.b16 %v2996
    %v3930 = vunpack.c.l.b16 %v2997
    %v3931 = vunpack.c.l.b16 %v2998
    %v3932 = vunpack.c.h.b16 %v2998
    %v3933 = vunpack.c.l.b16 %v2999
    %v3934 = vunpack.c.h.b16 %v2999
    %v3935 = vunpack.c.l.b16 %v3000
    %v3936 = vunpack.c.h.b16 %v3000
    %v3937 = vunpack.c.l.b16 %v3001
    %v3938 = vunpack.c.l.b16 %v3002
    %v3939 = vunpack.c.h.b16 %v3002
    %v3940 = vunpack.c.l.b16 %v3003
    %v3941 = vunpack.c.h.b16 %v3003
    %v3942 = vunpack.c.l.b16 %v3004
    %v3943 = vunpack.c.h.b16 %v3004
    %v3944 = vunpack.c.l.b16 %v3005
    %v3945 = vunpack.c.l.b16 %v3006
    %v3946 = vunpack.c.h.b16 %v3006
    %v3947 = vunpack.c.l.b16 %v3007
    %v3948 = vunpack.c.h.b16 %v3007
    %v3949 = vunpack.c.l.b16 %v3008
    %v3950 = vunpack.c.h.b16 %v3008
    %v3951 = vunpack.c.l.b16 %v3009
    %v3952 = vunpack.c.l.b16 %v3010
    %v3953 = vunpack.c.h.b16 %v3010
    %v3954 = vunpack.c.l.b16 %v3011
    %v3955 = vunpack.c.h.b16 %v3011
    %v3956 = vunpack.c.l.b16 %v3012
    %v3957 = vunpack.c.h.b16 %v3012
    %v3958 = vunpack.c.l.b16 %v3013
    %v3959 = vunpack.c.l.b16 %v3014
    %v3960 = vunpack.c.h.b16 %v3014
    %v3961 = vunpack.c.l.b16 %v3015
    %v3962 = vunpack.c.h.b16 %v3015
    %v3963 = vunpack.c.l.b16 %v3016
    %v3964 = vunpack.c.h.b16 %v3016
    %v3965 = vunpack.c.l.b16 %v3017
    %v3966 = vunpack.c.l.b16 %v3018
    %v3967 = vunpack.c.h.b16 %v3018
    %v3968 = vunpack.c.l.b16 %v3019
    %v3969 = vunpack.c.h.b16 %v3019
    %v3970 = vunpack.c.l.b16 %v3020
    %v3971 = vunpack.c.h.b16 %v3020
    %v3972 = vunpack.c.l.b16 %v3021
    %v3973 = vunpack.c.l.b16 %v3022
    %v3974 = vunpack.c.h.b16 %v3022
    %v3975 = vunpack.c.l.b16 %v3023
    %v3976 = vunpack.c.h.b16 %v3023
    %v3977 = vunpack.c.l.b16 %v3024
    %v3978 = vunpack.c.h.b16 %v3024
    %v3979 = vunpack.c.l.b16 %v3025
    %v3980 = vunpack.c.l.b16 %v3026
    %v3981 = vunpack.c.h.b16 %v3026
    %v3982 = vunpack.c.l.b16 %v3027
    %v3983 = vunpack.c.h.b16 %v3027
    %v3984 = vunpack.c.l.b16 %v3028
    %v3985 = vunpack.c.h.b16 %v3028
    %v3986 = vunpack.c.l.b16 %v3029
    %v3987 = vunpack.c.l.b16 %v3030
    %v3988 = vunpack.c.h.b16 %v3030
    %v3989 = vunpack.c.l.b16 %v3031
    %v3990 = vunpack.c.h.b16 %v3031
    %v3991 = vunpack.c.l.b16 %v3032
    %v3992 = vunpack.c.h.b16 %v3032
    %v3993 = vunpack.c.l.b16 %v3033
    %v3994 = vunpack.c.l.b16 %v3034
    %v3995 = vunpack.c.h.b16 %v3034
    %v3996 = vunpack.c.l.b16 %v3035
    %v3997 = vunpack.c.h.b16 %v3035
    %v3998 = vunpack.c.l.b16 %v3036
    %v3999 = vunpack.c.h.b16 %v3036
    %v4000 = vunpack.c.l.b16 %v3037
    %v4001 = vunpack.c.l.b16 %v3038
    %v4002 = vunpack.c.h.b16 %v3038
    %v4003 = vunpack.c.l.b16 %v3039
    %v4004 = vunpack.c.h.b16 %v3039
    %v4005 = vunpack.c.l.b16 %v3040
    %v4006 = vunpack.c.h.b16 %v3040
    %v4007 = vunpack.c.l.b16 %v3041
    %v4008 = vunpack.c.l.b16 %v3042
    %v4009 = vunpack.c.h.b16 %v3042
    %v4010 = vunpack.c.l.b16 %v3043
    %v4011 = vunpack.c.h.b16 %v3043
    %v4012 = vunpack.c.l.b16 %v3044
    %v4013 = vunpack.c.h.b16 %v3044
    %v4014 = vunpack.c.l.b16 %v3045
    %v4015 = vunpack.c.l.b16 %v3046
    %v4016 = vunpack.c.h.b16 %v3046
    %v4017 = vunpack.c.l.b16 %v3047
    %v4018 = vunpack.c.h.b16 %v3047
    %v4019 = vunpack.c.l.b16 %v3048
    %v4020 = vunpack.c.h.b16 %v3048
    %v4021 = vunpack.c.l.b16 %v3049
    %v4022 = vunpack.c.l.b16 %v3050
    %v4023 = vunpack.c.h.b16 %v3050
    %v4024 = vunpack.c.l.b16 %v3051
    %v4025 = vunpack.c.h.b16 %v3051
    %v4026 = vunpack.c.l.b16 %v3052
    %v4027 = vunpack.c.h.b16 %v3052
    %v4028 = vunpack.c.l.b16 %v3053
    %v4029 = vunpack.c.l.b16 %v3054
    %v4030 = vunpack.c.h.b16 %v3054
    %v4031 = vunpack.c.l.b16 %v3055
    %v4032 = vunpack.c.h.b16 %v3055
    %v4033 = vunpack.c.l.b16 %v3056
    %v4034 = vunpack.c.h.b16 %v3056
    %v4035 = vunpack.c.l.b16 %v3057
    %v4036 = vunpack.c.l.b16 %v3058
    %v4037 = vunpack.c.h.b16 %v3058
    %v4038 = vunpack.c.l.b16 %v3059
    %v4039 = vunpack.c.h.b16 %v3059
    %v4040 = vunpack.c.l.b16 %v3060
    %v4041 = vunpack.c.h.b16 %v3060
    %v4042 = vunpack.c.l.b16 %v3061
    %v4043 = vunpack.c.l.b16 %v3062
    %v4044 = vunpack.c.h.b16 %v3062
    %v4045 = vunpack.c.l.b16 %v3063
    %v4046 = vunpack.c.h.b16 %v3063
    %v4047 = vunpack.c.l.b16 %v3064
    %v4048 = vunpack.c.h.b16 %v3064
    %v4049 = vunpack.c.l.b16 %v3065
    %v4050 = vunpack.c.l.b16 %v3066
    %v4051 = vunpack.c.h.b16 %v3066
    %v4052 = vunpack.c.l.b16 %v3067
    %v4053 = vunpack.c.h.b16 %v3067
    %v4054 = vunpack.c.l.b16 %v3068
    %v4055 = vunpack.c.h.b16 %v3068
    %v4056 = vunpack.c.l.b16 %v3069
    %v4057 = vunpack.c.l.b16 %v3070
    %v4058 = vunpack.c.h.b16 %v3070
    %v4059 = vunpack.c.l.b16 %v3071
    %v4060 = vunpack.c.h.b16 %v3071
    %v4061 = vunpack.c.l.b16 %v3072
    %v4062 = vunpack.c.h.b16 %v3072
    %v4063 = vunpack.c.l.b16 %v3073
    %v4064 = vunpack.c.l.b16 %v3074
    %v4065 = vunpack.c.h.b16 %v3074
    %v4066 = vunpack.c.l.b16 %v3075
    %v4067 = vunpack.c.h.b16 %v3075
    %v4068 = vunpack.c.l.b16 %v3076
    %v4069 = vunpack.c.h.b16 %v3076
    %v4070 = vunpack.c.l.b16 %v3077
    %v4071 = vunpack.c.l.b16 %v3078
    %v4072 = vunpack.c.h.b16 %v3078
    %v4073 = vunpack.c.l.b16 %v3079
    %v4074 = vunpack.c.h.b16 %v3079
    %v4075 = vunpack.c.l.b16 %v3080
    %v4076 = vunpack.c.h.b16 %v3080
    %v4077 = vunpack.c.l.b16 %v3081
    %v4078 = vunpack.c.l.b16 %v3082
    %v4079 = vunpack.c.h.b16 %v3082
    %v4080 = vunpack.c.l.b16 %v3083
    %v4081 = vunpack.c.h.b16 %v3083
    %v4082 = vunpack.c.l.b16 %v3084
    %v4083 = vunpack.c.h.b16 %v3084
    %v4084 = vunpack.c.l.b16 %v3085
    %v4085 = vunpack.c.l.b16 %v3086
    %v4086 = vunpack.c.h.b16 %v3086
    %v4087 = vunpack.c.l.b16 %v3087
    %v4088 = vunpack.c.h.b16 %v3087
    %v4089 = vunpack.c.l.b16 %v3088
    %v4090 = vunpack.c.h.b16 %v3088
    %v4091 = vunpack.c.l.b16 %v3089
    %v4092 = vunpack.c.l.b16 %v3090
    %v4093 = vunpack.c.h.b16 %v3090
    %v4094 = vunpack.c.l.b16 %v3091
    %v4095 = vunpack.c.h.b16 %v3091
    %v4096 = vunpack.c.l.b16 %v3092
    %v4097 = vunpack.c.h.b16 %v3092
    %v4098 = vunpack.c.l.b16 %v3093
    %v4099 = vunpack.c.l.b16 %v3094
    %v4100 = vunpack.c.h.b16 %v3094
    %v4101 = vunpack.c.l.b16 %v3095
    %v4102 = vunpack.c.h.b16 %v3095
    %v4103 = vunpack.c.l.b16 %v3096
    %v4104 = vunpack.c.h.b16 %v3096
    %v4105 = vunpack.c.l.b16 %v3097
    %v4106 = vunpack.c.l.b16 %v3098
    %v4107 = vunpack.c.h.b16 %v3098
    %v4108 = vunpack.c.l.b16 %v3099
    %v4109 = vunpack.c.h.b16 %v3099
    %v4110 = vunpack.c.l.b16 %v3100
    %v4111 = vunpack.c.h.b16 %v3100
    %v4112 = vunpack.c.l.b16 %v3101
    %v4113 = vunpack.c.l.b16 %v3102
    %v4114 = vunpack.c.h.b16 %v3102
    %v4115 = vunpack.c.l.b16 %v3103
    %v4116 = vunpack.c.h.b16 %v3103
    %v4117 = vunpack.c.l.b16 %v3104
    %v4118 = vunpack.c.h.b16 %v3104
    %v4119 = vunpack.c.l.b16 %v3105
    %v4120 = vunpack.c.l.b16 %v3106
    %v4121 = vunpack.c.h.b16 %v3106
    %v4122 = vunpack.c.l.b16 %v3107
    %v4123 = vunpack.c.h.b16 %v3107
    %v4124 = vunpack.c.l.b16 %v3108
    %v4125 = vunpack.c.h.b16 %v3108
    %v4126 = vunpack.c.l.b16 %v3109
    %v4127 = vunpack.c.l.b16 %v3110
    %v4128 = vunpack.c.h.b16 %v3110
    %v4129 = vunpack.c.l.b16 %v3111
    %v4130 = vunpack.c.h.b16 %v3111
    %v4131 = vunpack.c.l.b16 %v3112
    %v4132 = vunpack.c.h.b16 %v3112
    %v4133 = vunpack.c.l.b16 %v3113
    %v4134 = vunpack.c.l.b16 %v3114
    %v4135 = vunpack.c.h.b16 %v3114
    %v4136 = vunpack.c.l.b16 %v3115
    %v4137 = vunpack.c.h.b16 %v3115
    %v4138 = vunpack.c.l.b16 %v3116
    %v4139 = vunpack.c.h.b16 %v3116
    %v4140 = vunpack.c.l.b16 %v3117
    %v4141 = vunpack.c.l.b16 %v3118
    %v4142 = vunpack.c.h.b16 %v3118
    %v4143 = vunpack.c.l.b16 %v3119
    %v4144 = vunpack.c.h.b16 %v3119
    %v4145 = vunpack.c.l.b16 %v3120
    %v4146 = vunpack.c.h.b16 %v3120
    %v4147 = vunpack.c.l.b16 %v3121
    %v4148 = vunpack.c.l.b16 %v3122
    %v4149 = vunpack.c.h.b16 %v3122
    %v4150 = vunpack.c.l.b16 %v3123
    %v4151 = vunpack.c.h.b16 %v3123
    %v4152 = vunpack.c.l.b16 %v3124
    %v4153 = vunpack.c.h.b16 %v3124
    %v4154 = vunpack.c.l.b16 %v3125
    %v4155 = vunpack.c.l.b16 %v3126
    %v4156 = vunpack.c.h.b16 %v3126
    %v4157 = vunpack.c.l.b16 %v3127
    %v4158 = vunpack.c.h.b16 %v3127
    %v4159 = vunpack.c.l.b16 %v3128
    %v4160 = vunpack.c.h.b16 %v3128
    %v4161 = vunpack.c.l.b16 %v3129
    %v4162 = vunpack.c.l.b16 %v3130
    %v4163 = vunpack.c.h.b16 %v3130
    %v4164 = vunpack.c.l.b16 %v3131
    %v4165 = vunpack.c.h.b16 %v3131
    %v4166 = vunpack.c.l.b16 %v3132
    %v4167 = vunpack.c.h.b16 %v3132
    %v4168 = vunpack.c.l.b16 %v3133
    %v4169 = vunpack.c.l.b16 %v3134
    %v4170 = vunpack.c.h.b16 %v3134
    %v4171 = vunpack.c.l.b16 %v3135
    %v4172 = vunpack.c.h.b16 %v3135
    %v4173 = vunpack.c.l.b16 %v3136
    %v4174 = vunpack.c.h.b16 %v3136
    %v4175 = vunpack.c.l.b16 %v3137
    %v4176 = vunpack.c.l.b16 %v3138
    %v4177 = vunpack.c.h.b16 %v3138
    %v4178 = vunpack.c.l.b16 %v3139
    %v4179 = vunpack.c.h.b16 %v3139
    %v4180 = vunpack.c.l.b16 %v3140
    %v4181 = vunpack.c.h.b16 %v3140
    %v4182 = vunpack.c.l.b16 %v3141
    %v4183 = vunpack.c.l.b16 %v3142
    %v4184 = vunpack.c.h.b16 %v3142
    %v4185 = vunpack.c.l.b16 %v3143
    %v4186 = vunpack.c.h.b16 %v3143
    %v4187 = vunpack.c.l.b16 %v3144
    %v4188 = vunpack.c.h.b16 %v3144
    %v4189 = vunpack.c.l.b16 %v3145
    %v4190 = vunpack.c.l.b16 %v3146
    %v4191 = vunpack.c.h.b16 %v3146
    %v4192 = vunpack.c.l.b16 %v3147
    %v4193 = vunpack.c.h.b16 %v3147
    %v4194 = vunpack.c.l.b16 %v3148
    %v4195 = vunpack.c.h.b16 %v3148
    %v4196 = vunpack.c.l.b16 %v3149
    %v4197 = vunpack.c.l.b16 %v3150
    %v4198 = vunpack.c.h.b16 %v3150
    %v4199 = vunpack.c.l.b16 %v3151
    %v4200 = vunpack.c.h.b16 %v3151
    %v4201 = vunpack.c.l.b16 %v3152
    %v4202 = vunpack.c.h.b16 %v3152
    %v4203 = vunpack.c.l.b16 %v3153
    %v4204 = vunpack.c.l.b16 %v3154
    %v4205 = vunpack.c.h.b16 %v3154
    %v4206 = vunpack.c.l.b16 %v3155
    %v4207 = vunpack.c.h.b16 %v3155
    %v4208 = vunpack.c.l.b16 %v3156
    %v4209 = vunpack.c.h.b16 %v3156
    %v4210 = vunpack.c.l.b16 %v3157
    %v4211 = vunpack.c.l.b16 %v3158
    %v4212 = vunpack.c.h.b16 %v3158
    %v4213 = vunpack.c.l.b16 %v3159
    %v4214 = vunpack.c.h.b16 %v3159
    %v4215 = vunpack.c.l.b16 %v3160
    %v4216 = vunpack.c.h.b16 %v3160
    %v4217 = vunpack.c.l.b16 %v3161
    %v4218 = vunpack.c.l.b16 %v3162
    %v4219 = vunpack.c.h.b16 %v3162
    %v4220 = vunpack.c.l.b16 %v3163
    %v4221 = vunpack.c.h.b16 %v3163
    %v4222 = vunpack.c.l.b16 %v3164
    %v4223 = vunpack.c.h.b16 %v3164
    %v4224 = vunpack.c.l.b16 %v3165
    %v4225 = vunpack.c.l.b16 %v3166
    %v4226 = vunpack.c.h.b16 %v3166
    %v4227 = vunpack.c.l.b16 %v3167
    %v4228 = vunpack.c.h.b16 %v3167
    %v4229 = vunpack.c.l.b16 %v3168
    %v4230 = vunpack.c.h.b16 %v3168
    %v4231 = vunpack.c.l.b16 %v3169
    %v4232 = vunpack.c.l.b16 %v3170
    %v4233 = vunpack.c.h.b16 %v3170
    %v4234 = vunpack.c.l.b16 %v3171
    %v4235 = vunpack.c.h.b16 %v3171
    %v4236 = vunpack.c.l.b16 %v3172
    %v4237 = vunpack.c.h.b16 %v3172
    %v4238 = vunpack.c.l.b16 %v3173
    %v4239 = vunpack.c.l.b16 %v3174
    %v4240 = vunpack.c.h.b16 %v3174
    %v4241 = vunpack.c.l.b16 %v3175
    %v4242 = vunpack.c.h.b16 %v3175
    %v4243 = vunpack.c.l.b16 %v3176
    %v4244 = vunpack.c.h.b16 %v3176
    %v4245 = vunpack.c.l.b16 %v3177
    %v4246 = vunpack.c.l.b16 %v3178
    %v4247 = vunpack.c.h.b16 %v3178
    %v4248 = vunpack.c.l.b16 %v3179
    %v4249 = vunpack.c.h.b16 %v3179
    %v4250 = vunpack.c.l.b16 %v3180
    %v4251 = vunpack.c.h.b16 %v3180
    %v4252 = vunpack.c.l.b16 %v3181
    %v4253 = vunpack.c.l.b16 %v3182
    %v4254 = vunpack.c.h.b16 %v3182
    %v4255 = vunpack.c.l.b16 %v3183
    %v4256 = vunpack.c.h.b16 %v3183
    %v4257 = vunpack.c.l.b16 %v3184
    %v4258 = vunpack.c.h.b16 %v3184
    %v4259 = vunpack.c.l.b16 %v3185
    %v4260 = vunpack.c.l.b16 %v3186
    %v4261 = vunpack.c.h.b16 %v3186
    %v4262 = vunpack.c.l.b16 %v3187
    %v4263 = vunpack.c.h.b16 %v3187
    %v4264 = vunpack.c.l.b16 %v3188
    %v4265 = vunpack.c.h.b16 %v3188
    %v4266 = vunpack.c.l.b16 %v3189
    %v4267 = vunpack.c.l.b16 %v3190
    %v4268 = vunpack.c.h.b16 %v3190
    %v4269 = vunpack.c.l.b16 %v3191
    %v4270 = vunpack.c.h.b16 %v3191
    %v4271 = vunpack.c.l.b16 %v3192
    %v4272 = vunpack.c.h.b16 %v3192
    %v4273 = vunpack.c.l.b16 %v3193
    %v4274 = vunpack.c.l.b16 %v3194
    %v4275 = vunpack.c.h.b16 %v3194
    %v4276 = vunpack.c.l.b16 %v3195
    %v4277 = vunpack.c.h.b16 %v3195
    %v4278 = vunpack.c.l.b16 %v3196
    %v4279 = vunpack.c.h.b16 %v3196
    %v4280 = vunpack.c.l.b16 %v3197
    %v4281 = vunpack.c.l.b16 %v3198
    %v4282 = vunpack.c.h.b16 %v3198
    %v4283 = vunpack.c.l.b16 %v3199
    %v4284 = vunpack.c.h.b16 %v3199
    %v4285 = vunpack.c.l.b16 %v3200
    %v4286 = vunpack.c.h.b16 %v3200
    %v4287 = vunpack.c.l.b16 %v3201
    %v4288 = vunpack.c.l.b16 %v3202
    %v4289 = vunpack.c.h.b16 %v3202
    %v4290 = vunpack.c.l.b16 %v3203
    %v4291 = vunpack.c.h.b16 %v3203
    %v4292 = vunpack.c.l.b16 %v3204
    %v4293 = vunpack.c.h.b16 %v3204
    %v4294 = vunpack.c.l.b16 %v3205
    %v4295 = vunpack.c.l.b16 %v3206
    %v4296 = vunpack.c.h.b16 %v3206
    %v4297 = vunpack.c.l.b16 %v3207
    %v4298 = vunpack.c.h.b16 %v3207
    %v4299 = vunpack.c.l.b16 %v3208
    %v4300 = vunpack.c.h.b16 %v3208
    %v4301 = vunpack.c.l.b16 %v3209
    %v4302 = vunpack.c.l.b16 %v3210
    %v4303 = vunpack.c.h.b16 %v3210
    %v4304 = vunpack.c.l.b16 %v3211
    %v4305 = vunpack.c.h.b16 %v3211
    %v4306 = vunpack.c.l.b16 %v3212
    %v4307 = vunpack.c.h.b16 %v3212
    %v4308 = vunpack.c.l.b16 %v3213
    %v4309 = vunpack.c.l.b16 %v3214
    %v4310 = vunpack.c.h.b16 %v3214
    %v4311 = vunpack.c.l.b16 %v3215
    %v4312 = vunpack.c.h.b16 %v3215
    %v4313 = vunpack.c.l.b16 %v3216
    %v4314 = vunpack.c.h.b16 %v3216
    %v4315 = vunpack.c.l.b16 %v3217
    %v4316 = vunpack.c.l.b16 %v3218
    %v4317 = vunpack.c.h.b16 %v3218
    %v4318 = vunpack.c.l.b16 %v3219
    %v4319 = vunpack.c.h.b16 %v3219
    %v4320 = vunpack.c.l.b16 %v3220
    %v4321 = vunpack.c.h.b16 %v3220
    %v4322 = vunpack.c.l.b16 %v3221
    %v4323 = vunpack.c.l.b16 %v3222
    %v4324 = vunpack.c.h.b16 %v3222
    %v4325 = vunpack.c.l.b16 %v3223
    %v4326 = vunpack.c.h.b16 %v3223
    %v4327 = vunpack.c.l.b16 %v3224
    %v4328 = vunpack.c.h.b16 %v3224
    %v4329 = vunpack.c.l.b16 %v3225
    %v4330 = vunpack.c.l.b16 %v3226
    %v4331 = vunpack.c.h.b16 %v3226
    %v4332 = vunpack.c.l.b16 %v3227
    %v4333 = vunpack.c.h.b16 %v3227
    %v4334 = vunpack.c.l.b16 %v3228
    %v4335 = vunpack.c.h.b16 %v3228
    %v4336 = vunpack.c.l.b16 %v3229
    %v4337 = vunpack.c.l.b16 %v3230
    %v4338 = vunpack.c.h.b16 %v3230
    %v4339 = vunpack.c.l.b16 %v3231
    %v4340 = vunpack.c.h.b16 %v3231
    %v4341 = vunpack.c.l.b16 %v3232
    %v4342 = vunpack.c.h.b16 %v3232
    %v4343 = vunpack.c.l.b16 %v3233
    %v4344 = vunpack.c.l.b16 %v3234
    %v4345 = vunpack.c.h.b16 %v3234
    %v4346 = vunpack.c.l.b16 %v3235
    %v4347 = vunpack.c.h.b16 %v3235
    %v4348 = vunpack.c.l.b16 %v3236
    %v4349 = vunpack.c.h.b16 %v3236
    %v4350 = vunpack.c.l.b16 %v3237
    %v4351 = vunpack.c.l.b16 %v3238
    %v4352 = vunpack.c.h.b16 %v3238
    %v4353 = vunpack.c.l.b16 %v3239
    %v4354 = vunpack.c.h.b16 %v3239
    %v4355 = vunpack.c.l.b16 %v3240
    %v4356 = vunpack.c.h.b16 %v3240
    %v4357 = vunpack.c.l.b16 %v3241
    %v4358 = vunpack.c.l.b16 %v3242
    %v4359 = vunpack.c.h.b16 %v3242
    %v4360 = vunpack.c.l.b16 %v3243
    %v4361 = vunpack.c.h.b16 %v3243
    %v4362 = vunpack.c.l.b16 %v3244
    %v4363 = vunpack.c.h.b16 %v3244
    %v4364 = vunpack.c.l.b16 %v3245
    %v4365 = vunpack.c.l.b16 %v3246
    %v4366 = vunpack.c.h.b16 %v3246
    %v4367 = vunpack.c.l.b16 %v3247
    %v4368 = vunpack.c.h.b16 %v3247
    %v4369 = vunpack.c.l.b16 %v3248
    %v4370 = vunpack.c.h.b16 %v3248
    %v4371 = vunpack.c.l.b16 %v3249
    %v4372 = vunpack.c.l.b16 %v3250
    %v4373 = vunpack.c.h.b16 %v3250
    %v4374 = vunpack.c.l.b16 %v3251
    %v4375 = vunpack.c.h.b16 %v3251
    %v4376 = vunpack.c.l.b16 %v3252
    %v4377 = vunpack.c.h.b16 %v3252
    %v4378 = vunpack.c.l.b16 %v3253
    %v4379 = vunpack.c.l.b16 %v3254
    %v4380 = vunpack.c.h.b16 %v3254
    %v4381 = vunpack.c.l.b16 %v3255
    %v4382 = vunpack.c.h.b16 %v3255
    %v4383 = vunpack.c.l.b16 %v3256
    %v4384 = vunpack.c.h.b16 %v3256
    %v4385 = vunpack.c.l.b16 %v3257
    %v4386 = vunpack.c.l.b16 %v3258
    %v4387 = vunpack.c.h.b16 %v3258
    %v4388 = vunpack.c.l.b16 %v3259
    %v4389 = vunpack.c.h.b16 %v3259
    %v4390 = vunpack.c.l.b16 %v3260
    %v4391 = vunpack.c.h.b16 %v3260
    %v4392 = vunpack.c.l.b16 %v3261
    %v4393 = vunpack.c.l.b16 %v3262
    %v4394 = vunpack.c.h.b16 %v3262
    %v4395 = vunpack.c.l.b16 %v3263
    %v4396 = vunpack.c.h.b16 %v3263
    %v4397 = vunpack.c.l.b16 %v3264
    %v4398 = vunpack.c.h.b16 %v3264
    %v4399 = vunpack.c.l.b16 %v3265
    %v4400 = vunpack.c.l.b16 %v3266
    %v4401 = vunpack.c.h.b16 %v3266
    %v4402 = vunpack.c.l.b16 %v3267
    %v4403 = vunpack.c.h.b16 %v3267
    %v4404 = vunpack.c.l.b16 %v3268
    %v4405 = vunpack.c.h.b16 %v3268
    %v4406 = vunpack.c.l.b16 %v3269
    %v4407 = vunpack.c.l.b16 %v3270
    %v4408 = vunpack.c.h.b16 %v3270
    %v4409 = vunpack.c.l.b16 %v3271
    %v4410 = vunpack.c.h.b16 %v3271
    %v4411 = vunpack.c.l.b16 %v3272
    %v4412 = vunpack.c.h.b16 %v3272
    %v4413 = vunpack.c.l.b16 %v3273
    %v4414 = vunpack.c.l.b16 %v3274
    %v4415 = vunpack.c.h.b16 %v3274
    %v4416 = vunpack.c.l.b16 %v3275
    %v4417 = vunpack.c.h.b16 %v3275
    %v4418 = vunpack.c.l.b16 %v3276
    %v4419 = vunpack.c.h.b16 %v3276
    %v4420 = vunpack.c.l.b16 %v3277
    %v4421 = vunpack.c.l.b16 %v3278
    %v4422 = vunpack.c.h.b16 %v3278
    %v4423 = vunpack.c.l.b16 %v3279
    %v4424 = vunpack.c.h.b16 %v3279
    %v4425 = vunpack.c.l.b16 %v3280
    %v4426 = vunpack.c.h.b16 %v3280
    %v4427 = vunpack.c.l.b16 %v3281
    %v4428 = vunpack.c.l.b16 %v3282
    %v4429 = vunpack.c.h.b16 %v3282
    %v4430 = vunpack.c.l.b16 %v3283
    %v4431 = vunpack.c.h.b16 %v3283
    %v4432 = vunpack.c.l.b16 %v3284
    %v4433 = vunpack.c.h.b16 %v3284
    %v4434 = vunpack.c.l.b16 %v3285
    %v4435 = vunpack.c.l.b16 %v3286
    %v4436 = vunpack.c.h.b16 %v3286
    %v4437 = vunpack.c.l.b16 %v3287
    %v4438 = vunpack.c.h.b16 %v3287
    %v4439 = vunpack.c.l.b16 %v3288
    %v4440 = vunpack.c.h.b16 %v3288
    %v4441 = vunpack.c.l.b16 %v3289
    %v4442 = vunpack.c.l.b16 %v3290
    %v4443 = vunpack.c.h.b16 %v3290
    %v4444 = vunpack.c.l.b16 %v3291
    %v4445 = vunpack.c.h.b16 %v3291
    %v4446 = vunpack.c.l.b16 %v3292
    %v4447 = vunpack.c.h.b16 %v3292
    %v4448 = vunpack.c.l.b16 %v3293
    %v4449 = vunpack.c.l.b16 %v3294
    %v4450 = vunpack.c.h.b16 %v3294
    %v4451 = vunpack.c.l.b16 %v3295
    %v4452 = vunpack.c.h.b16 %v3295
    %v4453 = vunpack.c.l.b16 %v3296
    %v4454 = vunpack.c.h.b16 %v3296
    %v4455 = vunpack.c.l.b16 %v3297
    %v4456 = vunpack.c.l.b16 %v3298
    %v4457 = vunpack.c.h.b16 %v3298
    %v4458 = vunpack.c.l.b16 %v3299
    %v4459 = vunpack.c.h.b16 %v3299
    %v4460 = vunpack.c.l.b16 %v3300
    %v4461 = vunpack.c.h.b16 %v3300
    %v4462 = vunpack.c.l.b16 %v3301
    %v4463 = vunpack.c.l.b16 %v3302
    %v4464 = vunpack.c.h.b16 %v3302
    %v4465 = vunpack.c.l.b16 %v3303
    %v4466 = vunpack.c.h.b16 %v3303
    %v4467 = vunpack.c.l.b16 %v3304
    %v4468 = vunpack.c.h.b16 %v3304
    %v4469 = vunpack.c.l.b16 %v3305
    %v4470 = vunpack.c.l.b16 %v3306
    %v4471 = vunpack.c.h.b16 %v3306
    %v4472 = vunpack.c.l.b16 %v3307
    %v4473 = vunpack.c.h.b16 %v3307
    %v4474 = vunpack.c.l.b16 %v3308
    %v4475 = vunpack.c.h.b16 %v3308
    %v4476 = vunpack.c.l.b16 %v3309
    %v4477 = vunpack.c.l.b16 %v3310
    %v4478 = vunpack.c.h.b16 %v3310
    %v4479 = vunpack.c.l.b16 %v3311
    %v4480 = vunpack.c.h.b16 %v3311
    %v4481 = vunpack.c.l.b16 %v3312
    %v4482 = vunpack.c.h.b16 %v3312
    %v4483 = vunpack.c.l.b16 %v3313
    %v4484 = vunpack.c.l.b16 %v3314
    %v4485 = vunpack.c.h.b16 %v3314
    %v4486 = vunpack.c.l.b16 %v3315
    %v4487 = vunpack.c.h.b16 %v3315
    %v4488 = vunpack.c.l.b16 %v3316
    %v4489 = vunpack.c.h.b16 %v3316
    %v4490 = vunpack.c.l.b16 %v3317
    %v4491 = vunpack.c.l.b16 %v3318
    %v4492 = vunpack.c.h.b16 %v3318
    %v4493 = vunpack.c.l.b16 %v3319
    %v4494 = vunpack.c.h.b16 %v3319
    %v4495 = vunpack.c.l.b16 %v3320
    %v4496 = vunpack.c.h.b16 %v3320
    %v4497 = vunpack.c.l.b16 %v3321
    %v4498 = vunpack.c.l.b16 %v3322
    %v4499 = vunpack.c.h.b16 %v3322
    %v4500 = vunpack.c.l.b16 %v3323
    %v4501 = vunpack.c.h.b16 %v3323
    %v4502 = vunpack.c.l.b16 %v3324
    %v4503 = vunpack.c.h.b16 %v3324
    %v4504 = vunpack.c.l.b16 %v3325
    %v4505 = vunpack.c.l.b16 %v3326
    %v4506 = vunpack.c.h.b16 %v3326
    %v4507 = vunpack.c.l.b16 %v3327
    %v4508 = vunpack.c.h.b16 %v3327
    %v4509 = vunpack.c.l.b16 %v3328
    %v4510 = vunpack.c.h.b16 %v3328
    %v4511 = vunpack.c.l.b16 %v3329
    %v4512 = vunpack.c.l.b16 %v3330
    %v4513 = vunpack.c.h.b16 %v3330
    %v4514 = vunpack.c.l.b16 %v3331
    %v4515 = vunpack.c.h.b16 %v3331
    %v4516 = vunpack.c.l.b16 %v3332
    %v4517 = vunpack.c.h.b16 %v3332
    %v4518 = vunpack.c.l.b16 %v3333
    %v4519 = vunpack.c.l.b16 %v3334
    %v4520 = vunpack.c.h.b16 %v3334
    %v4521 = vunpack.c.l.b16 %v3335
    %v4522 = vunpack.c.h.b16 %v3335
    %v4523 = vunpack.c.l.b16 %v3336
    %v4524 = vunpack.c.h.b16 %v3336
    %v4525 = vunpack.c.l.b16 %v3337
    %v4526 = vunpack.c.l.b16 %v3338
    %v4527 = vunpack.c.h.b16 %v3338
    %v4528 = vunpack.c.l.b16 %v3339
    %v4529 = vunpack.c.h.b16 %v3339
    %v4530 = vunpack.c.l.b16 %v3340
    %v4531 = vunpack.c.h.b16 %v3340
    %v4532 = vunpack.c.l.b16 %v3341
    %v4533 = vunpack.c.l.b16 %v3342
    %v4534 = vunpack.c.h.b16 %v3342
    %v4535 = vunpack.c.l.b16 %v3343
    %v4536 = vunpack.c.h.b16 %v3343
    %v4537 = vunpack.c.l.b16 %v3344
    %v4538 = vunpack.c.h.b16 %v3344
    %v4539 = vunpack.c.l.b16 %v3345
    %v4540 = vunpack.c.l.b16 %v3346
    %v4541 = vunpack.c.h.b16 %v3346
    %v4542 = vunpack.c.l.b16 %v3347
    %v4543 = vunpack.c.h.b16 %v3347
    %v4544 = vunpack.c.l.b16 %v3348
    %v4545 = vunpack.c.h.b16 %v3348
    %v4546 = vunpack.c.l.b16 %v3349
    %v4547 = vunpack.c.l.b16 %v3350
    %v4548 = vunpack.c.h.b16 %v3350
    %v4549 = vunpack.c.l.b16 %v3351
    %v4550 = vunpack.c.h.b16 %v3351
    %v4551 = vunpack.c.l.b16 %v3352
    %v4552 = vunpack.c.h.b16 %v3352
    %v4553 = vunpack.c.l.b16 %v3353
    %v4554 = vunpack.c.l.b16 %v3354
    %v4555 = vunpack.c.h.b16 %v3354
    %v4556 = vunpack.c.l.b16 %v3355
    %v4557 = vunpack.c.h.b16 %v3355
    %v4558 = vunpack.c.l.b16 %v3356
    %v4559 = vunpack.c.h.b16 %v3356
    %v4560 = vunpack.c.l.b16 %v3357
    %v4561 = vunpack.c.l.b16 %v3358
    %v4562 = vunpack.c.h.b16 %v3358
    %v4563 = vunpack.c.l.b16 %v3359
    %v4564 = vunpack.c.h.b16 %v3359
    %v4565 = vunpack.c.l.b16 %v3360
    %v4566 = vunpack.c.h.b16 %v3360
    %v4567 = vunpack.c.l.b16 %v3361
    %v4568 = vunpack.c.l.b16 %v3362
    %v4569 = vunpack.c.h.b16 %v3362
    %v4570 = vunpack.c.l.b16 %v3363
    %v4571 = vunpack.c.h.b16 %v3363
    %v4572 = vunpack.c.l.b16 %v3364
    %v4573 = vunpack.c.h.b16 %v3364
    %v4574 = vunpack.c.l.b16 %v3365
    %v4575 = vunpack.c.l.b16 %v3366
    %v4576 = vunpack.c.h.b16 %v3366
    %v4577 = vunpack.c.l.b16 %v3367
    %v4578 = vunpack.c.h.b16 %v3367
    %v4579 = vunpack.c.l.b16 %v3368
    %v4580 = vunpack.c.h.b16 %v3368
    %v4581 = vunpack.c.l.b16 %v3369
    %v4582 = vunpack.c.l.b16 %v3370
    %v4583 = vunpack.c.h.b16 %v3370
    %v4584 = vunpack.c.l.b16 %v3371
    %v4585 = vunpack.c.h.b16 %v3371
    %v4586 = vunpack.c.l.b16 %v3372
    %v4587 = vunpack.c.h.b16 %v3372
    %v4588 = vunpack.c.l.b16 %v3373
    %v4589 = vunpack.c.l.b16 %v3374
    %v4590 = vunpack.c.h.b16 %v3374
    %v4591 = vunpack.c.l.b16 %v3375
    %v4592 = vunpack.c.h.b16 %v3375
    %v4593 = vunpack.c.l.b16 %v3376
    %v4594 = vunpack.c.h.b16 %v3376
    %v4595 = vunpack.c.l.b16 %v3377
    %v4596 = vunpack.c.l.b16 %v3378
    %v4597 = vunpack.c.h.b16 %v3378
    %v4598 = vunpack.c.l.b16 %v3379
    %v4599 = vunpack.c.h.b16 %v3379
    %v4600 = vunpack.c.l.b16 %v3380
    %v4601 = vunpack.c.h.b16 %v3380
    %v4602 = vunpack.c.l.b16 %v3381
    %v4603 = vunpack.c.l.b16 %v3382
    %v4604 = vunpack.c.h.b16 %v3382
    %v4605 = vunpack.c.l.b16 %v3383
    %v4606 = vunpack.c.h.b16 %v3383
    %v4607 = vunpack.c.l.b16 %v3384
    %v4608 = vunpack.c.h.b16 %v3384
    %v4609 = vunpack.c.l.b16 %v3385
    %v4610 = vunpack.c.l.b16 %v3386
    %v4611 = vunpack.c.h.b16 %v3386
    %v4612 = vunpack.c.l.b16 %v3387
    %v4613 = vunpack.c.h.b16 %v3387
    %v4614 = vunpack.c.l.b16 %v3388
    %v4615 = vunpack.c.h.b16 %v3388
    %v4616 = vunpack.c.l.b16 %v3389
    %v4617 = vunpack.c.l.b16 %v3390
    %v4618 = vunpack.c.h.b16 %v3390
    %v4619 = vunpack.c.l.b16 %v3391
    %v4620 = vunpack.c.h.b16 %v3391
    %v4621 = vunpack.c.l.b16 %v3392
    %v4622 = vunpack.c.h.b16 %v3392
    %v4623 = vunpack.c.l.b16 %v3393
    %v4624 = vunpack.c.l.b16 %v3394
    %v4625 = vunpack.c.h.b16 %v3394
    %v4626 = vunpack.c.l.b16 %v3395
    %v4627 = vunpack.c.h.b16 %v3395
    %v4628 = vunpack.c.l.b16 %v3396
    %v4629 = vunpack.c.h.b16 %v3396
    %v4630 = vunpack.c.l.b16 %v3397
    %v4631 = vunpack.c.l.b16 %v3398
    %v4632 = vunpack.c.h.b16 %v3398
    %v4633 = vunpack.c.l.b16 %v3399
    %v4634 = vunpack.c.h.b16 %v3399
    %v4635 = vunpack.c.l.b16 %v3400
    %v4636 = vunpack.c.h.b16 %v3400
    %v4637 = vunpack.c.l.b16 %v3401
    %v4638 = vunpack.c.l.b16 %v3402
    %v4639 = vunpack.c.h.b16 %v3402
    %v4640 = vunpack.c.l.b16 %v3403
    %v4641 = vunpack.c.h.b16 %v3403
    %v4642 = vunpack.c.l.b16 %v3404
    %v4643 = vunpack.c.h.b16 %v3404
    %v4644 = vunpack.c.l.b16 %v3405
    %v4645 = vunpack.c.l.b16 %v3406
    %v4646 = vunpack.c.h.b16 %v3406
    %v4647 = vunpack.c.l.b16 %v3407
    %v4648 = vunpack.c.h.b16 %v3407
    %v4649 = vunpack.c.l.b16 %v3408
    %v4650 = vunpack.c.h.b16 %v3408
    %v4651 = vunpack.c.l.b16 %v3409
    %v4652 = vunpack.c.l.b16 %v3410
    %v4653 = vunpack.c.h.b16 %v3410
    %v4654 = vunpack.c.l.b16 %v3411
    %v4655 = vunpack.c.h.b16 %v3411
    %v4656 = vunpack.c.l.b16 %v3412
    %v4657 = vunpack.c.h.b16 %v3412
    %v4658 = vunpack.c.l.b16 %v3413
    %v4659 = vunpack.c.l.b16 %v3414
    %v4660 = vunpack.c.h.b16 %v3414
    %v4661 = vunpack.c.l.b16 %v3415
    %v4662 = vunpack.c.h.b16 %v3415
    %v4663 = vunpack.c.l.b16 %v3416
    %v4664 = vunpack.c.h.b16 %v3416
    %v4665 = vunpack.c.l.b16 %v3417
    %v4666 = vpack.c.b16 %v3889, %v3882
    %v4667 = vpack.c.b16 %v3890, %v3883
    %v4668 = vpack.c.b16 %v3891, %v3884
    %v4669 = vpack.c.b16 %v3892, %v3885
    %v4670 = vpack.c.b16 %v3893, %v3886
    %v4671 = vpack.c.b16 %v3894, %v3887
    %v4672 = vpack.c.b16 %v3895, %v3888
    %v4673 = vpack.c.b16 %v3903, %v3896
    %v4674 = vpack.c.b16 %v3904, %v3897
    %v4675 = vpack.c.b16 %v3905, %v3898
    %v4676 = vpack.c.b16 %v3906, %v3899
    %v4677 = vpack.c.b16 %v3907, %v3900
    %v4678 = vpack.c.b16 %v3908, %v3901
    %v4679 = vpack.c.b16 %v3909, %v3902
    %v4680 = vpack.c.b16 %v3917, %v3910
    %v4681 = vpack.c.b16 %v3918, %v3911
    %v4682 = vpack.c.b16 %v3919, %v3912
    %v4683 = vpack.c.b16 %v3920, %v3913
    %v4684 = vpack.c.b16 %v3921, %v3914
    %v4685 = vpack.c.b16 %v3922, %v3915
    %v4686 = vpack.c.b16 %v3923, %v3916
    %v4687 = vpack.c.b16 %v3931, %v3924
    %v4688 = vpack.c.b16 %v3932, %v3925
    %v4689 = vpack.c.b16 %v3933, %v3926
    %v4690 = vpack.c.b16 %v3934, %v3927
    %v4691 = vpack.c.b16 %v3935, %v3928
    %v4692 = vpack.c.b16 %v3936, %v3929
    %v4693 = vpack.c.b16 %v3937, %v3930
    %v4694 = vpack.c.b16 %v3945, %v3938
    %v4695 = vpack.c.b16 %v3946, %v3939
    %v4696 = vpack.c.b16 %v3947, %v3940
    %v4697 = vpack.c.b16 %v3948, %v3941
    %v4698 = vpack.c.b16 %v3949, %v3942
    %v4699 = vpack.c.b16 %v3950, %v3943
    %v4700 = vpack.c.b16 %v3951, %v3944
    %v4701 = vpack.c.b16 %v3959, %v3952
    %v4702 = vpack.c.b16 %v3960, %v3953
    %v4703 = vpack.c.b16 %v3961, %v3954
    %v4704 = vpack.c.b16 %v3962, %v3955
    %v4705 = vpack.c.b16 %v3963, %v3956
    %v4706 = vpack.c.b16 %v3964, %v3957
    %v4707 = vpack.c.b16 %v3965, %v3958
    %v4708 = vpack.c.b16 %v3973, %v3966
    %v4709 = vpack.c.b16 %v3974, %v3967
    %v4710 = vpack.c.b16 %v3975, %v3968
    %v4711 = vpack.c.b16 %v3976, %v3969
    %v4712 = vpack.c.b16 %v3977, %v3970
    %v4713 = vpack.c.b16 %v3978, %v3971
    %v4714 = vpack.c.b16 %v3979, %v3972
    %v4715 = vpack.c.b16 %v3987, %v3980
    %v4716 = vpack.c.b16 %v3988, %v3981
    %v4717 = vpack.c.b16 %v3989, %v3982
    %v4718 = vpack.c.b16 %v3990, %v3983
    %v4719 = vpack.c.b16 %v3991, %v3984
    %v4720 = vpack.c.b16 %v3992, %v3985
    %v4721 = vpack.c.b16 %v3993, %v3986
    %v4722 = vpack.c.b16 %v4001, %v3994
    %v4723 = vpack.c.b16 %v4002, %v3995
    %v4724 = vpack.c.b16 %v4003, %v3996
    %v4725 = vpack.c.b16 %v4004, %v3997
    %v4726 = vpack.c.b16 %v4005, %v3998
    %v4727 = vpack.c.b16 %v4006, %v3999
    %v4728 = vpack.c.b16 %v4007, %v4000
    %v4729 = vpack.c.b16 %v4015, %v4008
    %v4730 = vpack.c.b16 %v4016, %v4009
    %v4731 = vpack.c.b16 %v4017, %v4010
    %v4732 = vpack.c.b16 %v4018, %v4011
    %v4733 = vpack.c.b16 %v4019, %v4012
    %v4734 = vpack.c.b16 %v4020, %v4013
    %v4735 = vpack.c.b16 %v4021, %v4014
    %v4736 = vpack.c.b16 %v4029, %v4022
    %v4737 = vpack.c.b16 %v4030, %v4023
    %v4738 = vpack.c.b16 %v4031, %v4024
    %v4739 = vpack.c.b16 %v4032, %v4025
    %v4740 = vpack.c.b16 %v4033, %v4026
    %v4741 = vpack.c.b16 %v4034, %v4027
    %v4742 = vpack.c.b16 %v4035, %v4028
    %v4743 = vpack.c.b16 %v4043, %v4036
    %v4744 = vpack.c.b16 %v4044, %v4037
    %v4745 = vpack.c.b16 %v4045, %v4038
    %v4746 = vpack.c.b16 %v4046, %v4039
    %v4747 = vpack.c.b16 %v4047, %v4040
    %v4748 = vpack.c.b16 %v4048, %v4041
    %v4749 = vpack.c.b16 %v4049, %v4042
    %v4750 = vpack.c.b16 %v4057, %v4050
    %v4751 = vpack.c.b16 %v4058, %v4051
    %v4752 = vpack.c.b16 %v4059, %v4052
    %v4753 = vpack.c.b16 %v4060, %v4053
    %v4754 = vpack.c.b16 %v4061, %v4054
    %v4755 = vpack.c.b16 %v4062, %v4055
    %v4756 = vpack.c.b16 %v4063, %v4056
    %v4757 = vpack.c.b16 %v4071, %v4064
    %v4758 = vpack.c.b16 %v4072, %v4065
    %v4759 = vpack.c.b16 %v4073, %v4066
    %v4760 = vpack.c.b16 %v4074, %v4067
    %v4761 = vpack.c.b16 %v4075, %v4068
    %v4762 = vpack.c.b16 %v4076, %v4069
    %v4763 = vpack.c.b16 %v4077, %v4070
    %v4764 = vpack.c.b16 %v4085, %v4078
    %v4765 = vpack.c.b16 %v4086, %v4079
    %v4766 = vpack.c.b16 %v4087, %v4080
    %v4767 = vpack.c.b16 %v4088, %v4081
    %v4768 = vpack.c.b16 %v4089, %v4082
    %v4769 = vpack.c.b16 %v4090, %v4083
    %v4770 = vpack.c.b16 %v4091, %v4084
    %v4771 = vpack.c.b16 %v4099, %v4092
    %v4772 = vpack.c.b16 %v4100, %v4093
    %v4773 = vpack.c.b16 %v4101, %v4094
    %v4774 = vpack.c.b16 %v4102, %v4095
    %v4775 = vpack.c.b16 %v4103, %v4096
    %v4776 = vpack.c.b16 %v4104, %v4097
    %v4777 = vpack.c.b16 %v4105, %v4098
    %v4778 = vpack.c.b16 %v4113, %v4106
    %v4779 = vpack.c.b16 %v4114, %v4107
    %v4780 = vpack.c.b16 %v4115, %v4108
    %v4781 = vpack.c.b16 %v4116, %v4109
    %v4782 = vpack.c.b16 %v4117, %v4110
    %v4783 = vpack.c.b16 %v4118, %v4111
    %v4784 = vpack.c.b16 %v4119, %v4112
    %v4785 = vpack.c.b16 %v4127, %v4120
    %v4786 = vpack.c.b16 %v4128, %v4121
    %v4787 = vpack.c.b16 %v4129, %v4122
    %v4788 = vpack.c.b16 %v4130, %v4123
    %v4789 = vpack.c.b16 %v4131, %v4124
    %v4790 = vpack.c.b16 %v4132, %v4125
    %v4791 = vpack.c.b16 %v4133, %v4126
    %v4792 = vpack.c.b16 %v4141, %v4134
    %v4793 = vpack.c.b16 %v4142, %v4135
    %v4794 = vpack.c.b16 %v4143, %v4136
    %v4795 = vpack.c.b16 %v4144, %v4137
    %v4796 = vpack.c.b16 %v4145, %v4138
    %v4797 = vpack.c.b16 %v4146, %v4139
    %v4798 = vpack.c.b16 %v4147, %v4140
    %v4799 = vpack.c.b16 %v4155, %v4148
    %v4800 = vpack.c.b16 %v4156, %v4149
    %v4801 = vpack.c.b16 %v4157, %v4150
    %v4802 = vpack.c.b16 %v4158, %v4151
    %v4803 = vpack.c.b16 %v4159, %v4152
    %v4804 = vpack.c.b16 %v4160, %v4153
    %v4805 = vpack.c.b16 %v4161, %v4154
    %v4806 = vpack.c.b16 %v4169, %v4162
    %v4807 = vpack.c.b16 %v4170, %v4163
    %v4808 = vpack.c.b16 %v4171, %v4164
    %v4809 = vpack.c.b16 %v4172, %v4165
    %v4810 = vpack.c.b16 %v4173, %v4166
    %v4811 = vpack.c.b16 %v4174, %v4167
    %v4812 = vpack.c.b16 %v4175, %v4168
    %v4813 = vpack.c.b16 %v4183, %v4176
    %v4814 = vpack.c.b16 %v4184, %v4177
    %v4815 = vpack.c.b16 %v4185, %v4178
    %v4816 = vpack.c.b16 %v4186, %v4179
    %v4817 = vpack.c.b16 %v4187, %v4180
    %v4818 = vpack.c.b16 %v4188, %v4181
    %v4819 = vpack.c.b16 %v4189, %v4182
    %v4820 = vpack.c.b16 %v4197, %v4190
    %v4821 = vpack.c.b16 %v4198, %v4191
    %v4822 = vpack.c.b16 %v4199, %v4192
    %v4823 = vpack.c.b16 %v4200, %v4193
    %v4824 = vpack.c.b16 %v4201, %v4194
    %v4825 = vpack.c.b16 %v4202, %v4195
    %v4826 = vpack.c.b16 %v4203, %v4196
    %v4827 = vpack.c.b16 %v4211, %v4204
    %v4828 = vpack.c.b16 %v4212, %v4205
    %v4829 = vpack.c.b16 %v4213, %v4206
    %v4830 = vpack.c.b16 %v4214, %v4207
    %v4831 = vpack.c.b16 %v4215, %v4208
    %v4832 = vpack.c.b16 %v4216, %v4209
    %v4833 = vpack.c.b16 %v4217, %v4210
    %v4834 = vpack.c.b16 %v4225, %v4218
    %v4835 = vpack.c.b16 %v4226, %v4219
    %v4836 = vpack.c.b16 %v4227, %v4220
    %v4837 = vpack.c.b16 %v4228, %v4221
    %v4838 = vpack.c.b16 %v4229, %v4222
    %v4839 = vpack.c.b16 %v4230, %v4223
    %v4840 = vpack.c.b16 %v4231, %v4224
    %v4841 = vpack.c.b16 %v4239, %v4232
    %v4842 = vpack.c.b16 %v4240, %v4233
    %v4843 = vpack.c.b16 %v4241, %v4234
    %v4844 = vpack.c.b16 %v4242, %v4235
    %v4845 = vpack.c.b16 %v4243, %v4236
    %v4846 = vpack.c.b16 %v4244, %v4237
    %v4847 = vpack.c.b16 %v4245, %v4238
    %v4848 = vpack.c.b16 %v4253, %v4246
    %v4849 = vpack.c.b16 %v4254, %v4247
    %v4850 = vpack.c.b16 %v4255, %v4248
    %v4851 = vpack.c.b16 %v4256, %v4249
    %v4852 = vpack.c.b16 %v4257, %v4250
    %v4853 = vpack.c.b16 %v4258, %v4251
    %v4854 = vpack.c.b16 %v4259, %v4252
    %v4855 = vpack.c.b16 %v4267, %v4260
    %v4856 = vpack.c.b16 %v4268, %v4261
    %v4857 = vpack.c.b16 %v4269, %v4262
    %v4858 = vpack.c.b16 %v4270, %v4263
    %v4859 = vpack.c.b16 %v4271, %v4264
    %v4860 = vpack.c.b16 %v4272, %v4265
    %v4861 = vpack.c.b16 %v4273, %v4266
    %v4862 = vpack.c.b16 %v4281, %v4274
    %v4863 = vpack.c.b16 %v4282, %v4275
    %v4864 = vpack.c.b16 %v4283, %v4276
    %v4865 = vpack.c.b16 %v4284, %v4277
    %v4866 = vpack.c.b16 %v4285, %v4278
    %v4867 = vpack.c.b16 %v4286, %v4279
    %v4868 = vpack.c.b16 %v4287, %v4280
    %v4869 = vpack.c.b16 %v4295, %v4288
    %v4870 = vpack.c.b16 %v4296, %v4289
    %v4871 = vpack.c.b16 %v4297, %v4290
    %v4872 = vpack.c.b16 %v4298, %v4291
    %v4873 = vpack.c.b16 %v4299, %v4292
    %v4874 = vpack.c.b16 %v4300, %v4293
    %v4875 = vpack.c.b16 %v4301, %v4294
    %v4876 = vpack.c.b16 %v4309, %v4302
    %v4877 = vpack.c.b16 %v4310, %v4303
    %v4878 = vpack.c.b16 %v4311, %v4304
    %v4879 = vpack.c.b16 %v4312, %v4305
    %v4880 = vpack.c.b16 %v4313, %v4306
    %v4881 = vpack.c.b16 %v4314, %v4307
    %v4882 = vpack.c.b16 %v4315, %v4308
    %v4883 = vpack.c.b16 %v4323, %v4316
    %v4884 = vpack.c.b16 %v4324, %v4317
    %v4885 = vpack.c.b16 %v4325, %v4318
    %v4886 = vpack.c.b16 %v4326, %v4319
    %v4887 = vpack.c.b16 %v4327, %v4320
    %v4888 = vpack.c.b16 %v4328, %v4321
    %v4889 = vpack.c.b16 %v4329, %v4322
    %v4890 = vpack.c.b16 %v4337, %v4330
    %v4891 = vpack.c.b16 %v4338, %v4331
    %v4892 = vpack.c.b16 %v4339, %v4332
    %v4893 = vpack.c.b16 %v4340, %v4333
    %v4894 = vpack.c.b16 %v4341, %v4334
    %v4895 = vpack.c.b16 %v4342, %v4335
    %v4896 = vpack.c.b16 %v4343, %v4336
    %v4897 = vpack.c.b16 %v4351, %v4344
    %v4898 = vpack.c.b16 %v4352, %v4345
    %v4899 = vpack.c.b16 %v4353, %v4346
    %v4900 = vpack.c.b16 %v4354, %v4347
    %v4901 = vpack.c.b16 %v4355, %v4348
    %v4902 = vpack.c.b16 %v4356, %v4349
    %v4903 = vpack.c.b16 %v4357, %v4350
    %v4904 = vpack.c.b16 %v4365, %v4358
    %v4905 = vpack.c.b16 %v4366, %v4359
    %v4906 = vpack.c.b16 %v4367, %v4360
    %v4907 = vpack.c.b16 %v4368, %v4361
    %v4908 = vpack.c.b16 %v4369, %v4362
    %v4909 = vpack.c.b16 %v4370, %v4363
    %v4910 = vpack.c.b16 %v4371, %v4364
    %v4911 = vpack.c.b16 %v4379, %v4372
    %v4912 = vpack.c.b16 %v4380, %v4373
    %v4913 = vpack.c.b16 %v4381, %v4374
    %v4914 = vpack.c.b16 %v4382, %v4375
    %v4915 = vpack.c.b16 %v4383, %v4376
    %v4916 = vpack.c.b16 %v4384, %v4377
    %v4917 = vpack.c.b16 %v4385, %v4378
    %v4918 = vpack.c.b16 %v4393, %v4386
    %v4919 = vpack.c.b16 %v4394, %v4387
    %v4920 = vpack.c.b16 %v4395, %v4388
    %v4921 = vpack.c.b16 %v4396, %v4389
    %v4922 = vpack.c.b16 %v4397, %v4390
    %v4923 = vpack.c.b16 %v4398, %v4391
    %v4924 = vpack.c.b16 %v4399, %v4392
    %v4925 = vpack.c.b16 %v4407, %v4400
    %v4926 = vpack.c.b16 %v4408, %v4401
    %v4927 = vpack.c.b16 %v4409, %v4402
    %v4928 = vpack.c.b16 %v4410, %v4403
    %v4929 = vpack.c.b16 %v4411, %v4404
    %v4930 = vpack.c.b16 %v4412, %v4405
    %v4931 = vpack.c.b16 %v4413, %v4406
    %v4932 = vpack.c.b16 %v4421, %v4414
    %v4933 = vpack.c.b16 %v4422, %v4415
    %v4934 = vpack.c.b16 %v4423, %v4416
    %v4935 = vpack.c.b16 %v4424, %v4417
    %v4936 = vpack.c.b16 %v4425, %v4418
    %v4937 = vpack.c.b16 %v4426, %v4419
    %v4938 = vpack.c.b16 %v4427, %v4420
    %v4939 = vpack.c.b16 %v4435, %v4428
    %v4940 = vpack.c.b16 %v4436, %v4429
    %v4941 = vpack.c.b16 %v4437, %v4430
    %v4942 = vpack.c.b16 %v4438, %v4431
    %v4943 = vpack.c.b16 %v4439, %v4432
    %v4944 = vpack.c.b16 %v4440, %v4433
    %v4945 = vpack.c.b16 %v4441, %v4434
    %v4946 = vpack.c.b16 %v4449, %v4442
    %v4947 = vpack.c.b16 %v4450, %v4443
    %v4948 = vpack.c.b16 %v4451, %v4444
    %v4949 = vpack.c.b16 %v4452, %v4445
    %v4950 = vpack.c.b16 %v4453, %v4446
    %v4951 = vpack.c.b16 %v4454, %v4447
    %v4952 = vpack.c.b16 %v4455, %v4448
    %v4953 = vpack.c.b16 %v4463, %v4456
    %v4954 = vpack.c.b16 %v4464, %v4457
    %v4955 = vpack.c.b16 %v4465, %v4458
    %v4956 = vpack.c.b16 %v4466, %v4459
    %v4957 = vpack.c.b16 %v4467, %v4460
    %v4958 = vpack.c.b16 %v4468, %v4461
    %v4959 = vpack.c.b16 %v4469, %v4462
    %v4960 = vpack.c.b16 %v4477, %v4470
    %v4961 = vpack.c.b16 %v4478, %v4471
    %v4962 = vpack.c.b16 %v4479, %v4472
    %v4963 = vpack.c.b16 %v4480, %v4473
    %v4964 = vpack.c.b16 %v4481, %v4474
    %v4965 = vpack.c.b16 %v4482, %v4475
    %v4966 = vpack.c.b16 %v4483, %v4476
    %v4967 = vpack.c.b16 %v4491, %v4484
    %v4968 = vpack.c.b16 %v4492, %v4485
    %v4969 = vpack.c.b16 %v4493, %v4486
    %v4970 = vpack.c.b16 %v4494, %v4487
    %v4971 = vpack.c.b16 %v4495, %v4488
    %v4972 = vpack.c.b16 %v4496, %v4489
    %v4973 = vpack.c.b16 %v4497, %v4490
    %v4974 = vpack.c.b16 %v4505, %v4498
    %v4975 = vpack.c.b16 %v4506, %v4499
    %v4976 = vpack.c.b16 %v4507, %v4500
    %v4977 = vpack.c.b16 %v4508, %v4501
    %v4978 = vpack.c.b16 %v4509, %v4502
    %v4979 = vpack.c.b16 %v4510, %v4503
    %v4980 = vpack.c.b16 %v4511, %v4504
    %v4981 = vpack.c.b16 %v4519, %v4512
    %v4982 = vpack.c.b16 %v4520, %v4513
    %v4983 = vpack.c.b16 %v4521, %v4514
    %v4984 = vpack.c.b16 %v4522, %v4515
    %v4985 = vpack.c.b16 %v4523, %v4516
    %v4986 = vpack.c.b16 %v4524, %v4517
    %v4987 = vpack.c.b16 %v4525, %v4518
    %v4988 = vpack.c.b16 %v4533, %v4526
    %v4989 = vpack.c.b16 %v4534, %v4527
    %v4990 = vpack.c.b16 %v4535, %v4528
    %v4991 = vpack.c.b16 %v4536, %v4529
    %v4992 = vpack.c.b16 %v4537, %v4530
    %v4993 = vpack.c.b16 %v4538, %v4531
    %v4994 = vpack.c.b16 %v4539, %v4532
    %v4995 = vpack.c.b16 %v4547, %v4540
    %v4996 = vpack.c.b16 %v4548, %v4541
    %v4997 = vpack.c.b16 %v4549, %v4542
    %v4998 = vpack.c.b16 %v4550, %v4543
    %v4999 = vpack.c.b16 %v4551, %v4544
    %v5000 = vpack.c.b16 %v4552, %v4545
    %v5001 = vpack.c.b16 %v4553, %v4546
    %v5002 = vpack.c.b16 %v4561, %v4554
    %v5003 = vpack.c.b16 %v4562, %v4555
    %v5004 = vpack.c.b16 %v4563, %v4556
    %v5005 = vpack.c.b16 %v4564, %v4557
    %v5006 = vpack.c.b16 %v4565, %v4558
    %v5007 = vpack.c.b16 %v4566, %v4559
    %v5008 = vpack.c.b16 %v4567, %v4560
    %v5009 = vpack.c.b16 %v4575, %v4568
    %v5010 = vpack.c.b16 %v4576, %v4569
    %v5011 = vpack.c.b16 %v4577, %v4570
    %v5012 = vpack.c.b16 %v4578, %v4571
    %v5013 = vpack.c.b16 %v4579, %v4572
    %v5014 = vpack.c.b16 %v4580, %v4573
    %v5015 = vpack.c.b16 %v4581, %v4574
    %v5016 = vpack.c.b16 %v4589, %v4582
    %v5017 = vpack.c.b16 %v4590, %v4583
    %v5018 = vpack.c.b16 %v4591, %v4584
    %v5019 = vpack.c.b16 %v4592, %v4585
    %v5020 = vpack.c.b16 %v4593, %v4586
    %v5021 = vpack.c.b16 %v4594, %v4587
    %v5022 = vpack.c.b16 %v4595, %v4588
    %v5023 = vpack.c.b16 %v4603, %v4596
    %v5024 = vpack.c.b16 %v4604, %v4597
    %v5025 = vpack.c.b16 %v4605, %v4598
    %v5026 = vpack.c.b16 %v4606, %v4599
    %v5027 = vpack.c.b16 %v4607, %v4600
    %v5028 = vpack.c.b16 %v4608, %v4601
    %v5029 = vpack.c.b16 %v4609, %v4602
    %v5030 = vpack.c.b16 %v4617, %v4610
    %v5031 = vpack.c.b16 %v4618, %v4611
    %v5032 = vpack.c.b16 %v4619, %v4612
    %v5033 = vpack.c.b16 %v4620, %v4613
    %v5034 = vpack.c.b16 %v4621, %v4614
    %v5035 = vpack.c.b16 %v4622, %v4615
    %v5036 = vpack.c.b16 %v4623, %v4616
    %v5037 = vpack.c.b16 %v4631, %v4624
    %v5038 = vpack.c.b16 %v4632, %v4625
    %v5039 = vpack.c.b16 %v4633, %v4626
    %v5040 = vpack.c.b16 %v4634, %v4627
    %v5041 = vpack.c.b16 %v4635, %v4628
    %v5042 = vpack.c.b16 %v4636, %v4629
    %v5043 = vpack.c.b16 %v4637, %v4630
    %v5044 = vpack.c.b16 %v4645, %v4638
    %v5045 = vpack.c.b16 %v4646, %v4639
    %v5046 = vpack.c.b16 %v4647, %v4640
    %v5047 = vpack.c.b16 %v4648, %v4641
    %v5048 = vpack.c.b16 %v4649, %v4642
    %v5049 = vpack.c.b16 %v4650, %v4643
    %v5050 = vpack.c.b16 %v4651, %v4644
    %v5051 = vpack.c.b16 %v4659, %v4652
    %v5052 = vpack.c.b16 %v4660, %v4653
    %v5053 = vpack.c.b16 %v4661, %v4654
    %v5054 = vpack.c.b16 %v4662, %v4655
    %v5055 = vpack.c.b16 %v4663, %v4656
    %v5056 = vpack.c.b16 %v4664, %v4657
    %v5057 = vpack.c.b16 %v4665, %v4658
    %5450 = vmatpush.bf16.msra.mxu0 %v4715
    %5451 = vmatpush.bf16.msra.mxu0 %v4708
    %5452 = vmatpush.bf16.msra.mxu0 %v4701
    %5453 = vmatpush.bf16.msra.mxu0 %v4694
    %5454 = vmatpush.bf16.msra.mxu0 %v4687
    %5455 = vmatpush.bf16.msra.mxu0 %v4680
    %5456 = vmatpush.bf16.msra.mxu0 %v4673
    %5457 = vmatpush.bf16.msra.mxu0 %v4666
    %5458 = vmatmul.bf16.gmra.mxu0 %v2963
    %v5459 = vpop.f32.mrf.mxu0
    %v5460 = vadd.f32 %v3420, %v5459
    %v5461 = vpop.f32.mrf.mxu0
    %5462 = vdwg.mxu0
    %5463 = vmatpush.bf16.msra.mxu0 %v4771
    %5464 = vmatpush.bf16.msra.mxu0 %v4764
    %5465 = vmatpush.bf16.msra.mxu0 %v4757
    %5466 = vmatpush.bf16.msra.mxu0 %v4750
    %5467 = vmatpush.bf16.msra.mxu0 %v4743
    %5468 = vmatpush.bf16.msra.mxu0 %v4736
    %5469 = vmatpush.bf16.msra.mxu0 %v4729
    %5470 = vmatpush.bf16.msra.mxu0 %v4722
    %5471 = vmatmul.bf16.gmra.mxu0 %v2964
    %v5472 = vpop.f32.mrf.mxu0
    %v5473 = vadd.f32 %v5460, %v5472
    %v5474 = vpop.f32.mrf.mxu0
    %5475 = vdwg.mxu0
    %5476 = vmatpush.bf16.msra.mxu0 %v4827
    %5477 = vmatpush.bf16.msra.mxu0 %v4820
    %5478 = vmatpush.bf16.msra.mxu0 %v4813
    %5479 = vmatpush.bf16.msra.mxu0 %v4806
    %5480 = vmatpush.bf16.msra.mxu0 %v4799
    %5481 = vmatpush.bf16.msra.mxu0 %v4792
    %5482 = vmatpush.bf16.msra.mxu0 %v4785
    %5483 = vmatpush.bf16.msra.mxu0 %v4778
    %5484 = vmatmul.bf16.gmra.mxu0 %v2965
    %v5485 = vpop.f32.mrf.mxu0
    %v5486 = vadd.f32 %v5473, %v5485
    %v5487 = vpop.f32.mrf.mxu0
    %5488 = vdwg.mxu0
    %5489 = vmatpush.bf16.msra.mxu0 %v4883
    %5490 = vmatpush.bf16.msra.mxu0 %v4876
    %5491 = vmatpush.bf16.msra.mxu0 %v4869
    %5492 = vmatpush.bf16.msra.mxu0 %v4862
    %5493 = vmatpush.bf16.msra.mxu0 %v4855
    %5494 = vmatpush.bf16.msra.mxu0 %v4848
    %5495 = vmatpush.bf16.msra.mxu0 %v4841
    %5496 = vmatpush.bf16.msra.mxu0 %v4834
    %5497 = vmatmul.bf16.gmra.mxu0 %v2966
    %v5498 = vpop.f32.mrf.mxu0
    %v5499 = vadd.f32 %v5486, %v5498
    %v5500 = vpop.f32.mrf.mxu0
    %5501 = vdwg.mxu0
    %5502 = vmatpush.bf16.msra.mxu0 %v4939
    %5503 = vmatpush.bf16.msra.mxu0 %v4932
    %5504 = vmatpush.bf16.msra.mxu0 %v4925
    %5505 = vmatpush.bf16.msra.mxu0 %v4918
    %5506 = vmatpush.bf16.msra.mxu0 %v4911
    %5507 = vmatpush.bf16.msra.mxu0 %v4904
    %5508 = vmatpush.bf16.msra.mxu0 %v4897
    %5509 = vmatpush.bf16.msra.mxu0 %v4890
    %5510 = vmatmul.bf16.gmra.mxu0 %v2967
    %v5511 = vpop.f32.mrf.mxu0
    %v5512 = vadd.f32 %v5499, %v5511
    %v5513 = vpop.f32.mrf.mxu0
    %5514 = vdwg.mxu0
    %5515 = vmatpush.bf16.msra.mxu0 %v4995
    %5516 = vmatpush.bf16.msra.mxu0 %v4988
    %5517 = vmatpush.bf16.msra.mxu0 %v4981
    %5518 = vmatpush.bf16.msra.mxu0 %v4974
    %5519 = vmatpush.bf16.msra.mxu0 %v4967
    %5520 = vmatpush.bf16.msra.mxu0 %v4960
    %5521 = vmatpush.bf16.msra.mxu0 %v4953
    %5522 = vmatpush.bf16.msra.mxu0 %v4946
    %5523 = vmatmul.bf16.gmra.mxu0 %v2968
    %v5524 = vpop.f32.mrf.mxu0
    %v5525 = vadd.f32 %v5512, %v5524
    %v5526 = vpop.f32.mrf.mxu0
    %5527 = vdwg.mxu0
    %5528 = vmatpush.bf16.msra.mxu0 %v5051
    %5529 = vmatpush.bf16.msra.mxu0 %v5044
    %5530 = vmatpush.bf16.msra.mxu0 %v5037
    %5531 = vmatpush.bf16.msra.mxu0 %v5030
    %5532 = vmatpush.bf16.msra.mxu0 %v5023
    %5533 = vmatpush.bf16.msra.mxu0 %v5016
    %5534 = vmatpush.bf16.msra.mxu0 %v5009
    %5535 = vmatpush.bf16.msra.mxu0 %v5002
    %5536 = vmatmul.bf16.gmra.mxu0 %v2969
    %v5537 = vpop.f32.mrf.mxu0
    %v5538 = vadd.f32 %v5525, %v5537
    %v5539 = vpop.f32.mrf.mxu0
    %5540 = vdwg.mxu0
    %5541 = vmatpush.bf16.msra.mxu0 %v4716
    %5542 = vmatpush.bf16.msra.mxu0 %v4709
    %5543 = vmatpush.bf16.msra.mxu0 %v4702
    %5544 = vmatpush.bf16.msra.mxu0 %v4695
    %5545 = vmatpush.bf16.msra.mxu0 %v4688
    %5546 = vmatpush.bf16.msra.mxu0 %v4681
    %5547 = vmatpush.bf16.msra.mxu0 %v4674
    %5548 = vmatpush.bf16.msra.mxu0 %v4667
    %5549 = vmatmul.bf16.gmra.mxu0 %v2963
    %v5550 = vpop.f32.mrf.mxu0
    %v5551 = vadd.f32 %v3421, %v5550
    %v5552 = vpop.f32.mrf.mxu0
    %5553 = vdwg.mxu0
    %5554 = vmatpush.bf16.msra.mxu0 %v4772
    %5555 = vmatpush.bf16.msra.mxu0 %v4765
    %5556 = vmatpush.bf16.msra.mxu0 %v4758
    %5557 = vmatpush.bf16.msra.mxu0 %v4751
    %5558 = vmatpush.bf16.msra.mxu0 %v4744
    %5559 = vmatpush.bf16.msra.mxu0 %v4737
    %5560 = vmatpush.bf16.msra.mxu0 %v4730
    %5561 = vmatpush.bf16.msra.mxu0 %v4723
    %5562 = vmatmul.bf16.gmra.mxu0 %v2964
    %v5563 = vpop.f32.mrf.mxu0
    %v5564 = vadd.f32 %v5551, %v5563
    %v5565 = vpop.f32.mrf.mxu0
    %5566 = vdwg.mxu0
    %5567 = vmatpush.bf16.msra.mxu0 %v4828
    %5568 = vmatpush.bf16.msra.mxu0 %v4821
    %5569 = vmatpush.bf16.msra.mxu0 %v4814
    %5570 = vmatpush.bf16.msra.mxu0 %v4807
    %5571 = vmatpush.bf16.msra.mxu0 %v4800
    %5572 = vmatpush.bf16.msra.mxu0 %v4793
    %5573 = vmatpush.bf16.msra.mxu0 %v4786
    %5574 = vmatpush.bf16.msra.mxu0 %v4779
    %5575 = vmatmul.bf16.gmra.mxu0 %v2965
    %v5576 = vpop.f32.mrf.mxu0
    %v5577 = vadd.f32 %v5564, %v5576
    %v5578 = vpop.f32.mrf.mxu0
    %5579 = vdwg.mxu0
    %5580 = vmatpush.bf16.msra.mxu0 %v4884
    %5581 = vmatpush.bf16.msra.mxu0 %v4877
    %5582 = vmatpush.bf16.msra.mxu0 %v4870
    %5583 = vmatpush.bf16.msra.mxu0 %v4863
    %5584 = vmatpush.bf16.msra.mxu0 %v4856
    %5585 = vmatpush.bf16.msra.mxu0 %v4849
    %5586 = vmatpush.bf16.msra.mxu0 %v4842
    %5587 = vmatpush.bf16.msra.mxu0 %v4835
    %5588 = vmatmul.bf16.gmra.mxu0 %v2966
    %v5589 = vpop.f32.mrf.mxu0
    %v5590 = vadd.f32 %v5577, %v5589
    %v5591 = vpop.f32.mrf.mxu0
    %5592 = vdwg.mxu0
    %5593 = vmatpush.bf16.msra.mxu0 %v4940
    %5594 = vmatpush.bf16.msra.mxu0 %v4933
    %5595 = vmatpush.bf16.msra.mxu0 %v4926
    %5596 = vmatpush.bf16.msra.mxu0 %v4919
    %5597 = vmatpush.bf16.msra.mxu0 %v4912
    %5598 = vmatpush.bf16.msra.mxu0 %v4905
    %5599 = vmatpush.bf16.msra.mxu0 %v4898
    %5600 = vmatpush.bf16.msra.mxu0 %v4891
    %5601 = vmatmul.bf16.gmra.mxu0 %v2967
    %v5602 = vpop.f32.mrf.mxu0
    %v5603 = vadd.f32 %v5590, %v5602
    %v5604 = vpop.f32.mrf.mxu0
    %5605 = vdwg.mxu0
    %5606 = vmatpush.bf16.msra.mxu0 %v4996
    %5607 = vmatpush.bf16.msra.mxu0 %v4989
    %5608 = vmatpush.bf16.msra.mxu0 %v4982
    %5609 = vmatpush.bf16.msra.mxu0 %v4975
    %5610 = vmatpush.bf16.msra.mxu0 %v4968
    %5611 = vmatpush.bf16.msra.mxu0 %v4961
    %5612 = vmatpush.bf16.msra.mxu0 %v4954
    %5613 = vmatpush.bf16.msra.mxu0 %v4947
    %5614 = vmatmul.bf16.gmra.mxu0 %v2968
    %v5615 = vpop.f32.mrf.mxu0
    %v5616 = vadd.f32 %v5603, %v5615
    %v5617 = vpop.f32.mrf.mxu0
    %5618 = vdwg.mxu0
    %5619 = vmatpush.bf16.msra.mxu0 %v5052
    %5620 = vmatpush.bf16.msra.mxu0 %v5045
    %5621 = vmatpush.bf16.msra.mxu0 %v5038
    %5622 = vmatpush.bf16.msra.mxu0 %v5031
    %5623 = vmatpush.bf16.msra.mxu0 %v5024
    %5624 = vmatpush.bf16.msra.mxu0 %v5017
    %5625 = vmatpush.bf16.msra.mxu0 %v5010
    %5626 = vmatpush.bf16.msra.mxu0 %v5003
    %5627 = vmatmul.bf16.gmra.mxu0 %v2969
    %v5628 = vpop.f32.mrf.mxu0
    %v5629 = vadd.f32 %v5616, %v5628
    %v5630 = vpop.f32.mrf.mxu0
    %5631 = vdwg.mxu0
    %5632 = vmatpush.bf16.msra.mxu0 %v4717
    %5633 = vmatpush.bf16.msra.mxu0 %v4710
    %5634 = vmatpush.bf16.msra.mxu0 %v4703
    %5635 = vmatpush.bf16.msra.mxu0 %v4696
    %5636 = vmatpush.bf16.msra.mxu0 %v4689
    %5637 = vmatpush.bf16.msra.mxu0 %v4682
    %5638 = vmatpush.bf16.msra.mxu0 %v4675
    %5639 = vmatpush.bf16.msra.mxu0 %v4668
    %5640 = vmatmul.bf16.gmra.mxu0 %v2963
    %v5641 = vpop.f32.mrf.mxu0
    %v5642 = vadd.f32 %v3422, %v5641
    %v5643 = vpop.f32.mrf.mxu0
    %5644 = vdwg.mxu0
    %5645 = vmatpush.bf16.msra.mxu0 %v4773
    %5646 = vmatpush.bf16.msra.mxu0 %v4766
    %5647 = vmatpush.bf16.msra.mxu0 %v4759
    %5648 = vmatpush.bf16.msra.mxu0 %v4752
    %5649 = vmatpush.bf16.msra.mxu0 %v4745
    %5650 = vmatpush.bf16.msra.mxu0 %v4738
    %5651 = vmatpush.bf16.msra.mxu0 %v4731
    %5652 = vmatpush.bf16.msra.mxu0 %v4724
    %5653 = vmatmul.bf16.gmra.mxu0 %v2964
    %v5654 = vpop.f32.mrf.mxu0
    %v5655 = vadd.f32 %v5642, %v5654
    %v5656 = vpop.f32.mrf.mxu0
    %5657 = vdwg.mxu0
    %5658 = vmatpush.bf16.msra.mxu0 %v4829
    %5659 = vmatpush.bf16.msra.mxu0 %v4822
    %5660 = vmatpush.bf16.msra.mxu0 %v4815
    %5661 = vmatpush.bf16.msra.mxu0 %v4808
    %5662 = vmatpush.bf16.msra.mxu0 %v4801
    %5663 = vmatpush.bf16.msra.mxu0 %v4794
    %5664 = vmatpush.bf16.msra.mxu0 %v4787
    %5665 = vmatpush.bf16.msra.mxu0 %v4780
    %5666 = vmatmul.bf16.gmra.mxu0 %v2965
    %v5667 = vpop.f32.mrf.mxu0
    %v5668 = vadd.f32 %v5655, %v5667
    %v5669 = vpop.f32.mrf.mxu0
    %5670 = vdwg.mxu0
    %5671 = vmatpush.bf16.msra.mxu0 %v4885
    %5672 = vmatpush.bf16.msra.mxu0 %v4878
    %5673 = vmatpush.bf16.msra.mxu0 %v4871
    %5674 = vmatpush.bf16.msra.mxu0 %v4864
    %5675 = vmatpush.bf16.msra.mxu0 %v4857
    %5676 = vmatpush.bf16.msra.mxu0 %v4850
    %5677 = vmatpush.bf16.msra.mxu0 %v4843
    %5678 = vmatpush.bf16.msra.mxu0 %v4836
    %5679 = vmatmul.bf16.gmra.mxu0 %v2966
    %v5680 = vpop.f32.mrf.mxu0
    %v5681 = vadd.f32 %v5668, %v5680
    %v5682 = vpop.f32.mrf.mxu0
    %5683 = vdwg.mxu0
    %5684 = vmatpush.bf16.msra.mxu0 %v4941
    %5685 = vmatpush.bf16.msra.mxu0 %v4934
    %5686 = vmatpush.bf16.msra.mxu0 %v4927
    %5687 = vmatpush.bf16.msra.mxu0 %v4920
    %5688 = vmatpush.bf16.msra.mxu0 %v4913
    %5689 = vmatpush.bf16.msra.mxu0 %v4906
    %5690 = vmatpush.bf16.msra.mxu0 %v4899
    %5691 = vmatpush.bf16.msra.mxu0 %v4892
    %5692 = vmatmul.bf16.gmra.mxu0 %v2967
    %v5693 = vpop.f32.mrf.mxu0
    %v5694 = vadd.f32 %v5681, %v5693
    %v5695 = vpop.f32.mrf.mxu0
    %5696 = vdwg.mxu0
    %5697 = vmatpush.bf16.msra.mxu0 %v4997
    %5698 = vmatpush.bf16.msra.mxu0 %v4990
    %5699 = vmatpush.bf16.msra.mxu0 %v4983
    %5700 = vmatpush.bf16.msra.mxu0 %v4976
    %5701 = vmatpush.bf16.msra.mxu0 %v4969
    %5702 = vmatpush.bf16.msra.mxu0 %v4962
    %5703 = vmatpush.bf16.msra.mxu0 %v4955
    %5704 = vmatpush.bf16.msra.mxu0 %v4948
    %5705 = vmatmul.bf16.gmra.mxu0 %v2968
    %v5706 = vpop.f32.mrf.mxu0
    %v5707 = vadd.f32 %v5694, %v5706
    %v5708 = vpop.f32.mrf.mxu0
    %5709 = vdwg.mxu0
    %5710 = vmatpush.bf16.msra.mxu0 %v5053
    %5711 = vmatpush.bf16.msra.mxu0 %v5046
    %5712 = vmatpush.bf16.msra.mxu0 %v5039
    %5713 = vmatpush.bf16.msra.mxu0 %v5032
    %5714 = vmatpush.bf16.msra.mxu0 %v5025
    %5715 = vmatpush.bf16.msra.mxu0 %v5018
    %5716 = vmatpush.bf16.msra.mxu0 %v5011
    %5717 = vmatpush.bf16.msra.mxu0 %v5004
    %5718 = vmatmul.bf16.gmra.mxu0 %v2969
    %v5719 = vpop.f32.mrf.mxu0
    %v5720 = vadd.f32 %v5707, %v5719
    %v5721 = vpop.f32.mrf.mxu0
    %5722 = vdwg.mxu0
    %5723 = vmatpush.bf16.msra.mxu0 %v4718
    %5724 = vmatpush.bf16.msra.mxu0 %v4711
    %5725 = vmatpush.bf16.msra.mxu0 %v4704
    %5726 = vmatpush.bf16.msra.mxu0 %v4697
    %5727 = vmatpush.bf16.msra.mxu0 %v4690
    %5728 = vmatpush.bf16.msra.mxu0 %v4683
    %5729 = vmatpush.bf16.msra.mxu0 %v4676
    %5730 = vmatpush.bf16.msra.mxu0 %v4669
    %5731 = vmatmul.bf16.gmra.mxu0 %v2963
    %v5732 = vpop.f32.mrf.mxu0
    %v5733 = vadd.f32 %v3423, %v5732
    %v5734 = vpop.f32.mrf.mxu0
    %5735 = vdwg.mxu0
    %5736 = vmatpush.bf16.msra.mxu0 %v4774
    %5737 = vmatpush.bf16.msra.mxu0 %v4767
    %5738 = vmatpush.bf16.msra.mxu0 %v4760
    %5739 = vmatpush.bf16.msra.mxu0 %v4753
    %5740 = vmatpush.bf16.msra.mxu0 %v4746
    %5741 = vmatpush.bf16.msra.mxu0 %v4739
    %5742 = vmatpush.bf16.msra.mxu0 %v4732
    %5743 = vmatpush.bf16.msra.mxu0 %v4725
    %5744 = vmatmul.bf16.gmra.mxu0 %v2964
    %v5745 = vpop.f32.mrf.mxu0
    %v5746 = vadd.f32 %v5733, %v5745
    %v5747 = vpop.f32.mrf.mxu0
    %5748 = vdwg.mxu0
    %5749 = vmatpush.bf16.msra.mxu0 %v4830
    %5750 = vmatpush.bf16.msra.mxu0 %v4823
    %5751 = vmatpush.bf16.msra.mxu0 %v4816
    %5752 = vmatpush.bf16.msra.mxu0 %v4809
    %5753 = vmatpush.bf16.msra.mxu0 %v4802
    %5754 = vmatpush.bf16.msra.mxu0 %v4795
    %5755 = vmatpush.bf16.msra.mxu0 %v4788
    %5756 = vmatpush.bf16.msra.mxu0 %v4781
    %5757 = vmatmul.bf16.gmra.mxu0 %v2965
    %v5758 = vpop.f32.mrf.mxu0
    %v5759 = vadd.f32 %v5746, %v5758
    %v5760 = vpop.f32.mrf.mxu0
    %5761 = vdwg.mxu0
    %5762 = vmatpush.bf16.msra.mxu0 %v4886
    %5763 = vmatpush.bf16.msra.mxu0 %v4879
    %5764 = vmatpush.bf16.msra.mxu0 %v4872
    %5765 = vmatpush.bf16.msra.mxu0 %v4865
    %5766 = vmatpush.bf16.msra.mxu0 %v4858
    %5767 = vmatpush.bf16.msra.mxu0 %v4851
    %5768 = vmatpush.bf16.msra.mxu0 %v4844
    %5769 = vmatpush.bf16.msra.mxu0 %v4837
    %5770 = vmatmul.bf16.gmra.mxu0 %v2966
    %v5771 = vpop.f32.mrf.mxu0
    %v5772 = vadd.f32 %v5759, %v5771
    %v5773 = vpop.f32.mrf.mxu0
    %5774 = vdwg.mxu0
    %5775 = vmatpush.bf16.msra.mxu0 %v4942
    %5776 = vmatpush.bf16.msra.mxu0 %v4935
    %5777 = vmatpush.bf16.msra.mxu0 %v4928
    %5778 = vmatpush.bf16.msra.mxu0 %v4921
    %5779 = vmatpush.bf16.msra.mxu0 %v4914
    %5780 = vmatpush.bf16.msra.mxu0 %v4907
    %5781 = vmatpush.bf16.msra.mxu0 %v4900
    %5782 = vmatpush.bf16.msra.mxu0 %v4893
    %5783 = vmatmul.bf16.gmra.mxu0 %v2967
    %v5784 = vpop.f32.mrf.mxu0
    %v5785 = vadd.f32 %v5772, %v5784
    %v5786 = vpop.f32.mrf.mxu0
    %5787 = vdwg.mxu0
    %5788 = vmatpush.bf16.msra.mxu0 %v4998
    %5789 = vmatpush.bf16.msra.mxu0 %v4991
    %5790 = vmatpush.bf16.msra.mxu0 %v4984
    %5791 = vmatpush.bf16.msra.mxu0 %v4977
    %5792 = vmatpush.bf16.msra.mxu0 %v4970
    %5793 = vmatpush.bf16.msra.mxu0 %v4963
    %5794 = vmatpush.bf16.msra.mxu0 %v4956
    %5795 = vmatpush.bf16.msra.mxu0 %v4949
    %5796 = vmatmul.bf16.gmra.mxu0 %v2968
    %v5797 = vpop.f32.mrf.mxu0
    %v5798 = vadd.f32 %v5785, %v5797
    %v5799 = vpop.f32.mrf.mxu0
    %5800 = vdwg.mxu0
    %5801 = vmatpush.bf16.msra.mxu0 %v5054
    %5802 = vmatpush.bf16.msra.mxu0 %v5047
    %5803 = vmatpush.bf16.msra.mxu0 %v5040
    %5804 = vmatpush.bf16.msra.mxu0 %v5033
    %5805 = vmatpush.bf16.msra.mxu0 %v5026
    %5806 = vmatpush.bf16.msra.mxu0 %v5019
    %5807 = vmatpush.bf16.msra.mxu0 %v5012
    %5808 = vmatpush.bf16.msra.mxu0 %v5005
    %5809 = vmatmul.bf16.gmra.mxu0 %v2969
    %v5810 = vpop.f32.mrf.mxu0
    %v5811 = vadd.f32 %v5798, %v5810
    %v5812 = vpop.f32.mrf.mxu0
    %5813 = vdwg.mxu0
    %5814 = vmatpush.bf16.msra.mxu0 %v4719
    %5815 = vmatpush.bf16.msra.mxu0 %v4712
    %5816 = vmatpush.bf16.msra.mxu0 %v4705
    %5817 = vmatpush.bf16.msra.mxu0 %v4698
    %5818 = vmatpush.bf16.msra.mxu0 %v4691
    %5819 = vmatpush.bf16.msra.mxu0 %v4684
    %5820 = vmatpush.bf16.msra.mxu0 %v4677
    %5821 = vmatpush.bf16.msra.mxu0 %v4670
    %5822 = vmatmul.bf16.gmra.mxu0 %v2963
    %v5823 = vpop.f32.mrf.mxu0
    %v5824 = vadd.f32 %v3424, %v5823
    %v5825 = vpop.f32.mrf.mxu0
    %5826 = vdwg.mxu0
    %5827 = vmatpush.bf16.msra.mxu0 %v4775
    %5828 = vmatpush.bf16.msra.mxu0 %v4768
    %5829 = vmatpush.bf16.msra.mxu0 %v4761
    %5830 = vmatpush.bf16.msra.mxu0 %v4754
    %5831 = vmatpush.bf16.msra.mxu0 %v4747
    %5832 = vmatpush.bf16.msra.mxu0 %v4740
    %5833 = vmatpush.bf16.msra.mxu0 %v4733
    %5834 = vmatpush.bf16.msra.mxu0 %v4726
    %5835 = vmatmul.bf16.gmra.mxu0 %v2964
    %v5836 = vpop.f32.mrf.mxu0
    %v5837 = vadd.f32 %v5824, %v5836
    %v5838 = vpop.f32.mrf.mxu0
    %5839 = vdwg.mxu0
    %5840 = vmatpush.bf16.msra.mxu0 %v4831
    %5841 = vmatpush.bf16.msra.mxu0 %v4824
    %5842 = vmatpush.bf16.msra.mxu0 %v4817
    %5843 = vmatpush.bf16.msra.mxu0 %v4810
    %5844 = vmatpush.bf16.msra.mxu0 %v4803
    %5845 = vmatpush.bf16.msra.mxu0 %v4796
    %5846 = vmatpush.bf16.msra.mxu0 %v4789
    %5847 = vmatpush.bf16.msra.mxu0 %v4782
    %5848 = vmatmul.bf16.gmra.mxu0 %v2965
    %v5849 = vpop.f32.mrf.mxu0
    %v5850 = vadd.f32 %v5837, %v5849
    %v5851 = vpop.f32.mrf.mxu0
    %5852 = vdwg.mxu0
    %5853 = vmatpush.bf16.msra.mxu0 %v4887
    %5854 = vmatpush.bf16.msra.mxu0 %v4880
    %5855 = vmatpush.bf16.msra.mxu0 %v4873
    %5856 = vmatpush.bf16.msra.mxu0 %v4866
    %5857 = vmatpush.bf16.msra.mxu0 %v4859
    %5858 = vmatpush.bf16.msra.mxu0 %v4852
    %5859 = vmatpush.bf16.msra.mxu0 %v4845
    %5860 = vmatpush.bf16.msra.mxu0 %v4838
    %5861 = vmatmul.bf16.gmra.mxu0 %v2966
    %v5862 = vpop.f32.mrf.mxu0
    %v5863 = vadd.f32 %v5850, %v5862
    %v5864 = vpop.f32.mrf.mxu0
    %5865 = vdwg.mxu0
    %5866 = vmatpush.bf16.msra.mxu0 %v4943
    %5867 = vmatpush.bf16.msra.mxu0 %v4936
    %5868 = vmatpush.bf16.msra.mxu0 %v4929
    %5869 = vmatpush.bf16.msra.mxu0 %v4922
    %5870 = vmatpush.bf16.msra.mxu0 %v4915
    %5871 = vmatpush.bf16.msra.mxu0 %v4908
    %5872 = vmatpush.bf16.msra.mxu0 %v4901
    %5873 = vmatpush.bf16.msra.mxu0 %v4894
    %5874 = vmatmul.bf16.gmra.mxu0 %v2967
    %v5875 = vpop.f32.mrf.mxu0
    %v5876 = vadd.f32 %v5863, %v5875
    %v5877 = vpop.f32.mrf.mxu0
    %5878 = vdwg.mxu0
    %5879 = vmatpush.bf16.msra.mxu0 %v4999
    %5880 = vmatpush.bf16.msra.mxu0 %v4992
    %5881 = vmatpush.bf16.msra.mxu0 %v4985
    %5882 = vmatpush.bf16.msra.mxu0 %v4978
    %5883 = vmatpush.bf16.msra.mxu0 %v4971
    %5884 = vmatpush.bf16.msra.mxu0 %v4964
    %5885 = vmatpush.bf16.msra.mxu0 %v4957
    %5886 = vmatpush.bf16.msra.mxu0 %v4950
    %5887 = vmatmul.bf16.gmra.mxu0 %v2968
    %v5888 = vpop.f32.mrf.mxu0
    %v5889 = vadd.f32 %v5876, %v5888
    %v5890 = vpop.f32.mrf.mxu0
    %5891 = vdwg.mxu0
    %5892 = vmatpush.bf16.msra.mxu0 %v5055
    %5893 = vmatpush.bf16.msra.mxu0 %v5048
    %5894 = vmatpush.bf16.msra.mxu0 %v5041
    %5895 = vmatpush.bf16.msra.mxu0 %v5034
    %5896 = vmatpush.bf16.msra.mxu0 %v5027
    %5897 = vmatpush.bf16.msra.mxu0 %v5020
    %5898 = vmatpush.bf16.msra.mxu0 %v5013
    %5899 = vmatpush.bf16.msra.mxu0 %v5006
    %5900 = vmatmul.bf16.gmra.mxu0 %v2969
    %v5901 = vpop.f32.mrf.mxu0
    %v5902 = vadd.f32 %v5889, %v5901
    %v5903 = vpop.f32.mrf.mxu0
    %5904 = vdwg.mxu0
    %5905 = vmatpush.bf16.msra.mxu0 %v4720
    %5906 = vmatpush.bf16.msra.mxu0 %v4713
    %5907 = vmatpush.bf16.msra.mxu0 %v4706
    %5908 = vmatpush.bf16.msra.mxu0 %v4699
    %5909 = vmatpush.bf16.msra.mxu0 %v4692
    %5910 = vmatpush.bf16.msra.mxu0 %v4685
    %5911 = vmatpush.bf16.msra.mxu0 %v4678
    %5912 = vmatpush.bf16.msra.mxu0 %v4671
    %5913 = vmatmul.bf16.gmra.mxu0 %v2963
    %v5914 = vpop.f32.mrf.mxu0
    %v5915 = vadd.f32 %v3425, %v5914
    %v5916 = vpop.f32.mrf.mxu0
    %5917 = vdwg.mxu0
    %5918 = vmatpush.bf16.msra.mxu0 %v4776
    %5919 = vmatpush.bf16.msra.mxu0 %v4769
    %5920 = vmatpush.bf16.msra.mxu0 %v4762
    %5921 = vmatpush.bf16.msra.mxu0 %v4755
    %5922 = vmatpush.bf16.msra.mxu0 %v4748
    %5923 = vmatpush.bf16.msra.mxu0 %v4741
    %5924 = vmatpush.bf16.msra.mxu0 %v4734
    %5925 = vmatpush.bf16.msra.mxu0 %v4727
    %5926 = vmatmul.bf16.gmra.mxu0 %v2964
    %v5927 = vpop.f32.mrf.mxu0
    %v5928 = vadd.f32 %v5915, %v5927
    %v5929 = vpop.f32.mrf.mxu0
    %5930 = vdwg.mxu0
    %5931 = vmatpush.bf16.msra.mxu0 %v4832
    %5932 = vmatpush.bf16.msra.mxu0 %v4825
    %5933 = vmatpush.bf16.msra.mxu0 %v4818
    %5934 = vmatpush.bf16.msra.mxu0 %v4811
    %5935 = vmatpush.bf16.msra.mxu0 %v4804
    %5936 = vmatpush.bf16.msra.mxu0 %v4797
    %5937 = vmatpush.bf16.msra.mxu0 %v4790
    %5938 = vmatpush.bf16.msra.mxu0 %v4783
    %5939 = vmatmul.bf16.gmra.mxu0 %v2965
    %v5940 = vpop.f32.mrf.mxu0
    %v5941 = vadd.f32 %v5928, %v5940
    %v5942 = vpop.f32.mrf.mxu0
    %5943 = vdwg.mxu0
    %5944 = vmatpush.bf16.msra.mxu0 %v4888
    %5945 = vmatpush.bf16.msra.mxu0 %v4881
    %5946 = vmatpush.bf16.msra.mxu0 %v4874
    %5947 = vmatpush.bf16.msra.mxu0 %v4867
    %5948 = vmatpush.bf16.msra.mxu0 %v4860
    %5949 = vmatpush.bf16.msra.mxu0 %v4853
    %5950 = vmatpush.bf16.msra.mxu0 %v4846
    %5951 = vmatpush.bf16.msra.mxu0 %v4839
    %5952 = vmatmul.bf16.gmra.mxu0 %v2966
    %v5953 = vpop.f32.mrf.mxu0
    %v5954 = vadd.f32 %v5941, %v5953
    %v5955 = vpop.f32.mrf.mxu0
    %5956 = vdwg.mxu0
    %5957 = vmatpush.bf16.msra.mxu0 %v4944
    %5958 = vmatpush.bf16.msra.mxu0 %v4937
    %5959 = vmatpush.bf16.msra.mxu0 %v4930
    %5960 = vmatpush.bf16.msra.mxu0 %v4923
    %5961 = vmatpush.bf16.msra.mxu0 %v4916
    %5962 = vmatpush.bf16.msra.mxu0 %v4909
    %5963 = vmatpush.bf16.msra.mxu0 %v4902
    %5964 = vmatpush.bf16.msra.mxu0 %v4895
    %5965 = vmatmul.bf16.gmra.mxu0 %v2967
    %v5966 = vpop.f32.mrf.mxu0
    %v5967 = vadd.f32 %v5954, %v5966
    %v5968 = vpop.f32.mrf.mxu0
    %5969 = vdwg.mxu0
    %5970 = vmatpush.bf16.msra.mxu0 %v5000
    %5971 = vmatpush.bf16.msra.mxu0 %v4993
    %5972 = vmatpush.bf16.msra.mxu0 %v4986
    %5973 = vmatpush.bf16.msra.mxu0 %v4979
    %5974 = vmatpush.bf16.msra.mxu0 %v4972
    %5975 = vmatpush.bf16.msra.mxu0 %v4965
    %5976 = vmatpush.bf16.msra.mxu0 %v4958
    %5977 = vmatpush.bf16.msra.mxu0 %v4951
    %5978 = vmatmul.bf16.gmra.mxu0 %v2968
    %v5979 = vpop.f32.mrf.mxu0
    %v5980 = vadd.f32 %v5967, %v5979
    %v5981 = vpop.f32.mrf.mxu0
    %5982 = vdwg.mxu0
    %5983 = vmatpush.bf16.msra.mxu0 %v5056
    %5984 = vmatpush.bf16.msra.mxu0 %v5049
    %5985 = vmatpush.bf16.msra.mxu0 %v5042
    %5986 = vmatpush.bf16.msra.mxu0 %v5035
    %5987 = vmatpush.bf16.msra.mxu0 %v5028
    %5988 = vmatpush.bf16.msra.mxu0 %v5021
    %5989 = vmatpush.bf16.msra.mxu0 %v5014
    %5990 = vmatpush.bf16.msra.mxu0 %v5007
    %5991 = vmatmul.bf16.gmra.mxu0 %v2969
    %v5992 = vpop.f32.mrf.mxu0
    %v5993 = vadd.f32 %v5980, %v5992
    %v5994 = vpop.f32.mrf.mxu0
    %5995 = vdwg.mxu0
    %5996 = vmatpush.bf16.msra.mxu0 %v4721
    %5997 = vmatpush.bf16.msra.mxu0 %v4714
    %5998 = vmatpush.bf16.msra.mxu0 %v4707
    %5999 = vmatpush.bf16.msra.mxu0 %v4700
    %6000 = vmatpush.bf16.msra.mxu0 %v4693
    %6001 = vmatpush.bf16.msra.mxu0 %v4686
    %6002 = vmatpush.bf16.msra.mxu0 %v4679
    %6003 = vmatpush.bf16.msra.mxu0 %v4672
    %6004 = vmatmul.bf16.gmra.mxu0 %v2963
    %v6005 = vpop.f32.mrf.mxu0
    %v6006 = vadd.f32 %v3426, %v6005
    %v6007 = vpop.f32.mrf.mxu0
    %6008 = vdwg.mxu0
    %6009 = vmatpush.bf16.msra.mxu0 %v4777
    %6010 = vmatpush.bf16.msra.mxu0 %v4770
    %6011 = vmatpush.bf16.msra.mxu0 %v4763
    %6012 = vmatpush.bf16.msra.mxu0 %v4756
    %6013 = vmatpush.bf16.msra.mxu0 %v4749
    %6014 = vmatpush.bf16.msra.mxu0 %v4742
    %6015 = vmatpush.bf16.msra.mxu0 %v4735
    %6016 = vmatpush.bf16.msra.mxu0 %v4728
    %6017 = vmatmul.bf16.gmra.mxu0 %v2964
    %v6018 = vpop.f32.mrf.mxu0
    %v6019 = vadd.f32 %v6006, %v6018
    %v6020 = vpop.f32.mrf.mxu0
    %6021 = vdwg.mxu0
    %6022 = vmatpush.bf16.msra.mxu0 %v4833
    %6023 = vmatpush.bf16.msra.mxu0 %v4826
    %6024 = vmatpush.bf16.msra.mxu0 %v4819
    %6025 = vmatpush.bf16.msra.mxu0 %v4812
    %6026 = vmatpush.bf16.msra.mxu0 %v4805
    %6027 = vmatpush.bf16.msra.mxu0 %v4798
    %6028 = vmatpush.bf16.msra.mxu0 %v4791
    %6029 = vmatpush.bf16.msra.mxu0 %v4784
    %6030 = vmatmul.bf16.gmra.mxu0 %v2965
    %v6031 = vpop.f32.mrf.mxu0
    %v6032 = vadd.f32 %v6019, %v6031
    %v6033 = vpop.f32.mrf.mxu0
    %6034 = vdwg.mxu0
    %6035 = vmatpush.bf16.msra.mxu0 %v4889
    %6036 = vmatpush.bf16.msra.mxu0 %v4882
    %6037 = vmatpush.bf16.msra.mxu0 %v4875
    %6038 = vmatpush.bf16.msra.mxu0 %v4868
    %6039 = vmatpush.bf16.msra.mxu0 %v4861
    %6040 = vmatpush.bf16.msra.mxu0 %v4854
    %6041 = vmatpush.bf16.msra.mxu0 %v4847
    %6042 = vmatpush.bf16.msra.mxu0 %v4840
    %6043 = vmatmul.bf16.gmra.mxu0 %v2966
    %v6044 = vpop.f32.mrf.mxu0
    %v6045 = vadd.f32 %v6032, %v6044
    %v6046 = vpop.f32.mrf.mxu0
    %6047 = vdwg.mxu0
    %6048 = vmatpush.bf16.msra.mxu0 %v4945
    %6049 = vmatpush.bf16.msra.mxu0 %v4938
    %6050 = vmatpush.bf16.msra.mxu0 %v4931
    %6051 = vmatpush.bf16.msra.mxu0 %v4924
    %6052 = vmatpush.bf16.msra.mxu0 %v4917
    %6053 = vmatpush.bf16.msra.mxu0 %v4910
    %6054 = vmatpush.bf16.msra.mxu0 %v4903
    %6055 = vmatpush.bf16.msra.mxu0 %v4896
    %6056 = vmatmul.bf16.gmra.mxu0 %v2967
    %v6057 = vpop.f32.mrf.mxu0
    %v6058 = vadd.f32 %v6045, %v6057
    %v6059 = vpop.f32.mrf.mxu0
    %6060 = vdwg.mxu0
    %6061 = vmatpush.bf16.msra.mxu0 %v5001
    %6062 = vmatpush.bf16.msra.mxu0 %v4994
    %6063 = vmatpush.bf16.msra.mxu0 %v4987
    %6064 = vmatpush.bf16.msra.mxu0 %v4980
    %6065 = vmatpush.bf16.msra.mxu0 %v4973
    %6066 = vmatpush.bf16.msra.mxu0 %v4966
    %6067 = vmatpush.bf16.msra.mxu0 %v4959
    %6068 = vmatpush.bf16.msra.mxu0 %v4952
    %6069 = vmatmul.bf16.gmra.mxu0 %v2968
    %v6070 = vpop.f32.mrf.mxu0
    %v6071 = vadd.f32 %v6058, %v6070
    %v6072 = vpop.f32.mrf.mxu0
    %6073 = vdwg.mxu0
    %6074 = vmatpush.bf16.msra.mxu0 %v5057
    %6075 = vmatpush.bf16.msra.mxu0 %v5050
    %6076 = vmatpush.bf16.msra.mxu0 %v5043
    %6077 = vmatpush.bf16.msra.mxu0 %v5036
    %6078 = vmatpush.bf16.msra.mxu0 %v5029
    %6079 = vmatpush.bf16.msra.mxu0 %v5022
    %6080 = vmatpush.bf16.msra.mxu0 %v5015
    %6081 = vmatpush.bf16.msra.mxu0 %v5008
    %6082 = vmatmul.bf16.gmra.mxu0 %v2969
    %v6083 = vpop.f32.mrf.mxu0
    %v6084 = vadd.f32 %v6071, %v6083
    %v6085 = vpop.f32.mrf.mxu0
    %6086 = vdwg.mxu0
    %v6087 = vmax.f32 %v5538, 0.0
    %v6088 = vmax.f32 %v5629, 0.0
    %v6089 = vmax.f32 %v5720, 0.0
    %v6090 = vmax.f32 %v5811, 0.0
    %v6091 = vmax.f32 %v5902, 0.0
    %v6092 = vmax.f32 %v5993, 0.0
    %v6093 = vmax.f32 %v6084, 0.0
    %v6094 = vpack.c.bf16 %v6087, %v6087
    %v6095 = vpack.c.bf16 %v6088, %v6088
    %v6096 = vpack.c.bf16 %v6089, %v6089
    %v6097 = vpack.c.bf16 %v6090, %v6090
    %v6098 = vpack.c.bf16 %v6091, %v6091
    %v6099 = vpack.c.bf16 %v6092, %v6092
    %v6100 = vpack.c.bf16 %v6093, %v6093
    %v6101 = vld [vmem:[#allocation11] sm:$0xf]
    %v6102 = vld [vmem:[#allocation11 + $0x4] sm:$0xf]
    %v6103 = vld [vmem:[#allocation11 + $0x8] sm:$0xf]
    %v6104 = vld [vmem:[#allocation11 + $0xc] sm:$0xf]
    %v6105 = vld [vmem:[#allocation11 + $0x10] sm:$0xf]
    %v6106 = vld [vmem:[#allocation11 + $0x14] sm:$0xf]
    %v6107 = vld [vmem:[#allocation11 + $0x18] sm:$0xf]
    %v6108 = vld [vmem:[#allocation11 + $0x1c] sm:$0xf]
    %v6109 = vld [vmem:[#allocation11 + $0x20] sm:$0xf]
    %v6110 = vld [vmem:[#allocation11 + $0x24] sm:$0xf]
    %v6111 = vld [vmem:[#allocation11 + $0x28] sm:$0xf]
    %v6112 = vld [vmem:[#allocation11 + $0x2c] sm:$0xf]
    %v6113 = vld [vmem:[#allocation11 + $0x30] sm:$0xf]
    %v6114 = vld [vmem:[#allocation11 + $0x34] sm:$0xf]
    %v6115 = vld [vmem:[#allocation11 + $0x38] sm:$0xf]
    %v6116 = vld [vmem:[#allocation11 + $0x3c] sm:$0xf]
    %v6117 = vld [vmem:[#allocation11 + $0x40] sm:$0xf]
    %v6118 = vld [vmem:[#allocation11 + $0x44] sm:$0xf]
    %v6119 = vld [vmem:[#allocation11 + $0x48] sm:$0xf]
    %v6120 = vld [vmem:[#allocation11 + $0x4c] sm:$0xf]
    %v6121 = vld [vmem:[#allocation11 + $0x50] sm:$0xf]
    %v6122 = vld [vmem:[#allocation11 + $0x54] sm:$0xf]
    %v6123 = vld [vmem:[#allocation11 + $0x58] sm:$0xf]
    %v6124 = vld [vmem:[#allocation11 + $0x5c] sm:$0xf]
    %v6125 = vld [vmem:[#allocation11 + $0x60] sm:$0xf]
    %v6126 = vld [vmem:[#allocation11 + $0x64] sm:$0xf]
    %v6127 = vld [vmem:[#allocation11 + $0x68] sm:$0xf]
    %v6128 = vld [vmem:[#allocation11 + $0x6c] sm:$0xf]
    %v6129 = vld [vmem:[#allocation11 + $0x70] sm:$0xf]
    %v6130 = vld [vmem:[#allocation11 + $0x74] sm:$0xf]
    %v6131 = vld [vmem:[#allocation11 + $0x78] sm:$0xf]
    %v6132 = vld [vmem:[#allocation11 + $0x7c] sm:$0xf]
    %v6133 = vld [vmem:[#allocation11 + $0x80] sm:$0xf]
    %v6134 = vld [vmem:[#allocation11 + $0x84] sm:$0xf]
    %v6135 = vld [vmem:[#allocation11 + $0x88] sm:$0xf]
    %v6136 = vld [vmem:[#allocation11 + $0x8c] sm:$0xf]
    %v6137 = vld [vmem:[#allocation11 + $0x90] sm:$0xf]
    %v6138 = vld [vmem:[#allocation11 + $0x94] sm:$0xf]
    %v6139 = vld [vmem:[#allocation11 + $0x98] sm:$0xf]
    %v6140 = vld [vmem:[#allocation11 + $0x9c] sm:$0xf]
    %v6141 = vld [vmem:[#allocation11 + $0xa0] sm:$0xf]
    %v6142 = vld [vmem:[#allocation11 + $0xa4] sm:$0xf]
    %v6143 = vld [vmem:[#allocation11 + $0xa8] sm:$0xf]
    %v6144 = vld [vmem:[#allocation11 + $0xac] sm:$0xf]
    %v6145 = vld [vmem:[#allocation11 + $0xb0] sm:$0xf]
    %v6146 = vld [vmem:[#allocation11 + $0xb4] sm:$0xf]
    %v6147 = vld [vmem:[#allocation11 + $0xb8] sm:$0xf]
    %v6148 = vld [vmem:[#allocation11 + $0xbc] sm:$0xf]
    %v6149 = vld [vmem:[#allocation11 + $0xc0] sm:$0xf]
    %v6150 = vld [vmem:[#allocation11 + $0xc4] sm:$0xf]
    %v6151 = vld [vmem:[#allocation11 + $0xc8] sm:$0xf]
    %v6152 = vld [vmem:[#allocation11 + $0xcc] sm:$0xf]
    %v6153 = vld [vmem:[#allocation11 + $0xd0] sm:$0xf]
    %v6154 = vld [vmem:[#allocation11 + $0xd4] sm:$0xf]
    %v6155 = vld [vmem:[#allocation11 + $0xd8] sm:$0xf]
    %v6156 = vld [vmem:[#allocation11 + $0xdc] sm:$0xf]
    %v6157 = vld [vmem:[#allocation11 + $0xe0] sm:$0xf]
    %v6158 = vld [vmem:[#allocation11 + $0xe4] sm:$0xf]
    %v6159 = vld [vmem:[#allocation11 + $0xe8] sm:$0xf]
    %v6160 = vld [vmem:[#allocation11 + $0xec] sm:$0xf]
    %v6161 = vld [vmem:[#allocation11 + $0xf0] sm:$0xf]
    %v6162 = vld [vmem:[#allocation11 + $0xf4] sm:$0xf]
    %v6163 = vld [vmem:[#allocation11 + $0xf8] sm:$0xf]
    %v6164 = vld [vmem:[#allocation11 + $0xfc] sm:$0xf]
    %v6165 = vld [vmem:[#allocation11 + $0x100] sm:$0xf]
    %v6166 = vld [vmem:[#allocation11 + $0x104] sm:$0xf]
    %v6167 = vld [vmem:[#allocation11 + $0x108] sm:$0xf]
    %v6168 = vld [vmem:[#allocation11 + $0x10c] sm:$0xf]
    %v6169 = vld [vmem:[#allocation11 + $0x110] sm:$0xf]
    %v6170 = vld [vmem:[#allocation11 + $0x114] sm:$0xf]
    %v6171 = vld [vmem:[#allocation11 + $0x118] sm:$0xf]
    %v6172 = vld [vmem:[#allocation11 + $0x11c] sm:$0xf]
    %v6173 = vld [vmem:[#allocation11 + $0x120] sm:$0xf]
    %v6174 = vld [vmem:[#allocation11 + $0x124] sm:$0xf]
    %v6175 = vld [vmem:[#allocation11 + $0x128] sm:$0xf]
    %v6176 = vld [vmem:[#allocation11 + $0x12c] sm:$0xf]
    %v6177 = vld [vmem:[#allocation11 + $0x130] sm:$0xf]
    %v6178 = vld [vmem:[#allocation11 + $0x134] sm:$0xf]
    %v6179 = vld [vmem:[#allocation11 + $0x138] sm:$0xf]
    %v6180 = vld [vmem:[#allocation11 + $0x13c] sm:$0xf]
    %v6181 = vld [vmem:[#allocation11 + $0x140] sm:$0xf]
    %v6182 = vld [vmem:[#allocation11 + $0x144] sm:$0xf]
    %v6183 = vld [vmem:[#allocation11 + $0x148] sm:$0xf]
    %v6184 = vld [vmem:[#allocation11 + $0x14c] sm:$0xf]
    %v6185 = vld [vmem:[#allocation11 + $0x150] sm:$0xf]
    %v6186 = vld [vmem:[#allocation11 + $0x154] sm:$0xf]
    %v6187 = vld [vmem:[#allocation11 + $0x158] sm:$0xf]
    %v6188 = vld [vmem:[#allocation11 + $0x15c] sm:$0xf]
    %v6189 = vld [vmem:[#allocation11 + $0x160] sm:$0xf]
    %v6190 = vld [vmem:[#allocation11 + $0x164] sm:$0xf]
    %v6191 = vld [vmem:[#allocation11 + $0x168] sm:$0xf]
    %v6192 = vld [vmem:[#allocation11 + $0x16c] sm:$0xf]
    %v6193 = vld [vmem:[#allocation11 + $0x170] sm:$0xf]
    %v6194 = vld [vmem:[#allocation11 + $0x174] sm:$0xf]
    %v6195 = vld [vmem:[#allocation11 + $0x178] sm:$0xf]
    %v6196 = vld [vmem:[#allocation11 + $0x17c] sm:$0xf]
    %v6197 = vld [vmem:[#allocation11 + $0x180] sm:$0xf]
    %v6198 = vld [vmem:[#allocation11 + $0x184] sm:$0xf]
    %v6199 = vld [vmem:[#allocation11 + $0x188] sm:$0xf]
    %v6200 = vld [vmem:[#allocation11 + $0x18c] sm:$0xf]
    %v6201 = vld [vmem:[#allocation11 + $0x190] sm:$0xf]
    %v6202 = vld [vmem:[#allocation11 + $0x194] sm:$0xf]
    %v6203 = vld [vmem:[#allocation11 + $0x198] sm:$0xf]
    %v6204 = vld [vmem:[#allocation11 + $0x19c] sm:$0xf]
    %v6205 = vld [vmem:[#allocation11 + $0x1a0] sm:$0xf]
    %v6206 = vld [vmem:[#allocation11 + $0x1a4] sm:$0xf]
    %v6207 = vld [vmem:[#allocation11 + $0x1a8] sm:$0xf]
    %v6208 = vld [vmem:[#allocation11 + $0x1ac] sm:$0xf]
    %v6209 = vld [vmem:[#allocation11 + $0x1b0] sm:$0xf]
    %v6210 = vld [vmem:[#allocation11 + $0x1b4] sm:$0xf]
    %v6211 = vld [vmem:[#allocation11 + $0x1b8] sm:$0xf]
    %v6212 = vld [vmem:[#allocation11 + $0x1bc] sm:$0xf]
    %v6213 = vld [vmem:[#allocation13] sm:$0x1]
    %v6215 = vperm.slane %v6213, 0
    %v6329 = vunpack.c.l.b16 %v6101
    %v6330 = vunpack.c.l.b16 %v6102
    %v6331 = vunpack.c.l.b16 %v6103
    %v6332 = vunpack.c.l.b16 %v6104
    %v6333 = vunpack.c.l.b16 %v6105
    %v6334 = vunpack.c.l.b16 %v6106
    %v6335 = vunpack.c.l.b16 %v6107
    %v6336 = vunpack.c.l.b16 %v6108
    %v6337 = vunpack.c.l.b16 %v6109
    %v6338 = vunpack.c.l.b16 %v6110
    %v6339 = vunpack.c.l.b16 %v6111
    %v6340 = vunpack.c.l.b16 %v6112
    %v6341 = vunpack.c.l.b16 %v6113
    %v6342 = vunpack.c.l.b16 %v6114
    %v6343 = vunpack.c.l.b16 %v6115
    %v6344 = vunpack.c.l.b16 %v6116
    %v6345 = vunpack.c.l.b16 %v6117
    %v6346 = vunpack.c.l.b16 %v6118
    %v6347 = vunpack.c.l.b16 %v6119
    %v6348 = vunpack.c.l.b16 %v6120
    %v6349 = vunpack.c.l.b16 %v6121
    %v6350 = vunpack.c.l.b16 %v6122
    %v6351 = vunpack.c.l.b16 %v6123
    %v6352 = vunpack.c.l.b16 %v6124
    %v6353 = vunpack.c.l.b16 %v6125
    %v6354 = vunpack.c.l.b16 %v6126
    %v6355 = vunpack.c.l.b16 %v6127
    %v6356 = vunpack.c.l.b16 %v6128
    %v6357 = vunpack.c.l.b16 %v6129
    %v6358 = vunpack.c.l.b16 %v6130
    %v6359 = vunpack.c.l.b16 %v6131
    %v6360 = vunpack.c.l.b16 %v6132
    %v6361 = vunpack.c.l.b16 %v6133
    %v6362 = vunpack.c.l.b16 %v6134
    %v6363 = vunpack.c.l.b16 %v6135
    %v6364 = vunpack.c.l.b16 %v6136
    %v6365 = vunpack.c.l.b16 %v6137
    %v6366 = vunpack.c.l.b16 %v6138
    %v6367 = vunpack.c.l.b16 %v6139
    %v6368 = vunpack.c.l.b16 %v6140
    %v6369 = vunpack.c.l.b16 %v6141
    %v6370 = vunpack.c.l.b16 %v6142
    %v6371 = vunpack.c.l.b16 %v6143
    %v6372 = vunpack.c.l.b16 %v6144
    %v6373 = vunpack.c.l.b16 %v6145
    %v6374 = vunpack.c.l.b16 %v6146
    %v6375 = vunpack.c.l.b16 %v6147
    %v6376 = vunpack.c.l.b16 %v6148
    %v6377 = vunpack.c.l.b16 %v6149
    %v6378 = vunpack.c.l.b16 %v6150
    %v6379 = vunpack.c.l.b16 %v6151
    %v6380 = vunpack.c.l.b16 %v6152
    %v6381 = vunpack.c.l.b16 %v6153
    %v6382 = vunpack.c.l.b16 %v6154
    %v6383 = vunpack.c.l.b16 %v6155
    %v6384 = vunpack.c.l.b16 %v6156
    %v6385 = vunpack.c.l.b16 %v6157
    %v6386 = vunpack.c.l.b16 %v6158
    %v6387 = vunpack.c.l.b16 %v6159
    %v6388 = vunpack.c.l.b16 %v6160
    %v6389 = vunpack.c.l.b16 %v6161
    %v6390 = vunpack.c.l.b16 %v6162
    %v6391 = vunpack.c.l.b16 %v6163
    %v6392 = vunpack.c.l.b16 %v6164
    %v6393 = vunpack.c.l.b16 %v6165
    %v6394 = vunpack.c.l.b16 %v6166
    %v6395 = vunpack.c.l.b16 %v6167
    %v6396 = vunpack.c.l.b16 %v6168
    %v6397 = vunpack.c.l.b16 %v6169
    %v6398 = vunpack.c.l.b16 %v6170
    %v6399 = vunpack.c.l.b16 %v6171
    %v6400 = vunpack.c.l.b16 %v6172
    %v6401 = vunpack.c.l.b16 %v6173
    %v6402 = vunpack.c.l.b16 %v6174
    %v6403 = vunpack.c.l.b16 %v6175
    %v6404 = vunpack.c.l.b16 %v6176
    %v6405 = vunpack.c.l.b16 %v6177
    %v6406 = vunpack.c.l.b16 %v6178
    %v6407 = vunpack.c.l.b16 %v6179
    %v6408 = vunpack.c.l.b16 %v6180
    %v6409 = vunpack.c.l.b16 %v6181
    %v6410 = vunpack.c.l.b16 %v6182
    %v6411 = vunpack.c.l.b16 %v6183
    %v6412 = vunpack.c.l.b16 %v6184
    %v6413 = vunpack.c.l.b16 %v6185
    %v6414 = vunpack.c.l.b16 %v6186
    %v6415 = vunpack.c.l.b16 %v6187
    %v6416 = vunpack.c.l.b16 %v6188
    %v6417 = vunpack.c.l.b16 %v6189
    %v6418 = vunpack.c.l.b16 %v6190
    %v6419 = vunpack.c.l.b16 %v6191
    %v6420 = vunpack.c.l.b16 %v6192
    %v6421 = vunpack.c.l.b16 %v6193
    %v6422 = vunpack.c.l.b16 %v6194
    %v6423 = vunpack.c.l.b16 %v6195
    %v6424 = vunpack.c.l.b16 %v6196
    %v6425 = vunpack.c.l.b16 %v6197
    %v6426 = vunpack.c.l.b16 %v6198
    %v6427 = vunpack.c.l.b16 %v6199
    %v6428 = vunpack.c.l.b16 %v6200
    %v6429 = vunpack.c.l.b16 %v6201
    %v6430 = vunpack.c.l.b16 %v6202
    %v6431 = vunpack.c.l.b16 %v6203
    %v6432 = vunpack.c.l.b16 %v6204
    %v6433 = vunpack.c.l.b16 %v6205
    %v6434 = vunpack.c.l.b16 %v6206
    %v6435 = vunpack.c.l.b16 %v6207
    %v6436 = vunpack.c.l.b16 %v6208
    %v6437 = vunpack.c.l.b16 %v6209
    %v6438 = vunpack.c.l.b16 %v6210
    %v6439 = vunpack.c.l.b16 %v6211
    %v6440 = vunpack.c.l.b16 %v6212
    %v6441 = vpack.c.b16 %v6330, %v6329
    %v6442 = vpack.c.b16 %v6332, %v6331
    %v6443 = vpack.c.b16 %v6334, %v6333
    %v6444 = vpack.c.b16 %v6336, %v6335
    %v6445 = vpack.c.b16 %v6338, %v6337
    %v6446 = vpack.c.b16 %v6340, %v6339
    %v6447 = vpack.c.b16 %v6342, %v6341
    %v6448 = vpack.c.b16 %v6344, %v6343
    %v6449 = vpack.c.b16 %v6346, %v6345
    %v6450 = vpack.c.b16 %v6348, %v6347
    %v6451 = vpack.c.b16 %v6350, %v6349
    %v6452 = vpack.c.b16 %v6352, %v6351
    %v6453 = vpack.c.b16 %v6354, %v6353
    %v6454 = vpack.c.b16 %v6356, %v6355
    %v6455 = vpack.c.b16 %v6358, %v6357
    %v6456 = vpack.c.b16 %v6360, %v6359
    %v6457 = vpack.c.b16 %v6362, %v6361
    %v6458 = vpack.c.b16 %v6364, %v6363
    %v6459 = vpack.c.b16 %v6366, %v6365
    %v6460 = vpack.c.b16 %v6368, %v6367
    %v6461 = vpack.c.b16 %v6370, %v6369
    %v6462 = vpack.c.b16 %v6372, %v6371
    %v6463 = vpack.c.b16 %v6374, %v6373
    %v6464 = vpack.c.b16 %v6376, %v6375
    %v6465 = vpack.c.b16 %v6378, %v6377
    %v6466 = vpack.c.b16 %v6380, %v6379
    %v6467 = vpack.c.b16 %v6382, %v6381
    %v6468 = vpack.c.b16 %v6384, %v6383
    %v6469 = vpack.c.b16 %v6386, %v6385
    %v6470 = vpack.c.b16 %v6388, %v6387
    %v6471 = vpack.c.b16 %v6390, %v6389
    %v6472 = vpack.c.b16 %v6392, %v6391
    %v6473 = vpack.c.b16 %v6394, %v6393
    %v6474 = vpack.c.b16 %v6396, %v6395
    %v6475 = vpack.c.b16 %v6398, %v6397
    %v6476 = vpack.c.b16 %v6400, %v6399
    %v6477 = vpack.c.b16 %v6402, %v6401
    %v6478 = vpack.c.b16 %v6404, %v6403
    %v6479 = vpack.c.b16 %v6406, %v6405
    %v6480 = vpack.c.b16 %v6408, %v6407
    %v6481 = vpack.c.b16 %v6410, %v6409
    %v6482 = vpack.c.b16 %v6412, %v6411
    %v6483 = vpack.c.b16 %v6414, %v6413
    %v6484 = vpack.c.b16 %v6416, %v6415
    %v6485 = vpack.c.b16 %v6418, %v6417
    %v6486 = vpack.c.b16 %v6420, %v6419
    %v6487 = vpack.c.b16 %v6422, %v6421
    %v6488 = vpack.c.b16 %v6424, %v6423
    %v6489 = vpack.c.b16 %v6426, %v6425
    %v6490 = vpack.c.b16 %v6428, %v6427
    %v6491 = vpack.c.b16 %v6430, %v6429
    %v6492 = vpack.c.b16 %v6432, %v6431
    %v6493 = vpack.c.b16 %v6434, %v6433
    %v6494 = vpack.c.b16 %v6436, %v6435
    %v6495 = vpack.c.b16 %v6438, %v6437
    %v6496 = vpack.c.b16 %v6440, %v6439
    %6553 = vmatpush.bf16.msra.mxu0 %v6448
    %6554 = vmatpush.bf16.msra.mxu0 %v6447
    %6555 = vmatpush.bf16.msra.mxu0 %v6446
    %6556 = vmatpush.bf16.msra.mxu0 %v6445
    %6557 = vmatpush.bf16.msra.mxu0 %v6444
    %6558 = vmatpush.bf16.msra.mxu0 %v6443
    %6559 = vmatpush.bf16.msra.mxu0 %v6442
    %6560 = vmatpush.bf16.msra.mxu0 %v6441
    %6561 = vmatmul.bf16.gmra.mxu0 %v6094
    %v6562 = vpop.f32.mrf.mxu0
    %v6563 = vadd.f32 %v6215, %v6562
    %v6564 = vpop.f32.mrf.mxu0
    %6565 = vdwg.mxu0
    %6566 = vmatpush.bf16.msra.mxu0 %v6456
    %6567 = vmatpush.bf16.msra.mxu0 %v6455
    %6568 = vmatpush.bf16.msra.mxu0 %v6454
    %6569 = vmatpush.bf16.msra.mxu0 %v6453
    %6570 = vmatpush.bf16.msra.mxu0 %v6452
    %6571 = vmatpush.bf16.msra.mxu0 %v6451
    %6572 = vmatpush.bf16.msra.mxu0 %v6450
    %6573 = vmatpush.bf16.msra.mxu0 %v6449
    %6574 = vmatmul.bf16.gmra.mxu0 %v6095
    %v6575 = vpop.f32.mrf.mxu0
    %v6576 = vadd.f32 %v6563, %v6575
    %v6577 = vpop.f32.mrf.mxu0
    %6578 = vdwg.mxu0
    %6579 = vmatpush.bf16.msra.mxu0 %v6464
    %6580 = vmatpush.bf16.msra.mxu0 %v6463
    %6581 = vmatpush.bf16.msra.mxu0 %v6462
    %6582 = vmatpush.bf16.msra.mxu0 %v6461
    %6583 = vmatpush.bf16.msra.mxu0 %v6460
    %6584 = vmatpush.bf16.msra.mxu0 %v6459
    %6585 = vmatpush.bf16.msra.mxu0 %v6458
    %6586 = vmatpush.bf16.msra.mxu0 %v6457
    %6587 = vmatmul.bf16.gmra.mxu0 %v6096
    %v6588 = vpop.f32.mrf.mxu0
    %v6589 = vadd.f32 %v6576, %v6588
    %v6590 = vpop.f32.mrf.mxu0
    %6591 = vdwg.mxu0
    %6592 = vmatpush.bf16.msra.mxu0 %v6472
    %6593 = vmatpush.bf16.msra.mxu0 %v6471
    %6594 = vmatpush.bf16.msra.mxu0 %v6470
    %6595 = vmatpush.bf16.msra.mxu0 %v6469
    %6596 = vmatpush.bf16.msra.mxu0 %v6468
    %6597 = vmatpush.bf16.msra.mxu0 %v6467
    %6598 = vmatpush.bf16.msra.mxu0 %v6466
    %6599 = vmatpush.bf16.msra.mxu0 %v6465
    %6600 = vmatmul.bf16.gmra.mxu0 %v6097
    %v6601 = vpop.f32.mrf.mxu0
    %v6602 = vadd.f32 %v6589, %v6601
    %v6603 = vpop.f32.mrf.mxu0
    %6604 = vdwg.mxu0
    %6605 = vmatpush.bf16.msra.mxu0 %v6480
    %6606 = vmatpush.bf16.msra.mxu0 %v6479
    %6607 = vmatpush.bf16.msra.mxu0 %v6478
    %6608 = vmatpush.bf16.msra.mxu0 %v6477
    %6609 = vmatpush.bf16.msra.mxu0 %v6476
    %6610 = vmatpush.bf16.msra.mxu0 %v6475
    %6611 = vmatpush.bf16.msra.mxu0 %v6474
    %6612 = vmatpush.bf16.msra.mxu0 %v6473
    %6613 = vmatmul.bf16.gmra.mxu0 %v6098
    %v6614 = vpop.f32.mrf.mxu0
    %v6615 = vadd.f32 %v6602, %v6614
    %v6616 = vpop.f32.mrf.mxu0
    %6617 = vdwg.mxu0
    %6618 = vmatpush.bf16.msra.mxu0 %v6488
    %6619 = vmatpush.bf16.msra.mxu0 %v6487
    %6620 = vmatpush.bf16.msra.mxu0 %v6486
    %6621 = vmatpush.bf16.msra.mxu0 %v6485
    %6622 = vmatpush.bf16.msra.mxu0 %v6484
    %6623 = vmatpush.bf16.msra.mxu0 %v6483
    %6624 = vmatpush.bf16.msra.mxu0 %v6482
    %6625 = vmatpush.bf16.msra.mxu0 %v6481
    %6626 = vmatmul.bf16.gmra.mxu0 %v6099
    %v6627 = vpop.f32.mrf.mxu0
    %v6628 = vadd.f32 %v6615, %v6627
    %v6629 = vpop.f32.mrf.mxu0
    %6630 = vdwg.mxu0
    %6631 = vmatpush.bf16.msra.mxu0 %v6496
    %6632 = vmatpush.bf16.msra.mxu0 %v6495
    %6633 = vmatpush.bf16.msra.mxu0 %v6494
    %6634 = vmatpush.bf16.msra.mxu0 %v6493
    %6635 = vmatpush.bf16.msra.mxu0 %v6492
    %6636 = vmatpush.bf16.msra.mxu0 %v6491
    %6637 = vmatpush.bf16.msra.mxu0 %v6490
    %6638 = vmatpush.bf16.msra.mxu0 %v6489
    %6639 = vmatmul.bf16.gmra.mxu0 %v6100
    %v6640 = vpop.f32.mrf.mxu0
    %v6641 = vadd.f32 %v6628, %v6640
    %v6642 = vpop.f32.mrf.mxu0
    %6643 = vdwg.mxu0
    %6644 = vmax.xlane.f32.xlu0 %v6641
    %v6645 = vpop.xlane.xlu0 %6644
    %v6646 = vsub.f32 %v6641, %v6645
    %v6647 = vmul.f32 %v6646, 1.442695
    %v6648 = vpow.pop %v6647
    %6649 = vadd.xlane.f32.xlu0 %v6648
    %v6650 = vpop.xlane.xlu0 %6649
    %v6651 = vlog2.pop %v6650
    %v6652 = vmul.f32 %v6651, 0.6931472
    %v6653 = vsub.f32 %v6646, %v6652
    %6654 = vst [vmem:[#allocation14] sm:$0xff] %v6653
    // Predicated region
    $region58: #{tpu_custom_call.1} parent=1 // pred_check
      _
    $region59: #{tpu_custom_call.1} parent=1 // pred_check_branch
      %6656 = sbr.rel (0) target = $region61
    $region60: #{tpu_custom_call.1} parent=1 // pred_region
      %6658 = vsyncadd [#allocation4], 0
      %s6660 = sshll.u32 [#allocation14], 4
      %s6661 = int_to_ptr.vmem [resolvable:$true] %s6660
      %s6662 = sshll.u32 %s7, 4
      %s6663 = int_to_ptr.hbm [resolvable:$true] %s6662
      %6665 = dma.vmem_to_hbm [thread:$0]  %s6661, 128, %s6663, [#allocation4]
    $region61: #{tpu_custom_call.1} parent=1 // pred_fallthru
      _
    // Predicated region
    $region62: #{tpu_custom_call.1} parent=1 // pred_check
      _
    $region63: #{tpu_custom_call.1} parent=1 // pred_check_branch
      %6667 = sbr.rel (0) target = $region65
    $region64: #{tpu_custom_call.1} parent=1 // pred_region
      %6669 = dma.done [#allocation4], 128
    $region65: #{tpu_custom_call.1} parent=1 // pred_fallthru
      _
    %6670 = vsyncpa [#allocation3], 1
    %6671 = vsyncpa [#allocation6], 1
    %6672 = vsyncpa [#allocation9], 1
    %6673 = vsyncpa [#allocation12], 1
    %6674 = vsyncpa [#allocation4], 1

// kernel: tpu_custom_call.1
$region0: #{tpu_custom_call.1}
  #allocation0 [shape = 'u32[]', space=smem, size = 0x4, offset = 0x4, fixed_abs, tag = 'smem constant byte address 0x4 - core index']
  #allocation1 [shape = 'u32[72,128]{1,0:T(1,128)}', space=vmem, size = 0x9000, scoped, tag = 'internal scratch']
  %s0 = inlined_call_operand.hbm [shape: f32[8,784], index: 0, kind: input, shape index: {}]
  %s1 = inlined_call_operand.hbm [shape: bf16[784,896], index: 1, kind: input, shape index: {}]
  %s2 = inlined_call_operand.hbm [shape: f32[1,896], index: 2, kind: input, shape index: {}]
  %s3 = inlined_call_operand.hbm [shape: bf16[896,896], index: 3, kind: input, shape index: {}]
  %s4 = inlined_call_operand.hbm [shape: f32[1,896], index: 4, kind: input, shape index: {}]
  %s5 = inlined_call_operand.hbm [shape: bf16[896,128], index: 5, kind: input, shape index: {}]
  %s6 = inlined_call_operand.hbm [shape: f32[1,128], index: 6, kind: input, shape index: {}]
  %s7 = inlined_call_operand.hbm [shape: f32[8,128], index: 7, kind: output, shape index: {}]
  %s8 = sld [smem:[#allocation0]]
  $region66: #{tpu_custom_call.1} parent=0
    _
  %s10 = ssub.s32 1, %s8
  %s11 = scalar_select 0, %s10, %s8
  $region1: #{tpu_custom_call.1} parent=0
    #allocation2 [shape = 'u8[28672]{0}', space=vmem, size = 0x7000, scoped, tag = 'input window, operand 0, single buffered']
    #allocation3 [shape = 's32[1]{0}', space=sflag, size = 0x4, scoped, tag = 'scoped memory for tpu_custom_call.1']
    #allocation4 [shape = 's32[1]{0}', space=sflag, size = 0x4, scoped, tag = 'scoped memory for tpu_custom_call.1']
    #allocation5 [shape = 'u8[1404928]{0}', space=vmem, size = 0x157000, scoped, tag = 'input window, operand 1, single buffered']
    #allocation6 [shape = 's32[1]{0}', space=sflag, size = 0x4, scoped, tag = 'scoped memory for tpu_custom_call.1']
    #allocation7 [shape = 'u8[3584]{0}', space=vmem, size = 0x1000, scoped, tag = 'input window, operand 2, single buffered']
    #allocation8 [shape = 'u8[1605632]{0}', space=vmem, size = 0x188000, scoped, tag = 'input window, operand 3, single buffered']
    #allocation9 [shape = 's32[1]{0}', space=sflag, size = 0x4, scoped, tag = 'scoped memory for tpu_custom_call.1']
    #allocation10 [shape = 'u8[3584]{0}', space=vmem, size = 0x1000, scoped, tag = 'input window, operand 4, single buffered']
    #allocation11 [shape = 'u8[229376]{0}', space=vmem, size = 0x38000, scoped, tag = 'input window, operand 5, single buffered']
    #allocation12 [shape = 's32[1]{0}', space=sflag, size = 0x4, scoped, tag = 'scoped memory for tpu_custom_call.1']
    #allocation13 [shape = 'u8[512]{0}', space=vmem, size = 0x400, scoped, tag = 'input window, operand 6, single buffered']
    #allocation14 [shape = 'u8[4096]{0}', space=vmem, size = 0x1000, scoped, tag = 'output window, operand 0, single buffered']
    %12 = vsyncpa [#allocation3], 0
    %13 = vsyncpa [#allocation6], 0
    %14 = vsyncpa [#allocation9], 0
    %15 = vsyncpa [#allocation12], 0
    %16 = vsyncpa [#allocation4], 0
    // Predicated region
    $region2: #{tpu_custom_call.1} parent=1 // pred_check
      _
    $region3: #{tpu_custom_call.1} parent=1 // pred_check_branch
      %18 = sbr.rel (0) target = $region5
    $region4: #{tpu_custom_call.1} parent=1 // pred_region
      %20 = vsyncadd [#allocation3], 0
      %s22 = sshll.u32 %s0, 4
      %s23 = int_to_ptr.hbm [resolvable:$true] %s22
      %s24 = sshll.u32 [#allocation2], 4
      %s25 = int_to_ptr.vmem [resolvable:$true] %s24
      %27 = dma.hbm_to_vmem [thread:$0]  %s23, 896, %s25, [#allocation3]
    $region5: #{tpu_custom_call.1} parent=1 // pred_fallthru
      _
    // Predicated region
    $region6: #{tpu_custom_call.1} parent=1 // pred_check
      _
    $region7: #{tpu_custom_call.1} parent=1 // pred_check_branch
      %29 = sbr.rel (0) target = $region9
    $region8: #{tpu_custom_call.1} parent=1 // pred_region
      %31 = vsyncadd [#allocation6], 0
      %s32 = sshll.u32 %s1, 4
      %s33 = int_to_ptr.hbm [resolvable:$true] %s32
      %s34 = sshll.u32 [#allocation5], 4
      %s35 = int_to_ptr.vmem [resolvable:$true] %s34
      %40 = dma.hbm_to_vmem [thread:$0]  %s33, 43904, %s35, [#allocation6], 448, 448, 28
    $region9: #{tpu_custom_call.1} parent=1 // pred_fallthru
      _
    // Predicated region
    $region10: #{tpu_custom_call.1} parent=1 // pred_check
      _
    $region11: #{tpu_custom_call.1} parent=1 // pred_check_branch
      %42 = sbr.rel (0) target = $region13
    $region12: #{tpu_custom_call.1} parent=1 // pred_region
      %44 = vsyncadd [#allocation6], 0
      %s46 = sshll.u32 %s2, 4
      %s47 = int_to_ptr.hbm [resolvable:$true] %s46
      %s48 = sshll.u32 [#allocation7], 4
      %s49 = int_to_ptr.vmem [resolvable:$true] %s48
      %51 = dma.hbm_to_vmem [thread:$0]  %s47, 112, %s49, [#allocation6]
    $region13: #{tpu_custom_call.1} parent=1 // pred_fallthru
      _
    // Predicated region
    $region14: #{tpu_custom_call.1} parent=1 // pred_check
      _
    $region15: #{tpu_custom_call.1} parent=1 // pred_check_branch
      %53 = sbr.rel (0) target = $region17
    $region16: #{tpu_custom_call.1} parent=1 // pred_region
      %55 = vsyncadd [#allocation9], 0
      %s56 = sshll.u32 %s3, 4
      %s57 = int_to_ptr.hbm [resolvable:$true] %s56
      %s58 = sshll.u32 [#allocation8], 4
      %s59 = int_to_ptr.vmem [resolvable:$true] %s58
      %64 = dma.hbm_to_vmem [thread:$0]  %s57, 50176, %s59, [#allocation9], 448, 448, 28
    $region17: #{tpu_custom_call.1} parent=1 // pred_fallthru
      _
    // Predicated region
    $region18: #{tpu_custom_call.1} parent=1 // pred_check
      _
    $region19: #{tpu_custom_call.1} parent=1 // pred_check_branch
      %66 = sbr.rel (0) target = $region21
    $region20: #{tpu_custom_call.1} parent=1 // pred_region
      %68 = vsyncadd [#allocation9], 0
      %s70 = sshll.u32 %s4, 4
      %s71 = int_to_ptr.hbm [resolvable:$true] %s70
      %s72 = sshll.u32 [#allocation10], 4
      %s73 = int_to_ptr.vmem [resolvable:$true] %s72
      %75 = dma.hbm_to_vmem [thread:$0]  %s71, 112, %s73, [#allocation9]
    $region21: #{tpu_custom_call.1} parent=1 // pred_fallthru
      _
    // Predicated region
    $region22: #{tpu_custom_call.1} parent=1 // pred_check
      _
    $region23: #{tpu_custom_call.1} parent=1 // pred_check_branch
      %77 = sbr.rel (0) target = $region25
    $region24: #{tpu_custom_call.1} parent=1 // pred_region
      %79 = vsyncadd [#allocation12], 0
      %s80 = sshll.u32 %s5, 4
      %s81 = int_to_ptr.hbm [resolvable:$true] %s80
      %s82 = sshll.u32 [#allocation11], 4
      %s83 = int_to_ptr.vmem [resolvable:$true] %s82
      %88 = dma.hbm_to_vmem [thread:$0]  %s81, 7168, %s83, [#allocation12], 64, 64, 4
    $region25: #{tpu_custom_call.1} parent=1 // pred_fallthru
      _
    // Predicated region
    $region26: #{tpu_custom_call.1} parent=1 // pred_check
      _
    $region27: #{tpu_custom_call.1} parent=1 // pred_check_branch
      %90 = sbr.rel (0) target = $region29
    $region28: #{tpu_custom_call.1} parent=1 // pred_region
      %92 = vsyncadd [#allocation12], 0
      %s94 = sshll.u32 %s6, 4
      %s95 = int_to_ptr.hbm [resolvable:$true] %s94
      %s96 = sshll.u32 [#allocation13], 4
      %s97 = int_to_ptr.vmem [resolvable:$true] %s96
      %99 = dma.hbm_to_vmem [thread:$0]  %s95, 16, %s97, [#allocation12]
    $region29: #{tpu_custom_call.1} parent=1 // pred_fallthru
      _
    // Predicated region
    $region30: #{tpu_custom_call.1} parent=1 // pred_check
      _
    $region31: #{tpu_custom_call.1} parent=1 // pred_check_branch
      %101 = sbr.rel (0) target = $region33
    $region32: #{tpu_custom_call.1} parent=1 // pred_region
      %103 = dma.done [#allocation3], 896
    $region33: #{tpu_custom_call.1} parent=1 // pred_fallthru
      _
    // Predicated region
    $region34: #{tpu_custom_call.1} parent=1 // pred_check
      _
    $region35: #{tpu_custom_call.1} parent=1 // pred_check_branch
      %105 = sbr.rel (0) target = $region37
    $region36: #{tpu_custom_call.1} parent=1 // pred_region
      %107 = dma.done [#allocation6], 43904
    $region37: #{tpu_custom_call.1} parent=1 // pred_fallthru
      _
    // Predicated region
    $region38: #{tpu_custom_call.1} parent=1 // pred_check
      _
    $region39: #{tpu_custom_call.1} parent=1 // pred_check_branch
      %109 = sbr.rel (0) target = $region41
    $region40: #{tpu_custom_call.1} parent=1 // pred_region
      %111 = dma.done [#allocation6], 112
    $region41: #{tpu_custom_call.1} parent=1 // pred_fallthru
      _
    // Predicated region
    $region42: #{tpu_custom_call.1} parent=1 // pred_check
      _
    $region43: #{tpu_custom_call.1} parent=1 // pred_check_branch
      %113 = sbr.rel (0) target = $region45
    $region44: #{tpu_custom_call.1} parent=1 // pred_region
      %115 = dma.done [#allocation9], 50176
    $region45: #{tpu_custom_call.1} parent=1 // pred_fallthru
      _
    // Predicated region
    $region46: #{tpu_custom_call.1} parent=1 // pred_check
      _
    $region47: #{tpu_custom_call.1} parent=1 // pred_check_branch
      %117 = sbr.rel (0) target = $region49
    $region48: #{tpu_custom_call.1} parent=1 // pred_region
      %119 = dma.done [#allocation9], 112
    $region49: #{tpu_custom_call.1} parent=1 // pred_fallthru
      _
    // Predicated region
    $region50: #{tpu_custom_call.1} parent=1 // pred_check
      _
    $region51: #{tpu_custom_call.1} parent=1 // pred_check_branch
      %121 = sbr.rel (0) target = $region53
    $region52: #{tpu_custom_call.1} parent=1 // pred_region
      %123 = dma.done [#allocation12], 7168
    $region53: #{tpu_custom_call.1} parent=1 // pred_fallthru
      _
    // Predicated region
    $region54: #{tpu_custom_call.1} parent=1 // pred_check
      _
    $region55: #{tpu_custom_call.1} parent=1 // pred_check_branch
      %125 = sbr.rel (0) target = $region57
    $region56: #{tpu_custom_call.1} parent=1 // pred_region
      %127 = dma.done [#allocation12], 16
    $region57: #{tpu_custom_call.1} parent=1 // pred_fallthru
      _
    %v129 = vld [vmem:[#allocation2] sm:$0xff]
    %v130 = vld [vmem:[#allocation2 + $0x8] sm:$0xff]
    %v131 = vld [vmem:[#allocation2 + $0x10] sm:$0xff]
    %v132 = vld [vmem:[#allocation2 + $0x18] sm:$0xff]
    %v133 = vld [vmem:[#allocation2 + $0x20] sm:$0xff]
    %v134 = vld [vmem:[#allocation2 + $0x28] sm:$0xff]
    %v135 = vld [vmem:[#allocation2 + $0x30] sm:$0xff]
    %v136 = vpack.c.bf16 %v129, %v129
    %v137 = vpack.c.bf16 %v130, %v130
    %v138 = vpack.c.bf16 %v131, %v131
    %v139 = vpack.c.bf16 %v132, %v132
    %v140 = vpack.c.bf16 %v133, %v133
    %v141 = vpack.c.bf16 %v134, %v134
    %v142 = vpack.c.bf16 %v135, %v135
    %v143 = vld [vmem:[#allocation5] sm:$0xff]
    %v144 = vld [vmem:[#allocation5 + $0x8] sm:$0xff]
    %v145 = vld [vmem:[#allocation5 + $0x10] sm:$0xff]
    %v146 = vld [vmem:[#allocation5 + $0x18] sm:$0xf]
    %v147 = vld [vmem:[#allocation5 + $0x1c] sm:$0xff]
    %v148 = vld [vmem:[#allocation5 + $0x24] sm:$0xff]
    %v149 = vld [vmem:[#allocation5 + $0x2c] sm:$0xff]
    %v150 = vld [vmem:[#allocation5 + $0x34] sm:$0xf]
    %v151 = vld [vmem:[#allocation5 + $0x38] sm:$0xff]
    %v152 = vld [vmem:[#allocation5 + $0x40] sm:$0xff]
    %v153 = vld [vmem:[#allocation5 + $0x48] sm:$0xff]
    %v154 = vld [vmem:[#allocation5 + $0x50] sm:$0xf]
    %v155 = vld [vmem:[#allocation5 + $0x54] sm:$0xff]
    %v156 = vld [vmem:[#allocation5 + $0x5c] sm:$0xff]
    %v157 = vld [vmem:[#allocation5 + $0x64] sm:$0xff]
    %v158 = vld [vmem:[#allocation5 + $0x6c] sm:$0xf]
    %v159 = vld [vmem:[#allocation5 + $0x70] sm:$0xff]
    %v160 = vld [vmem:[#allocation5 + $0x78] sm:$0xff]
    %v161 = vld [vmem:[#allocation5 + $0x80] sm:$0xff]
    %v162 = vld [vmem:[#allocation5 + $0x88] sm:$0xf]
    %v163 = vld [vmem:[#allocation5 + $0x8c] sm:$0xff]
    %v164 = vld [vmem:[#allocation5 + $0x94] sm:$0xff]
    %v165 = vld [vmem:[#allocation5 + $0x9c] sm:$0xff]
    %v166 = vld [vmem:[#allocation5 + $0xa4] sm:$0xf]
    %v167 = vld [vmem:[#allocation5 + $0xa8] sm:$0xff]
    %v168 = vld [vmem:[#allocation5 + $0xb0] sm:$0xff]
    %v169 = vld [vmem:[#allocation5 + $0xb8] sm:$0xff]
    %v170 = vld [vmem:[#allocation5 + $0xc0] sm:$0xf]
    %v171 = vld [vmem:[#allocation5 + $0xc4] sm:$0xff]
    %v172 = vld [vmem:[#allocation5 + $0xcc] sm:$0xff]
    %v173 = vld [vmem:[#allocation5 + $0xd4] sm:$0xff]
    %v174 = vld [vmem:[#allocation5 + $0xdc] sm:$0xf]
    %v175 = vld [vmem:[#allocation5 + $0xe0] sm:$0xff]
    %v176 = vld [vmem:[#allocation5 + $0xe8] sm:$0xff]
    %v177 = vld [vmem:[#allocation5 + $0xf0] sm:$0xff]
    %v178 = vld [vmem:[#allocation5 + $0xf8] sm:$0xf]
    %v179 = vld [vmem:[#allocation5 + $0xfc] sm:$0xff]
    %v180 = vld [vmem:[#allocation5 + $0x104] sm:$0xff]
    %v181 = vld [vmem:[#allocation5 + $0x10c] sm:$0xff]
    %v182 = vld [vmem:[#allocation5 + $0x114] sm:$0xf]
    %v183 = vld [vmem:[#allocation5 + $0x118] sm:$0xff]
    %v184 = vld [vmem:[#allocation5 + $0x120] sm:$0xff]
    %v185 = vld [vmem:[#allocation5 + $0x128] sm:$0xff]
    %v186 = vld [vmem:[#allocation5 + $0x130] sm:$0xf]
    %v187 = vld [vmem:[#allocation5 + $0x134] sm:$0xff]
    %v188 = vld [vmem:[#allocation5 + $0x13c] sm:$0xff]
    %v189 = vld [vmem:[#allocation5 + $0x144] sm:$0xff]
    %v190 = vld [vmem:[#allocation5 + $0x14c] sm:$0xf]
    %v191 = vld [vmem:[#allocation5 + $0x150] sm:$0xff]
    %v192 = vld [vmem:[#allocation5 + $0x158] sm:$0xff]
    %v193 = vld [vmem:[#allocation5 + $0x160] sm:$0xff]
    %v194 = vld [vmem:[#allocation5 + $0x168] sm:$0xf]
    %v195 = vld [vmem:[#allocation5 + $0x16c] sm:$0xff]
    %v196 = vld [vmem:[#allocation5 + $0x174] sm:$0xff]
    %v197 = vld [vmem:[#allocation5 + $0x17c] sm:$0xff]
    %v198 = vld [vmem:[#allocation5 + $0x184] sm:$0xf]
    %v199 = vld [vmem:[#allocation5 + $0x188] sm:$0xff]
    %v200 = vld [vmem:[#allocation5 + $0x190] sm:$0xff]
    %v201 = vld [vmem:[#allocation5 + $0x198] sm:$0xff]
    %v202 = vld [vmem:[#allocation5 + $0x1a0] sm:$0xf]
    %v203 = vld [vmem:[#allocation5 + $0x1a4] sm:$0xff]
    %v204 = vld [vmem:[#allocation5 + $0x1ac] sm:$0xff]
    %v205 = vld [vmem:[#allocation5 + $0x1b4] sm:$0xff]
    %v206 = vld [vmem:[#allocation5 + $0x1bc] sm:$0xf]
    %v207 = vld [vmem:[#allocation5 + $0x1c0] sm:$0xff]
    %v208 = vld [vmem:[#allocation5 + $0x1c8] sm:$0xff]
    %v209 = vld [vmem:[#allocation5 + $0x1d0] sm:$0xff]
    %v210 = vld [vmem:[#allocation5 + $0x1d8] sm:$0xf]
    %v211 = vld [vmem:[#allocation5 + $0x1dc] sm:$0xff]
    %v212 = vld [vmem:[#allocation5 + $0x1e4] sm:$0xff]
    %v213 = vld [vmem:[#allocation5 + $0x1ec] sm:$0xff]
    %v214 = vld [vmem:[#allocation5 + $0x1f4] sm:$0xf]
    %v215 = vld [vmem:[#allocation5 + $0x1f8] sm:$0xff]
    %v216 = vld [vmem:[#allocation5 + $0x200] sm:$0xff]
    %v217 = vld [vmem:[#allocation5 + $0x208] sm:$0xff]
    %v218 = vld [vmem:[#allocation5 + $0x210] sm:$0xf]
    %v219 = vld [vmem:[#allocation5 + $0x214] sm:$0xff]
    %v220 = vld [vmem:[#allocation5 + $0x21c] sm:$0xff]
    %v221 = vld [vmem:[#allocation5 + $0x224] sm:$0xff]
    %v222 = vld [vmem:[#allocation5 + $0x22c] sm:$0xf]
    %v223 = vld [vmem:[#allocation5 + $0x230] sm:$0xff]
    %v224 = vld [vmem:[#allocation5 + $0x238] sm:$0xff]
    %v225 = vld [vmem:[#allocation5 + $0x240] sm:$0xff]
    %v226 = vld [vmem:[#allocation5 + $0x248] sm:$0xf]
    %v227 = vld [vmem:[#allocation5 + $0x24c] sm:$0xff]
    %v228 = vld [vmem:[#allocation5 + $0x254] sm:$0xff]
    %v229 = vld [vmem:[#allocation5 + $0x25c] sm:$0xff]
    %v230 = vld [vmem:[#allocation5 + $0x264] sm:$0xf]
    %v231 = vld [vmem:[#allocation5 + $0x268] sm:$0xff]
    %v232 = vld [vmem:[#allocation5 + $0x270] sm:$0xff]
    %v233 = vld [vmem:[#allocation5 + $0x278] sm:$0xff]
    %v234 = vld [vmem:[#allocation5 + $0x280] sm:$0xf]
    %v235 = vld [vmem:[#allocation5 + $0x284] sm:$0xff]
    %v236 = vld [vmem:[#allocation5 + $0x28c] sm:$0xff]
    %v237 = vld [vmem:[#allocation5 + $0x294] sm:$0xff]
    %v238 = vld [vmem:[#allocation5 + $0x29c] sm:$0xf]
    %v239 = vld [vmem:[#allocation5 + $0x2a0] sm:$0xff]
    %v240 = vld [vmem:[#allocation5 + $0x2a8] sm:$0xff]
    %v241 = vld [vmem:[#allocation5 + $0x2b0] sm:$0xff]
    %v242 = vld [vmem:[#allocation5 + $0x2b8] sm:$0xf]
    %v243 = vld [vmem:[#allocation5 + $0x2bc] sm:$0xff]
    %v244 = vld [vmem:[#allocation5 + $0x2c4] sm:$0xff]
    %v245 = vld [vmem:[#allocation5 + $0x2cc] sm:$0xff]
    %v246 = vld [vmem:[#allocation5 + $0x2d4] sm:$0xf]
    %v247 = vld [vmem:[#allocation5 + $0x2d8] sm:$0xff]
    %v248 = vld [vmem:[#allocation5 + $0x2e0] sm:$0xff]
    %v249 = vld [vmem:[#allocation5 + $0x2e8] sm:$0xff]
    %v250 = vld [vmem:[#allocation5 + $0x2f0] sm:$0xf]
    %v251 = vld [vmem:[#allocation5 + $0x2f4] sm:$0xff]
    %v252 = vld [vmem:[#allocation5 + $0x2fc] sm:$0xff]
    %v253 = vld [vmem:[#allocation5 + $0x304] sm:$0xff]
    %v254 = vld [vmem:[#allocation5 + $0x30c] sm:$0xf]
    %v255 = vld [vmem:[#allocation5 + $0x310] sm:$0xff]
    %v256 = vld [vmem:[#allocation5 + $0x318] sm:$0xff]
    %v257 = vld [vmem:[#allocation5 + $0x320] sm:$0xff]
    %v258 = vld [vmem:[#allocation5 + $0x328] sm:$0xf]
    %v259 = vld [vmem:[#allocation5 + $0x32c] sm:$0xff]
    %v260 = vld [vmem:[#allocation5 + $0x334] sm:$0xff]
    %v261 = vld [vmem:[#allocation5 + $0x33c] sm:$0xff]
    %v262 = vld [vmem:[#allocation5 + $0x344] sm:$0xf]
    %v263 = vld [vmem:[#allocation5 + $0x348] sm:$0xff]
    %v264 = vld [vmem:[#allocation5 + $0x350] sm:$0xff]
    %v265 = vld [vmem:[#allocation5 + $0x358] sm:$0xff]
    %v266 = vld [vmem:[#allocation5 + $0x360] sm:$0xf]
    %v267 = vld [vmem:[#allocation5 + $0x364] sm:$0xff]
    %v268 = vld [vmem:[#allocation5 + $0x36c] sm:$0xff]
    %v269 = vld [vmem:[#allocation5 + $0x374] sm:$0xff]
    %v270 = vld [vmem:[#allocation5 + $0x37c] sm:$0xf]
    %v271 = vld [vmem:[#allocation5 + $0x380] sm:$0xff]
    %v272 = vld [vmem:[#allocation5 + $0x388] sm:$0xff]
    %v273 = vld [vmem:[#allocation5 + $0x390] sm:$0xff]
    %v274 = vld [vmem:[#allocation5 + $0x398] sm:$0xf]
    %v275 = vld [vmem:[#allocation5 + $0x39c] sm:$0xff]
    %v276 = vld [vmem:[#allocation5 + $0x3a4] sm:$0xff]
    %v277 = vld [vmem:[#allocation5 + $0x3ac] sm:$0xff]
    %v278 = vld [vmem:[#allocation5 + $0x3b4] sm:$0xf]
    %v279 = vld [vmem:[#allocation5 + $0x3b8] sm:$0xff]
    %v280 = vld [vmem:[#allocation5 + $0x3c0] sm:$0xff]
    %v281 = vld [vmem:[#allocation5 + $0x3c8] sm:$0xff]
    %v282 = vld [vmem:[#allocation5 + $0x3d0] sm:$0xf]
    %v283 = vld [vmem:[#allocation5 + $0x3d4] sm:$0xff]
    %v284 = vld [vmem:[#allocation5 + $0x3dc] sm:$0xff]
    %v285 = vld [vmem:[#allocation5 + $0x3e4] sm:$0xff]
    %v286 = vld [vmem:[#allocation5 + $0x3ec] sm:$0xf]
    %v287 = vld [vmem:[#allocation5 + $0x3f0] sm:$0xff]
    %v288 = vld [vmem:[#allocation5 + $0x3f8] sm:$0xff]
    %v289 = vld [vmem:[#allocation5 + $0x400] sm:$0xff]
    %v290 = vld [vmem:[#allocation5 + $0x408] sm:$0xf]
    %v291 = vld [vmem:[#allocation5 + $0x40c] sm:$0xff]
    %v292 = vld [vmem:[#allocation5 + $0x414] sm:$0xff]
    %v293 = vld [vmem:[#allocation5 + $0x41c] sm:$0xff]
    %v294 = vld [vmem:[#allocation5 + $0x424] sm:$0xf]
    %v295 = vld [vmem:[#allocation5 + $0x428] sm:$0xff]
    %v296 = vld [vmem:[#allocation5 + $0x430] sm:$0xff]
    %v297 = vld [vmem:[#allocation5 + $0x438] sm:$0xff]
    %v298 = vld [vmem:[#allocation5 + $0x440] sm:$0xf]
    %v299 = vld [vmem:[#allocation5 + $0x444] sm:$0xff]
    %v300 = vld [vmem:[#allocation5 + $0x44c] sm:$0xff]
    %v301 = vld [vmem:[#allocation5 + $0x454] sm:$0xff]
    %v302 = vld [vmem:[#allocation5 + $0x45c] sm:$0xf]
    %v303 = vld [vmem:[#allocation5 + $0x460] sm:$0xff]
    %v304 = vld [vmem:[#allocation5 + $0x468] sm:$0xff]
    %v305 = vld [vmem:[#allocation5 + $0x470] sm:$0xff]
    %v306 = vld [vmem:[#allocation5 + $0x478] sm:$0xf]
    %v307 = vld [vmem:[#allocation5 + $0x47c] sm:$0xff]
    %v308 = vld [vmem:[#allocation5 + $0x484] sm:$0xff]
    %v309 = vld [vmem:[#allocation5 + $0x48c] sm:$0xff]
    %v310 = vld [vmem:[#allocation5 + $0x494] sm:$0xf]
    %v311 = vld [vmem:[#allocation5 + $0x498] sm:$0xff]
    %v312 = vld [vmem:[#allocation5 + $0x4a0] sm:$0xff]
    %v313 = vld [vmem:[#allocation5 + $0x4a8] sm:$0xff]
    %v314 = vld [vmem:[#allocation5 + $0x4b0] sm:$0xf]
    %v315 = vld [vmem:[#allocation5 + $0x4b4] sm:$0xff]
    %v316 = vld [vmem:[#allocation5 + $0x4bc] sm:$0xff]
    %v317 = vld [vmem:[#allocation5 + $0x4c4] sm:$0xff]
    %v318 = vld [vmem:[#allocation5 + $0x4cc] sm:$0xf]
    %v319 = vld [vmem:[#allocation5 + $0x4d0] sm:$0xff]
    %v320 = vld [vmem:[#allocation5 + $0x4d8] sm:$0xff]
    %v321 = vld [vmem:[#allocation5 + $0x4e0] sm:$0xff]
    %v322 = vld [vmem:[#allocation5 + $0x4e8] sm:$0xf]
    %v323 = vld [vmem:[#allocation5 + $0x4ec] sm:$0xff]
    %v324 = vld [vmem:[#allocation5 + $0x4f4] sm:$0xff]
    %v325 = vld [vmem:[#allocation5 + $0x4fc] sm:$0xff]
    %v326 = vld [vmem:[#allocation5 + $0x504] sm:$0xf]
    %v327 = vld [vmem:[#allocation5 + $0x508] sm:$0xff]
    %v328 = vld [vmem:[#allocation5 + $0x510] sm:$0xff]
    %v329 = vld [vmem:[#allocation5 + $0x518] sm:$0xff]
    %v330 = vld [vmem:[#allocation5 + $0x520] sm:$0xf]
    %v331 = vld [vmem:[#allocation5 + $0x524] sm:$0xff]
    %v332 = vld [vmem:[#allocation5 + $0x52c] sm:$0xff]
    %v333 = vld [vmem:[#allocation5 + $0x534] sm:$0xff]
    %v334 = vld [vmem:[#allocation5 + $0x53c] sm:$0xf]
    %v335 = vld [vmem:[#allocation5 + $0x540] sm:$0xff]
    %v336 = vld [vmem:[#allocation5 + $0x548] sm:$0xff]
    %v337 = vld [vmem:[#allocation5 + $0x550] sm:$0xff]
    %v338 = vld [vmem:[#allocation5 + $0x558] sm:$0xf]
    %v339 = vld [vmem:[#allocation5 + $0x55c] sm:$0xff]
    %v340 = vld [vmem:[#allocation5 + $0x564] sm:$0xff]
    %v341 = vld [vmem:[#allocation5 + $0x56c] sm:$0xff]
    %v342 = vld [vmem:[#allocation5 + $0x574] sm:$0xf]
    %v343 = vld [vmem:[#allocation5 + $0x578] sm:$0xff]
    %v344 = vld [vmem:[#allocation5 + $0x580] sm:$0xff]
    %v345 = vld [vmem:[#allocation5 + $0x588] sm:$0xff]
    %v346 = vld [vmem:[#allocation5 + $0x590] sm:$0xf]
    %v347 = vld [vmem:[#allocation5 + $0x594] sm:$0xff]
    %v348 = vld [vmem:[#allocation5 + $0x59c] sm:$0xff]
    %v349 = vld [vmem:[#allocation5 + $0x5a4] sm:$0xff]
    %v350 = vld [vmem:[#allocation5 + $0x5ac] sm:$0xf]
    %v351 = vld [vmem:[#allocation5 + $0x5b0] sm:$0xff]
    %v352 = vld [vmem:[#allocation5 + $0x5b8] sm:$0xff]
    %v353 = vld [vmem:[#allocation5 + $0x5c0] sm:$0xff]
    %v354 = vld [vmem:[#allocation5 + $0x5c8] sm:$0xf]
    %v355 = vld [vmem:[#allocation5 + $0x5cc] sm:$0xff]
    %v356 = vld [vmem:[#allocation5 + $0x5d4] sm:$0xff]
    %v357 = vld [vmem:[#allocation5 + $0x5dc] sm:$0xff]
    %v358 = vld [vmem:[#allocation5 + $0x5e4] sm:$0xf]
    %v359 = vld [vmem:[#allocation5 + $0x5e8] sm:$0xff]
    %v360 = vld [vmem:[#allocation5 + $0x5f0] sm:$0xff]
    %v361 = vld [vmem:[#allocation5 + $0x5f8] sm:$0xff]
    %v362 = vld [vmem:[#allocation5 + $0x600] sm:$0xf]
    %v363 = vld [vmem:[#allocation5 + $0x604] sm:$0xff]
    %v364 = vld [vmem:[#allocation5 + $0x60c] sm:$0xff]
    %v365 = vld [vmem:[#allocation5 + $0x614] sm:$0xff]
    %v366 = vld [vmem:[#allocation5 + $0x61c] sm:$0xf]
    %v367 = vld [vmem:[#allocation5 + $0x620] sm:$0xff]
    %v368 = vld [vmem:[#allocation5 + $0x628] sm:$0xff]
    %v369 = vld [vmem:[#allocation5 + $0x630] sm:$0xff]
    %v370 = vld [vmem:[#allocation5 + $0x638] sm:$0xf]
    %v371 = vld [vmem:[#allocation5 + $0x63c] sm:$0xff]
    %v372 = vld [vmem:[#allocation5 + $0x644] sm:$0xff]
    %v373 = vld [vmem:[#allocation5 + $0x64c] sm:$0xff]
    %v374 = vld [vmem:[#allocation5 + $0x654] sm:$0xf]
    %v375 = vld [vmem:[#allocation5 + $0x658] sm:$0xff]
    %v376 = vld [vmem:[#allocation5 + $0x660] sm:$0xff]
    %v377 = vld [vmem:[#allocation5 + $0x668] sm:$0xff]
    %v378 = vld [vmem:[#allocation5 + $0x670] sm:$0xf]
    %v379 = vld [vmem:[#allocation5 + $0x674] sm:$0xff]
    %v380 = vld [vmem:[#allocation5 + $0x67c] sm:$0xff]
    %v381 = vld [vmem:[#allocation5 + $0x684] sm:$0xff]
    %v382 = vld [vmem:[#allocation5 + $0x68c] sm:$0xf]
    %v383 = vld [vmem:[#allocation5 + $0x690] sm:$0xff]
    %v384 = vld [vmem:[#allocation5 + $0x698] sm:$0xff]
    %v385 = vld [vmem:[#allocation5 + $0x6a0] sm:$0xff]
    %v386 = vld [vmem:[#allocation5 + $0x6a8] sm:$0xf]
    %v387 = vld [vmem:[#allocation5 + $0x6ac] sm:$0xff]
    %v388 = vld [vmem:[#allocation5 + $0x6b4] sm:$0xff]
    %v389 = vld [vmem:[#allocation5 + $0x6bc] sm:$0xff]
    %v390 = vld [vmem:[#allocation5 + $0x6c4] sm:$0xf]
    %v391 = vld [vmem:[#allocation5 + $0x6c8] sm:$0xff]
    %v392 = vld [vmem:[#allocation5 + $0x6d0] sm:$0xff]
    %v393 = vld [vmem:[#allocation5 + $0x6d8] sm:$0xff]
    %v394 = vld [vmem:[#allocation5 + $0x6e0] sm:$0xf]
    %v395 = vld [vmem:[#allocation5 + $0x6e4] sm:$0xff]
    %v396 = vld [vmem:[#allocation5 + $0x6ec] sm:$0xff]
    %v397 = vld [vmem:[#allocation5 + $0x6f4] sm:$0xff]
    %v398 = vld [vmem:[#allocation5 + $0x6fc] sm:$0xf]
    %v399 = vld [vmem:[#allocation5 + $0x700] sm:$0xff]
    %v400 = vld [vmem:[#allocation5 + $0x708] sm:$0xff]
    %v401 = vld [vmem:[#allocation5 + $0x710] sm:$0xff]
    %v402 = vld [vmem:[#allocation5 + $0x718] sm:$0xf]
    %v403 = vld [vmem:[#allocation5 + $0x71c] sm:$0xff]
    %v404 = vld [vmem:[#allocation5 + $0x724] sm:$0xff]
    %v405 = vld [vmem:[#allocation5 + $0x72c] sm:$0xff]
    %v406 = vld [vmem:[#allocation5 + $0x734] sm:$0xf]
    %v407 = vld [vmem:[#allocation5 + $0x738] sm:$0xff]
    %v408 = vld [vmem:[#allocation5 + $0x740] sm:$0xff]
    %v409 = vld [vmem:[#allocation5 + $0x748] sm:$0xff]
    %v410 = vld [vmem:[#allocation5 + $0x750] sm:$0xf]
    %v411 = vld [vmem:[#allocation5 + $0x754] sm:$0xff]
    %v412 = vld [vmem:[#allocation5 + $0x75c] sm:$0xff]
    %v413 = vld [vmem:[#allocation5 + $0x764] sm:$0xff]
    %v414 = vld [vmem:[#allocation5 + $0x76c] sm:$0xf]
    %v415 = vld [vmem:[#allocation5 + $0x770] sm:$0xff]
    %v416 = vld [vmem:[#allocation5 + $0x778] sm:$0xff]
    %v417 = vld [vmem:[#allocation5 + $0x780] sm:$0xff]
    %v418 = vld [vmem:[#allocation5 + $0x788] sm:$0xf]
    %v419 = vld [vmem:[#allocation5 + $0x78c] sm:$0xff]
    %v420 = vld [vmem:[#allocation5 + $0x794] sm:$0xff]
    %v421 = vld [vmem:[#allocation5 + $0x79c] sm:$0xff]
    %v422 = vld [vmem:[#allocation5 + $0x7a4] sm:$0xf]
    %v423 = vld [vmem:[#allocation5 + $0x7a8] sm:$0xff]
    %v424 = vld [vmem:[#allocation5 + $0x7b0] sm:$0xff]
    %v425 = vld [vmem:[#allocation5 + $0x7b8] sm:$0xff]
    %v426 = vld [vmem:[#allocation5 + $0x7c0] sm:$0xf]
    %v427 = vld [vmem:[#allocation5 + $0x7c4] sm:$0xff]
    %v428 = vld [vmem:[#allocation5 + $0x7cc] sm:$0xff]
    %v429 = vld [vmem:[#allocation5 + $0x7d4] sm:$0xff]
    %v430 = vld [vmem:[#allocation5 + $0x7dc] sm:$0xf]
    %v431 = vld [vmem:[#allocation5 + $0x7e0] sm:$0xff]
    %v432 = vld [vmem:[#allocation5 + $0x7e8] sm:$0xff]
    %v433 = vld [vmem:[#allocation5 + $0x7f0] sm:$0xff]
    %v434 = vld [vmem:[#allocation5 + $0x7f8] sm:$0xf]
    %v435 = vld [vmem:[#allocation5 + $0x7fc] sm:$0xff]
    %v436 = vld [vmem:[#allocation5 + $0x804] sm:$0xff]
    %v437 = vld [vmem:[#allocation5 + $0x80c] sm:$0xff]
    %v438 = vld [vmem:[#allocation5 + $0x814] sm:$0xf]
    %v439 = vld [vmem:[#allocation5 + $0x818] sm:$0xff]
    %v440 = vld [vmem:[#allocation5 + $0x820] sm:$0xff]
    %v441 = vld [vmem:[#allocation5 + $0x828] sm:$0xff]
    %v442 = vld [vmem:[#allocation5 + $0x830] sm:$0xf]
    %v443 = vld [vmem:[#allocation5 + $0x834] sm:$0xff]
    %v444 = vld [vmem:[#allocation5 + $0x83c] sm:$0xff]
    %v445 = vld [vmem:[#allocation5 + $0x844] sm:$0xff]
    %v446 = vld [vmem:[#allocation5 + $0x84c] sm:$0xf]
    %v447 = vld [vmem:[#allocation5 + $0x850] sm:$0xff]
    %v448 = vld [vmem:[#allocation5 + $0x858] sm:$0xff]
    %v449 = vld [vmem:[#allocation5 + $0x860] sm:$0xff]
    %v450 = vld [vmem:[#allocation5 + $0x868] sm:$0xf]
    %v451 = vld [vmem:[#allocation5 + $0x86c] sm:$0xff]
    %v452 = vld [vmem:[#allocation5 + $0x874] sm:$0xff]
    %v453 = vld [vmem:[#allocation5 + $0x87c] sm:$0xff]
    %v454 = vld [vmem:[#allocation5 + $0x884] sm:$0xf]
    %v455 = vld [vmem:[#allocation5 + $0x888] sm:$0xff]
    %v456 = vld [vmem:[#allocation5 + $0x890] sm:$0xff]
    %v457 = vld [vmem:[#allocation5 + $0x898] sm:$0xff]
    %v458 = vld [vmem:[#allocation5 + $0x8a0] sm:$0xf]
    %v459 = vld [vmem:[#allocation5 + $0x8a4] sm:$0xff]
    %v460 = vld [vmem:[#allocation5 + $0x8ac] sm:$0xff]
    %v461 = vld [vmem:[#allocation5 + $0x8b4] sm:$0xff]
    %v462 = vld [vmem:[#allocation5 + $0x8bc] sm:$0xf]
    %v463 = vld [vmem:[#allocation5 + $0x8c0] sm:$0xff]
    %v464 = vld [vmem:[#allocation5 + $0x8c8] sm:$0xff]
    %v465 = vld [vmem:[#allocation5 + $0x8d0] sm:$0xff]
    %v466 = vld [vmem:[#allocation5 + $0x8d8] sm:$0xf]
    %v467 = vld [vmem:[#allocation5 + $0x8dc] sm:$0xff]
    %v468 = vld [vmem:[#allocation5 + $0x8e4] sm:$0xff]
    %v469 = vld [vmem:[#allocation5 + $0x8ec] sm:$0xff]
    %v470 = vld [vmem:[#allocation5 + $0x8f4] sm:$0xf]
    %v471 = vld [vmem:[#allocation5 + $0x8f8] sm:$0xff]
    %v472 = vld [vmem:[#allocation5 + $0x900] sm:$0xff]
    %v473 = vld [vmem:[#allocation5 + $0x908] sm:$0xff]
    %v474 = vld [vmem:[#allocation5 + $0x910] sm:$0xf]
    %v475 = vld [vmem:[#allocation5 + $0x914] sm:$0xff]
    %v476 = vld [vmem:[#allocation5 + $0x91c] sm:$0xff]
    %v477 = vld [vmem:[#allocation5 + $0x924] sm:$0xff]
    %v478 = vld [vmem:[#allocation5 + $0x92c] sm:$0xf]
    %v479 = vld [vmem:[#allocation5 + $0x930] sm:$0xff]
    %v480 = vld [vmem:[#allocation5 + $0x938] sm:$0xff]
    %v481 = vld [vmem:[#allocation5 + $0x940] sm:$0xff]
    %v482 = vld [vmem:[#allocation5 + $0x948] sm:$0xf]
    %v483 = vld [vmem:[#allocation5 + $0x94c] sm:$0xff]
    %v484 = vld [vmem:[#allocation5 + $0x954] sm:$0xff]
    %v485 = vld [vmem:[#allocation5 + $0x95c] sm:$0xff]
    %v486 = vld [vmem:[#allocation5 + $0x964] sm:$0xf]
    %v487 = vld [vmem:[#allocation5 + $0x968] sm:$0xff]
    %v488 = vld [vmem:[#allocation5 + $0x970] sm:$0xff]
    %v489 = vld [vmem:[#allocation5 + $0x978] sm:$0xff]
    %v490 = vld [vmem:[#allocation5 + $0x980] sm:$0xf]
    %v491 = vld [vmem:[#allocation5 + $0x984] sm:$0xff]
    %v492 = vld [vmem:[#allocation5 + $0x98c] sm:$0xff]
    %v493 = vld [vmem:[#allocation5 + $0x994] sm:$0xff]
    %v494 = vld [vmem:[#allocation5 + $0x99c] sm:$0xf]
    %v495 = vld [vmem:[#allocation5 + $0x9a0] sm:$0xff]
    %v496 = vld [vmem:[#allocation5 + $0x9a8] sm:$0xff]
    %v497 = vld [vmem:[#allocation5 + $0x9b0] sm:$0xff]
    %v498 = vld [vmem:[#allocation5 + $0x9b8] sm:$0xf]
    %v499 = vld [vmem:[#allocation5 + $0x9bc] sm:$0xff]
    %v500 = vld [vmem:[#allocation5 + $0x9c4] sm:$0xff]
    %v501 = vld [vmem:[#allocation5 + $0x9cc] sm:$0xff]
    %v502 = vld [vmem:[#allocation5 + $0x9d4] sm:$0xf]
    %v503 = vld [vmem:[#allocation5 + $0x9d8] sm:$0xff]
    %v504 = vld [vmem:[#allocation5 + $0x9e0] sm:$0xff]
    %v505 = vld [vmem:[#allocation5 + $0x9e8] sm:$0xff]
    %v506 = vld [vmem:[#allocation5 + $0x9f0] sm:$0xf]
    %v507 = vld [vmem:[#allocation5 + $0x9f4] sm:$0xff]
    %v508 = vld [vmem:[#allocation5 + $0x9fc] sm:$0xff]
    %v509 = vld [vmem:[#allocation5 + $0xa04] sm:$0xff]
    %v510 = vld [vmem:[#allocation5 + $0xa0c] sm:$0xf]
    %v511 = vld [vmem:[#allocation5 + $0xa10] sm:$0xff]
    %v512 = vld [vmem:[#allocation5 + $0xa18] sm:$0xff]
    %v513 = vld [vmem:[#allocation5 + $0xa20] sm:$0xff]
    %v514 = vld [vmem:[#allocation5 + $0xa28] sm:$0xf]
    %v515 = vld [vmem:[#allocation5 + $0xa2c] sm:$0xff]
    %v516 = vld [vmem:[#allocation5 + $0xa34] sm:$0xff]
    %v517 = vld [vmem:[#allocation5 + $0xa3c] sm:$0xff]
    %v518 = vld [vmem:[#allocation5 + $0xa44] sm:$0xf]
    %v519 = vld [vmem:[#allocation5 + $0xa48] sm:$0xff]
    %v520 = vld [vmem:[#allocation5 + $0xa50] sm:$0xff]
    %v521 = vld [vmem:[#allocation5 + $0xa58] sm:$0xff]
    %v522 = vld [vmem:[#allocation5 + $0xa60] sm:$0xf]
    %v523 = vld [vmem:[#allocation5 + $0xa64] sm:$0xff]
    %v524 = vld [vmem:[#allocation5 + $0xa6c] sm:$0xff]
    %v525 = vld [vmem:[#allocation5 + $0xa74] sm:$0xff]
    %v526 = vld [vmem:[#allocation5 + $0xa7c] sm:$0xf]
    %v527 = vld [vmem:[#allocation5 + $0xa80] sm:$0xff]
    %v528 = vld [vmem:[#allocation5 + $0xa88] sm:$0xff]
    %v529 = vld [vmem:[#allocation5 + $0xa90] sm:$0xff]
    %v530 = vld [vmem:[#allocation5 + $0xa98] sm:$0xf]
    %v531 = vld [vmem:[#allocation5 + $0xa9c] sm:$0xff]
    %v532 = vld [vmem:[#allocation5 + $0xaa4] sm:$0xff]
    %v533 = vld [vmem:[#allocation5 + $0xaac] sm:$0xff]
    %v534 = vld [vmem:[#allocation5 + $0xab4] sm:$0xf]
    %v535 = vld [vmem:[#allocation7] sm:$0xff]
    %v537 = vperm.slane %v535, 0
    %v538 = vperm.slane %v535, 1
    %v539 = vperm.slane %v535, 2
    %v540 = vperm.slane %v535, 3
    %v541 = vperm.slane %v535, 4
    %v542 = vperm.slane %v535, 5
    %v543 = vperm.slane %v535, 6
    %v943 = vunpack.c.l.b16 %v143
    %v944 = vunpack.c.h.b16 %v143
    %v945 = vunpack.c.l.b16 %v144
    %v946 = vunpack.c.h.b16 %v144
    %v947 = vunpack.c.l.b16 %v145
    %v948 = vunpack.c.h.b16 %v145
    %v949 = vunpack.c.l.b16 %v146
    %v950 = vunpack.c.l.b16 %v147
    %v951 = vunpack.c.h.b16 %v147
    %v952 = vunpack.c.l.b16 %v148
    %v953 = vunpack.c.h.b16 %v148
    %v954 = vunpack.c.l.b16 %v149
    %v955 = vunpack.c.h.b16 %v149
    %v956 = vunpack.c.l.b16 %v150
    %v957 = vunpack.c.l.b16 %v151
    %v958 = vunpack.c.h.b16 %v151
    %v959 = vunpack.c.l.b16 %v152
    %v960 = vunpack.c.h.b16 %v152
    %v961 = vunpack.c.l.b16 %v153
    %v962 = vunpack.c.h.b16 %v153
    %v963 = vunpack.c.l.b16 %v154
    %v964 = vunpack.c.l.b16 %v155
    %v965 = vunpack.c.h.b16 %v155
    %v966 = vunpack.c.l.b16 %v156
    %v967 = vunpack.c.h.b16 %v156
    %v968 = vunpack.c.l.b16 %v157
    %v969 = vunpack.c.h.b16 %v157
    %v970 = vunpack.c.l.b16 %v158
    %v971 = vunpack.c.l.b16 %v159
    %v972 = vunpack.c.h.b16 %v159
    %v973 = vunpack.c.l.b16 %v160
    %v974 = vunpack.c.h.b16 %v160
    %v975 = vunpack.c.l.b16 %v161
    %v976 = vunpack.c.h.b16 %v161
    %v977 = vunpack.c.l.b16 %v162
    %v978 = vunpack.c.l.b16 %v163
    %v979 = vunpack.c.h.b16 %v163
    %v980 = vunpack.c.l.b16 %v164
    %v981 = vunpack.c.h.b16 %v164
    %v982 = vunpack.c.l.b16 %v165
    %v983 = vunpack.c.h.b16 %v165
    %v984 = vunpack.c.l.b16 %v166
    %v985 = vunpack.c.l.b16 %v167
    %v986 = vunpack.c.h.b16 %v167
    %v987 = vunpack.c.l.b16 %v168
    %v988 = vunpack.c.h.b16 %v168
    %v989 = vunpack.c.l.b16 %v169
    %v990 = vunpack.c.h.b16 %v169
    %v991 = vunpack.c.l.b16 %v170
    %v992 = vunpack.c.l.b16 %v171
    %v993 = vunpack.c.h.b16 %v171
    %v994 = vunpack.c.l.b16 %v172
    %v995 = vunpack.c.h.b16 %v172
    %v996 = vunpack.c.l.b16 %v173
    %v997 = vunpack.c.h.b16 %v173
    %v998 = vunpack.c.l.b16 %v174
    %v999 = vunpack.c.l.b16 %v175
    %v1000 = vunpack.c.h.b16 %v175
    %v1001 = vunpack.c.l.b16 %v176
    %v1002 = vunpack.c.h.b16 %v176
    %v1003 = vunpack.c.l.b16 %v177
    %v1004 = vunpack.c.h.b16 %v177
    %v1005 = vunpack.c.l.b16 %v178
    %v1006 = vunpack.c.l.b16 %v179
    %v1007 = vunpack.c.h.b16 %v179
    %v1008 = vunpack.c.l.b16 %v180
    %v1009 = vunpack.c.h.b16 %v180
    %v1010 = vunpack.c.l.b16 %v181
    %v1011 = vunpack.c.h.b16 %v181
    %v1012 = vunpack.c.l.b16 %v182
    %v1013 = vunpack.c.l.b16 %v183
    %v1014 = vunpack.c.h.b16 %v183
    %v1015 = vunpack.c.l.b16 %v184
    %v1016 = vunpack.c.h.b16 %v184
    %v1017 = vunpack.c.l.b16 %v185
    %v1018 = vunpack.c.h.b16 %v185
    %v1019 = vunpack.c.l.b16 %v186
    %v1020 = vunpack.c.l.b16 %v187
    %v1021 = vunpack.c.h.b16 %v187
    %v1022 = vunpack.c.l.b16 %v188
    %v1023 = vunpack.c.h.b16 %v188
    %v1024 = vunpack.c.l.b16 %v189
    %v1025 = vunpack.c.h.b16 %v189
    %v1026 = vunpack.c.l.b16 %v190
    %v1027 = vunpack.c.l.b16 %v191
    %v1028 = vunpack.c.h.b16 %v191
    %v1029 = vunpack.c.l.b16 %v192
    %v1030 = vunpack.c.h.b16 %v192
    %v1031 = vunpack.c.l.b16 %v193
    %v1032 = vunpack.c.h.b16 %v193
    %v1033 = vunpack.c.l.b16 %v194
    %v1034 = vunpack.c.l.b16 %v195
    %v1035 = vunpack.c.h.b16 %v195
    %v1036 = vunpack.c.l.b16 %v196
    %v1037 = vunpack.c.h.b16 %v196
    %v1038 = vunpack.c.l.b16 %v197
    %v1039 = vunpack.c.h.b16 %v197
    %v1040 = vunpack.c.l.b16 %v198
    %v1041 = vunpack.c.l.b16 %v199
    %v1042 = vunpack.c.h.b16 %v199
    %v1043 = vunpack.c.l.b16 %v200
    %v1044 = vunpack.c.h.b16 %v200
    %v1045 = vunpack.c.l.b16 %v201
    %v1046 = vunpack.c.h.b16 %v201
    %v1047 = vunpack.c.l.b16 %v202
    %v1048 = vunpack.c.l.b16 %v203
    %v1049 = vunpack.c.h.b16 %v203
    %v1050 = vunpack.c.l.b16 %v204
    %v1051 = vunpack.c.h.b16 %v204
    %v1052 = vunpack.c.l.b16 %v205
    %v1053 = vunpack.c.h.b16 %v205
    %v1054 = vunpack.c.l.b16 %v206
    %v1055 = vunpack.c.l.b16 %v207
    %v1056 = vunpack.c.h.b16 %v207
    %v1057 = vunpack.c.l.b16 %v208
    %v1058 = vunpack.c.h.b16 %v208
    %v1059 = vunpack.c.l.b16 %v209
    %v1060 = vunpack.c.h.b16 %v209
    %v1061 = vunpack.c.l.b16 %v210
    %v1062 = vunpack.c.l.b16 %v211
    %v1063 = vunpack.c.h.b16 %v211
    %v1064 = vunpack.c.l.b16 %v212
    %v1065 = vunpack.c.h.b16 %v212
    %v1066 = vunpack.c.l.b16 %v213
    %v1067 = vunpack.c.h.b16 %v213
    %v1068 = vunpack.c.l.b16 %v214
    %v1069 = vunpack.c.l.b16 %v215
    %v1070 = vunpack.c.h.b16 %v215
    %v1071 = vunpack.c.l.b16 %v216
    %v1072 = vunpack.c.h.b16 %v216
    %v1073 = vunpack.c.l.b16 %v217
    %v1074 = vunpack.c.h.b16 %v217
    %v1075 = vunpack.c.l.b16 %v218
    %v1076 = vunpack.c.l.b16 %v219
    %v1077 = vunpack.c.h.b16 %v219
    %v1078 = vunpack.c.l.b16 %v220
    %v1079 = vunpack.c.h.b16 %v220
    %v1080 = vunpack.c.l.b16 %v221
    %v1081 = vunpack.c.h.b16 %v221
    %v1082 = vunpack.c.l.b16 %v222
    %v1083 = vunpack.c.l.b16 %v223
    %v1084 = vunpack.c.h.b16 %v223
    %v1085 = vunpack.c.l.b16 %v224
    %v1086 = vunpack.c.h.b16 %v224
    %v1087 = vunpack.c.l.b16 %v225
    %v1088 = vunpack.c.h.b16 %v225
    %v1089 = vunpack.c.l.b16 %v226
    %v1090 = vunpack.c.l.b16 %v227
    %v1091 = vunpack.c.h.b16 %v227
    %v1092 = vunpack.c.l.b16 %v228
    %v1093 = vunpack.c.h.b16 %v228
    %v1094 = vunpack.c.l.b16 %v229
    %v1095 = vunpack.c.h.b16 %v229
    %v1096 = vunpack.c.l.b16 %v230
    %v1097 = vunpack.c.l.b16 %v231
    %v1098 = vunpack.c.h.b16 %v231
    %v1099 = vunpack.c.l.b16 %v232
    %v1100 = vunpack.c.h.b16 %v232
    %v1101 = vunpack.c.l.b16 %v233
    %v1102 = vunpack.c.h.b16 %v233
    %v1103 = vunpack.c.l.b16 %v234
    %v1104 = vunpack.c.l.b16 %v235
    %v1105 = vunpack.c.h.b16 %v235
    %v1106 = vunpack.c.l.b16 %v236
    %v1107 = vunpack.c.h.b16 %v236
    %v1108 = vunpack.c.l.b16 %v237
    %v1109 = vunpack.c.h.b16 %v237
    %v1110 = vunpack.c.l.b16 %v238
    %v1111 = vunpack.c.l.b16 %v239
    %v1112 = vunpack.c.h.b16 %v239
    %v1113 = vunpack.c.l.b16 %v240
    %v1114 = vunpack.c.h.b16 %v240
    %v1115 = vunpack.c.l.b16 %v241
    %v1116 = vunpack.c.h.b16 %v241
    %v1117 = vunpack.c.l.b16 %v242
    %v1118 = vunpack.c.l.b16 %v243
    %v1119 = vunpack.c.h.b16 %v243
    %v1120 = vunpack.c.l.b16 %v244
    %v1121 = vunpack.c.h.b16 %v244
    %v1122 = vunpack.c.l.b16 %v245
    %v1123 = vunpack.c.h.b16 %v245
    %v1124 = vunpack.c.l.b16 %v246
    %v1125 = vunpack.c.l.b16 %v247
    %v1126 = vunpack.c.h.b16 %v247
    %v1127 = vunpack.c.l.b16 %v248
    %v1128 = vunpack.c.h.b16 %v248
    %v1129 = vunpack.c.l.b16 %v249
    %v1130 = vunpack.c.h.b16 %v249
    %v1131 = vunpack.c.l.b16 %v250
    %v1132 = vunpack.c.l.b16 %v251
    %v1133 = vunpack.c.h.b16 %v251
    %v1134 = vunpack.c.l.b16 %v252
    %v1135 = vunpack.c.h.b16 %v252
    %v1136 = vunpack.c.l.b16 %v253
    %v1137 = vunpack.c.h.b16 %v253
    %v1138 = vunpack.c.l.b16 %v254
    %v1139 = vunpack.c.l.b16 %v255
    %v1140 = vunpack.c.h.b16 %v255
    %v1141 = vunpack.c.l.b16 %v256
    %v1142 = vunpack.c.h.b16 %v256
    %v1143 = vunpack.c.l.b16 %v257
    %v1144 = vunpack.c.h.b16 %v257
    %v1145 = vunpack.c.l.b16 %v258
    %v1146 = vunpack.c.l.b16 %v259
    %v1147 = vunpack.c.h.b16 %v259
    %v1148 = vunpack.c.l.b16 %v260
    %v1149 = vunpack.c.h.b16 %v260
    %v1150 = vunpack.c.l.b16 %v261
    %v1151 = vunpack.c.h.b16 %v261
    %v1152 = vunpack.c.l.b16 %v262
    %v1153 = vunpack.c.l.b16 %v263
    %v1154 = vunpack.c.h.b16 %v263
    %v1155 = vunpack.c.l.b16 %v264
    %v1156 = vunpack.c.h.b16 %v264
    %v1157 = vunpack.c.l.b16 %v265
    %v1158 = vunpack.c.h.b16 %v265
    %v1159 = vunpack.c.l.b16 %v266
    %v1160 = vunpack.c.l.b16 %v267
    %v1161 = vunpack.c.h.b16 %v267
    %v1162 = vunpack.c.l.b16 %v268
    %v1163 = vunpack.c.h.b16 %v268
    %v1164 = vunpack.c.l.b16 %v269
    %v1165 = vunpack.c.h.b16 %v269
    %v1166 = vunpack.c.l.b16 %v270
    %v1167 = vunpack.c.l.b16 %v271
    %v1168 = vunpack.c.h.b16 %v271
    %v1169 = vunpack.c.l.b16 %v272
    %v1170 = vunpack.c.h.b16 %v272
    %v1171 = vunpack.c.l.b16 %v273
    %v1172 = vunpack.c.h.b16 %v273
    %v1173 = vunpack.c.l.b16 %v274
    %v1174 = vunpack.c.l.b16 %v275
    %v1175 = vunpack.c.h.b16 %v275
    %v1176 = vunpack.c.l.b16 %v276
    %v1177 = vunpack.c.h.b16 %v276
    %v1178 = vunpack.c.l.b16 %v277
    %v1179 = vunpack.c.h.b16 %v277
    %v1180 = vunpack.c.l.b16 %v278
    %v1181 = vunpack.c.l.b16 %v279
    %v1182 = vunpack.c.h.b16 %v279
    %v1183 = vunpack.c.l.b16 %v280
    %v1184 = vunpack.c.h.b16 %v280
    %v1185 = vunpack.c.l.b16 %v281
    %v1186 = vunpack.c.h.b16 %v281
    %v1187 = vunpack.c.l.b16 %v282
    %v1188 = vunpack.c.l.b16 %v283
    %v1189 = vunpack.c.h.b16 %v283
    %v1190 = vunpack.c.l.b16 %v284
    %v1191 = vunpack.c.h.b16 %v284
    %v1192 = vunpack.c.l.b16 %v285
    %v1193 = vunpack.c.h.b16 %v285
    %v1194 = vunpack.c.l.b16 %v286
    %v1195 = vunpack.c.l.b16 %v287
    %v1196 = vunpack.c.h.b16 %v287
    %v1197 = vunpack.c.l.b16 %v288
    %v1198 = vunpack.c.h.b16 %v288
    %v1199 = vunpack.c.l.b16 %v289
    %v1200 = vunpack.c.h.b16 %v289
    %v1201 = vunpack.c.l.b16 %v290
    %v1202 = vunpack.c.l.b16 %v291
    %v1203 = vunpack.c.h.b16 %v291
    %v1204 = vunpack.c.l.b16 %v292
    %v1205 = vunpack.c.h.b16 %v292
    %v1206 = vunpack.c.l.b16 %v293
    %v1207 = vunpack.c.h.b16 %v293
    %v1208 = vunpack.c.l.b16 %v294
    %v1209 = vunpack.c.l.b16 %v295
    %v1210 = vunpack.c.h.b16 %v295
    %v1211 = vunpack.c.l.b16 %v296
    %v1212 = vunpack.c.h.b16 %v296
    %v1213 = vunpack.c.l.b16 %v297
    %v1214 = vunpack.c.h.b16 %v297
    %v1215 = vunpack.c.l.b16 %v298
    %v1216 = vunpack.c.l.b16 %v299
    %v1217 = vunpack.c.h.b16 %v299
    %v1218 = vunpack.c.l.b16 %v300
    %v1219 = vunpack.c.h.b16 %v300
    %v1220 = vunpack.c.l.b16 %v301
    %v1221 = vunpack.c.h.b16 %v301
    %v1222 = vunpack.c.l.b16 %v302
    %v1223 = vunpack.c.l.b16 %v303
    %v1224 = vunpack.c.h.b16 %v303
    %v1225 = vunpack.c.l.b16 %v304
    %v1226 = vunpack.c.h.b16 %v304
    %v1227 = vunpack.c.l.b16 %v305
    %v1228 = vunpack.c.h.b16 %v305
    %v1229 = vunpack.c.l.b16 %v306
    %v1230 = vunpack.c.l.b16 %v307
    %v1231 = vunpack.c.h.b16 %v307
    %v1232 = vunpack.c.l.b16 %v308
    %v1233 = vunpack.c.h.b16 %v308
    %v1234 = vunpack.c.l.b16 %v309
    %v1235 = vunpack.c.h.b16 %v309
    %v1236 = vunpack.c.l.b16 %v310
    %v1237 = vunpack.c.l.b16 %v311
    %v1238 = vunpack.c.h.b16 %v311
    %v1239 = vunpack.c.l.b16 %v312
    %v1240 = vunpack.c.h.b16 %v312
    %v1241 = vunpack.c.l.b16 %v313
    %v1242 = vunpack.c.h.b16 %v313
    %v1243 = vunpack.c.l.b16 %v314
    %v1244 = vunpack.c.l.b16 %v315
    %v1245 = vunpack.c.h.b16 %v315
    %v1246 = vunpack.c.l.b16 %v316
    %v1247 = vunpack.c.h.b16 %v316
    %v1248 = vunpack.c.l.b16 %v317
    %v1249 = vunpack.c.h.b16 %v317
    %v1250 = vunpack.c.l.b16 %v318
    %v1251 = vunpack.c.l.b16 %v319
    %v1252 = vunpack.c.h.b16 %v319
    %v1253 = vunpack.c.l.b16 %v320
    %v1254 = vunpack.c.h.b16 %v320
    %v1255 = vunpack.c.l.b16 %v321
    %v1256 = vunpack.c.h.b16 %v321
    %v1257 = vunpack.c.l.b16 %v322
    %v1258 = vunpack.c.l.b16 %v323
    %v1259 = vunpack.c.h.b16 %v323
    %v1260 = vunpack.c.l.b16 %v324
    %v1261 = vunpack.c.h.b16 %v324
    %v1262 = vunpack.c.l.b16 %v325
    %v1263 = vunpack.c.h.b16 %v325
    %v1264 = vunpack.c.l.b16 %v326
    %v1265 = vunpack.c.l.b16 %v327
    %v1266 = vunpack.c.h.b16 %v327
    %v1267 = vunpack.c.l.b16 %v328
    %v1268 = vunpack.c.h.b16 %v328
    %v1269 = vunpack.c.l.b16 %v329
    %v1270 = vunpack.c.h.b16 %v329
    %v1271 = vunpack.c.l.b16 %v330
    %v1272 = vunpack.c.l.b16 %v331
    %v1273 = vunpack.c.h.b16 %v331
    %v1274 = vunpack.c.l.b16 %v332
    %v1275 = vunpack.c.h.b16 %v332
    %v1276 = vunpack.c.l.b16 %v333
    %v1277 = vunpack.c.h.b16 %v333
    %v1278 = vunpack.c.l.b16 %v334
    %v1279 = vunpack.c.l.b16 %v335
    %v1280 = vunpack.c.h.b16 %v335
    %v1281 = vunpack.c.l.b16 %v336
    %v1282 = vunpack.c.h.b16 %v336
    %v1283 = vunpack.c.l.b16 %v337
    %v1284 = vunpack.c.h.b16 %v337
    %v1285 = vunpack.c.l.b16 %v338
    %v1286 = vunpack.c.l.b16 %v339
    %v1287 = vunpack.c.h.b16 %v339
    %v1288 = vunpack.c.l.b16 %v340
    %v1289 = vunpack.c.h.b16 %v340
    %v1290 = vunpack.c.l.b16 %v341
    %v1291 = vunpack.c.h.b16 %v341
    %v1292 = vunpack.c.l.b16 %v342
    %v1293 = vunpack.c.l.b16 %v343
    %v1294 = vunpack.c.h.b16 %v343
    %v1295 = vunpack.c.l.b16 %v344
    %v1296 = vunpack.c.h.b16 %v344
    %v1297 = vunpack.c.l.b16 %v345
    %v1298 = vunpack.c.h.b16 %v345
    %v1299 = vunpack.c.l.b16 %v346
    %v1300 = vunpack.c.l.b16 %v347
    %v1301 = vunpack.c.h.b16 %v347
    %v1302 = vunpack.c.l.b16 %v348
    %v1303 = vunpack.c.h.b16 %v348
    %v1304 = vunpack.c.l.b16 %v349
    %v1305 = vunpack.c.h.b16 %v349
    %v1306 = vunpack.c.l.b16 %v350
    %v1307 = vunpack.c.l.b16 %v351
    %v1308 = vunpack.c.h.b16 %v351
    %v1309 = vunpack.c.l.b16 %v352
    %v1310 = vunpack.c.h.b16 %v352
    %v1311 = vunpack.c.l.b16 %v353
    %v1312 = vunpack.c.h.b16 %v353
    %v1313 = vunpack.c.l.b16 %v354
    %v1314 = vunpack.c.l.b16 %v355
    %v1315 = vunpack.c.h.b16 %v355
    %v1316 = vunpack.c.l.b16 %v356
    %v1317 = vunpack.c.h.b16 %v356
    %v1318 = vunpack.c.l.b16 %v357
    %v1319 = vunpack.c.h.b16 %v357
    %v1320 = vunpack.c.l.b16 %v358
    %v1321 = vunpack.c.l.b16 %v359
    %v1322 = vunpack.c.h.b16 %v359
    %v1323 = vunpack.c.l.b16 %v360
    %v1324 = vunpack.c.h.b16 %v360
    %v1325 = vunpack.c.l.b16 %v361
    %v1326 = vunpack.c.h.b16 %v361
    %v1327 = vunpack.c.l.b16 %v362
    %v1328 = vunpack.c.l.b16 %v363
    %v1329 = vunpack.c.h.b16 %v363
    %v1330 = vunpack.c.l.b16 %v364
    %v1331 = vunpack.c.h.b16 %v364
    %v1332 = vunpack.c.l.b16 %v365
    %v1333 = vunpack.c.h.b16 %v365
    %v1334 = vunpack.c.l.b16 %v366
    %v1335 = vunpack.c.l.b16 %v367
    %v1336 = vunpack.c.h.b16 %v367
    %v1337 = vunpack.c.l.b16 %v368
    %v1338 = vunpack.c.h.b16 %v368
    %v1339 = vunpack.c.l.b16 %v369
    %v1340 = vunpack.c.h.b16 %v369
    %v1341 = vunpack.c.l.b16 %v370
    %v1342 = vunpack.c.l.b16 %v371
    %v1343 = vunpack.c.h.b16 %v371
    %v1344 = vunpack.c.l.b16 %v372
    %v1345 = vunpack.c.h.b16 %v372
    %v1346 = vunpack.c.l.b16 %v373
    %v1347 = vunpack.c.h.b16 %v373
    %v1348 = vunpack.c.l.b16 %v374
    %v1349 = vunpack.c.l.b16 %v375
    %v1350 = vunpack.c.h.b16 %v375
    %v1351 = vunpack.c.l.b16 %v376
    %v1352 = vunpack.c.h.b16 %v376
    %v1353 = vunpack.c.l.b16 %v377
    %v1354 = vunpack.c.h.b16 %v377
    %v1355 = vunpack.c.l.b16 %v378
    %v1356 = vunpack.c.l.b16 %v379
    %v1357 = vunpack.c.h.b16 %v379
    %v1358 = vunpack.c.l.b16 %v380
    %v1359 = vunpack.c.h.b16 %v380
    %v1360 = vunpack.c.l.b16 %v381
    %v1361 = vunpack.c.h.b16 %v381
    %v1362 = vunpack.c.l.b16 %v382
    %v1363 = vunpack.c.l.b16 %v383
    %v1364 = vunpack.c.h.b16 %v383
    %v1365 = vunpack.c.l.b16 %v384
    %v1366 = vunpack.c.h.b16 %v384
    %v1367 = vunpack.c.l.b16 %v385
    %v1368 = vunpack.c.h.b16 %v385
    %v1369 = vunpack.c.l.b16 %v386
    %v1370 = vunpack.c.l.b16 %v387
    %v1371 = vunpack.c.h.b16 %v387
    %v1372 = vunpack.c.l.b16 %v388
    %v1373 = vunpack.c.h.b16 %v388
    %v1374 = vunpack.c.l.b16 %v389
    %v1375 = vunpack.c.h.b16 %v389
    %v1376 = vunpack.c.l.b16 %v390
    %v1377 = vunpack.c.l.b16 %v391
    %v1378 = vunpack.c.h.b16 %v391
    %v1379 = vunpack.c.l.b16 %v392
    %v1380 = vunpack.c.h.b16 %v392
    %v1381 = vunpack.c.l.b16 %v393
    %v1382 = vunpack.c.h.b16 %v393
    %v1383 = vunpack.c.l.b16 %v394
    %v1384 = vunpack.c.l.b16 %v395
    %v1385 = vunpack.c.h.b16 %v395
    %v1386 = vunpack.c.l.b16 %v396
    %v1387 = vunpack.c.h.b16 %v396
    %v1388 = vunpack.c.l.b16 %v397
    %v1389 = vunpack.c.h.b16 %v397
    %v1390 = vunpack.c.l.b16 %v398
    %v1391 = vunpack.c.l.b16 %v399
    %v1392 = vunpack.c.h.b16 %v399
    %v1393 = vunpack.c.l.b16 %v400
    %v1394 = vunpack.c.h.b16 %v400
    %v1395 = vunpack.c.l.b16 %v401
    %v1396 = vunpack.c.h.b16 %v401
    %v1397 = vunpack.c.l.b16 %v402
    %v1398 = vunpack.c.l.b16 %v403
    %v1399 = vunpack.c.h.b16 %v403
    %v1400 = vunpack.c.l.b16 %v404
    %v1401 = vunpack.c.h.b16 %v404
    %v1402 = vunpack.c.l.b16 %v405
    %v1403 = vunpack.c.h.b16 %v405
    %v1404 = vunpack.c.l.b16 %v406
    %v1405 = vunpack.c.l.b16 %v407
    %v1406 = vunpack.c.h.b16 %v407
    %v1407 = vunpack.c.l.b16 %v408
    %v1408 = vunpack.c.h.b16 %v408
    %v1409 = vunpack.c.l.b16 %v409
    %v1410 = vunpack.c.h.b16 %v409
    %v1411 = vunpack.c.l.b16 %v410
    %v1412 = vunpack.c.l.b16 %v411
    %v1413 = vunpack.c.h.b16 %v411
    %v1414 = vunpack.c.l.b16 %v412
    %v1415 = vunpack.c.h.b16 %v412
    %v1416 = vunpack.c.l.b16 %v413
    %v1417 = vunpack.c.h.b16 %v413
    %v1418 = vunpack.c.l.b16 %v414
    %v1419 = vunpack.c.l.b16 %v415
    %v1420 = vunpack.c.h.b16 %v415
    %v1421 = vunpack.c.l.b16 %v416
    %v1422 = vunpack.c.h.b16 %v416
    %v1423 = vunpack.c.l.b16 %v417
    %v1424 = vunpack.c.h.b16 %v417
    %v1425 = vunpack.c.l.b16 %v418
    %v1426 = vunpack.c.l.b16 %v419
    %v1427 = vunpack.c.h.b16 %v419
    %v1428 = vunpack.c.l.b16 %v420
    %v1429 = vunpack.c.h.b16 %v420
    %v1430 = vunpack.c.l.b16 %v421
    %v1431 = vunpack.c.h.b16 %v421
    %v1432 = vunpack.c.l.b16 %v422
    %v1433 = vunpack.c.l.b16 %v423
    %v1434 = vunpack.c.h.b16 %v423
    %v1435 = vunpack.c.l.b16 %v424
    %v1436 = vunpack.c.h.b16 %v424
    %v1437 = vunpack.c.l.b16 %v425
    %v1438 = vunpack.c.h.b16 %v425
    %v1439 = vunpack.c.l.b16 %v426
    %v1440 = vunpack.c.l.b16 %v427
    %v1441 = vunpack.c.h.b16 %v427
    %v1442 = vunpack.c.l.b16 %v428
    %v1443 = vunpack.c.h.b16 %v428
    %v1444 = vunpack.c.l.b16 %v429
    %v1445 = vunpack.c.h.b16 %v429
    %v1446 = vunpack.c.l.b16 %v430
    %v1447 = vunpack.c.l.b16 %v431
    %v1448 = vunpack.c.h.b16 %v431
    %v1449 = vunpack.c.l.b16 %v432
    %v1450 = vunpack.c.h.b16 %v432
    %v1451 = vunpack.c.l.b16 %v433
    %v1452 = vunpack.c.h.b16 %v433
    %v1453 = vunpack.c.l.b16 %v434
    %v1454 = vunpack.c.l.b16 %v435
    %v1455 = vunpack.c.h.b16 %v435
    %v1456 = vunpack.c.l.b16 %v436
    %v1457 = vunpack.c.h.b16 %v436
    %v1458 = vunpack.c.l.b16 %v437
    %v1459 = vunpack.c.h.b16 %v437
    %v1460 = vunpack.c.l.b16 %v438
    %v1461 = vunpack.c.l.b16 %v439
    %v1462 = vunpack.c.h.b16 %v439
    %v1463 = vunpack.c.l.b16 %v440
    %v1464 = vunpack.c.h.b16 %v440
    %v1465 = vunpack.c.l.b16 %v441
    %v1466 = vunpack.c.h.b16 %v441
    %v1467 = vunpack.c.l.b16 %v442
    %v1468 = vunpack.c.l.b16 %v443
    %v1469 = vunpack.c.h.b16 %v443
    %v1470 = vunpack.c.l.b16 %v444
    %v1471 = vunpack.c.h.b16 %v444
    %v1472 = vunpack.c.l.b16 %v445
    %v1473 = vunpack.c.h.b16 %v445
    %v1474 = vunpack.c.l.b16 %v446
    %v1475 = vunpack.c.l.b16 %v447
    %v1476 = vunpack.c.h.b16 %v447
    %v1477 = vunpack.c.l.b16 %v448
    %v1478 = vunpack.c.h.b16 %v448
    %v1479 = vunpack.c.l.b16 %v449
    %v1480 = vunpack.c.h.b16 %v449
    %v1481 = vunpack.c.l.b16 %v450
    %v1482 = vunpack.c.l.b16 %v451
    %v1483 = vunpack.c.h.b16 %v451
    %v1484 = vunpack.c.l.b16 %v452
    %v1485 = vunpack.c.h.b16 %v452
    %v1486 = vunpack.c.l.b16 %v453
    %v1487 = vunpack.c.h.b16 %v453
    %v1488 = vunpack.c.l.b16 %v454
    %v1489 = vunpack.c.l.b16 %v455
    %v1490 = vunpack.c.h.b16 %v455
    %v1491 = vunpack.c.l.b16 %v456
    %v1492 = vunpack.c.h.b16 %v456
    %v1493 = vunpack.c.l.b16 %v457
    %v1494 = vunpack.c.h.b16 %v457
    %v1495 = vunpack.c.l.b16 %v458
    %v1496 = vunpack.c.l.b16 %v459
    %v1497 = vunpack.c.h.b16 %v459
    %v1498 = vunpack.c.l.b16 %v460
    %v1499 = vunpack.c.h.b16 %v460
    %v1500 = vunpack.c.l.b16 %v461
    %v1501 = vunpack.c.h.b16 %v461
    %v1502 = vunpack.c.l.b16 %v462
    %v1503 = vunpack.c.l.b16 %v463
    %v1504 = vunpack.c.h.b16 %v463
    %v1505 = vunpack.c.l.b16 %v464
    %v1506 = vunpack.c.h.b16 %v464
    %v1507 = vunpack.c.l.b16 %v465
    %v1508 = vunpack.c.h.b16 %v465
    %v1509 = vunpack.c.l.b16 %v466
    %v1510 = vunpack.c.l.b16 %v467
    %v1511 = vunpack.c.h.b16 %v467
    %v1512 = vunpack.c.l.b16 %v468
    %v1513 = vunpack.c.h.b16 %v468
    %v1514 = vunpack.c.l.b16 %v469
    %v1515 = vunpack.c.h.b16 %v469
    %v1516 = vunpack.c.l.b16 %v470
    %v1517 = vunpack.c.l.b16 %v471
    %v1518 = vunpack.c.h.b16 %v471
    %v1519 = vunpack.c.l.b16 %v472
    %v1520 = vunpack.c.h.b16 %v472
    %v1521 = vunpack.c.l.b16 %v473
    %v1522 = vunpack.c.h.b16 %v473
    %v1523 = vunpack.c.l.b16 %v474
    %v1524 = vunpack.c.l.b16 %v475
    %v1525 = vunpack.c.h.b16 %v475
    %v1526 = vunpack.c.l.b16 %v476
    %v1527 = vunpack.c.h.b16 %v476
    %v1528 = vunpack.c.l.b16 %v477
    %v1529 = vunpack.c.h.b16 %v477
    %v1530 = vunpack.c.l.b16 %v478
    %v1531 = vunpack.c.l.b16 %v479
    %v1532 = vunpack.c.h.b16 %v479
    %v1533 = vunpack.c.l.b16 %v480
    %v1534 = vunpack.c.h.b16 %v480
    %v1535 = vunpack.c.l.b16 %v481
    %v1536 = vunpack.c.h.b16 %v481
    %v1537 = vunpack.c.l.b16 %v482
    %v1538 = vunpack.c.l.b16 %v483
    %v1539 = vunpack.c.h.b16 %v483
    %v1540 = vunpack.c.l.b16 %v484
    %v1541 = vunpack.c.h.b16 %v484
    %v1542 = vunpack.c.l.b16 %v485
    %v1543 = vunpack.c.h.b16 %v485
    %v1544 = vunpack.c.l.b16 %v486
    %v1545 = vunpack.c.l.b16 %v487
    %v1546 = vunpack.c.h.b16 %v487
    %v1547 = vunpack.c.l.b16 %v488
    %v1548 = vunpack.c.h.b16 %v488
    %v1549 = vunpack.c.l.b16 %v489
    %v1550 = vunpack.c.h.b16 %v489
    %v1551 = vunpack.c.l.b16 %v490
    %v1552 = vunpack.c.l.b16 %v491
    %v1553 = vunpack.c.h.b16 %v491
    %v1554 = vunpack.c.l.b16 %v492
    %v1555 = vunpack.c.h.b16 %v492
    %v1556 = vunpack.c.l.b16 %v493
    %v1557 = vunpack.c.h.b16 %v493
    %v1558 = vunpack.c.l.b16 %v494
    %v1559 = vunpack.c.l.b16 %v495
    %v1560 = vunpack.c.h.b16 %v495
    %v1561 = vunpack.c.l.b16 %v496
    %v1562 = vunpack.c.h.b16 %v496
    %v1563 = vunpack.c.l.b16 %v497
    %v1564 = vunpack.c.h.b16 %v497
    %v1565 = vunpack.c.l.b16 %v498
    %v1566 = vunpack.c.l.b16 %v499
    %v1567 = vunpack.c.h.b16 %v499
    %v1568 = vunpack.c.l.b16 %v500
    %v1569 = vunpack.c.h.b16 %v500
    %v1570 = vunpack.c.l.b16 %v501
    %v1571 = vunpack.c.h.b16 %v501
    %v1572 = vunpack.c.l.b16 %v502
    %v1573 = vunpack.c.l.b16 %v503
    %v1574 = vunpack.c.h.b16 %v503
    %v1575 = vunpack.c.l.b16 %v504
    %v1576 = vunpack.c.h.b16 %v504
    %v1577 = vunpack.c.l.b16 %v505
    %v1578 = vunpack.c.h.b16 %v505
    %v1579 = vunpack.c.l.b16 %v506
    %v1580 = vunpack.c.l.b16 %v507
    %v1581 = vunpack.c.h.b16 %v507
    %v1582 = vunpack.c.l.b16 %v508
    %v1583 = vunpack.c.h.b16 %v508
    %v1584 = vunpack.c.l.b16 %v509
    %v1585 = vunpack.c.h.b16 %v509
    %v1586 = vunpack.c.l.b16 %v510
    %v1587 = vunpack.c.l.b16 %v511
    %v1588 = vunpack.c.h.b16 %v511
    %v1589 = vunpack.c.l.b16 %v512
    %v1590 = vunpack.c.h.b16 %v512
    %v1591 = vunpack.c.l.b16 %v513
    %v1592 = vunpack.c.h.b16 %v513
    %v1593 = vunpack.c.l.b16 %v514
    %v1594 = vunpack.c.l.b16 %v515
    %v1595 = vunpack.c.h.b16 %v515
    %v1596 = vunpack.c.l.b16 %v516
    %v1597 = vunpack.c.h.b16 %v516
    %v1598 = vunpack.c.l.b16 %v517
    %v1599 = vunpack.c.h.b16 %v517
    %v1600 = vunpack.c.l.b16 %v518
    %v1601 = vunpack.c.l.b16 %v519
    %v1602 = vunpack.c.h.b16 %v519
    %v1603 = vunpack.c.l.b16 %v520
    %v1604 = vunpack.c.h.b16 %v520
    %v1605 = vunpack.c.l.b16 %v521
    %v1606 = vunpack.c.h.b16 %v521
    %v1607 = vunpack.c.l.b16 %v522
    %v1608 = vunpack.c.l.b16 %v523
    %v1609 = vunpack.c.h.b16 %v523
    %v1610 = vunpack.c.l.b16 %v524
    %v1611 = vunpack.c.h.b16 %v524
    %v1612 = vunpack.c.l.b16 %v525
    %v1613 = vunpack.c.h.b16 %v525
    %v1614 = vunpack.c.l.b16 %v526
    %v1615 = vunpack.c.l.b16 %v527
    %v1616 = vunpack.c.h.b16 %v527
    %v1617 = vunpack.c.l.b16 %v528
    %v1618 = vunpack.c.h.b16 %v528
    %v1619 = vunpack.c.l.b16 %v529
    %v1620 = vunpack.c.h.b16 %v529
    %v1621 = vunpack.c.l.b16 %v530
    %v1622 = vunpack.c.l.b16 %v531
    %v1623 = vunpack.c.h.b16 %v531
    %v1624 = vunpack.c.l.b16 %v532
    %v1625 = vunpack.c.h.b16 %v532
    %v1626 = vunpack.c.l.b16 %v533
    %v1627 = vunpack.c.h.b16 %v533
    %v1628 = vunpack.c.l.b16 %v534
    %v1629 = vpack.c.b16 %v950, %v943
    %v1630 = vpack.c.b16 %v951, %v944
    %v1631 = vpack.c.b16 %v952, %v945
    %v1632 = vpack.c.b16 %v953, %v946
    %v1633 = vpack.c.b16 %v954, %v947
    %v1634 = vpack.c.b16 %v955, %v948
    %v1635 = vpack.c.b16 %v956, %v949
    %v1636 = vpack.c.b16 %v964, %v957
    %v1637 = vpack.c.b16 %v965, %v958
    %v1638 = vpack.c.b16 %v966, %v959
    %v1639 = vpack.c.b16 %v967, %v960
    %v1640 = vpack.c.b16 %v968, %v961
    %v1641 = vpack.c.b16 %v969, %v962
    %v1642 = vpack.c.b16 %v970, %v963
    %v1643 = vpack.c.b16 %v978, %v971
    %v1644 = vpack.c.b16 %v979, %v972
    %v1645 = vpack.c.b16 %v980, %v973
    %v1646 = vpack.c.b16 %v981, %v974
    %v1647 = vpack.c.b16 %v982, %v975
    %v1648 = vpack.c.b16 %v983, %v976
    %v1649 = vpack.c.b16 %v984, %v977
    %v1650 = vpack.c.b16 %v992, %v985
    %v1651 = vpack.c.b16 %v993, %v986
    %v1652 = vpack.c.b16 %v994, %v987
    %v1653 = vpack.c.b16 %v995, %v988
    %v1654 = vpack.c.b16 %v996, %v989
    %v1655 = vpack.c.b16 %v997, %v990
    %v1656 = vpack.c.b16 %v998, %v991
    %v1657 = vpack.c.b16 %v1006, %v999
    %v1658 = vpack.c.b16 %v1007, %v1000
    %v1659 = vpack.c.b16 %v1008, %v1001
    %v1660 = vpack.c.b16 %v1009, %v1002
    %v1661 = vpack.c.b16 %v1010, %v1003
    %v1662 = vpack.c.b16 %v1011, %v1004
    %v1663 = vpack.c.b16 %v1012, %v1005
    %v1664 = vpack.c.b16 %v1020, %v1013
    %v1665 = vpack.c.b16 %v1021, %v1014
    %v1666 = vpack.c.b16 %v1022, %v1015
    %v1667 = vpack.c.b16 %v1023, %v1016
    %v1668 = vpack.c.b16 %v1024, %v1017
    %v1669 = vpack.c.b16 %v1025, %v1018
    %v1670 = vpack.c.b16 %v1026, %v1019
    %v1671 = vpack.c.b16 %v1034, %v1027
    %v1672 = vpack.c.b16 %v1035, %v1028
    %v1673 = vpack.c.b16 %v1036, %v1029
    %v1674 = vpack.c.b16 %v1037, %v1030
    %v1675 = vpack.c.b16 %v1038, %v1031
    %v1676 = vpack.c.b16 %v1039, %v1032
    %v1677 = vpack.c.b16 %v1040, %v1033
    %v1678 = vpack.c.b16 %v1048, %v1041
    %v1679 = vpack.c.b16 %v1049, %v1042
    %v1680 = vpack.c.b16 %v1050, %v1043
    %v1681 = vpack.c.b16 %v1051, %v1044
    %v1682 = vpack.c.b16 %v1052, %v1045
    %v1683 = vpack.c.b16 %v1053, %v1046
    %v1684 = vpack.c.b16 %v1054, %v1047
    %v1685 = vpack.c.b16 %v1062, %v1055
    %v1686 = vpack.c.b16 %v1063, %v1056
    %v1687 = vpack.c.b16 %v1064, %v1057
    %v1688 = vpack.c.b16 %v1065, %v1058
    %v1689 = vpack.c.b16 %v1066, %v1059
    %v1690 = vpack.c.b16 %v1067, %v1060
    %v1691 = vpack.c.b16 %v1068, %v1061
    %v1692 = vpack.c.b16 %v1076, %v1069
    %v1693 = vpack.c.b16 %v1077, %v1070
    %v1694 = vpack.c.b16 %v1078, %v1071
    %v1695 = vpack.c.b16 %v1079, %v1072
    %v1696 = vpack.c.b16 %v1080, %v1073
    %v1697 = vpack.c.b16 %v1081, %v1074
    %v1698 = vpack.c.b16 %v1082, %v1075
    %v1699 = vpack.c.b16 %v1090, %v1083
    %v1700 = vpack.c.b16 %v1091, %v1084
    %v1701 = vpack.c.b16 %v1092, %v1085
    %v1702 = vpack.c.b16 %v1093, %v1086
    %v1703 = vpack.c.b16 %v1094, %v1087
    %v1704 = vpack.c.b16 %v1095, %v1088
    %v1705 = vpack.c.b16 %v1096, %v1089
    %v1706 = vpack.c.b16 %v1104, %v1097
    %v1707 = vpack.c.b16 %v1105, %v1098
    %v1708 = vpack.c.b16 %v1106, %v1099
    %v1709 = vpack.c.b16 %v1107, %v1100
    %v1710 = vpack.c.b16 %v1108, %v1101
    %v1711 = vpack.c.b16 %v1109, %v1102
    %v1712 = vpack.c.b16 %v1110, %v1103
    %v1713 = vpack.c.b16 %v1118, %v1111
    %v1714 = vpack.c.b16 %v1119, %v1112
    %v1715 = vpack.c.b16 %v1120, %v1113
    %v1716 = vpack.c.b16 %v1121, %v1114
    %v1717 = vpack.c.b16 %v1122, %v1115
    %v1718 = vpack.c.b16 %v1123, %v1116
    %v1719 = vpack.c.b16 %v1124, %v1117
    %v1720 = vpack.c.b16 %v1132, %v1125
    %v1721 = vpack.c.b16 %v1133, %v1126
    %v1722 = vpack.c.b16 %v1134, %v1127
    %v1723 = vpack.c.b16 %v1135, %v1128
    %v1724 = vpack.c.b16 %v1136, %v1129
    %v1725 = vpack.c.b16 %v1137, %v1130
    %v1726 = vpack.c.b16 %v1138, %v1131
    %v1727 = vpack.c.b16 %v1146, %v1139
    %v1728 = vpack.c.b16 %v1147, %v1140
    %v1729 = vpack.c.b16 %v1148, %v1141
    %v1730 = vpack.c.b16 %v1149, %v1142
    %v1731 = vpack.c.b16 %v1150, %v1143
    %v1732 = vpack.c.b16 %v1151, %v1144
    %v1733 = vpack.c.b16 %v1152, %v1145
    %v1734 = vpack.c.b16 %v1160, %v1153
    %v1735 = vpack.c.b16 %v1161, %v1154
    %v1736 = vpack.c.b16 %v1162, %v1155
    %v1737 = vpack.c.b16 %v1163, %v1156
    %v1738 = vpack.c.b16 %v1164, %v1157
    %v1739 = vpack.c.b16 %v1165, %v1158
    %v1740 = vpack.c.b16 %v1166, %v1159
    %v1741 = vpack.c.b16 %v1174, %v1167
    %v1742 = vpack.c.b16 %v1175, %v1168
    %v1743 = vpack.c.b16 %v1176, %v1169
    %v1744 = vpack.c.b16 %v1177, %v1170
    %v1745 = vpack.c.b16 %v1178, %v1171
    %v1746 = vpack.c.b16 %v1179, %v1172
    %v1747 = vpack.c.b16 %v1180, %v1173
    %v1748 = vpack.c.b16 %v1188, %v1181
    %v1749 = vpack.c.b16 %v1189, %v1182
    %v1750 = vpack.c.b16 %v1190, %v1183
    %v1751 = vpack.c.b16 %v1191, %v1184
    %v1752 = vpack.c.b16 %v1192, %v1185
    %v1753 = vpack.c.b16 %v1193, %v1186
    %v1754 = vpack.c.b16 %v1194, %v1187
    %v1755 = vpack.c.b16 %v1202, %v1195
    %v1756 = vpack.c.b16 %v1203, %v1196
    %v1757 = vpack.c.b16 %v1204, %v1197
    %v1758 = vpack.c.b16 %v1205, %v1198
    %v1759 = vpack.c.b16 %v1206, %v1199
    %v1760 = vpack.c.b16 %v1207, %v1200
    %v1761 = vpack.c.b16 %v1208, %v1201
    %v1762 = vpack.c.b16 %v1216, %v1209
    %v1763 = vpack.c.b16 %v1217, %v1210
    %v1764 = vpack.c.b16 %v1218, %v1211
    %v1765 = vpack.c.b16 %v1219, %v1212
    %v1766 = vpack.c.b16 %v1220, %v1213
    %v1767 = vpack.c.b16 %v1221, %v1214
    %v1768 = vpack.c.b16 %v1222, %v1215
    %v1769 = vpack.c.b16 %v1230, %v1223
    %v1770 = vpack.c.b16 %v1231, %v1224
    %v1771 = vpack.c.b16 %v1232, %v1225
    %v1772 = vpack.c.b16 %v1233, %v1226
    %v1773 = vpack.c.b16 %v1234, %v1227
    %v1774 = vpack.c.b16 %v1235, %v1228
    %v1775 = vpack.c.b16 %v1236, %v1229
    %v1776 = vpack.c.b16 %v1244, %v1237
    %v1777 = vpack.c.b16 %v1245, %v1238
    %v1778 = vpack.c.b16 %v1246, %v1239
    %v1779 = vpack.c.b16 %v1247, %v1240
    %v1780 = vpack.c.b16 %v1248, %v1241
    %v1781 = vpack.c.b16 %v1249, %v1242
    %v1782 = vpack.c.b16 %v1250, %v1243
    %v1783 = vpack.c.b16 %v1258, %v1251
    %v1784 = vpack.c.b16 %v1259, %v1252
    %v1785 = vpack.c.b16 %v1260, %v1253
    %v1786 = vpack.c.b16 %v1261, %v1254
    %v1787 = vpack.c.b16 %v1262, %v1255
    %v1788 = vpack.c.b16 %v1263, %v1256
    %v1789 = vpack.c.b16 %v1264, %v1257
    %v1790 = vpack.c.b16 %v1272, %v1265
    %v1791 = vpack.c.b16 %v1273, %v1266
    %v1792 = vpack.c.b16 %v1274, %v1267
    %v1793 = vpack.c.b16 %v1275, %v1268
    %v1794 = vpack.c.b16 %v1276, %v1269
    %v1795 = vpack.c.b16 %v1277, %v1270
    %v1796 = vpack.c.b16 %v1278, %v1271
    %v1797 = vpack.c.b16 %v1286, %v1279
    %v1798 = vpack.c.b16 %v1287, %v1280
    %v1799 = vpack.c.b16 %v1288, %v1281
    %v1800 = vpack.c.b16 %v1289, %v1282
    %v1801 = vpack.c.b16 %v1290, %v1283
    %v1802 = vpack.c.b16 %v1291, %v1284
    %v1803 = vpack.c.b16 %v1292, %v1285
    %v1804 = vpack.c.b16 %v1300, %v1293
    %v1805 = vpack.c.b16 %v1301, %v1294
    %v1806 = vpack.c.b16 %v1302, %v1295
    %v1807 = vpack.c.b16 %v1303, %v1296
    %v1808 = vpack.c.b16 %v1304, %v1297
    %v1809 = vpack.c.b16 %v1305, %v1298
    %v1810 = vpack.c.b16 %v1306, %v1299
    %v1811 = vpack.c.b16 %v1314, %v1307
    %v1812 = vpack.c.b16 %v1315, %v1308
    %v1813 = vpack.c.b16 %v1316, %v1309
    %v1814 = vpack.c.b16 %v1317, %v1310
    %v1815 = vpack.c.b16 %v1318, %v1311
    %v1816 = vpack.c.b16 %v1319, %v1312
    %v1817 = vpack.c.b16 %v1320, %v1313
    %v1818 = vpack.c.b16 %v1328, %v1321
    %v1819 = vpack.c.b16 %v1329, %v1322
    %v1820 = vpack.c.b16 %v1330, %v1323
    %v1821 = vpack.c.b16 %v1331, %v1324
    %v1822 = vpack.c.b16 %v1332, %v1325
    %v1823 = vpack.c.b16 %v1333, %v1326
    %v1824 = vpack.c.b16 %v1334, %v1327
    %v1825 = vpack.c.b16 %v1342, %v1335
    %v1826 = vpack.c.b16 %v1343, %v1336
    %v1827 = vpack.c.b16 %v1344, %v1337
    %v1828 = vpack.c.b16 %v1345, %v1338
    %v1829 = vpack.c.b16 %v1346, %v1339
    %v1830 = vpack.c.b16 %v1347, %v1340
    %v1831 = vpack.c.b16 %v1348, %v1341
    %v1832 = vpack.c.b16 %v1356, %v1349
    %v1833 = vpack.c.b16 %v1357, %v1350
    %v1834 = vpack.c.b16 %v1358, %v1351
    %v1835 = vpack.c.b16 %v1359, %v1352
    %v1836 = vpack.c.b16 %v1360, %v1353
    %v1837 = vpack.c.b16 %v1361, %v1354
    %v1838 = vpack.c.b16 %v1362, %v1355
    %v1839 = vpack.c.b16 %v1370, %v1363
    %v1840 = vpack.c.b16 %v1371, %v1364
    %v1841 = vpack.c.b16 %v1372, %v1365
    %v1842 = vpack.c.b16 %v1373, %v1366
    %v1843 = vpack.c.b16 %v1374, %v1367
    %v1844 = vpack.c.b16 %v1375, %v1368
    %v1845 = vpack.c.b16 %v1376, %v1369
    %v1846 = vpack.c.b16 %v1384, %v1377
    %v1847 = vpack.c.b16 %v1385, %v1378
    %v1848 = vpack.c.b16 %v1386, %v1379
    %v1849 = vpack.c.b16 %v1387, %v1380
    %v1850 = vpack.c.b16 %v1388, %v1381
    %v1851 = vpack.c.b16 %v1389, %v1382
    %v1852 = vpack.c.b16 %v1390, %v1383
    %v1853 = vpack.c.b16 %v1398, %v1391
    %v1854 = vpack.c.b16 %v1399, %v1392
    %v1855 = vpack.c.b16 %v1400, %v1393
    %v1856 = vpack.c.b16 %v1401, %v1394
    %v1857 = vpack.c.b16 %v1402, %v1395
    %v1858 = vpack.c.b16 %v1403, %v1396
    %v1859 = vpack.c.b16 %v1404, %v1397
    %v1860 = vpack.c.b16 %v1412, %v1405
    %v1861 = vpack.c.b16 %v1413, %v1406
    %v1862 = vpack.c.b16 %v1414, %v1407
    %v1863 = vpack.c.b16 %v1415, %v1408
    %v1864 = vpack.c.b16 %v1416, %v1409
    %v1865 = vpack.c.b16 %v1417, %v1410
    %v1866 = vpack.c.b16 %v1418, %v1411
    %v1867 = vpack.c.b16 %v1426, %v1419
    %v1868 = vpack.c.b16 %v1427, %v1420
    %v1869 = vpack.c.b16 %v1428, %v1421
    %v1870 = vpack.c.b16 %v1429, %v1422
    %v1871 = vpack.c.b16 %v1430, %v1423
    %v1872 = vpack.c.b16 %v1431, %v1424
    %v1873 = vpack.c.b16 %v1432, %v1425
    %v1874 = vpack.c.b16 %v1440, %v1433
    %v1875 = vpack.c.b16 %v1441, %v1434
    %v1876 = vpack.c.b16 %v1442, %v1435
    %v1877 = vpack.c.b16 %v1443, %v1436
    %v1878 = vpack.c.b16 %v1444, %v1437
    %v1879 = vpack.c.b16 %v1445, %v1438
    %v1880 = vpack.c.b16 %v1446, %v1439
    %v1881 = vpack.c.b16 %v1454, %v1447
    %v1882 = vpack.c.b16 %v1455, %v1448
    %v1883 = vpack.c.b16 %v1456, %v1449
    %v1884 = vpack.c.b16 %v1457, %v1450
    %v1885 = vpack.c.b16 %v1458, %v1451
    %v1886 = vpack.c.b16 %v1459, %v1452
    %v1887 = vpack.c.b16 %v1460, %v1453
    %v1888 = vpack.c.b16 %v1468, %v1461
    %v1889 = vpack.c.b16 %v1469, %v1462
    %v1890 = vpack.c.b16 %v1470, %v1463
    %v1891 = vpack.c.b16 %v1471, %v1464
    %v1892 = vpack.c.b16 %v1472, %v1465
    %v1893 = vpack.c.b16 %v1473, %v1466
    %v1894 = vpack.c.b16 %v1474, %v1467
    %v1895 = vpack.c.b16 %v1482, %v1475
    %v1896 = vpack.c.b16 %v1483, %v1476
    %v1897 = vpack.c.b16 %v1484, %v1477
    %v1898 = vpack.c.b16 %v1485, %v1478
    %v1899 = vpack.c.b16 %v1486, %v1479
    %v1900 = vpack.c.b16 %v1487, %v1480
    %v1901 = vpack.c.b16 %v1488, %v1481
    %v1902 = vpack.c.b16 %v1496, %v1489
    %v1903 = vpack.c.b16 %v1497, %v1490
    %v1904 = vpack.c.b16 %v1498, %v1491
    %v1905 = vpack.c.b16 %v1499, %v1492
    %v1906 = vpack.c.b16 %v1500, %v1493
    %v1907 = vpack.c.b16 %v1501, %v1494
    %v1908 = vpack.c.b16 %v1502, %v1495
    %v1909 = vpack.c.b16 %v1510, %v1503
    %v1910 = vpack.c.b16 %v1511, %v1504
    %v1911 = vpack.c.b16 %v1512, %v1505
    %v1912 = vpack.c.b16 %v1513, %v1506
    %v1913 = vpack.c.b16 %v1514, %v1507
    %v1914 = vpack.c.b16 %v1515, %v1508
    %v1915 = vpack.c.b16 %v1516, %v1509
    %v1916 = vpack.c.b16 %v1524, %v1517
    %v1917 = vpack.c.b16 %v1525, %v1518
    %v1918 = vpack.c.b16 %v1526, %v1519
    %v1919 = vpack.c.b16 %v1527, %v1520
    %v1920 = vpack.c.b16 %v1528, %v1521
    %v1921 = vpack.c.b16 %v1529, %v1522
    %v1922 = vpack.c.b16 %v1530, %v1523
    %v1923 = vpack.c.b16 %v1538, %v1531
    %v1924 = vpack.c.b16 %v1539, %v1532
    %v1925 = vpack.c.b16 %v1540, %v1533
    %v1926 = vpack.c.b16 %v1541, %v1534
    %v1927 = vpack.c.b16 %v1542, %v1535
    %v1928 = vpack.c.b16 %v1543, %v1536
    %v1929 = vpack.c.b16 %v1544, %v1537
    %v1930 = vpack.c.b16 %v1552, %v1545
    %v1931 = vpack.c.b16 %v1553, %v1546
    %v1932 = vpack.c.b16 %v1554, %v1547
    %v1933 = vpack.c.b16 %v1555, %v1548
    %v1934 = vpack.c.b16 %v1556, %v1549
    %v1935 = vpack.c.b16 %v1557, %v1550
    %v1936 = vpack.c.b16 %v1558, %v1551
    %v1937 = vpack.c.b16 %v1566, %v1559
    %v1938 = vpack.c.b16 %v1567, %v1560
    %v1939 = vpack.c.b16 %v1568, %v1561
    %v1940 = vpack.c.b16 %v1569, %v1562
    %v1941 = vpack.c.b16 %v1570, %v1563
    %v1942 = vpack.c.b16 %v1571, %v1564
    %v1943 = vpack.c.b16 %v1572, %v1565
    %v1944 = vpack.c.b16 %v1580, %v1573
    %v1945 = vpack.c.b16 %v1581, %v1574
    %v1946 = vpack.c.b16 %v1582, %v1575
    %v1947 = vpack.c.b16 %v1583, %v1576
    %v1948 = vpack.c.b16 %v1584, %v1577
    %v1949 = vpack.c.b16 %v1585, %v1578
    %v1950 = vpack.c.b16 %v1586, %v1579
    %v1951 = vpack.c.b16 %v1594, %v1587
    %v1952 = vpack.c.b16 %v1595, %v1588
    %v1953 = vpack.c.b16 %v1596, %v1589
    %v1954 = vpack.c.b16 %v1597, %v1590
    %v1955 = vpack.c.b16 %v1598, %v1591
    %v1956 = vpack.c.b16 %v1599, %v1592
    %v1957 = vpack.c.b16 %v1600, %v1593
    %v1958 = vpack.c.b16 %v1608, %v1601
    %v1959 = vpack.c.b16 %v1609, %v1602
    %v1960 = vpack.c.b16 %v1610, %v1603
    %v1961 = vpack.c.b16 %v1611, %v1604
    %v1962 = vpack.c.b16 %v1612, %v1605
    %v1963 = vpack.c.b16 %v1613, %v1606
    %v1964 = vpack.c.b16 %v1614, %v1607
    %v1965 = vpack.c.b16 %v1622, %v1615
    %v1966 = vpack.c.b16 %v1623, %v1616
    %v1967 = vpack.c.b16 %v1624, %v1617
    %v1968 = vpack.c.b16 %v1625, %v1618
    %v1969 = vpack.c.b16 %v1626, %v1619
    %v1970 = vpack.c.b16 %v1627, %v1620
    %v1971 = vpack.c.b16 %v1628, %v1621
    %vm2315 = vcmask 130048
    %v2317 = vsel %vm2315, %v142, 0
    %2319 = vmatpush.bf16.msra.mxu0 %v1678
    %2320 = vmatpush.bf16.msra.mxu0 %v1671
    %2321 = vmatpush.bf16.msra.mxu0 %v1664
    %2322 = vmatpush.bf16.msra.mxu0 %v1657
    %2323 = vmatpush.bf16.msra.mxu0 %v1650
    %2324 = vmatpush.bf16.msra.mxu0 %v1643
    %2325 = vmatpush.bf16.msra.mxu0 %v1636
    %2326 = vmatpush.bf16.msra.mxu0 %v1629
    %2327 = vmatmul.bf16.gmra.mxu0 %v136
    %v2328 = vpop.f32.mrf.mxu0
    %v2329 = vadd.f32 %v537, %v2328
    %v2330 = vpop.f32.mrf.mxu0
    %2331 = vdwg.mxu0
    %2332 = vmatpush.bf16.msra.mxu0 %v1734
    %2333 = vmatpush.bf16.msra.mxu0 %v1727
    %2334 = vmatpush.bf16.msra.mxu0 %v1720
    %2335 = vmatpush.bf16.msra.mxu0 %v1713
    %2336 = vmatpush.bf16.msra.mxu0 %v1706
    %2337 = vmatpush.bf16.msra.mxu0 %v1699
    %2338 = vmatpush.bf16.msra.mxu0 %v1692
    %2339 = vmatpush.bf16.msra.mxu0 %v1685
    %2340 = vmatmul.bf16.gmra.mxu0 %v137
    %v2341 = vpop.f32.mrf.mxu0
    %v2342 = vadd.f32 %v2329, %v2341
    %v2343 = vpop.f32.mrf.mxu0
    %2344 = vdwg.mxu0
    %2345 = vmatpush.bf16.msra.mxu0 %v1790
    %2346 = vmatpush.bf16.msra.mxu0 %v1783
    %2347 = vmatpush.bf16.msra.mxu0 %v1776
    %2348 = vmatpush.bf16.msra.mxu0 %v1769
    %2349 = vmatpush.bf16.msra.mxu0 %v1762
    %2350 = vmatpush.bf16.msra.mxu0 %v1755
    %2351 = vmatpush.bf16.msra.mxu0 %v1748
    %2352 = vmatpush.bf16.msra.mxu0 %v1741
    %2353 = vmatmul.bf16.gmra.mxu0 %v138
    %v2354 = vpop.f32.mrf.mxu0
    %v2355 = vadd.f32 %v2342, %v2354
    %v2356 = vpop.f32.mrf.mxu0
    %2357 = vdwg.mxu0
    %2358 = vmatpush.bf16.msra.mxu0 %v1846
    %2359 = vmatpush.bf16.msra.mxu0 %v1839
    %2360 = vmatpush.bf16.msra.mxu0 %v1832
    %2361 = vmatpush.bf16.msra.mxu0 %v1825
    %2362 = vmatpush.bf16.msra.mxu0 %v1818
    %2363 = vmatpush.bf16.msra.mxu0 %v1811
    %2364 = vmatpush.bf16.msra.mxu0 %v1804
    %2365 = vmatpush.bf16.msra.mxu0 %v1797
    %2366 = vmatmul.bf16.gmra.mxu0 %v139
    %v2367 = vpop.f32.mrf.mxu0
    %v2368 = vadd.f32 %v2355, %v2367
    %v2369 = vpop.f32.mrf.mxu0
    %2370 = vdwg.mxu0
    %2371 = vmatpush.bf16.msra.mxu0 %v1902
    %2372 = vmatpush.bf16.msra.mxu0 %v1895
    %2373 = vmatpush.bf16.msra.mxu0 %v1888
    %2374 = vmatpush.bf16.msra.mxu0 %v1881
    %2375 = vmatpush.bf16.msra.mxu0 %v1874
    %2376 = vmatpush.bf16.msra.mxu0 %v1867
    %2377 = vmatpush.bf16.msra.mxu0 %v1860
    %2378 = vmatpush.bf16.msra.mxu0 %v1853
    %2379 = vmatmul.bf16.gmra.mxu0 %v140
    %v2380 = vpop.f32.mrf.mxu0
    %v2381 = vadd.f32 %v2368, %v2380
    %v2382 = vpop.f32.mrf.mxu0
    %2383 = vdwg.mxu0
    %2384 = vmatpush.bf16.msra.mxu0 %v1958
    %2385 = vmatpush.bf16.msra.mxu0 %v1951
    %2386 = vmatpush.bf16.msra.mxu0 %v1944
    %2387 = vmatpush.bf16.msra.mxu0 %v1937
    %2388 = vmatpush.bf16.msra.mxu0 %v1930
    %2389 = vmatpush.bf16.msra.mxu0 %v1923
    %2390 = vmatpush.bf16.msra.mxu0 %v1916
    %2391 = vmatpush.bf16.msra.mxu0 %v1909
    %2392 = vmatmul.bf16.gmra.mxu0 %v141
    %v2393 = vpop.f32.mrf.mxu0
    %v2394 = vadd.f32 %v2381, %v2393
    %v2395 = vpop.f32.mrf.mxu0
    %2396 = vdwg.mxu0
    %2397 = vmatpush.bf16.msra.mxu0 0
    %2398 = vmatpush.bf16.msra.mxu0 0
    %2399 = vmatpush.bf16.msra.mxu0 0
    %2400 = vmatpush.bf16.msra.mxu0 0
    %2401 = vmatpush.bf16.msra.mxu0 0
    %2402 = vmatpush.bf16.msra.mxu0 0
    %2403 = vmatpush.bf16.msra.mxu0 0
    %2404 = vmatpush.bf16.msra.mxu0 %v1965
    %2405 = vmatmul.bf16.gmra.mxu0 %v2317
    %v2406 = vpop.f32.mrf.mxu0
    %v2407 = vadd.f32 %v2394, %v2406
    %v2408 = vpop.f32.mrf.mxu0
    %2409 = vdwg.mxu0
    %2410 = vmatpush.bf16.msra.mxu0 %v1679
    %2411 = vmatpush.bf16.msra.mxu0 %v1672
    %2412 = vmatpush.bf16.msra.mxu0 %v1665
    %2413 = vmatpush.bf16.msra.mxu0 %v1658
    %2414 = vmatpush.bf16.msra.mxu0 %v1651
    %2415 = vmatpush.bf16.msra.mxu0 %v1644
    %2416 = vmatpush.bf16.msra.mxu0 %v1637
    %2417 = vmatpush.bf16.msra.mxu0 %v1630
    %2418 = vmatmul.bf16.gmra.mxu0 %v136
    %v2419 = vpop.f32.mrf.mxu0
    %v2420 = vadd.f32 %v538, %v2419
    %v2421 = vpop.f32.mrf.mxu0
    %2422 = vdwg.mxu0
    %2423 = vmatpush.bf16.msra.mxu0 %v1735
    %2424 = vmatpush.bf16.msra.mxu0 %v1728
    %2425 = vmatpush.bf16.msra.mxu0 %v1721
    %2426 = vmatpush.bf16.msra.mxu0 %v1714
    %2427 = vmatpush.bf16.msra.mxu0 %v1707
    %2428 = vmatpush.bf16.msra.mxu0 %v1700
    %2429 = vmatpush.bf16.msra.mxu0 %v1693
    %2430 = vmatpush.bf16.msra.mxu0 %v1686
    %2431 = vmatmul.bf16.gmra.mxu0 %v137
    %v2432 = vpop.f32.mrf.mxu0
    %v2433 = vadd.f32 %v2420, %v2432
    %v2434 = vpop.f32.mrf.mxu0
    %2435 = vdwg.mxu0
    %2436 = vmatpush.bf16.msra.mxu0 %v1791
    %2437 = vmatpush.bf16.msra.mxu0 %v1784
    %2438 = vmatpush.bf16.msra.mxu0 %v1777
    %2439 = vmatpush.bf16.msra.mxu0 %v1770
    %2440 = vmatpush.bf16.msra.mxu0 %v1763
    %2441 = vmatpush.bf16.msra.mxu0 %v1756
    %2442 = vmatpush.bf16.msra.mxu0 %v1749
    %2443 = vmatpush.bf16.msra.mxu0 %v1742
    %2444 = vmatmul.bf16.gmra.mxu0 %v138
    %v2445 = vpop.f32.mrf.mxu0
    %v2446 = vadd.f32 %v2433, %v2445
    %v2447 = vpop.f32.mrf.mxu0
    %2448 = vdwg.mxu0
    %2449 = vmatpush.bf16.msra.mxu0 %v1847
    %2450 = vmatpush.bf16.msra.mxu0 %v1840
    %2451 = vmatpush.bf16.msra.mxu0 %v1833
    %2452 = vmatpush.bf16.msra.mxu0 %v1826
    %2453 = vmatpush.bf16.msra.mxu0 %v1819
    %2454 = vmatpush.bf16.msra.mxu0 %v1812
    %2455 = vmatpush.bf16.msra.mxu0 %v1805
    %2456 = vmatpush.bf16.msra.mxu0 %v1798
    %2457 = vmatmul.bf16.gmra.mxu0 %v139
    %v2458 = vpop.f32.mrf.mxu0
    %v2459 = vadd.f32 %v2446, %v2458
    %v2460 = vpop.f32.mrf.mxu0
    %2461 = vdwg.mxu0
    %2462 = vmatpush.bf16.msra.mxu0 %v1903
    %2463 = vmatpush.bf16.msra.mxu0 %v1896
    %2464 = vmatpush.bf16.msra.mxu0 %v1889
    %2465 = vmatpush.bf16.msra.mxu0 %v1882
    %2466 = vmatpush.bf16.msra.mxu0 %v1875
    %2467 = vmatpush.bf16.msra.mxu0 %v1868
    %2468 = vmatpush.bf16.msra.mxu0 %v1861
    %2469 = vmatpush.bf16.msra.mxu0 %v1854
    %2470 = vmatmul.bf16.gmra.mxu0 %v140
    %v2471 = vpop.f32.mrf.mxu0
    %v2472 = vadd.f32 %v2459, %v2471
    %v2473 = vpop.f32.mrf.mxu0
    %2474 = vdwg.mxu0
    %2475 = vmatpush.bf16.msra.mxu0 %v1959
    %2476 = vmatpush.bf16.msra.mxu0 %v1952
    %2477 = vmatpush.bf16.msra.mxu0 %v1945
    %2478 = vmatpush.bf16.msra.mxu0 %v1938
    %2479 = vmatpush.bf16.msra.mxu0 %v1931
    %2480 = vmatpush.bf16.msra.mxu0 %v1924
    %2481 = vmatpush.bf16.msra.mxu0 %v1917
    %2482 = vmatpush.bf16.msra.mxu0 %v1910
    %2483 = vmatmul.bf16.gmra.mxu0 %v141
    %v2484 = vpop.f32.mrf.mxu0
    %v2485 = vadd.f32 %v2472, %v2484
    %v2486 = vpop.f32.mrf.mxu0
    %2487 = vdwg.mxu0
    %2488 = vmatpush.bf16.msra.mxu0 0
    %2489 = vmatpush.bf16.msra.mxu0 0
    %2490 = vmatpush.bf16.msra.mxu0 0
    %2491 = vmatpush.bf16.msra.mxu0 0
    %2492 = vmatpush.bf16.msra.mxu0 0
    %2493 = vmatpush.bf16.msra.mxu0 0
    %2494 = vmatpush.bf16.msra.mxu0 0
    %2495 = vmatpush.bf16.msra.mxu0 %v1966
    %2496 = vmatmul.bf16.gmra.mxu0 %v2317
    %v2497 = vpop.f32.mrf.mxu0
    %v2498 = vadd.f32 %v2485, %v2497
    %v2499 = vpop.f32.mrf.mxu0
    %2500 = vdwg.mxu0
    %2501 = vmatpush.bf16.msra.mxu0 %v1680
    %2502 = vmatpush.bf16.msra.mxu0 %v1673
    %2503 = vmatpush.bf16.msra.mxu0 %v1666
    %2504 = vmatpush.bf16.msra.mxu0 %v1659
    %2505 = vmatpush.bf16.msra.mxu0 %v1652
    %2506 = vmatpush.bf16.msra.mxu0 %v1645
    %2507 = vmatpush.bf16.msra.mxu0 %v1638
    %2508 = vmatpush.bf16.msra.mxu0 %v1631
    %2509 = vmatmul.bf16.gmra.mxu0 %v136
    %v2510 = vpop.f32.mrf.mxu0
    %v2511 = vadd.f32 %v539, %v2510
    %v2512 = vpop.f32.mrf.mxu0
    %2513 = vdwg.mxu0
    %2514 = vmatpush.bf16.msra.mxu0 %v1736
    %2515 = vmatpush.bf16.msra.mxu0 %v1729
    %2516 = vmatpush.bf16.msra.mxu0 %v1722
    %2517 = vmatpush.bf16.msra.mxu0 %v1715
    %2518 = vmatpush.bf16.msra.mxu0 %v1708
    %2519 = vmatpush.bf16.msra.mxu0 %v1701
    %2520 = vmatpush.bf16.msra.mxu0 %v1694
    %2521 = vmatpush.bf16.msra.mxu0 %v1687
    %2522 = vmatmul.bf16.gmra.mxu0 %v137
    %v2523 = vpop.f32.mrf.mxu0
    %v2524 = vadd.f32 %v2511, %v2523
    %v2525 = vpop.f32.mrf.mxu0
    %2526 = vdwg.mxu0
    %2527 = vmatpush.bf16.msra.mxu0 %v1792
    %2528 = vmatpush.bf16.msra.mxu0 %v1785
    %2529 = vmatpush.bf16.msra.mxu0 %v1778
    %2530 = vmatpush.bf16.msra.mxu0 %v1771
    %2531 = vmatpush.bf16.msra.mxu0 %v1764
    %2532 = vmatpush.bf16.msra.mxu0 %v1757
    %2533 = vmatpush.bf16.msra.mxu0 %v1750
    %2534 = vmatpush.bf16.msra.mxu0 %v1743
    %2535 = vmatmul.bf16.gmra.mxu0 %v138
    %v2536 = vpop.f32.mrf.mxu0
    %v2537 = vadd.f32 %v2524, %v2536
    %v2538 = vpop.f32.mrf.mxu0
    %2539 = vdwg.mxu0
    %2540 = vmatpush.bf16.msra.mxu0 %v1848
    %2541 = vmatpush.bf16.msra.mxu0 %v1841
    %2542 = vmatpush.bf16.msra.mxu0 %v1834
    %2543 = vmatpush.bf16.msra.mxu0 %v1827
    %2544 = vmatpush.bf16.msra.mxu0 %v1820
    %2545 = vmatpush.bf16.msra.mxu0 %v1813
    %2546 = vmatpush.bf16.msra.mxu0 %v1806
    %2547 = vmatpush.bf16.msra.mxu0 %v1799
    %2548 = vmatmul.bf16.gmra.mxu0 %v139
    %v2549 = vpop.f32.mrf.mxu0
    %v2550 = vadd.f32 %v2537, %v2549
    %v2551 = vpop.f32.mrf.mxu0
    %2552 = vdwg.mxu0
    %2553 = vmatpush.bf16.msra.mxu0 %v1904
    %2554 = vmatpush.bf16.msra.mxu0 %v1897
    %2555 = vmatpush.bf16.msra.mxu0 %v1890
    %2556 = vmatpush.bf16.msra.mxu0 %v1883
    %2557 = vmatpush.bf16.msra.mxu0 %v1876
    %2558 = vmatpush.bf16.msra.mxu0 %v1869
    %2559 = vmatpush.bf16.msra.mxu0 %v1862
    %2560 = vmatpush.bf16.msra.mxu0 %v1855
    %2561 = vmatmul.bf16.gmra.mxu0 %v140
    %v2562 = vpop.f32.mrf.mxu0
    %v2563 = vadd.f32 %v2550, %v2562
    %v2564 = vpop.f32.mrf.mxu0
    %2565 = vdwg.mxu0
    %2566 = vmatpush.bf16.msra.mxu0 %v1960
    %2567 = vmatpush.bf16.msra.mxu0 %v1953
    %2568 = vmatpush.bf16.msra.mxu0 %v1946
    %2569 = vmatpush.bf16.msra.mxu0 %v1939
    %2570 = vmatpush.bf16.msra.mxu0 %v1932
    %2571 = vmatpush.bf16.msra.mxu0 %v1925
    %2572 = vmatpush.bf16.msra.mxu0 %v1918
    %2573 = vmatpush.bf16.msra.mxu0 %v1911
    %2574 = vmatmul.bf16.gmra.mxu0 %v141
    %v2575 = vpop.f32.mrf.mxu0
    %v2576 = vadd.f32 %v2563, %v2575
    %v2577 = vpop.f32.mrf.mxu0
    %2578 = vdwg.mxu0
    %2579 = vmatpush.bf16.msra.mxu0 0
    %2580 = vmatpush.bf16.msra.mxu0 0
    %2581 = vmatpush.bf16.msra.mxu0 0
    %2582 = vmatpush.bf16.msra.mxu0 0
    %2583 = vmatpush.bf16.msra.mxu0 0
    %2584 = vmatpush.bf16.msra.mxu0 0
    %2585 = vmatpush.bf16.msra.mxu0 0
    %2586 = vmatpush.bf16.msra.mxu0 %v1967
    %2587 = vmatmul.bf16.gmra.mxu0 %v2317
    %v2588 = vpop.f32.mrf.mxu0
    %v2589 = vadd.f32 %v2576, %v2588
    %v2590 = vpop.f32.mrf.mxu0
    %2591 = vdwg.mxu0
    %2592 = vmatpush.bf16.msra.mxu0 %v1681
    %2593 = vmatpush.bf16.msra.mxu0 %v1674
    %2594 = vmatpush.bf16.msra.mxu0 %v1667
    %2595 = vmatpush.bf16.msra.mxu0 %v1660
    %2596 = vmatpush.bf16.msra.mxu0 %v1653
    %2597 = vmatpush.bf16.msra.mxu0 %v1646
    %2598 = vmatpush.bf16.msra.mxu0 %v1639
    %2599 = vmatpush.bf16.msra.mxu0 %v1632
    %2600 = vmatmul.bf16.gmra.mxu0 %v136
    %v2601 = vpop.f32.mrf.mxu0
    %v2602 = vadd.f32 %v540, %v2601
    %v2603 = vpop.f32.mrf.mxu0
    %2604 = vdwg.mxu0
    %2605 = vmatpush.bf16.msra.mxu0 %v1737
    %2606 = vmatpush.bf16.msra.mxu0 %v1730
    %2607 = vmatpush.bf16.msra.mxu0 %v1723
    %2608 = vmatpush.bf16.msra.mxu0 %v1716
    %2609 = vmatpush.bf16.msra.mxu0 %v1709
    %2610 = vmatpush.bf16.msra.mxu0 %v1702
    %2611 = vmatpush.bf16.msra.mxu0 %v1695
    %2612 = vmatpush.bf16.msra.mxu0 %v1688
    %2613 = vmatmul.bf16.gmra.mxu0 %v137
    %v2614 = vpop.f32.mrf.mxu0
    %v2615 = vadd.f32 %v2602, %v2614
    %v2616 = vpop.f32.mrf.mxu0
    %2617 = vdwg.mxu0
    %2618 = vmatpush.bf16.msra.mxu0 %v1793
    %2619 = vmatpush.bf16.msra.mxu0 %v1786
    %2620 = vmatpush.bf16.msra.mxu0 %v1779
    %2621 = vmatpush.bf16.msra.mxu0 %v1772
    %2622 = vmatpush.bf16.msra.mxu0 %v1765
    %2623 = vmatpush.bf16.msra.mxu0 %v1758
    %2624 = vmatpush.bf16.msra.mxu0 %v1751
    %2625 = vmatpush.bf16.msra.mxu0 %v1744
    %2626 = vmatmul.bf16.gmra.mxu0 %v138
    %v2627 = vpop.f32.mrf.mxu0
    %v2628 = vadd.f32 %v2615, %v2627
    %v2629 = vpop.f32.mrf.mxu0
    %2630 = vdwg.mxu0
    %2631 = vmatpush.bf16.msra.mxu0 %v1849
    %2632 = vmatpush.bf16.msra.mxu0 %v1842
    %2633 = vmatpush.bf16.msra.mxu0 %v1835
    %2634 = vmatpush.bf16.msra.mxu0 %v1828
    %2635 = vmatpush.bf16.msra.mxu0 %v1821
    %2636 = vmatpush.bf16.msra.mxu0 %v1814
    %2637 = vmatpush.bf16.msra.mxu0 %v1807
    %2638 = vmatpush.bf16.msra.mxu0 %v1800
    %2639 = vmatmul.bf16.gmra.mxu0 %v139
    %v2640 = vpop.f32.mrf.mxu0
    %v2641 = vadd.f32 %v2628, %v2640
    %v2642 = vpop.f32.mrf.mxu0
    %2643 = vdwg.mxu0
    %2644 = vmatpush.bf16.msra.mxu0 %v1905
    %2645 = vmatpush.bf16.msra.mxu0 %v1898
    %2646 = vmatpush.bf16.msra.mxu0 %v1891
    %2647 = vmatpush.bf16.msra.mxu0 %v1884
    %2648 = vmatpush.bf16.msra.mxu0 %v1877
    %2649 = vmatpush.bf16.msra.mxu0 %v1870
    %2650 = vmatpush.bf16.msra.mxu0 %v1863
    %2651 = vmatpush.bf16.msra.mxu0 %v1856
    %2652 = vmatmul.bf16.gmra.mxu0 %v140
    %v2653 = vpop.f32.mrf.mxu0
    %v2654 = vadd.f32 %v2641, %v2653
    %v2655 = vpop.f32.mrf.mxu0
    %2656 = vdwg.mxu0
    %2657 = vmatpush.bf16.msra.mxu0 %v1961
    %2658 = vmatpush.bf16.msra.mxu0 %v1954
    %2659 = vmatpush.bf16.msra.mxu0 %v1947
    %2660 = vmatpush.bf16.msra.mxu0 %v1940
    %2661 = vmatpush.bf16.msra.mxu0 %v1933
    %2662 = vmatpush.bf16.msra.mxu0 %v1926
    %2663 = vmatpush.bf16.msra.mxu0 %v1919
    %2664 = vmatpush.bf16.msra.mxu0 %v1912
    %2665 = vmatmul.bf16.gmra.mxu0 %v141
    %v2666 = vpop.f32.mrf.mxu0
    %v2667 = vadd.f32 %v2654, %v2666
    %v2668 = vpop.f32.mrf.mxu0
    %2669 = vdwg.mxu0
    %2670 = vmatpush.bf16.msra.mxu0 0
    %2671 = vmatpush.bf16.msra.mxu0 0
    %2672 = vmatpush.bf16.msra.mxu0 0
    %2673 = vmatpush.bf16.msra.mxu0 0
    %2674 = vmatpush.bf16.msra.mxu0 0
    %2675 = vmatpush.bf16.msra.mxu0 0
    %2676 = vmatpush.bf16.msra.mxu0 0
    %2677 = vmatpush.bf16.msra.mxu0 %v1968
    %2678 = vmatmul.bf16.gmra.mxu0 %v2317
    %v2679 = vpop.f32.mrf.mxu0
    %v2680 = vadd.f32 %v2667, %v2679
    %v2681 = vpop.f32.mrf.mxu0
    %2682 = vdwg.mxu0
    %2683 = vmatpush.bf16.msra.mxu0 %v1682
    %2684 = vmatpush.bf16.msra.mxu0 %v1675
    %2685 = vmatpush.bf16.msra.mxu0 %v1668
    %2686 = vmatpush.bf16.msra.mxu0 %v1661
    %2687 = vmatpush.bf16.msra.mxu0 %v1654
    %2688 = vmatpush.bf16.msra.mxu0 %v1647
    %2689 = vmatpush.bf16.msra.mxu0 %v1640
    %2690 = vmatpush.bf16.msra.mxu0 %v1633
    %2691 = vmatmul.bf16.gmra.mxu0 %v136
    %v2692 = vpop.f32.mrf.mxu0
    %v2693 = vadd.f32 %v541, %v2692
    %v2694 = vpop.f32.mrf.mxu0
    %2695 = vdwg.mxu0
    %2696 = vmatpush.bf16.msra.mxu0 %v1738
    %2697 = vmatpush.bf16.msra.mxu0 %v1731
    %2698 = vmatpush.bf16.msra.mxu0 %v1724
    %2699 = vmatpush.bf16.msra.mxu0 %v1717
    %2700 = vmatpush.bf16.msra.mxu0 %v1710
    %2701 = vmatpush.bf16.msra.mxu0 %v1703
    %2702 = vmatpush.bf16.msra.mxu0 %v1696
    %2703 = vmatpush.bf16.msra.mxu0 %v1689
    %2704 = vmatmul.bf16.gmra.mxu0 %v137
    %v2705 = vpop.f32.mrf.mxu0
    %v2706 = vadd.f32 %v2693, %v2705
    %v2707 = vpop.f32.mrf.mxu0
    %2708 = vdwg.mxu0
    %2709 = vmatpush.bf16.msra.mxu0 %v1794
    %2710 = vmatpush.bf16.msra.mxu0 %v1787
    %2711 = vmatpush.bf16.msra.mxu0 %v1780
    %2712 = vmatpush.bf16.msra.mxu0 %v1773
    %2713 = vmatpush.bf16.msra.mxu0 %v1766
    %2714 = vmatpush.bf16.msra.mxu0 %v1759
    %2715 = vmatpush.bf16.msra.mxu0 %v1752
    %2716 = vmatpush.bf16.msra.mxu0 %v1745
    %2717 = vmatmul.bf16.gmra.mxu0 %v138
    %v2718 = vpop.f32.mrf.mxu0
    %v2719 = vadd.f32 %v2706, %v2718
    %v2720 = vpop.f32.mrf.mxu0
    %2721 = vdwg.mxu0
    %2722 = vmatpush.bf16.msra.mxu0 %v1850
    %2723 = vmatpush.bf16.msra.mxu0 %v1843
    %2724 = vmatpush.bf16.msra.mxu0 %v1836
    %2725 = vmatpush.bf16.msra.mxu0 %v1829
    %2726 = vmatpush.bf16.msra.mxu0 %v1822
    %2727 = vmatpush.bf16.msra.mxu0 %v1815
    %2728 = vmatpush.bf16.msra.mxu0 %v1808
    %2729 = vmatpush.bf16.msra.mxu0 %v1801
    %2730 = vmatmul.bf16.gmra.mxu0 %v139
    %v2731 = vpop.f32.mrf.mxu0
    %v2732 = vadd.f32 %v2719, %v2731
    %v2733 = vpop.f32.mrf.mxu0
    %2734 = vdwg.mxu0
    %2735 = vmatpush.bf16.msra.mxu0 %v1906
    %2736 = vmatpush.bf16.msra.mxu0 %v1899
    %2737 = vmatpush.bf16.msra.mxu0 %v1892
    %2738 = vmatpush.bf16.msra.mxu0 %v1885
    %2739 = vmatpush.bf16.msra.mxu0 %v1878
    %2740 = vmatpush.bf16.msra.mxu0 %v1871
    %2741 = vmatpush.bf16.msra.mxu0 %v1864
    %2742 = vmatpush.bf16.msra.mxu0 %v1857
    %2743 = vmatmul.bf16.gmra.mxu0 %v140
    %v2744 = vpop.f32.mrf.mxu0
    %v2745 = vadd.f32 %v2732, %v2744
    %v2746 = vpop.f32.mrf.mxu0
    %2747 = vdwg.mxu0
    %2748 = vmatpush.bf16.msra.mxu0 %v1962
    %2749 = vmatpush.bf16.msra.mxu0 %v1955
    %2750 = vmatpush.bf16.msra.mxu0 %v1948
    %2751 = vmatpush.bf16.msra.mxu0 %v1941
    %2752 = vmatpush.bf16.msra.mxu0 %v1934
    %2753 = vmatpush.bf16.msra.mxu0 %v1927
    %2754 = vmatpush.bf16.msra.mxu0 %v1920
    %2755 = vmatpush.bf16.msra.mxu0 %v1913
    %2756 = vmatmul.bf16.gmra.mxu0 %v141
    %v2757 = vpop.f32.mrf.mxu0
    %v2758 = vadd.f32 %v2745, %v2757
    %v2759 = vpop.f32.mrf.mxu0
    %2760 = vdwg.mxu0
    %2761 = vmatpush.bf16.msra.mxu0 0
    %2762 = vmatpush.bf16.msra.mxu0 0
    %2763 = vmatpush.bf16.msra.mxu0 0
    %2764 = vmatpush.bf16.msra.mxu0 0
    %2765 = vmatpush.bf16.msra.mxu0 0
    %2766 = vmatpush.bf16.msra.mxu0 0
    %2767 = vmatpush.bf16.msra.mxu0 0
    %2768 = vmatpush.bf16.msra.mxu0 %v1969
    %2769 = vmatmul.bf16.gmra.mxu0 %v2317
    %v2770 = vpop.f32.mrf.mxu0
    %v2771 = vadd.f32 %v2758, %v2770
    %v2772 = vpop.f32.mrf.mxu0
    %2773 = vdwg.mxu0
    %2774 = vmatpush.bf16.msra.mxu0 %v1683
    %2775 = vmatpush.bf16.msra.mxu0 %v1676
    %2776 = vmatpush.bf16.msra.mxu0 %v1669
    %2777 = vmatpush.bf16.msra.mxu0 %v1662
    %2778 = vmatpush.bf16.msra.mxu0 %v1655
    %2779 = vmatpush.bf16.msra.mxu0 %v1648
    %2780 = vmatpush.bf16.msra.mxu0 %v1641
    %2781 = vmatpush.bf16.msra.mxu0 %v1634
    %2782 = vmatmul.bf16.gmra.mxu0 %v136
    %v2783 = vpop.f32.mrf.mxu0
    %v2784 = vadd.f32 %v542, %v2783
    %v2785 = vpop.f32.mrf.mxu0
    %2786 = vdwg.mxu0
    %2787 = vmatpush.bf16.msra.mxu0 %v1739
    %2788 = vmatpush.bf16.msra.mxu0 %v1732
    %2789 = vmatpush.bf16.msra.mxu0 %v1725
    %2790 = vmatpush.bf16.msra.mxu0 %v1718
    %2791 = vmatpush.bf16.msra.mxu0 %v1711
    %2792 = vmatpush.bf16.msra.mxu0 %v1704
    %2793 = vmatpush.bf16.msra.mxu0 %v1697
    %2794 = vmatpush.bf16.msra.mxu0 %v1690
    %2795 = vmatmul.bf16.gmra.mxu0 %v137
    %v2796 = vpop.f32.mrf.mxu0
    %v2797 = vadd.f32 %v2784, %v2796
    %v2798 = vpop.f32.mrf.mxu0
    %2799 = vdwg.mxu0
    %2800 = vmatpush.bf16.msra.mxu0 %v1795
    %2801 = vmatpush.bf16.msra.mxu0 %v1788
    %2802 = vmatpush.bf16.msra.mxu0 %v1781
    %2803 = vmatpush.bf16.msra.mxu0 %v1774
    %2804 = vmatpush.bf16.msra.mxu0 %v1767
    %2805 = vmatpush.bf16.msra.mxu0 %v1760
    %2806 = vmatpush.bf16.msra.mxu0 %v1753
    %2807 = vmatpush.bf16.msra.mxu0 %v1746
    %2808 = vmatmul.bf16.gmra.mxu0 %v138
    %v2809 = vpop.f32.mrf.mxu0
    %v2810 = vadd.f32 %v2797, %v2809
    %v2811 = vpop.f32.mrf.mxu0
    %2812 = vdwg.mxu0
    %2813 = vmatpush.bf16.msra.mxu0 %v1851
    %2814 = vmatpush.bf16.msra.mxu0 %v1844
    %2815 = vmatpush.bf16.msra.mxu0 %v1837
    %2816 = vmatpush.bf16.msra.mxu0 %v1830
    %2817 = vmatpush.bf16.msra.mxu0 %v1823
    %2818 = vmatpush.bf16.msra.mxu0 %v1816
    %2819 = vmatpush.bf16.msra.mxu0 %v1809
    %2820 = vmatpush.bf16.msra.mxu0 %v1802
    %2821 = vmatmul.bf16.gmra.mxu0 %v139
    %v2822 = vpop.f32.mrf.mxu0
    %v2823 = vadd.f32 %v2810, %v2822
    %v2824 = vpop.f32.mrf.mxu0
    %2825 = vdwg.mxu0
    %2826 = vmatpush.bf16.msra.mxu0 %v1907
    %2827 = vmatpush.bf16.msra.mxu0 %v1900
    %2828 = vmatpush.bf16.msra.mxu0 %v1893
    %2829 = vmatpush.bf16.msra.mxu0 %v1886
    %2830 = vmatpush.bf16.msra.mxu0 %v1879
    %2831 = vmatpush.bf16.msra.mxu0 %v1872
    %2832 = vmatpush.bf16.msra.mxu0 %v1865
    %2833 = vmatpush.bf16.msra.mxu0 %v1858
    %2834 = vmatmul.bf16.gmra.mxu0 %v140
    %v2835 = vpop.f32.mrf.mxu0
    %v2836 = vadd.f32 %v2823, %v2835
    %v2837 = vpop.f32.mrf.mxu0
    %2838 = vdwg.mxu0
    %2839 = vmatpush.bf16.msra.mxu0 %v1963
    %2840 = vmatpush.bf16.msra.mxu0 %v1956
    %2841 = vmatpush.bf16.msra.mxu0 %v1949
    %2842 = vmatpush.bf16.msra.mxu0 %v1942
    %2843 = vmatpush.bf16.msra.mxu0 %v1935
    %2844 = vmatpush.bf16.msra.mxu0 %v1928
    %2845 = vmatpush.bf16.msra.mxu0 %v1921
    %2846 = vmatpush.bf16.msra.mxu0 %v1914
    %2847 = vmatmul.bf16.gmra.mxu0 %v141
    %v2848 = vpop.f32.mrf.mxu0
    %v2849 = vadd.f32 %v2836, %v2848
    %v2850 = vpop.f32.mrf.mxu0
    %2851 = vdwg.mxu0
    %2852 = vmatpush.bf16.msra.mxu0 0
    %2853 = vmatpush.bf16.msra.mxu0 0
    %2854 = vmatpush.bf16.msra.mxu0 0
    %2855 = vmatpush.bf16.msra.mxu0 0
    %2856 = vmatpush.bf16.msra.mxu0 0
    %2857 = vmatpush.bf16.msra.mxu0 0
    %2858 = vmatpush.bf16.msra.mxu0 0
    %2859 = vmatpush.bf16.msra.mxu0 %v1970
    %2860 = vmatmul.bf16.gmra.mxu0 %v2317
    %v2861 = vpop.f32.mrf.mxu0
    %v2862 = vadd.f32 %v2849, %v2861
    %v2863 = vpop.f32.mrf.mxu0
    %2864 = vdwg.mxu0
    %2865 = vmatpush.bf16.msra.mxu0 %v1684
    %2866 = vmatpush.bf16.msra.mxu0 %v1677
    %2867 = vmatpush.bf16.msra.mxu0 %v1670
    %2868 = vmatpush.bf16.msra.mxu0 %v1663
    %2869 = vmatpush.bf16.msra.mxu0 %v1656
    %2870 = vmatpush.bf16.msra.mxu0 %v1649
    %2871 = vmatpush.bf16.msra.mxu0 %v1642
    %2872 = vmatpush.bf16.msra.mxu0 %v1635
    %2873 = vmatmul.bf16.gmra.mxu0 %v136
    %v2874 = vpop.f32.mrf.mxu0
    %v2875 = vadd.f32 %v543, %v2874
    %v2876 = vpop.f32.mrf.mxu0
    %2877 = vdwg.mxu0
    %2878 = vmatpush.bf16.msra.mxu0 %v1740
    %2879 = vmatpush.bf16.msra.mxu0 %v1733
    %2880 = vmatpush.bf16.msra.mxu0 %v1726
    %2881 = vmatpush.bf16.msra.mxu0 %v1719
    %2882 = vmatpush.bf16.msra.mxu0 %v1712
    %2883 = vmatpush.bf16.msra.mxu0 %v1705
    %2884 = vmatpush.bf16.msra.mxu0 %v1698
    %2885 = vmatpush.bf16.msra.mxu0 %v1691
    %2886 = vmatmul.bf16.gmra.mxu0 %v137
    %v2887 = vpop.f32.mrf.mxu0
    %v2888 = vadd.f32 %v2875, %v2887
    %v2889 = vpop.f32.mrf.mxu0
    %2890 = vdwg.mxu0
    %2891 = vmatpush.bf16.msra.mxu0 %v1796
    %2892 = vmatpush.bf16.msra.mxu0 %v1789
    %2893 = vmatpush.bf16.msra.mxu0 %v1782
    %2894 = vmatpush.bf16.msra.mxu0 %v1775
    %2895 = vmatpush.bf16.msra.mxu0 %v1768
    %2896 = vmatpush.bf16.msra.mxu0 %v1761
    %2897 = vmatpush.bf16.msra.mxu0 %v1754
    %2898 = vmatpush.bf16.msra.mxu0 %v1747
    %2899 = vmatmul.bf16.gmra.mxu0 %v138
    %v2900 = vpop.f32.mrf.mxu0
    %v2901 = vadd.f32 %v2888, %v2900
    %v2902 = vpop.f32.mrf.mxu0
    %2903 = vdwg.mxu0
    %2904 = vmatpush.bf16.msra.mxu0 %v1852
    %2905 = vmatpush.bf16.msra.mxu0 %v1845
    %2906 = vmatpush.bf16.msra.mxu0 %v1838
    %2907 = vmatpush.bf16.msra.mxu0 %v1831
    %2908 = vmatpush.bf16.msra.mxu0 %v1824
    %2909 = vmatpush.bf16.msra.mxu0 %v1817
    %2910 = vmatpush.bf16.msra.mxu0 %v1810
    %2911 = vmatpush.bf16.msra.mxu0 %v1803
    %2912 = vmatmul.bf16.gmra.mxu0 %v139
    %v2913 = vpop.f32.mrf.mxu0
    %v2914 = vadd.f32 %v2901, %v2913
    %v2915 = vpop.f32.mrf.mxu0
    %2916 = vdwg.mxu0
    %2917 = vmatpush.bf16.msra.mxu0 %v1908
    %2918 = vmatpush.bf16.msra.mxu0 %v1901
    %2919 = vmatpush.bf16.msra.mxu0 %v1894
    %2920 = vmatpush.bf16.msra.mxu0 %v1887
    %2921 = vmatpush.bf16.msra.mxu0 %v1880
    %2922 = vmatpush.bf16.msra.mxu0 %v1873
    %2923 = vmatpush.bf16.msra.mxu0 %v1866
    %2924 = vmatpush.bf16.msra.mxu0 %v1859
    %2925 = vmatmul.bf16.gmra.mxu0 %v140
    %v2926 = vpop.f32.mrf.mxu0
    %v2927 = vadd.f32 %v2914, %v2926
    %v2928 = vpop.f32.mrf.mxu0
    %2929 = vdwg.mxu0
    %2930 = vmatpush.bf16.msra.mxu0 %v1964
    %2931 = vmatpush.bf16.msra.mxu0 %v1957
    %2932 = vmatpush.bf16.msra.mxu0 %v1950
    %2933 = vmatpush.bf16.msra.mxu0 %v1943
    %2934 = vmatpush.bf16.msra.mxu0 %v1936
    %2935 = vmatpush.bf16.msra.mxu0 %v1929
    %2936 = vmatpush.bf16.msra.mxu0 %v1922
    %2937 = vmatpush.bf16.msra.mxu0 %v1915
    %2938 = vmatmul.bf16.gmra.mxu0 %v141
    %v2939 = vpop.f32.mrf.mxu0
    %v2940 = vadd.f32 %v2927, %v2939
    %v2941 = vpop.f32.mrf.mxu0
    %2942 = vdwg.mxu0
    %2943 = vmatpush.bf16.msra.mxu0 0
    %2944 = vmatpush.bf16.msra.mxu0 0
    %2945 = vmatpush.bf16.msra.mxu0 0
    %2946 = vmatpush.bf16.msra.mxu0 0
    %2947 = vmatpush.bf16.msra.mxu0 0
    %2948 = vmatpush.bf16.msra.mxu0 0
    %2949 = vmatpush.bf16.msra.mxu0 0
    %2950 = vmatpush.bf16.msra.mxu0 %v1971
    %2951 = vmatmul.bf16.gmra.mxu0 %v2317
    %v2952 = vpop.f32.mrf.mxu0
    %v2953 = vadd.f32 %v2940, %v2952
    %v2954 = vpop.f32.mrf.mxu0
    %2955 = vdwg.mxu0
    %v2956 = vmax.f32 %v2407, 0.0
    %v2957 = vmax.f32 %v2498, 0.0
    %v2958 = vmax.f32 %v2589, 0.0
    %v2959 = vmax.f32 %v2680, 0.0
    %v2960 = vmax.f32 %v2771, 0.0
    %v2961 = vmax.f32 %v2862, 0.0
    %v2962 = vmax.f32 %v2953, 0.0
    %v2963 = vpack.c.bf16 %v2956, %v2956
    %v2964 = vpack.c.bf16 %v2957, %v2957
    %v2965 = vpack.c.bf16 %v2958, %v2958
    %v2966 = vpack.c.bf16 %v2959, %v2959
    %v2967 = vpack.c.bf16 %v2960, %v2960
    %v2968 = vpack.c.bf16 %v2961, %v2961
    %v2969 = vpack.c.bf16 %v2962, %v2962
    %v2970 = vld [vmem:[#allocation8] sm:$0xff]
    %v2971 = vld [vmem:[#allocation8 + $0x8] sm:$0xff]
    %v2972 = vld [vmem:[#allocation8 + $0x10] sm:$0xff]
    %v2973 = vld [vmem:[#allocation8 + $0x18] sm:$0xf]
    %v2974 = vld [vmem:[#allocation8 + $0x1c] sm:$0xff]
    %v2975 = vld [vmem:[#allocation8 + $0x24] sm:$0xff]
    %v2976 = vld [vmem:[#allocation8 + $0x2c] sm:$0xff]
    %v2977 = vld [vmem:[#allocation8 + $0x34] sm:$0xf]
    %v2978 = vld [vmem:[#allocation8 + $0x38] sm:$0xff]
    %v2979 = vld [vmem:[#allocation8 + $0x40] sm:$0xff]
    %v2980 = vld [vmem:[#allocation8 + $0x48] sm:$0xff]
    %v2981 = vld [vmem:[#allocation8 + $0x50] sm:$0xf]
    %v2982 = vld [vmem:[#allocation8 + $0x54] sm:$0xff]
    %v2983 = vld [vmem:[#allocation8 + $0x5c] sm:$0xff]
    %v2984 = vld [vmem:[#allocation8 + $0x64] sm:$0xff]
    %v2985 = vld [vmem:[#allocation8 + $0x6c] sm:$0xf]
    %v2986 = vld [vmem:[#allocation8 + $0x70] sm:$0xff]
    %v2987 = vld [vmem:[#allocation8 + $0x78] sm:$0xff]
    %v2988 = vld [vmem:[#allocation8 + $0x80] sm:$0xff]
    %v2989 = vld [vmem:[#allocation8 + $0x88] sm:$0xf]
    %v2990 = vld [vmem:[#allocation8 + $0x8c] sm:$0xff]
    %v2991 = vld [vmem:[#allocation8 + $0x94] sm:$0xff]
    %v2992 = vld [vmem:[#allocation8 + $0x9c] sm:$0xff]
    %v2993 = vld [vmem:[#allocation8 + $0xa4] sm:$0xf]
    %v2994 = vld [vmem:[#allocation8 + $0xa8] sm:$0xff]
    %v2995 = vld [vmem:[#allocation8 + $0xb0] sm:$0xff]
    %v2996 = vld [vmem:[#allocation8 + $0xb8] sm:$0xff]
    %v2997 = vld [vmem:[#allocation8 + $0xc0] sm:$0xf]
    %v2998 = vld [vmem:[#allocation8 + $0xc4] sm:$0xff]
    %v2999 = vld [vmem:[#allocation8 + $0xcc] sm:$0xff]
    %v3000 = vld [vmem:[#allocation8 + $0xd4] sm:$0xff]
    %v3001 = vld [vmem:[#allocation8 + $0xdc] sm:$0xf]
    %v3002 = vld [vmem:[#allocation8 + $0xe0] sm:$0xff]
    %v3003 = vld [vmem:[#allocation8 + $0xe8] sm:$0xff]
    %v3004 = vld [vmem:[#allocation8 + $0xf0] sm:$0xff]
    %v3005 = vld [vmem:[#allocation8 + $0xf8] sm:$0xf]
    %v3006 = vld [vmem:[#allocation8 + $0xfc] sm:$0xff]
    %v3007 = vld [vmem:[#allocation8 + $0x104] sm:$0xff]
    %v3008 = vld [vmem:[#allocation8 + $0x10c] sm:$0xff]
    %v3009 = vld [vmem:[#allocation8 + $0x114] sm:$0xf]
    %v3010 = vld [vmem:[#allocation8 + $0x118] sm:$0xff]
    %v3011 = vld [vmem:[#allocation8 + $0x120] sm:$0xff]
    %v3012 = vld [vmem:[#allocation8 + $0x128] sm:$0xff]
    %v3013 = vld [vmem:[#allocation8 + $0x130] sm:$0xf]
    %v3014 = vld [vmem:[#allocation8 + $0x134] sm:$0xff]
    %v3015 = vld [vmem:[#allocation8 + $0x13c] sm:$0xff]
    %v3016 = vld [vmem:[#allocation8 + $0x144] sm:$0xff]
    %v3017 = vld [vmem:[#allocation8 + $0x14c] sm:$0xf]
    %v3018 = vld [vmem:[#allocation8 + $0x150] sm:$0xff]
    %v3019 = vld [vmem:[#allocation8 + $0x158] sm:$0xff]
    %v3020 = vld [vmem:[#allocation8 + $0x160] sm:$0xff]
    %v3021 = vld [vmem:[#allocation8 + $0x168] sm:$0xf]
    %v3022 = vld [vmem:[#allocation8 + $0x16c] sm:$0xff]
    %v3023 = vld [vmem:[#allocation8 + $0x174] sm:$0xff]
    %v3024 = vld [vmem:[#allocation8 + $0x17c] sm:$0xff]
    %v3025 = vld [vmem:[#allocation8 + $0x184] sm:$0xf]
    %v3026 = vld [vmem:[#allocation8 + $0x188] sm:$0xff]
    %v3027 = vld [vmem:[#allocation8 + $0x190] sm:$0xff]
    %v3028 = vld [vmem:[#allocation8 + $0x198] sm:$0xff]
    %v3029 = vld [vmem:[#allocation8 + $0x1a0] sm:$0xf]
    %v3030 = vld [vmem:[#allocation8 + $0x1a4] sm:$0xff]
    %v3031 = vld [vmem:[#allocation8 + $0x1ac] sm:$0xff]
    %v3032 = vld [vmem:[#allocation8 + $0x1b4] sm:$0xff]
    %v3033 = vld [vmem:[#allocation8 + $0x1bc] sm:$0xf]
    %v3034 = vld [vmem:[#allocation8 + $0x1c0] sm:$0xff]
    %v3035 = vld [vmem:[#allocation8 + $0x1c8] sm:$0xff]
    %v3036 = vld [vmem:[#allocation8 + $0x1d0] sm:$0xff]
    %v3037 = vld [vmem:[#allocation8 + $0x1d8] sm:$0xf]
    %v3038 = vld [vmem:[#allocation8 + $0x1dc] sm:$0xff]
    %v3039 = vld [vmem:[#allocation8 + $0x1e4] sm:$0xff]
    %v3040 = vld [vmem:[#allocation8 + $0x1ec] sm:$0xff]
    %v3041 = vld [vmem:[#allocation8 + $0x1f4] sm:$0xf]
    %v3042 = vld [vmem:[#allocation8 + $0x1f8] sm:$0xff]
    %v3043 = vld [vmem:[#allocation8 + $0x200] sm:$0xff]
    %v3044 = vld [vmem:[#allocation8 + $0x208] sm:$0xff]
    %v3045 = vld [vmem:[#allocation8 + $0x210] sm:$0xf]
    %v3046 = vld [vmem:[#allocation8 + $0x214] sm:$0xff]
    %v3047 = vld [vmem:[#allocation8 + $0x21c] sm:$0xff]
    %v3048 = vld [vmem:[#allocation8 + $0x224] sm:$0xff]
    %v3049 = vld [vmem:[#allocation8 + $0x22c] sm:$0xf]
    %v3050 = vld [vmem:[#allocation8 + $0x230] sm:$0xff]
    %v3051 = vld [vmem:[#allocation8 + $0x238] sm:$0xff]
    %v3052 = vld [vmem:[#allocation8 + $0x240] sm:$0xff]
    %v3053 = vld [vmem:[#allocation8 + $0x248] sm:$0xf]
    %v3054 = vld [vmem:[#allocation8 + $0x24c] sm:$0xff]
    %v3055 = vld [vmem:[#allocation8 + $0x254] sm:$0xff]
    %v3056 = vld [vmem:[#allocation8 + $0x25c] sm:$0xff]
    %v3057 = vld [vmem:[#allocation8 + $0x264] sm:$0xf]
    %v3058 = vld [vmem:[#allocation8 + $0x268] sm:$0xff]
    %v3059 = vld [vmem:[#allocation8 + $0x270] sm:$0xff]
    %v3060 = vld [vmem:[#allocation8 + $0x278] sm:$0xff]
    %v3061 = vld [vmem:[#allocation8 + $0x280] sm:$0xf]
    %v3062 = vld [vmem:[#allocation8 + $0x284] sm:$0xff]
    %v3063 = vld [vmem:[#allocation8 + $0x28c] sm:$0xff]
    %v3064 = vld [vmem:[#allocation8 + $0x294] sm:$0xff]
    %v3065 = vld [vmem:[#allocation8 + $0x29c] sm:$0xf]
    %v3066 = vld [vmem:[#allocation8 + $0x2a0] sm:$0xff]
    %v3067 = vld [vmem:[#allocation8 + $0x2a8] sm:$0xff]
    %v3068 = vld [vmem:[#allocation8 + $0x2b0] sm:$0xff]
    %v3069 = vld [vmem:[#allocation8 + $0x2b8] sm:$0xf]
    %v3070 = vld [vmem:[#allocation8 + $0x2bc] sm:$0xff]
    %v3071 = vld [vmem:[#allocation8 + $0x2c4] sm:$0xff]
    %v3072 = vld [vmem:[#allocation8 + $0x2cc] sm:$0xff]
    %v3073 = vld [vmem:[#allocation8 + $0x2d4] sm:$0xf]
    %v3074 = vld [vmem:[#allocation8 + $0x2d8] sm:$0xff]
    %v3075 = vld [vmem:[#allocation8 + $0x2e0] sm:$0xff]
    %v3076 = vld [vmem:[#allocation8 + $0x2e8] sm:$0xff]
    %v3077 = vld [vmem:[#allocation8 + $0x2f0] sm:$0xf]
    %v3078 = vld [vmem:[#allocation8 + $0x2f4] sm:$0xff]
    %v3079 = vld [vmem:[#allocation8 + $0x2fc] sm:$0xff]
    %v3080 = vld [vmem:[#allocation8 + $0x304] sm:$0xff]
    %v3081 = vld [vmem:[#allocation8 + $0x30c] sm:$0xf]
    %v3082 = vld [vmem:[#allocation8 + $0x310] sm:$0xff]
    %v3083 = vld [vmem:[#allocation8 + $0x318] sm:$0xff]
    %v3084 = vld [vmem:[#allocation8 + $0x320] sm:$0xff]
    %v3085 = vld [vmem:[#allocation8 + $0x328] sm:$0xf]
    %v3086 = vld [vmem:[#allocation8 + $0x32c] sm:$0xff]
    %v3087 = vld [vmem:[#allocation8 + $0x334] sm:$0xff]
    %v3088 = vld [vmem:[#allocation8 + $0x33c] sm:$0xff]
    %v3089 = vld [vmem:[#allocation8 + $0x344] sm:$0xf]
    %v3090 = vld [vmem:[#allocation8 + $0x348] sm:$0xff]
    %v3091 = vld [vmem:[#allocation8 + $0x350] sm:$0xff]
    %v3092 = vld [vmem:[#allocation8 + $0x358] sm:$0xff]
    %v3093 = vld [vmem:[#allocation8 + $0x360] sm:$0xf]
    %v3094 = vld [vmem:[#allocation8 + $0x364] sm:$0xff]
    %v3095 = vld [vmem:[#allocation8 + $0x36c] sm:$0xff]
    %v3096 = vld [vmem:[#allocation8 + $0x374] sm:$0xff]
    %v3097 = vld [vmem:[#allocation8 + $0x37c] sm:$0xf]
    %v3098 = vld [vmem:[#allocation8 + $0x380] sm:$0xff]
    %v3099 = vld [vmem:[#allocation8 + $0x388] sm:$0xff]
    %v3100 = vld [vmem:[#allocation8 + $0x390] sm:$0xff]
    %v3101 = vld [vmem:[#allocation8 + $0x398] sm:$0xf]
    %v3102 = vld [vmem:[#allocation8 + $0x39c] sm:$0xff]
    %v3103 = vld [vmem:[#allocation8 + $0x3a4] sm:$0xff]
    %v3104 = vld [vmem:[#allocation8 + $0x3ac] sm:$0xff]
    %v3105 = vld [vmem:[#allocation8 + $0x3b4] sm:$0xf]
    %v3106 = vld [vmem:[#allocation8 + $0x3b8] sm:$0xff]
    %v3107 = vld [vmem:[#allocation8 + $0x3c0] sm:$0xff]
    %v3108 = vld [vmem:[#allocation8 + $0x3c8] sm:$0xff]
    %v3109 = vld [vmem:[#allocation8 + $0x3d0] sm:$0xf]
    %v3110 = vld [vmem:[#allocation8 + $0x3d4] sm:$0xff]
    %v3111 = vld [vmem:[#allocation8 + $0x3dc] sm:$0xff]
    %v3112 = vld [vmem:[#allocation8 + $0x3e4] sm:$0xff]
    %v3113 = vld [vmem:[#allocation8 + $0x3ec] sm:$0xf]
    %v3114 = vld [vmem:[#allocation8 + $0x3f0] sm:$0xff]
    %v3115 = vld [vmem:[#allocation8 + $0x3f8] sm:$0xff]
    %v3116 = vld [vmem:[#allocation8 + $0x400] sm:$0xff]
    %v3117 = vld [vmem:[#allocation8 + $0x408] sm:$0xf]
    %v3118 = vld [vmem:[#allocation8 + $0x40c] sm:$0xff]
    %v3119 = vld [vmem:[#allocation8 + $0x414] sm:$0xff]
    %v3120 = vld [vmem:[#allocation8 + $0x41c] sm:$0xff]
    %v3121 = vld [vmem:[#allocation8 + $0x424] sm:$0xf]
    %v3122 = vld [vmem:[#allocation8 + $0x428] sm:$0xff]
    %v3123 = vld [vmem:[#allocation8 + $0x430] sm:$0xff]
    %v3124 = vld [vmem:[#allocation8 + $0x438] sm:$0xff]
    %v3125 = vld [vmem:[#allocation8 + $0x440] sm:$0xf]
    %v3126 = vld [vmem:[#allocation8 + $0x444] sm:$0xff]
    %v3127 = vld [vmem:[#allocation8 + $0x44c] sm:$0xff]
    %v3128 = vld [vmem:[#allocation8 + $0x454] sm:$0xff]
    %v3129 = vld [vmem:[#allocation8 + $0x45c] sm:$0xf]
    %v3130 = vld [vmem:[#allocation8 + $0x460] sm:$0xff]
    %v3131 = vld [vmem:[#allocation8 + $0x468] sm:$0xff]
    %v3132 = vld [vmem:[#allocation8 + $0x470] sm:$0xff]
    %v3133 = vld [vmem:[#allocation8 + $0x478] sm:$0xf]
    %v3134 = vld [vmem:[#allocation8 + $0x47c] sm:$0xff]
    %v3135 = vld [vmem:[#allocation8 + $0x484] sm:$0xff]
    %v3136 = vld [vmem:[#allocation8 + $0x48c] sm:$0xff]
    %v3137 = vld [vmem:[#allocation8 + $0x494] sm:$0xf]
    %v3138 = vld [vmem:[#allocation8 + $0x498] sm:$0xff]
    %v3139 = vld [vmem:[#allocation8 + $0x4a0] sm:$0xff]
    %v3140 = vld [vmem:[#allocation8 + $0x4a8] sm:$0xff]
    %v3141 = vld [vmem:[#allocation8 + $0x4b0] sm:$0xf]
    %v3142 = vld [vmem:[#allocation8 + $0x4b4] sm:$0xff]
    %v3143 = vld [vmem:[#allocation8 + $0x4bc] sm:$0xff]
    %v3144 = vld [vmem:[#allocation8 + $0x4c4] sm:$0xff]
    %v3145 = vld [vmem:[#allocation8 + $0x4cc] sm:$0xf]
    %v3146 = vld [vmem:[#allocation8 + $0x4d0] sm:$0xff]
    %v3147 = vld [vmem:[#allocation8 + $0x4d8] sm:$0xff]
    %v3148 = vld [vmem:[#allocation8 + $0x4e0] sm:$0xff]
    %v3149 = vld [vmem:[#allocation8 + $0x4e8] sm:$0xf]
    %v3150 = vld [vmem:[#allocation8 + $0x4ec] sm:$0xff]
    %v3151 = vld [vmem:[#allocation8 + $0x4f4] sm:$0xff]
    %v3152 = vld [vmem:[#allocation8 + $0x4fc] sm:$0xff]
    %v3153 = vld [vmem:[#allocation8 + $0x504] sm:$0xf]
    %v3154 = vld [vmem:[#allocation8 + $0x508] sm:$0xff]
    %v3155 = vld [vmem:[#allocation8 + $0x510] sm:$0xff]
    %v3156 = vld [vmem:[#allocation8 + $0x518] sm:$0xff]
    %v3157 = vld [vmem:[#allocation8 + $0x520] sm:$0xf]
    %v3158 = vld [vmem:[#allocation8 + $0x524] sm:$0xff]
    %v3159 = vld [vmem:[#allocation8 + $0x52c] sm:$0xff]
    %v3160 = vld [vmem:[#allocation8 + $0x534] sm:$0xff]
    %v3161 = vld [vmem:[#allocation8 + $0x53c] sm:$0xf]
    %v3162 = vld [vmem:[#allocation8 + $0x540] sm:$0xff]
    %v3163 = vld [vmem:[#allocation8 + $0x548] sm:$0xff]
    %v3164 = vld [vmem:[#allocation8 + $0x550] sm:$0xff]
    %v3165 = vld [vmem:[#allocation8 + $0x558] sm:$0xf]
    %v3166 = vld [vmem:[#allocation8 + $0x55c] sm:$0xff]
    %v3167 = vld [vmem:[#allocation8 + $0x564] sm:$0xff]
    %v3168 = vld [vmem:[#allocation8 + $0x56c] sm:$0xff]
    %v3169 = vld [vmem:[#allocation8 + $0x574] sm:$0xf]
    %v3170 = vld [vmem:[#allocation8 + $0x578] sm:$0xff]
    %v3171 = vld [vmem:[#allocation8 + $0x580] sm:$0xff]
    %v3172 = vld [vmem:[#allocation8 + $0x588] sm:$0xff]
    %v3173 = vld [vmem:[#allocation8 + $0x590] sm:$0xf]
    %v3174 = vld [vmem:[#allocation8 + $0x594] sm:$0xff]
    %v3175 = vld [vmem:[#allocation8 + $0x59c] sm:$0xff]
    %v3176 = vld [vmem:[#allocation8 + $0x5a4] sm:$0xff]
    %v3177 = vld [vmem:[#allocation8 + $0x5ac] sm:$0xf]
    %v3178 = vld [vmem:[#allocation8 + $0x5b0] sm:$0xff]
    %v3179 = vld [vmem:[#allocation8 + $0x5b8] sm:$0xff]
    %v3180 = vld [vmem:[#allocation8 + $0x5c0] sm:$0xff]
    %v3181 = vld [vmem:[#allocation8 + $0x5c8] sm:$0xf]
    %v3182 = vld [vmem:[#allocation8 + $0x5cc] sm:$0xff]
    %v3183 = vld [vmem:[#allocation8 + $0x5d4] sm:$0xff]
    %v3184 = vld [vmem:[#allocation8 + $0x5dc] sm:$0xff]
    %v3185 = vld [vmem:[#allocation8 + $0x5e4] sm:$0xf]
    %v3186 = vld [vmem:[#allocation8 + $0x5e8] sm:$0xff]
    %v3187 = vld [vmem:[#allocation8 + $0x5f0] sm:$0xff]
    %v3188 = vld [vmem:[#allocation8 + $0x5f8] sm:$0xff]
    %v3189 = vld [vmem:[#allocation8 + $0x600] sm:$0xf]
    %v3190 = vld [vmem:[#allocation8 + $0x604] sm:$0xff]
    %v3191 = vld [vmem:[#allocation8 + $0x60c] sm:$0xff]
    %v3192 = vld [vmem:[#allocation8 + $0x614] sm:$0xff]
    %v3193 = vld [vmem:[#allocation8 + $0x61c] sm:$0xf]
    %v3194 = vld [vmem:[#allocation8 + $0x620] sm:$0xff]
    %v3195 = vld [vmem:[#allocation8 + $0x628] sm:$0xff]
    %v3196 = vld [vmem:[#allocation8 + $0x630] sm:$0xff]
    %v3197 = vld [vmem:[#allocation8 + $0x638] sm:$0xf]
    %v3198 = vld [vmem:[#allocation8 + $0x63c] sm:$0xff]
    %v3199 = vld [vmem:[#allocation8 + $0x644] sm:$0xff]
    %v3200 = vld [vmem:[#allocation8 + $0x64c] sm:$0xff]
    %v3201 = vld [vmem:[#allocation8 + $0x654] sm:$0xf]
    %v3202 = vld [vmem:[#allocation8 + $0x658] sm:$0xff]
    %v3203 = vld [vmem:[#allocation8 + $0x660] sm:$0xff]
    %v3204 = vld [vmem:[#allocation8 + $0x668] sm:$0xff]
    %v3205 = vld [vmem:[#allocation8 + $0x670] sm:$0xf]
    %v3206 = vld [vmem:[#allocation8 + $0x674] sm:$0xff]
    %v3207 = vld [vmem:[#allocation8 + $0x67c] sm:$0xff]
    %v3208 = vld [vmem:[#allocation8 + $0x684] sm:$0xff]
    %v3209 = vld [vmem:[#allocation8 + $0x68c] sm:$0xf]
    %v3210 = vld [vmem:[#allocation8 + $0x690] sm:$0xff]
    %v3211 = vld [vmem:[#allocation8 + $0x698] sm:$0xff]
    %v3212 = vld [vmem:[#allocation8 + $0x6a0] sm:$0xff]
    %v3213 = vld [vmem:[#allocation8 + $0x6a8] sm:$0xf]
    %v3214 = vld [vmem:[#allocation8 + $0x6ac] sm:$0xff]
    %v3215 = vld [vmem:[#allocation8 + $0x6b4] sm:$0xff]
    %v3216 = vld [vmem:[#allocation8 + $0x6bc] sm:$0xff]
    %v3217 = vld [vmem:[#allocation8 + $0x6c4] sm:$0xf]
    %v3218 = vld [vmem:[#allocation8 + $0x6c8] sm:$0xff]
    %v3219 = vld [vmem:[#allocation8 + $0x6d0] sm:$0xff]
    %v3220 = vld [vmem:[#allocation8 + $0x6d8] sm:$0xff]
    %v3221 = vld [vmem:[#allocation8 + $0x6e0] sm:$0xf]
    %v3222 = vld [vmem:[#allocation8 + $0x6e4] sm:$0xff]
    %v3223 = vld [vmem:[#allocation8 + $0x6ec] sm:$0xff]
    %v3224 = vld [vmem:[#allocation8 + $0x6f4] sm:$0xff]
    %v3225 = vld [vmem:[#allocation8 + $0x6fc] sm:$0xf]
    %v3226 = vld [vmem:[#allocation8 + $0x700] sm:$0xff]
    %v3227 = vld [vmem:[#allocation8 + $0x708] sm:$0xff]
    %v3228 = vld [vmem:[#allocation8 + $0x710] sm:$0xff]
    %v3229 = vld [vmem:[#allocation8 + $0x718] sm:$0xf]
    %v3230 = vld [vmem:[#allocation8 + $0x71c] sm:$0xff]
    %v3231 = vld [vmem:[#allocation8 + $0x724] sm:$0xff]
    %v3232 = vld [vmem:[#allocation8 + $0x72c] sm:$0xff]
    %v3233 = vld [vmem:[#allocation8 + $0x734] sm:$0xf]
    %v3234 = vld [vmem:[#allocation8 + $0x738] sm:$0xff]
    %v3235 = vld [vmem:[#allocation8 + $0x740] sm:$0xff]
    %v3236 = vld [vmem:[#allocation8 + $0x748] sm:$0xff]
    %v3237 = vld [vmem:[#allocation8 + $0x750] sm:$0xf]
    %v3238 = vld [vmem:[#allocation8 + $0x754] sm:$0xff]
    %v3239 = vld [vmem:[#allocation8 + $0x75c] sm:$0xff]
    %v3240 = vld [vmem:[#allocation8 + $0x764] sm:$0xff]
    %v3241 = vld [vmem:[#allocation8 + $0x76c] sm:$0xf]
    %v3242 = vld [vmem:[#allocation8 + $0x770] sm:$0xff]
    %v3243 = vld [vmem:[#allocation8 + $0x778] sm:$0xff]
    %v3244 = vld [vmem:[#allocation8 + $0x780] sm:$0xff]
    %v3245 = vld [vmem:[#allocation8 + $0x788] sm:$0xf]
    %v3246 = vld [vmem:[#allocation8 + $0x78c] sm:$0xff]
    %v3247 = vld [vmem:[#allocation8 + $0x794] sm:$0xff]
    %v3248 = vld [vmem:[#allocation8 + $0x79c] sm:$0xff]
    %v3249 = vld [vmem:[#allocation8 + $0x7a4] sm:$0xf]
    %v3250 = vld [vmem:[#allocation8 + $0x7a8] sm:$0xff]
    %v3251 = vld [vmem:[#allocation8 + $0x7b0] sm:$0xff]
    %v3252 = vld [vmem:[#allocation8 + $0x7b8] sm:$0xff]
    %v3253 = vld [vmem:[#allocation8 + $0x7c0] sm:$0xf]
    %v3254 = vld [vmem:[#allocation8 + $0x7c4] sm:$0xff]
    %v3255 = vld [vmem:[#allocation8 + $0x7cc] sm:$0xff]
    %v3256 = vld [vmem:[#allocation8 + $0x7d4] sm:$0xff]
    %v3257 = vld [vmem:[#allocation8 + $0x7dc] sm:$0xf]
    %v3258 = vld [vmem:[#allocation8 + $0x7e0] sm:$0xff]
    %v3259 = vld [vmem:[#allocation8 + $0x7e8] sm:$0xff]
    %v3260 = vld [vmem:[#allocation8 + $0x7f0] sm:$0xff]
    %v3261 = vld [vmem:[#allocation8 + $0x7f8] sm:$0xf]
    %v3262 = vld [vmem:[#allocation8 + $0x7fc] sm:$0xff]
    %v3263 = vld [vmem:[#allocation8 + $0x804] sm:$0xff]
    %v3264 = vld [vmem:[#allocation8 + $0x80c] sm:$0xff]
    %v3265 = vld [vmem:[#allocation8 + $0x814] sm:$0xf]
    %v3266 = vld [vmem:[#allocation8 + $0x818] sm:$0xff]
    %v3267 = vld [vmem:[#allocation8 + $0x820] sm:$0xff]
    %v3268 = vld [vmem:[#allocation8 + $0x828] sm:$0xff]
    %v3269 = vld [vmem:[#allocation8 + $0x830] sm:$0xf]
    %v3270 = vld [vmem:[#allocation8 + $0x834] sm:$0xff]
    %v3271 = vld [vmem:[#allocation8 + $0x83c] sm:$0xff]
    %v3272 = vld [vmem:[#allocation8 + $0x844] sm:$0xff]
    %v3273 = vld [vmem:[#allocation8 + $0x84c] sm:$0xf]
    %v3274 = vld [vmem:[#allocation8 + $0x850] sm:$0xff]
    %v3275 = vld [vmem:[#allocation8 + $0x858] sm:$0xff]
    %v3276 = vld [vmem:[#allocation8 + $0x860] sm:$0xff]
    %v3277 = vld [vmem:[#allocation8 + $0x868] sm:$0xf]
    %v3278 = vld [vmem:[#allocation8 + $0x86c] sm:$0xff]
    %v3279 = vld [vmem:[#allocation8 + $0x874] sm:$0xff]
    %v3280 = vld [vmem:[#allocation8 + $0x87c] sm:$0xff]
    %v3281 = vld [vmem:[#allocation8 + $0x884] sm:$0xf]
    %v3282 = vld [vmem:[#allocation8 + $0x888] sm:$0xff]
    %v3283 = vld [vmem:[#allocation8 + $0x890] sm:$0xff]
    %v3284 = vld [vmem:[#allocation8 + $0x898] sm:$0xff]
    %v3285 = vld [vmem:[#allocation8 + $0x8a0] sm:$0xf]
    %v3286 = vld [vmem:[#allocation8 + $0x8a4] sm:$0xff]
    %v3287 = vld [vmem:[#allocation8 + $0x8ac] sm:$0xff]
    %v3288 = vld [vmem:[#allocation8 + $0x8b4] sm:$0xff]
    %v3289 = vld [vmem:[#allocation8 + $0x8bc] sm:$0xf]
    %v3290 = vld [vmem:[#allocation8 + $0x8c0] sm:$0xff]
    %v3291 = vld [vmem:[#allocation8 + $0x8c8] sm:$0xff]
    %v3292 = vld [vmem:[#allocation8 + $0x8d0] sm:$0xff]
    %v3293 = vld [vmem:[#allocation8 + $0x8d8] sm:$0xf]
    %v3294 = vld [vmem:[#allocation8 + $0x8dc] sm:$0xff]
    %v3295 = vld [vmem:[#allocation8 + $0x8e4] sm:$0xff]
    %v3296 = vld [vmem:[#allocation8 + $0x8ec] sm:$0xff]
    %v3297 = vld [vmem:[#allocation8 + $0x8f4] sm:$0xf]
    %v3298 = vld [vmem:[#allocation8 + $0x8f8] sm:$0xff]
    %v3299 = vld [vmem:[#allocation8 + $0x900] sm:$0xff]
    %v3300 = vld [vmem:[#allocation8 + $0x908] sm:$0xff]
    %v3301 = vld [vmem:[#allocation8 + $0x910] sm:$0xf]
    %v3302 = vld [vmem:[#allocation8 + $0x914] sm:$0xff]
    %v3303 = vld [vmem:[#allocation8 + $0x91c] sm:$0xff]
    %v3304 = vld [vmem:[#allocation8 + $0x924] sm:$0xff]
    %v3305 = vld [vmem:[#allocation8 + $0x92c] sm:$0xf]
    %v3306 = vld [vmem:[#allocation8 + $0x930] sm:$0xff]
    %v3307 = vld [vmem:[#allocation8 + $0x938] sm:$0xff]
    %v3308 = vld [vmem:[#allocation8 + $0x940] sm:$0xff]
    %v3309 = vld [vmem:[#allocation8 + $0x948] sm:$0xf]
    %v3310 = vld [vmem:[#allocation8 + $0x94c] sm:$0xff]
    %v3311 = vld [vmem:[#allocation8 + $0x954] sm:$0xff]
    %v3312 = vld [vmem:[#allocation8 + $0x95c] sm:$0xff]
    %v3313 = vld [vmem:[#allocation8 + $0x964] sm:$0xf]
    %v3314 = vld [vmem:[#allocation8 + $0x968] sm:$0xff]
    %v3315 = vld [vmem:[#allocation8 + $0x970] sm:$0xff]
    %v3316 = vld [vmem:[#allocation8 + $0x978] sm:$0xff]
    %v3317 = vld [vmem:[#allocation8 + $0x980] sm:$0xf]
    %v3318 = vld [vmem:[#allocation8 + $0x984] sm:$0xff]
    %v3319 = vld [vmem:[#allocation8 + $0x98c] sm:$0xff]
    %v3320 = vld [vmem:[#allocation8 + $0x994] sm:$0xff]
    %v3321 = vld [vmem:[#allocation8 + $0x99c] sm:$0xf]
    %v3322 = vld [vmem:[#allocation8 + $0x9a0] sm:$0xff]
    %v3323 = vld [vmem:[#allocation8 + $0x9a8] sm:$0xff]
    %v3324 = vld [vmem:[#allocation8 + $0x9b0] sm:$0xff]
    %v3325 = vld [vmem:[#allocation8 + $0x9b8] sm:$0xf]
    %v3326 = vld [vmem:[#allocation8 + $0x9bc] sm:$0xff]
    %v3327 = vld [vmem:[#allocation8 + $0x9c4] sm:$0xff]
    %v3328 = vld [vmem:[#allocation8 + $0x9cc] sm:$0xff]
    %v3329 = vld [vmem:[#allocation8 + $0x9d4] sm:$0xf]
    %v3330 = vld [vmem:[#allocation8 + $0x9d8] sm:$0xff]
    %v3331 = vld [vmem:[#allocation8 + $0x9e0] sm:$0xff]
    %v3332 = vld [vmem:[#allocation8 + $0x9e8] sm:$0xff]
    %v3333 = vld [vmem:[#allocation8 + $0x9f0] sm:$0xf]
    %v3334 = vld [vmem:[#allocation8 + $0x9f4] sm:$0xff]
    %v3335 = vld [vmem:[#allocation8 + $0x9fc] sm:$0xff]
    %v3336 = vld [vmem:[#allocation8 + $0xa04] sm:$0xff]
    %v3337 = vld [vmem:[#allocation8 + $0xa0c] sm:$0xf]
    %v3338 = vld [vmem:[#allocation8 + $0xa10] sm:$0xff]
    %v3339 = vld [vmem:[#allocation8 + $0xa18] sm:$0xff]
    %v3340 = vld [vmem:[#allocation8 + $0xa20] sm:$0xff]
    %v3341 = vld [vmem:[#allocation8 + $0xa28] sm:$0xf]
    %v3342 = vld [vmem:[#allocation8 + $0xa2c] sm:$0xff]
    %v3343 = vld [vmem:[#allocation8 + $0xa34] sm:$0xff]
    %v3344 = vld [vmem:[#allocation8 + $0xa3c] sm:$0xff]
    %v3345 = vld [vmem:[#allocation8 + $0xa44] sm:$0xf]
    %v3346 = vld [vmem:[#allocation8 + $0xa48] sm:$0xff]
    %v3347 = vld [vmem:[#allocation8 + $0xa50] sm:$0xff]
    %v3348 = vld [vmem:[#allocation8 + $0xa58] sm:$0xff]
    %v3349 = vld [vmem:[#allocation8 + $0xa60] sm:$0xf]
    %v3350 = vld [vmem:[#allocation8 + $0xa64] sm:$0xff]
    %v3351 = vld [vmem:[#allocation8 + $0xa6c] sm:$0xff]
    %v3352 = vld [vmem:[#allocation8 + $0xa74] sm:$0xff]
    %v3353 = vld [vmem:[#allocation8 + $0xa7c] sm:$0xf]
    %v3354 = vld [vmem:[#allocation8 + $0xa80] sm:$0xff]
    %v3355 = vld [vmem:[#allocation8 + $0xa88] sm:$0xff]
    %v3356 = vld [vmem:[#allocation8 + $0xa90] sm:$0xff]
    %v3357 = vld [vmem:[#allocation8 + $0xa98] sm:$0xf]
    %v3358 = vld [vmem:[#allocation8 + $0xa9c] sm:$0xff]
    %v3359 = vld [vmem:[#allocation8 + $0xaa4] sm:$0xff]
    %v3360 = vld [vmem:[#allocation8 + $0xaac] sm:$0xff]
    %v3361 = vld [vmem:[#allocation8 + $0xab4] sm:$0xf]
    %v3362 = vld [vmem:[#allocation8 + $0xab8] sm:$0xff]
    %v3363 = vld [vmem:[#allocation8 + $0xac0] sm:$0xff]
    %v3364 = vld [vmem:[#allocation8 + $0xac8] sm:$0xff]
    %v3365 = vld [vmem:[#allocation8 + $0xad0] sm:$0xf]
    %v3366 = vld [vmem:[#allocation8 + $0xad4] sm:$0xff]
    %v3367 = vld [vmem:[#allocation8 + $0xadc] sm:$0xff]
    %v3368 = vld [vmem:[#allocation8 + $0xae4] sm:$0xff]
    %v3369 = vld [vmem:[#allocation8 + $0xaec] sm:$0xf]
    %v3370 = vld [vmem:[#allocation8 + $0xaf0] sm:$0xff]
    %v3371 = vld [vmem:[#allocation8 + $0xaf8] sm:$0xff]
    %v3372 = vld [vmem:[#allocation8 + $0xb00] sm:$0xff]
    %v3373 = vld [vmem:[#allocation8 + $0xb08] sm:$0xf]
    %v3374 = vld [vmem:[#allocation8 + $0xb0c] sm:$0xff]
    %v3375 = vld [vmem:[#allocation8 + $0xb14] sm:$0xff]
    %v3376 = vld [vmem:[#allocation8 + $0xb1c] sm:$0xff]
    %v3377 = vld [vmem:[#allocation8 + $0xb24] sm:$0xf]
    %v3378 = vld [vmem:[#allocation8 + $0xb28] sm:$0xff]
    %v3379 = vld [vmem:[#allocation8 + $0xb30] sm:$0xff]
    %v3380 = vld [vmem:[#allocation8 + $0xb38] sm:$0xff]
    %v3381 = vld [vmem:[#allocation8 + $0xb40] sm:$0xf]
    %v3382 = vld [vmem:[#allocation8 + $0xb44] sm:$0xff]
    %v3383 = vld [vmem:[#allocation8 + $0xb4c] sm:$0xff]
    %v3384 = vld [vmem:[#allocation8 + $0xb54] sm:$0xff]
    %v3385 = vld [vmem:[#allocation8 + $0xb5c] sm:$0xf]
    %v3386 = vld [vmem:[#allocation8 + $0xb60] sm:$0xff]
    %v3387 = vld [vmem:[#allocation8 + $0xb68] sm:$0xff]
    %v3388 = vld [vmem:[#allocation8 + $0xb70] sm:$0xff]
    %v3389 = vld [vmem:[#allocation8 + $0xb78] sm:$0xf]
    %v3390 = vld [vmem:[#allocation8 + $0xb7c] sm:$0xff]
    %v3391 = vld [vmem:[#allocation8 + $0xb84] sm:$0xff]
    %v3392 = vld [vmem:[#allocation8 + $0xb8c] sm:$0xff]
    %v3393 = vld [vmem:[#allocation8 + $0xb94] sm:$0xf]
    %v3394 = vld [vmem:[#allocation8 + $0xb98] sm:$0xff]
    %v3395 = vld [vmem:[#allocation8 + $0xba0] sm:$0xff]
    %v3396 = vld [vmem:[#allocation8 + $0xba8] sm:$0xff]
    %v3397 = vld [vmem:[#allocation8 + $0xbb0] sm:$0xf]
    %v3398 = vld [vmem:[#allocation8 + $0xbb4] sm:$0xff]
    %v3399 = vld [vmem:[#allocation8 + $0xbbc] sm:$0xff]
    %v3400 = vld [vmem:[#allocation8 + $0xbc4] sm:$0xff]
    %v3401 = vld [vmem:[#allocation8 + $0xbcc] sm:$0xf]
    %v3402 = vld [vmem:[#allocation8 + $0xbd0] sm:$0xff]
    %v3403 = vld [vmem:[#allocation8 + $0xbd8] sm:$0xff]
    %v3404 = vld [vmem:[#allocation8 + $0xbe0] sm:$0xff]
    %v3405 = vld [vmem:[#allocation8 + $0xbe8] sm:$0xf]
    %v3406 = vld [vmem:[#allocation8 + $0xbec] sm:$0xff]
    %v3407 = vld [vmem:[#allocation8 + $0xbf4] sm:$0xff]
    %v3408 = vld [vmem:[#allocation8 + $0xbfc] sm:$0xff]
    %v3409 = vld [vmem:[#allocation8 + $0xc04] sm:$0xf]
    %v3410 = vld [vmem:[#allocation8 + $0xc08] sm:$0xff]
    %v3411 = vld [vmem:[#allocation8 + $0xc10] sm:$0xff]
    %v3412 = vld [vmem:[#allocation8 + $0xc18] sm:$0xff]
    %v3413 = vld [vmem:[#allocation8 + $0xc20] sm:$0xf]
    %v3414 = vld [vmem:[#allocation8 + $0xc24] sm:$0xff]
    %v3415 = vld [vmem:[#allocation8 + $0xc2c] sm:$0xff]
    %v3416 = vld [vmem:[#allocation8 + $0xc34] sm:$0xff]
    %v3417 = vld [vmem:[#allocation8 + $0xc3c] sm:$0xf]
    %v3418 = vld [vmem:[#allocation10] sm:$0xff]
    %v3420 = vperm.slane %v3418, 0
    %v3421 = vperm.slane %v3418, 1
    %v3422 = vperm.slane %v3418, 2
    %v3423 = vperm.slane %v3418, 3
    %v3424 = vperm.slane %v3418, 4
    %v3425 = vperm.slane %v3418, 5
    %v3426 = vperm.slane %v3418, 6
    %v3882 = vunpack.c.l.b16 %v2970
    %v3883 = vunpack.c.h.b16 %v2970
    %v3884 = vunpack.c.l.b16 %v2971
    %v3885 = vunpack.c.h.b16 %v2971
    %v3886 = vunpack.c.l.b16 %v2972
    %v3887 = vunpack.c.h.b16 %v2972
    %v3888 = vunpack.c.l.b16 %v2973
    %v3889 = vunpack.c.l.b16 %v2974
    %v3890 = vunpack.c.h.b16 %v2974
    %v3891 = vunpack.c.l.b16 %v2975
    %v3892 = vunpack.c.h.b16 %v2975
    %v3893 = vunpack.c.l.b16 %v2976
    %v3894 = vunpack.c.h.b16 %v2976
    %v3895 = vunpack.c.l.b16 %v2977
    %v3896 = vunpack.c.l.b16 %v2978
    %v3897 = vunpack.c.h.b16 %v2978
    %v3898 = vunpack.c.l.b16 %v2979
    %v3899 = vunpack.c.h.b16 %v2979
    %v3900 = vunpack.c.l.b16 %v2980
    %v3901 = vunpack.c.h.b16 %v2980
    %v3902 = vunpack.c.l.b16 %v2981
    %v3903 = vunpack.c.l.b16 %v2982
    %v3904 = vunpack.c.h.b16 %v2982
    %v3905 = vunpack.c.l.b16 %v2983
    %v3906 = vunpack.c.h.b16 %v2983
    %v3907 = vunpack.c.l.b16 %v2984
    %v3908 = vunpack.c.h.b16 %v2984
    %v3909 = vunpack.c.l.b16 %v2985
    %v3910 = vunpack.c.l.b16 %v2986
    %v3911 = vunpack.c.h.b16 %v2986
    %v3912 = vunpack.c.l.b16 %v2987
    %v3913 = vunpack.c.h.b16 %v2987
    %v3914 = vunpack.c.l.b16 %v2988
    %v3915 = vunpack.c.h.b16 %v2988
    %v3916 = vunpack.c.l.b16 %v2989
    %v3917 = vunpack.c.l.b16 %v2990
    %v3918 = vunpack.c.h.b16 %v2990
    %v3919 = vunpack.c.l.b16 %v2991
    %v3920 = vunpack.c.h.b16 %v2991
    %v3921 = vunpack.c.l.b16 %v2992
    %v3922 = vunpack.c.h.b16 %v2992
    %v3923 = vunpack.c.l.b16 %v2993
    %v3924 = vunpack.c.l.b16 %v2994
    %v3925 = vunpack.c.h.b16 %v2994
    %v3926 = vunpack.c.l.b16 %v2995
    %v3927 = vunpack.c.h.b16 %v2995
    %v3928 = vunpack.c.l.b16 %v2996
    %v3929 = vunpack.c.h.b16 %v2996
    %v3930 = vunpack.c.l.b16 %v2997
    %v3931 = vunpack.c.l.b16 %v2998
    %v3932 = vunpack.c.h.b16 %v2998
    %v3933 = vunpack.c.l.b16 %v2999
    %v3934 = vunpack.c.h.b16 %v2999
    %v3935 = vunpack.c.l.b16 %v3000
    %v3936 = vunpack.c.h.b16 %v3000
    %v3937 = vunpack.c.l.b16 %v3001
    %v3938 = vunpack.c.l.b16 %v3002
    %v3939 = vunpack.c.h.b16 %v3002
    %v3940 = vunpack.c.l.b16 %v3003
    %v3941 = vunpack.c.h.b16 %v3003
    %v3942 = vunpack.c.l.b16 %v3004
    %v3943 = vunpack.c.h.b16 %v3004
    %v3944 = vunpack.c.l.b16 %v3005
    %v3945 = vunpack.c.l.b16 %v3006
    %v3946 = vunpack.c.h.b16 %v3006
    %v3947 = vunpack.c.l.b16 %v3007
    %v3948 = vunpack.c.h.b16 %v3007
    %v3949 = vunpack.c.l.b16 %v3008
    %v3950 = vunpack.c.h.b16 %v3008
    %v3951 = vunpack.c.l.b16 %v3009
    %v3952 = vunpack.c.l.b16 %v3010
    %v3953 = vunpack.c.h.b16 %v3010
    %v3954 = vunpack.c.l.b16 %v3011
    %v3955 = vunpack.c.h.b16 %v3011
    %v3956 = vunpack.c.l.b16 %v3012
    %v3957 = vunpack.c.h.b16 %v3012
    %v3958 = vunpack.c.l.b16 %v3013
    %v3959 = vunpack.c.l.b16 %v3014
    %v3960 = vunpack.c.h.b16 %v3014
    %v3961 = vunpack.c.l.b16 %v3015
    %v3962 = vunpack.c.h.b16 %v3015
    %v3963 = vunpack.c.l.b16 %v3016
    %v3964 = vunpack.c.h.b16 %v3016
    %v3965 = vunpack.c.l.b16 %v3017
    %v3966 = vunpack.c.l.b16 %v3018
    %v3967 = vunpack.c.h.b16 %v3018
    %v3968 = vunpack.c.l.b16 %v3019
    %v3969 = vunpack.c.h.b16 %v3019
    %v3970 = vunpack.c.l.b16 %v3020
    %v3971 = vunpack.c.h.b16 %v3020
    %v3972 = vunpack.c.l.b16 %v3021
    %v3973 = vunpack.c.l.b16 %v3022
    %v3974 = vunpack.c.h.b16 %v3022
    %v3975 = vunpack.c.l.b16 %v3023
    %v3976 = vunpack.c.h.b16 %v3023
    %v3977 = vunpack.c.l.b16 %v3024
    %v3978 = vunpack.c.h.b16 %v3024
    %v3979 = vunpack.c.l.b16 %v3025
    %v3980 = vunpack.c.l.b16 %v3026
    %v3981 = vunpack.c.h.b16 %v3026
    %v3982 = vunpack.c.l.b16 %v3027
    %v3983 = vunpack.c.h.b16 %v3027
    %v3984 = vunpack.c.l.b16 %v3028
    %v3985 = vunpack.c.h.b16 %v3028
    %v3986 = vunpack.c.l.b16 %v3029
    %v3987 = vunpack.c.l.b16 %v3030
    %v3988 = vunpack.c.h.b16 %v3030
    %v3989 = vunpack.c.l.b16 %v3031
    %v3990 = vunpack.c.h.b16 %v3031
    %v3991 = vunpack.c.l.b16 %v3032
    %v3992 = vunpack.c.h.b16 %v3032
    %v3993 = vunpack.c.l.b16 %v3033
    %v3994 = vunpack.c.l.b16 %v3034
    %v3995 = vunpack.c.h.b16 %v3034
    %v3996 = vunpack.c.l.b16 %v3035
    %v3997 = vunpack.c.h.b16 %v3035
    %v3998 = vunpack.c.l.b16 %v3036
    %v3999 = vunpack.c.h.b16 %v3036
    %v4000 = vunpack.c.l.b16 %v3037
    %v4001 = vunpack.c.l.b16 %v3038
    %v4002 = vunpack.c.h.b16 %v3038
    %v4003 = vunpack.c.l.b16 %v3039
    %v4004 = vunpack.c.h.b16 %v3039
    %v4005 = vunpack.c.l.b16 %v3040
    %v4006 = vunpack.c.h.b16 %v3040
    %v4007 = vunpack.c.l.b16 %v3041
    %v4008 = vunpack.c.l.b16 %v3042
    %v4009 = vunpack.c.h.b16 %v3042
    %v4010 = vunpack.c.l.b16 %v3043
    %v4011 = vunpack.c.h.b16 %v3043
    %v4012 = vunpack.c.l.b16 %v3044
    %v4013 = vunpack.c.h.b16 %v3044
    %v4014 = vunpack.c.l.b16 %v3045
    %v4015 = vunpack.c.l.b16 %v3046
    %v4016 = vunpack.c.h.b16 %v3046
    %v4017 = vunpack.c.l.b16 %v3047
    %v4018 = vunpack.c.h.b16 %v3047
    %v4019 = vunpack.c.l.b16 %v3048
    %v4020 = vunpack.c.h.b16 %v3048
    %v4021 = vunpack.c.l.b16 %v3049
    %v4022 = vunpack.c.l.b16 %v3050
    %v4023 = vunpack.c.h.b16 %v3050
    %v4024 = vunpack.c.l.b16 %v3051
    %v4025 = vunpack.c.h.b16 %v3051
    %v4026 = vunpack.c.l.b16 %v3052
    %v4027 = vunpack.c.h.b16 %v3052
    %v4028 = vunpack.c.l.b16 %v3053
    %v4029 = vunpack.c.l.b16 %v3054
    %v4030 = vunpack.c.h.b16 %v3054
    %v4031 = vunpack.c.l.b16 %v3055
    %v4032 = vunpack.c.h.b16 %v3055
    %v4033 = vunpack.c.l.b16 %v3056
    %v4034 = vunpack.c.h.b16 %v3056
    %v4035 = vunpack.c.l.b16 %v3057
    %v4036 = vunpack.c.l.b16 %v3058
    %v4037 = vunpack.c.h.b16 %v3058
    %v4038 = vunpack.c.l.b16 %v3059
    %v4039 = vunpack.c.h.b16 %v3059
    %v4040 = vunpack.c.l.b16 %v3060
    %v4041 = vunpack.c.h.b16 %v3060
    %v4042 = vunpack.c.l.b16 %v3061
    %v4043 = vunpack.c.l.b16 %v3062
    %v4044 = vunpack.c.h.b16 %v3062
    %v4045 = vunpack.c.l.b16 %v3063
    %v4046 = vunpack.c.h.b16 %v3063
    %v4047 = vunpack.c.l.b16 %v3064
    %v4048 = vunpack.c.h.b16 %v3064
    %v4049 = vunpack.c.l.b16 %v3065
    %v4050 = vunpack.c.l.b16 %v3066
    %v4051 = vunpack.c.h.b16 %v3066
    %v4052 = vunpack.c.l.b16 %v3067
    %v4053 = vunpack.c.h.b16 %v3067
    %v4054 = vunpack.c.l.b16 %v3068
    %v4055 = vunpack.c.h.b16 %v3068
    %v4056 = vunpack.c.l.b16 %v3069
    %v4057 = vunpack.c.l.b16 %v3070
    %v4058 = vunpack.c.h.b16 %v3070
    %v4059 = vunpack.c.l.b16 %v3071
    %v4060 = vunpack.c.h.b16 %v3071
    %v4061 = vunpack.c.l.b16 %v3072
    %v4062 = vunpack.c.h.b16 %v3072
    %v4063 = vunpack.c.l.b16 %v3073
    %v4064 = vunpack.c.l.b16 %v3074
    %v4065 = vunpack.c.h.b16 %v3074
    %v4066 = vunpack.c.l.b16 %v3075
    %v4067 = vunpack.c.h.b16 %v3075
    %v4068 = vunpack.c.l.b16 %v3076
    %v4069 = vunpack.c.h.b16 %v3076
    %v4070 = vunpack.c.l.b16 %v3077
    %v4071 = vunpack.c.l.b16 %v3078
    %v4072 = vunpack.c.h.b16 %v3078
    %v4073 = vunpack.c.l.b16 %v3079
    %v4074 = vunpack.c.h.b16 %v3079
    %v4075 = vunpack.c.l.b16 %v3080
    %v4076 = vunpack.c.h.b16 %v3080
    %v4077 = vunpack.c.l.b16 %v3081
    %v4078 = vunpack.c.l.b16 %v3082
    %v4079 = vunpack.c.h.b16 %v3082
    %v4080 = vunpack.c.l.b16 %v3083
    %v4081 = vunpack.c.h.b16 %v3083
    %v4082 = vunpack.c.l.b16 %v3084
    %v4083 = vunpack.c.h.b16 %v3084
    %v4084 = vunpack.c.l.b16 %v3085
    %v4085 = vunpack.c.l.b16 %v3086
    %v4086 = vunpack.c.h.b16 %v3086
    %v4087 = vunpack.c.l.b16 %v3087
    %v4088 = vunpack.c.h.b16 %v3087
    %v4089 = vunpack.c.l.b16 %v3088
    %v4090 = vunpack.c.h.b16 %v3088
    %v4091 = vunpack.c.l.b16 %v3089
    %v4092 = vunpack.c.l.b16 %v3090
    %v4093 = vunpack.c.h.b16 %v3090
    %v4094 = vunpack.c.l.b16 %v3091
    %v4095 = vunpack.c.h.b16 %v3091
    %v4096 = vunpack.c.l.b16 %v3092
    %v4097 = vunpack.c.h.b16 %v3092
    %v4098 = vunpack.c.l.b16 %v3093
    %v4099 = vunpack.c.l.b16 %v3094
    %v4100 = vunpack.c.h.b16 %v3094
    %v4101 = vunpack.c.l.b16 %v3095
    %v4102 = vunpack.c.h.b16 %v3095
    %v4103 = vunpack.c.l.b16 %v3096
    %v4104 = vunpack.c.h.b16 %v3096
    %v4105 = vunpack.c.l.b16 %v3097
    %v4106 = vunpack.c.l.b16 %v3098
    %v4107 = vunpack.c.h.b16 %v3098
    %v4108 = vunpack.c.l.b16 %v3099
    %v4109 = vunpack.c.h.b16 %v3099
    %v4110 = vunpack.c.l.b16 %v3100
    %v4111 = vunpack.c.h.b16 %v3100
    %v4112 = vunpack.c.l.b16 %v3101
    %v4113 = vunpack.c.l.b16 %v3102
    %v4114 = vunpack.c.h.b16 %v3102
    %v4115 = vunpack.c.l.b16 %v3103
    %v4116 = vunpack.c.h.b16 %v3103
    %v4117 = vunpack.c.l.b16 %v3104
    %v4118 = vunpack.c.h.b16 %v3104
    %v4119 = vunpack.c.l.b16 %v3105
    %v4120 = vunpack.c.l.b16 %v3106
    %v4121 = vunpack.c.h.b16 %v3106
    %v4122 = vunpack.c.l.b16 %v3107
    %v4123 = vunpack.c.h.b16 %v3107
    %v4124 = vunpack.c.l.b16 %v3108
    %v4125 = vunpack.c.h.b16 %v3108
    %v4126 = vunpack.c.l.b16 %v3109
    %v4127 = vunpack.c.l.b16 %v3110
    %v4128 = vunpack.c.h.b16 %v3110
    %v4129 = vunpack.c.l.b16 %v3111
    %v4130 = vunpack.c.h.b16 %v3111
    %v4131 = vunpack.c.l.b16 %v3112
    %v4132 = vunpack.c.h.b16 %v3112
    %v4133 = vunpack.c.l.b16 %v3113
    %v4134 = vunpack.c.l.b16 %v3114
    %v4135 = vunpack.c.h.b16 %v3114
    %v4136 = vunpack.c.l.b16 %v3115
    %v4137 = vunpack.c.h.b16 %v3115
    %v4138 = vunpack.c.l.b16 %v3116
    %v4139 = vunpack.c.h.b16 %v3116
    %v4140 = vunpack.c.l.b16 %v3117
    %v4141 = vunpack.c.l.b16 %v3118
    %v4142 = vunpack.c.h.b16 %v3118
    %v4143 = vunpack.c.l.b16 %v3119
    %v4144 = vunpack.c.h.b16 %v3119
    %v4145 = vunpack.c.l.b16 %v3120
    %v4146 = vunpack.c.h.b16 %v3120
    %v4147 = vunpack.c.l.b16 %v3121
    %v4148 = vunpack.c.l.b16 %v3122
    %v4149 = vunpack.c.h.b16 %v3122
    %v4150 = vunpack.c.l.b16 %v3123
    %v4151 = vunpack.c.h.b16 %v3123
    %v4152 = vunpack.c.l.b16 %v3124
    %v4153 = vunpack.c.h.b16 %v3124
    %v4154 = vunpack.c.l.b16 %v3125
    %v4155 = vunpack.c.l.b16 %v3126
    %v4156 = vunpack.c.h.b16 %v3126
    %v4157 = vunpack.c.l.b16 %v3127
    %v4158 = vunpack.c.h.b16 %v3127
    %v4159 = vunpack.c.l.b16 %v3128
    %v4160 = vunpack.c.h.b16 %v3128
    %v4161 = vunpack.c.l.b16 %v3129
    %v4162 = vunpack.c.l.b16 %v3130
    %v4163 = vunpack.c.h.b16 %v3130
    %v4164 = vunpack.c.l.b16 %v3131
    %v4165 = vunpack.c.h.b16 %v3131
    %v4166 = vunpack.c.l.b16 %v3132
    %v4167 = vunpack.c.h.b16 %v3132
    %v4168 = vunpack.c.l.b16 %v3133
    %v4169 = vunpack.c.l.b16 %v3134
    %v4170 = vunpack.c.h.b16 %v3134
    %v4171 = vunpack.c.l.b16 %v3135
    %v4172 = vunpack.c.h.b16 %v3135
    %v4173 = vunpack.c.l.b16 %v3136
    %v4174 = vunpack.c.h.b16 %v3136
    %v4175 = vunpack.c.l.b16 %v3137
    %v4176 = vunpack.c.l.b16 %v3138
    %v4177 = vunpack.c.h.b16 %v3138
    %v4178 = vunpack.c.l.b16 %v3139
    %v4179 = vunpack.c.h.b16 %v3139
    %v4180 = vunpack.c.l.b16 %v3140
    %v4181 = vunpack.c.h.b16 %v3140
    %v4182 = vunpack.c.l.b16 %v3141
    %v4183 = vunpack.c.l.b16 %v3142
    %v4184 = vunpack.c.h.b16 %v3142
    %v4185 = vunpack.c.l.b16 %v3143
    %v4186 = vunpack.c.h.b16 %v3143
    %v4187 = vunpack.c.l.b16 %v3144
    %v4188 = vunpack.c.h.b16 %v3144
    %v4189 = vunpack.c.l.b16 %v3145
    %v4190 = vunpack.c.l.b16 %v3146
    %v4191 = vunpack.c.h.b16 %v3146
    %v4192 = vunpack.c.l.b16 %v3147
    %v4193 = vunpack.c.h.b16 %v3147
    %v4194 = vunpack.c.l.b16 %v3148
    %v4195 = vunpack.c.h.b16 %v3148
    %v4196 = vunpack.c.l.b16 %v3149
    %v4197 = vunpack.c.l.b16 %v3150
    %v4198 = vunpack.c.h.b16 %v3150
    %v4199 = vunpack.c.l.b16 %v3151
    %v4200 = vunpack.c.h.b16 %v3151
    %v4201 = vunpack.c.l.b16 %v3152
    %v4202 = vunpack.c.h.b16 %v3152
    %v4203 = vunpack.c.l.b16 %v3153
    %v4204 = vunpack.c.l.b16 %v3154
    %v4205 = vunpack.c.h.b16 %v3154
    %v4206 = vunpack.c.l.b16 %v3155
    %v4207 = vunpack.c.h.b16 %v3155
    %v4208 = vunpack.c.l.b16 %v3156
    %v4209 = vunpack.c.h.b16 %v3156
    %v4210 = vunpack.c.l.b16 %v3157
    %v4211 = vunpack.c.l.b16 %v3158
    %v4212 = vunpack.c.h.b16 %v3158
    %v4213 = vunpack.c.l.b16 %v3159
    %v4214 = vunpack.c.h.b16 %v3159
    %v4215 = vunpack.c.l.b16 %v3160
    %v4216 = vunpack.c.h.b16 %v3160
    %v4217 = vunpack.c.l.b16 %v3161
    %v4218 = vunpack.c.l.b16 %v3162
    %v4219 = vunpack.c.h.b16 %v3162
    %v4220 = vunpack.c.l.b16 %v3163
    %v4221 = vunpack.c.h.b16 %v3163
    %v4222 = vunpack.c.l.b16 %v3164
    %v4223 = vunpack.c.h.b16 %v3164
    %v4224 = vunpack.c.l.b16 %v3165
    %v4225 = vunpack.c.l.b16 %v3166
    %v4226 = vunpack.c.h.b16 %v3166
    %v4227 = vunpack.c.l.b16 %v3167
    %v4228 = vunpack.c.h.b16 %v3167
    %v4229 = vunpack.c.l.b16 %v3168
    %v4230 = vunpack.c.h.b16 %v3168
    %v4231 = vunpack.c.l.b16 %v3169
    %v4232 = vunpack.c.l.b16 %v3170
    %v4233 = vunpack.c.h.b16 %v3170
    %v4234 = vunpack.c.l.b16 %v3171
    %v4235 = vunpack.c.h.b16 %v3171
    %v4236 = vunpack.c.l.b16 %v3172
    %v4237 = vunpack.c.h.b16 %v3172
    %v4238 = vunpack.c.l.b16 %v3173
    %v4239 = vunpack.c.l.b16 %v3174
    %v4240 = vunpack.c.h.b16 %v3174
    %v4241 = vunpack.c.l.b16 %v3175
    %v4242 = vunpack.c.h.b16 %v3175
    %v4243 = vunpack.c.l.b16 %v3176
    %v4244 = vunpack.c.h.b16 %v3176
    %v4245 = vunpack.c.l.b16 %v3177
    %v4246 = vunpack.c.l.b16 %v3178
    %v4247 = vunpack.c.h.b16 %v3178
    %v4248 = vunpack.c.l.b16 %v3179
    %v4249 = vunpack.c.h.b16 %v3179
    %v4250 = vunpack.c.l.b16 %v3180
    %v4251 = vunpack.c.h.b16 %v3180
    %v4252 = vunpack.c.l.b16 %v3181
    %v4253 = vunpack.c.l.b16 %v3182
    %v4254 = vunpack.c.h.b16 %v3182
    %v4255 = vunpack.c.l.b16 %v3183
    %v4256 = vunpack.c.h.b16 %v3183
    %v4257 = vunpack.c.l.b16 %v3184
    %v4258 = vunpack.c.h.b16 %v3184
    %v4259 = vunpack.c.l.b16 %v3185
    %v4260 = vunpack.c.l.b16 %v3186
    %v4261 = vunpack.c.h.b16 %v3186
    %v4262 = vunpack.c.l.b16 %v3187
    %v4263 = vunpack.c.h.b16 %v3187
    %v4264 = vunpack.c.l.b16 %v3188
    %v4265 = vunpack.c.h.b16 %v3188
    %v4266 = vunpack.c.l.b16 %v3189
    %v4267 = vunpack.c.l.b16 %v3190
    %v4268 = vunpack.c.h.b16 %v3190
    %v4269 = vunpack.c.l.b16 %v3191
    %v4270 = vunpack.c.h.b16 %v3191
    %v4271 = vunpack.c.l.b16 %v3192
    %v4272 = vunpack.c.h.b16 %v3192
    %v4273 = vunpack.c.l.b16 %v3193
    %v4274 = vunpack.c.l.b16 %v3194
    %v4275 = vunpack.c.h.b16 %v3194
    %v4276 = vunpack.c.l.b16 %v3195
    %v4277 = vunpack.c.h.b16 %v3195
    %v4278 = vunpack.c.l.b16 %v3196
    %v4279 = vunpack.c.h.b16 %v3196
    %v4280 = vunpack.c.l.b16 %v3197
    %v4281 = vunpack.c.l.b16 %v3198
    %v4282 = vunpack.c.h.b16 %v3198
    %v4283 = vunpack.c.l.b16 %v3199
    %v4284 = vunpack.c.h.b16 %v3199
    %v4285 = vunpack.c.l.b16 %v3200
    %v4286 = vunpack.c.h.b16 %v3200
    %v4287 = vunpack.c.l.b16 %v3201
    %v4288 = vunpack.c.l.b16 %v3202
    %v4289 = vunpack.c.h.b16 %v3202
    %v4290 = vunpack.c.l.b16 %v3203
    %v4291 = vunpack.c.h.b16 %v3203
    %v4292 = vunpack.c.l.b16 %v3204
    %v4293 = vunpack.c.h.b16 %v3204
    %v4294 = vunpack.c.l.b16 %v3205
    %v4295 = vunpack.c.l.b16 %v3206
    %v4296 = vunpack.c.h.b16 %v3206
    %v4297 = vunpack.c.l.b16 %v3207
    %v4298 = vunpack.c.h.b16 %v3207
    %v4299 = vunpack.c.l.b16 %v3208
    %v4300 = vunpack.c.h.b16 %v3208
    %v4301 = vunpack.c.l.b16 %v3209
    %v4302 = vunpack.c.l.b16 %v3210
    %v4303 = vunpack.c.h.b16 %v3210
    %v4304 = vunpack.c.l.b16 %v3211
    %v4305 = vunpack.c.h.b16 %v3211
    %v4306 = vunpack.c.l.b16 %v3212
    %v4307 = vunpack.c.h.b16 %v3212
    %v4308 = vunpack.c.l.b16 %v3213
    %v4309 = vunpack.c.l.b16 %v3214
    %v4310 = vunpack.c.h.b16 %v3214
    %v4311 = vunpack.c.l.b16 %v3215
    %v4312 = vunpack.c.h.b16 %v3215
    %v4313 = vunpack.c.l.b16 %v3216
    %v4314 = vunpack.c.h.b16 %v3216
    %v4315 = vunpack.c.l.b16 %v3217
    %v4316 = vunpack.c.l.b16 %v3218
    %v4317 = vunpack.c.h.b16 %v3218
    %v4318 = vunpack.c.l.b16 %v3219
    %v4319 = vunpack.c.h.b16 %v3219
    %v4320 = vunpack.c.l.b16 %v3220
    %v4321 = vunpack.c.h.b16 %v3220
    %v4322 = vunpack.c.l.b16 %v3221
    %v4323 = vunpack.c.l.b16 %v3222
    %v4324 = vunpack.c.h.b16 %v3222
    %v4325 = vunpack.c.l.b16 %v3223
    %v4326 = vunpack.c.h.b16 %v3223
    %v4327 = vunpack.c.l.b16 %v3224
    %v4328 = vunpack.c.h.b16 %v3224
    %v4329 = vunpack.c.l.b16 %v3225
    %v4330 = vunpack.c.l.b16 %v3226
    %v4331 = vunpack.c.h.b16 %v3226
    %v4332 = vunpack.c.l.b16 %v3227
    %v4333 = vunpack.c.h.b16 %v3227
    %v4334 = vunpack.c.l.b16 %v3228
    %v4335 = vunpack.c.h.b16 %v3228
    %v4336 = vunpack.c.l.b16 %v3229
    %v4337 = vunpack.c.l.b16 %v3230
    %v4338 = vunpack.c.h.b16 %v3230
    %v4339 = vunpack.c.l.b16 %v3231
    %v4340 = vunpack.c.h.b16 %v3231
    %v4341 = vunpack.c.l.b16 %v3232
    %v4342 = vunpack.c.h.b16 %v3232
    %v4343 = vunpack.c.l.b16 %v3233
    %v4344 = vunpack.c.l.b16 %v3234
    %v4345 = vunpack.c.h.b16 %v3234
    %v4346 = vunpack.c.l.b16 %v3235
    %v4347 = vunpack.c.h.b16 %v3235
    %v4348 = vunpack.c.l.b16 %v3236
    %v4349 = vunpack.c.h.b16 %v3236
    %v4350 = vunpack.c.l.b16 %v3237
    %v4351 = vunpack.c.l.b16 %v3238
    %v4352 = vunpack.c.h.b16 %v3238
    %v4353 = vunpack.c.l.b16 %v3239
    %v4354 = vunpack.c.h.b16 %v3239
    %v4355 = vunpack.c.l.b16 %v3240
    %v4356 = vunpack.c.h.b16 %v3240
    %v4357 = vunpack.c.l.b16 %v3241
    %v4358 = vunpack.c.l.b16 %v3242
    %v4359 = vunpack.c.h.b16 %v3242
    %v4360 = vunpack.c.l.b16 %v3243
    %v4361 = vunpack.c.h.b16 %v3243
    %v4362 = vunpack.c.l.b16 %v3244
    %v4363 = vunpack.c.h.b16 %v3244
    %v4364 = vunpack.c.l.b16 %v3245
    %v4365 = vunpack.c.l.b16 %v3246
    %v4366 = vunpack.c.h.b16 %v3246
    %v4367 = vunpack.c.l.b16 %v3247
    %v4368 = vunpack.c.h.b16 %v3247
    %v4369 = vunpack.c.l.b16 %v3248
    %v4370 = vunpack.c.h.b16 %v3248
    %v4371 = vunpack.c.l.b16 %v3249
    %v4372 = vunpack.c.l.b16 %v3250
    %v4373 = vunpack.c.h.b16 %v3250
    %v4374 = vunpack.c.l.b16 %v3251
    %v4375 = vunpack.c.h.b16 %v3251
    %v4376 = vunpack.c.l.b16 %v3252
    %v4377 = vunpack.c.h.b16 %v3252
    %v4378 = vunpack.c.l.b16 %v3253
    %v4379 = vunpack.c.l.b16 %v3254
    %v4380 = vunpack.c.h.b16 %v3254
    %v4381 = vunpack.c.l.b16 %v3255
    %v4382 = vunpack.c.h.b16 %v3255
    %v4383 = vunpack.c.l.b16 %v3256
    %v4384 = vunpack.c.h.b16 %v3256
    %v4385 = vunpack.c.l.b16 %v3257
    %v4386 = vunpack.c.l.b16 %v3258
    %v4387 = vunpack.c.h.b16 %v3258
    %v4388 = vunpack.c.l.b16 %v3259
    %v4389 = vunpack.c.h.b16 %v3259
    %v4390 = vunpack.c.l.b16 %v3260
    %v4391 = vunpack.c.h.b16 %v3260
    %v4392 = vunpack.c.l.b16 %v3261
    %v4393 = vunpack.c.l.b16 %v3262
    %v4394 = vunpack.c.h.b16 %v3262
    %v4395 = vunpack.c.l.b16 %v3263
    %v4396 = vunpack.c.h.b16 %v3263
    %v4397 = vunpack.c.l.b16 %v3264
    %v4398 = vunpack.c.h.b16 %v3264
    %v4399 = vunpack.c.l.b16 %v3265
    %v4400 = vunpack.c.l.b16 %v3266
    %v4401 = vunpack.c.h.b16 %v3266
    %v4402 = vunpack.c.l.b16 %v3267
    %v4403 = vunpack.c.h.b16 %v3267
    %v4404 = vunpack.c.l.b16 %v3268
    %v4405 = vunpack.c.h.b16 %v3268
    %v4406 = vunpack.c.l.b16 %v3269
    %v4407 = vunpack.c.l.b16 %v3270
    %v4408 = vunpack.c.h.b16 %v3270
    %v4409 = vunpack.c.l.b16 %v3271
    %v4410 = vunpack.c.h.b16 %v3271
    %v4411 = vunpack.c.l.b16 %v3272
    %v4412 = vunpack.c.h.b16 %v3272
    %v4413 = vunpack.c.l.b16 %v3273
    %v4414 = vunpack.c.l.b16 %v3274
    %v4415 = vunpack.c.h.b16 %v3274
    %v4416 = vunpack.c.l.b16 %v3275
    %v4417 = vunpack.c.h.b16 %v3275
    %v4418 = vunpack.c.l.b16 %v3276
    %v4419 = vunpack.c.h.b16 %v3276
    %v4420 = vunpack.c.l.b16 %v3277
    %v4421 = vunpack.c.l.b16 %v3278
    %v4422 = vunpack.c.h.b16 %v3278
    %v4423 = vunpack.c.l.b16 %v3279
    %v4424 = vunpack.c.h.b16 %v3279
    %v4425 = vunpack.c.l.b16 %v3280
    %v4426 = vunpack.c.h.b16 %v3280
    %v4427 = vunpack.c.l.b16 %v3281
    %v4428 = vunpack.c.l.b16 %v3282
    %v4429 = vunpack.c.h.b16 %v3282
    %v4430 = vunpack.c.l.b16 %v3283
    %v4431 = vunpack.c.h.b16 %v3283
    %v4432 = vunpack.c.l.b16 %v3284
    %v4433 = vunpack.c.h.b16 %v3284
    %v4434 = vunpack.c.l.b16 %v3285
    %v4435 = vunpack.c.l.b16 %v3286
    %v4436 = vunpack.c.h.b16 %v3286
    %v4437 = vunpack.c.l.b16 %v3287
    %v4438 = vunpack.c.h.b16 %v3287
    %v4439 = vunpack.c.l.b16 %v3288
    %v4440 = vunpack.c.h.b16 %v3288
    %v4441 = vunpack.c.l.b16 %v3289
    %v4442 = vunpack.c.l.b16 %v3290
    %v4443 = vunpack.c.h.b16 %v3290
    %v4444 = vunpack.c.l.b16 %v3291
    %v4445 = vunpack.c.h.b16 %v3291
    %v4446 = vunpack.c.l.b16 %v3292
    %v4447 = vunpack.c.h.b16 %v3292
    %v4448 = vunpack.c.l.b16 %v3293
    %v4449 = vunpack.c.l.b16 %v3294
    %v4450 = vunpack.c.h.b16 %v3294
    %v4451 = vunpack.c.l.b16 %v3295
    %v4452 = vunpack.c.h.b16 %v3295
    %v4453 = vunpack.c.l.b16 %v3296
    %v4454 = vunpack.c.h.b16 %v3296
    %v4455 = vunpack.c.l.b16 %v3297
    %v4456 = vunpack.c.l.b16 %v3298
    %v4457 = vunpack.c.h.b16 %v3298
    %v4458 = vunpack.c.l.b16 %v3299
    %v4459 = vunpack.c.h.b16 %v3299
    %v4460 = vunpack.c.l.b16 %v3300
    %v4461 = vunpack.c.h.b16 %v3300
    %v4462 = vunpack.c.l.b16 %v3301
    %v4463 = vunpack.c.l.b16 %v3302
    %v4464 = vunpack.c.h.b16 %v3302
    %v4465 = vunpack.c.l.b16 %v3303
    %v4466 = vunpack.c.h.b16 %v3303
    %v4467 = vunpack.c.l.b16 %v3304
    %v4468 = vunpack.c.h.b16 %v3304
    %v4469 = vunpack.c.l.b16 %v3305
    %v4470 = vunpack.c.l.b16 %v3306
    %v4471 = vunpack.c.h.b16 %v3306
    %v4472 = vunpack.c.l.b16 %v3307
    %v4473 = vunpack.c.h.b16 %v3307
    %v4474 = vunpack.c.l.b16 %v3308
    %v4475 = vunpack.c.h.b16 %v3308
    %v4476 = vunpack.c.l.b16 %v3309
    %v4477 = vunpack.c.l.b16 %v3310
    %v4478 = vunpack.c.h.b16 %v3310
    %v4479 = vunpack.c.l.b16 %v3311
    %v4480 = vunpack.c.h.b16 %v3311
    %v4481 = vunpack.c.l.b16 %v3312
    %v4482 = vunpack.c.h.b16 %v3312
    %v4483 = vunpack.c.l.b16 %v3313
    %v4484 = vunpack.c.l.b16 %v3314
    %v4485 = vunpack.c.h.b16 %v3314
    %v4486 = vunpack.c.l.b16 %v3315
    %v4487 = vunpack.c.h.b16 %v3315
    %v4488 = vunpack.c.l.b16 %v3316
    %v4489 = vunpack.c.h.b16 %v3316
    %v4490 = vunpack.c.l.b16 %v3317
    %v4491 = vunpack.c.l.b16 %v3318
    %v4492 = vunpack.c.h.b16 %v3318
    %v4493 = vunpack.c.l.b16 %v3319
    %v4494 = vunpack.c.h.b16 %v3319
    %v4495 = vunpack.c.l.b16 %v3320
    %v4496 = vunpack.c.h.b16 %v3320
    %v4497 = vunpack.c.l.b16 %v3321
    %v4498 = vunpack.c.l.b16 %v3322
    %v4499 = vunpack.c.h.b16 %v3322
    %v4500 = vunpack.c.l.b16 %v3323
    %v4501 = vunpack.c.h.b16 %v3323
    %v4502 = vunpack.c.l.b16 %v3324
    %v4503 = vunpack.c.h.b16 %v3324
    %v4504 = vunpack.c.l.b16 %v3325
    %v4505 = vunpack.c.l.b16 %v3326
    %v4506 = vunpack.c.h.b16 %v3326
    %v4507 = vunpack.c.l.b16 %v3327
    %v4508 = vunpack.c.h.b16 %v3327
    %v4509 = vunpack.c.l.b16 %v3328
    %v4510 = vunpack.c.h.b16 %v3328
    %v4511 = vunpack.c.l.b16 %v3329
    %v4512 = vunpack.c.l.b16 %v3330
    %v4513 = vunpack.c.h.b16 %v3330
    %v4514 = vunpack.c.l.b16 %v3331
    %v4515 = vunpack.c.h.b16 %v3331
    %v4516 = vunpack.c.l.b16 %v3332
    %v4517 = vunpack.c.h.b16 %v3332
    %v4518 = vunpack.c.l.b16 %v3333
    %v4519 = vunpack.c.l.b16 %v3334
    %v4520 = vunpack.c.h.b16 %v3334
    %v4521 = vunpack.c.l.b16 %v3335
    %v4522 = vunpack.c.h.b16 %v3335
    %v4523 = vunpack.c.l.b16 %v3336
    %v4524 = vunpack.c.h.b16 %v3336
    %v4525 = vunpack.c.l.b16 %v3337
    %v4526 = vunpack.c.l.b16 %v3338
    %v4527 = vunpack.c.h.b16 %v3338
    %v4528 = vunpack.c.l.b16 %v3339
    %v4529 = vunpack.c.h.b16 %v3339
    %v4530 = vunpack.c.l.b16 %v3340
    %v4531 = vunpack.c.h.b16 %v3340
    %v4532 = vunpack.c.l.b16 %v3341
    %v4533 = vunpack.c.l.b16 %v3342
    %v4534 = vunpack.c.h.b16 %v3342
    %v4535 = vunpack.c.l.b16 %v3343
    %v4536 = vunpack.c.h.b16 %v3343
    %v4537 = vunpack.c.l.b16 %v3344
    %v4538 = vunpack.c.h.b16 %v3344
    %v4539 = vunpack.c.l.b16 %v3345
    %v4540 = vunpack.c.l.b16 %v3346
    %v4541 = vunpack.c.h.b16 %v3346
    %v4542 = vunpack.c.l.b16 %v3347
    %v4543 = vunpack.c.h.b16 %v3347
    %v4544 = vunpack.c.l.b16 %v3348
    %v4545 = vunpack.c.h.b16 %v3348
    %v4546 = vunpack.c.l.b16 %v3349
    %v4547 = vunpack.c.l.b16 %v3350
    %v4548 = vunpack.c.h.b16 %v3350
    %v4549 = vunpack.c.l.b16 %v3351
    %v4550 = vunpack.c.h.b16 %v3351
    %v4551 = vunpack.c.l.b16 %v3352
    %v4552 = vunpack.c.h.b16 %v3352
    %v4553 = vunpack.c.l.b16 %v3353
    %v4554 = vunpack.c.l.b16 %v3354
    %v4555 = vunpack.c.h.b16 %v3354
    %v4556 = vunpack.c.l.b16 %v3355
    %v4557 = vunpack.c.h.b16 %v3355
    %v4558 = vunpack.c.l.b16 %v3356
    %v4559 = vunpack.c.h.b16 %v3356
    %v4560 = vunpack.c.l.b16 %v3357
    %v4561 = vunpack.c.l.b16 %v3358
    %v4562 = vunpack.c.h.b16 %v3358
    %v4563 = vunpack.c.l.b16 %v3359
    %v4564 = vunpack.c.h.b16 %v3359
    %v4565 = vunpack.c.l.b16 %v3360
    %v4566 = vunpack.c.h.b16 %v3360
    %v4567 = vunpack.c.l.b16 %v3361
    %v4568 = vunpack.c.l.b16 %v3362
    %v4569 = vunpack.c.h.b16 %v3362
    %v4570 = vunpack.c.l.b16 %v3363
    %v4571 = vunpack.c.h.b16 %v3363
    %v4572 = vunpack.c.l.b16 %v3364
    %v4573 = vunpack.c.h.b16 %v3364
    %v4574 = vunpack.c.l.b16 %v3365
    %v4575 = vunpack.c.l.b16 %v3366
    %v4576 = vunpack.c.h.b16 %v3366
    %v4577 = vunpack.c.l.b16 %v3367
    %v4578 = vunpack.c.h.b16 %v3367
    %v4579 = vunpack.c.l.b16 %v3368
    %v4580 = vunpack.c.h.b16 %v3368
    %v4581 = vunpack.c.l.b16 %v3369
    %v4582 = vunpack.c.l.b16 %v3370
    %v4583 = vunpack.c.h.b16 %v3370
    %v4584 = vunpack.c.l.b16 %v3371
    %v4585 = vunpack.c.h.b16 %v3371
    %v4586 = vunpack.c.l.b16 %v3372
    %v4587 = vunpack.c.h.b16 %v3372
    %v4588 = vunpack.c.l.b16 %v3373
    %v4589 = vunpack.c.l.b16 %v3374
    %v4590 = vunpack.c.h.b16 %v3374
    %v4591 = vunpack.c.l.b16 %v3375
    %v4592 = vunpack.c.h.b16 %v3375
    %v4593 = vunpack.c.l.b16 %v3376
    %v4594 = vunpack.c.h.b16 %v3376
    %v4595 = vunpack.c.l.b16 %v3377
    %v4596 = vunpack.c.l.b16 %v3378
    %v4597 = vunpack.c.h.b16 %v3378
    %v4598 = vunpack.c.l.b16 %v3379
    %v4599 = vunpack.c.h.b16 %v3379
    %v4600 = vunpack.c.l.b16 %v3380
    %v4601 = vunpack.c.h.b16 %v3380
    %v4602 = vunpack.c.l.b16 %v3381
    %v4603 = vunpack.c.l.b16 %v3382
    %v4604 = vunpack.c.h.b16 %v3382
    %v4605 = vunpack.c.l.b16 %v3383
    %v4606 = vunpack.c.h.b16 %v3383
    %v4607 = vunpack.c.l.b16 %v3384
    %v4608 = vunpack.c.h.b16 %v3384
    %v4609 = vunpack.c.l.b16 %v3385
    %v4610 = vunpack.c.l.b16 %v3386
    %v4611 = vunpack.c.h.b16 %v3386
    %v4612 = vunpack.c.l.b16 %v3387
    %v4613 = vunpack.c.h.b16 %v3387
    %v4614 = vunpack.c.l.b16 %v3388
    %v4615 = vunpack.c.h.b16 %v3388
    %v4616 = vunpack.c.l.b16 %v3389
    %v4617 = vunpack.c.l.b16 %v3390
    %v4618 = vunpack.c.h.b16 %v3390
    %v4619 = vunpack.c.l.b16 %v3391
    %v4620 = vunpack.c.h.b16 %v3391
    %v4621 = vunpack.c.l.b16 %v3392
    %v4622 = vunpack.c.h.b16 %v3392
    %v4623 = vunpack.c.l.b16 %v3393
    %v4624 = vunpack.c.l.b16 %v3394
    %v4625 = vunpack.c.h.b16 %v3394
    %v4626 = vunpack.c.l.b16 %v3395
    %v4627 = vunpack.c.h.b16 %v3395
    %v4628 = vunpack.c.l.b16 %v3396
    %v4629 = vunpack.c.h.b16 %v3396
    %v4630 = vunpack.c.l.b16 %v3397
    %v4631 = vunpack.c.l.b16 %v3398
    %v4632 = vunpack.c.h.b16 %v3398
    %v4633 = vunpack.c.l.b16 %v3399
    %v4634 = vunpack.c.h.b16 %v3399
    %v4635 = vunpack.c.l.b16 %v3400
    %v4636 = vunpack.c.h.b16 %v3400
    %v4637 = vunpack.c.l.b16 %v3401
    %v4638 = vunpack.c.l.b16 %v3402
    %v4639 = vunpack.c.h.b16 %v3402
    %v4640 = vunpack.c.l.b16 %v3403
    %v4641 = vunpack.c.h.b16 %v3403
    %v4642 = vunpack.c.l.b16 %v3404
    %v4643 = vunpack.c.h.b16 %v3404
    %v4644 = vunpack.c.l.b16 %v3405
    %v4645 = vunpack.c.l.b16 %v3406
    %v4646 = vunpack.c.h.b16 %v3406
    %v4647 = vunpack.c.l.b16 %v3407
    %v4648 = vunpack.c.h.b16 %v3407
    %v4649 = vunpack.c.l.b16 %v3408
    %v4650 = vunpack.c.h.b16 %v3408
    %v4651 = vunpack.c.l.b16 %v3409
    %v4652 = vunpack.c.l.b16 %v3410
    %v4653 = vunpack.c.h.b16 %v3410
    %v4654 = vunpack.c.l.b16 %v3411
    %v4655 = vunpack.c.h.b16 %v3411
    %v4656 = vunpack.c.l.b16 %v3412
    %v4657 = vunpack.c.h.b16 %v3412
    %v4658 = vunpack.c.l.b16 %v3413
    %v4659 = vunpack.c.l.b16 %v3414
    %v4660 = vunpack.c.h.b16 %v3414
    %v4661 = vunpack.c.l.b16 %v3415
    %v4662 = vunpack.c.h.b16 %v3415
    %v4663 = vunpack.c.l.b16 %v3416
    %v4664 = vunpack.c.h.b16 %v3416
    %v4665 = vunpack.c.l.b16 %v3417
    %v4666 = vpack.c.b16 %v3889, %v3882
    %v4667 = vpack.c.b16 %v3890, %v3883
    %v4668 = vpack.c.b16 %v3891, %v3884
    %v4669 = vpack.c.b16 %v3892, %v3885
    %v4670 = vpack.c.b16 %v3893, %v3886
    %v4671 = vpack.c.b16 %v3894, %v3887
    %v4672 = vpack.c.b16 %v3895, %v3888
    %v4673 = vpack.c.b16 %v3903, %v3896
    %v4674 = vpack.c.b16 %v3904, %v3897
    %v4675 = vpack.c.b16 %v3905, %v3898
    %v4676 = vpack.c.b16 %v3906, %v3899
    %v4677 = vpack.c.b16 %v3907, %v3900
    %v4678 = vpack.c.b16 %v3908, %v3901
    %v4679 = vpack.c.b16 %v3909, %v3902
    %v4680 = vpack.c.b16 %v3917, %v3910
    %v4681 = vpack.c.b16 %v3918, %v3911
    %v4682 = vpack.c.b16 %v3919, %v3912
    %v4683 = vpack.c.b16 %v3920, %v3913
    %v4684 = vpack.c.b16 %v3921, %v3914
    %v4685 = vpack.c.b16 %v3922, %v3915
    %v4686 = vpack.c.b16 %v3923, %v3916
    %v4687 = vpack.c.b16 %v3931, %v3924
    %v4688 = vpack.c.b16 %v3932, %v3925
    %v4689 = vpack.c.b16 %v3933, %v3926
    %v4690 = vpack.c.b16 %v3934, %v3927
    %v4691 = vpack.c.b16 %v3935, %v3928
    %v4692 = vpack.c.b16 %v3936, %v3929
    %v4693 = vpack.c.b16 %v3937, %v3930
    %v4694 = vpack.c.b16 %v3945, %v3938
    %v4695 = vpack.c.b16 %v3946, %v3939
    %v4696 = vpack.c.b16 %v3947, %v3940
    %v4697 = vpack.c.b16 %v3948, %v3941
    %v4698 = vpack.c.b16 %v3949, %v3942
    %v4699 = vpack.c.b16 %v3950, %v3943
    %v4700 = vpack.c.b16 %v3951, %v3944
    %v4701 = vpack.c.b16 %v3959, %v3952
    %v4702 = vpack.c.b16 %v3960, %v3953
    %v4703 = vpack.c.b16 %v3961, %v3954
    %v4704 = vpack.c.b16 %v3962, %v3955
    %v4705 = vpack.c.b16 %v3963, %v3956
    %v4706 = vpack.c.b16 %v3964, %v3957
    %v4707 = vpack.c.b16 %v3965, %v3958
    %v4708 = vpack.c.b16 %v3973, %v3966
    %v4709 = vpack.c.b16 %v3974, %v3967
    %v4710 = vpack.c.b16 %v3975, %v3968
    %v4711 = vpack.c.b16 %v3976, %v3969
    %v4712 = vpack.c.b16 %v3977, %v3970
    %v4713 = vpack.c.b16 %v3978, %v3971
    %v4714 = vpack.c.b16 %v3979, %v3972
    %v4715 = vpack.c.b16 %v3987, %v3980
    %v4716 = vpack.c.b16 %v3988, %v3981
    %v4717 = vpack.c.b16 %v3989, %v3982
    %v4718 = vpack.c.b16 %v3990, %v3983
    %v4719 = vpack.c.b16 %v3991, %v3984
    %v4720 = vpack.c.b16 %v3992, %v3985
    %v4721 = vpack.c.b16 %v3993, %v3986
    %v4722 = vpack.c.b16 %v4001, %v3994
    %v4723 = vpack.c.b16 %v4002, %v3995
    %v4724 = vpack.c.b16 %v4003, %v3996
    %v4725 = vpack.c.b16 %v4004, %v3997
    %v4726 = vpack.c.b16 %v4005, %v3998
    %v4727 = vpack.c.b16 %v4006, %v3999
    %v4728 = vpack.c.b16 %v4007, %v4000
    %v4729 = vpack.c.b16 %v4015, %v4008
    %v4730 = vpack.c.b16 %v4016, %v4009
    %v4731 = vpack.c.b16 %v4017, %v4010
    %v4732 = vpack.c.b16 %v4018, %v4011
    %v4733 = vpack.c.b16 %v4019, %v4012
    %v4734 = vpack.c.b16 %v4020, %v4013
    %v4735 = vpack.c.b16 %v4021, %v4014
    %v4736 = vpack.c.b16 %v4029, %v4022
    %v4737 = vpack.c.b16 %v4030, %v4023
    %v4738 = vpack.c.b16 %v4031, %v4024
    %v4739 = vpack.c.b16 %v4032, %v4025
    %v4740 = vpack.c.b16 %v4033, %v4026
    %v4741 = vpack.c.b16 %v4034, %v4027
    %v4742 = vpack.c.b16 %v4035, %v4028
    %v4743 = vpack.c.b16 %v4043, %v4036
    %v4744 = vpack.c.b16 %v4044, %v4037
    %v4745 = vpack.c.b16 %v4045, %v4038
    %v4746 = vpack.c.b16 %v4046, %v4039
    %v4747 = vpack.c.b16 %v4047, %v4040
    %v4748 = vpack.c.b16 %v4048, %v4041
    %v4749 = vpack.c.b16 %v4049, %v4042
    %v4750 = vpack.c.b16 %v4057, %v4050
    %v4751 = vpack.c.b16 %v4058, %v4051
    %v4752 = vpack.c.b16 %v4059, %v4052
    %v4753 = vpack.c.b16 %v4060, %v4053
    %v4754 = vpack.c.b16 %v4061, %v4054
    %v4755 = vpack.c.b16 %v4062, %v4055
    %v4756 = vpack.c.b16 %v4063, %v4056
    %v4757 = vpack.c.b16 %v4071, %v4064
    %v4758 = vpack.c.b16 %v4072, %v4065
    %v4759 = vpack.c.b16 %v4073, %v4066
    %v4760 = vpack.c.b16 %v4074, %v4067
    %v4761 = vpack.c.b16 %v4075, %v4068
    %v4762 = vpack.c.b16 %v4076, %v4069
    %v4763 = vpack.c.b16 %v4077, %v4070
    %v4764 = vpack.c.b16 %v4085, %v4078
    %v4765 = vpack.c.b16 %v4086, %v4079
    %v4766 = vpack.c.b16 %v4087, %v4080
    %v4767 = vpack.c.b16 %v4088, %v4081
    %v4768 = vpack.c.b16 %v4089, %v4082
    %v4769 = vpack.c.b16 %v4090, %v4083
    %v4770 = vpack.c.b16 %v4091, %v4084
    %v4771 = vpack.c.b16 %v4099, %v4092
    %v4772 = vpack.c.b16 %v4100, %v4093
    %v4773 = vpack.c.b16 %v4101, %v4094
    %v4774 = vpack.c.b16 %v4102, %v4095
    %v4775 = vpack.c.b16 %v4103, %v4096
    %v4776 = vpack.c.b16 %v4104, %v4097
    %v4777 = vpack.c.b16 %v4105, %v4098
    %v4778 = vpack.c.b16 %v4113, %v4106
    %v4779 = vpack.c.b16 %v4114, %v4107
    %v4780 = vpack.c.b16 %v4115, %v4108
    %v4781 = vpack.c.b16 %v4116, %v4109
    %v4782 = vpack.c.b16 %v4117, %v4110
    %v4783 = vpack.c.b16 %v4118, %v4111
    %v4784 = vpack.c.b16 %v4119, %v4112
    %v4785 = vpack.c.b16 %v4127, %v4120
    %v4786 = vpack.c.b16 %v4128, %v4121
    %v4787 = vpack.c.b16 %v4129, %v4122
    %v4788 = vpack.c.b16 %v4130, %v4123
    %v4789 = vpack.c.b16 %v4131, %v4124
    %v4790 = vpack.c.b16 %v4132, %v4125
    %v4791 = vpack.c.b16 %v4133, %v4126
    %v4792 = vpack.c.b16 %v4141, %v4134
    %v4793 = vpack.c.b16 %v4142, %v4135
    %v4794 = vpack.c.b16 %v4143, %v4136
    %v4795 = vpack.c.b16 %v4144, %v4137
    %v4796 = vpack.c.b16 %v4145, %v4138
    %v4797 = vpack.c.b16 %v4146, %v4139
    %v4798 = vpack.c.b16 %v4147, %v4140
    %v4799 = vpack.c.b16 %v4155, %v4148
    %v4800 = vpack.c.b16 %v4156, %v4149
    %v4801 = vpack.c.b16 %v4157, %v4150
    %v4802 = vpack.c.b16 %v4158, %v4151
    %v4803 = vpack.c.b16 %v4159, %v4152
    %v4804 = vpack.c.b16 %v4160, %v4153
    %v4805 = vpack.c.b16 %v4161, %v4154
    %v4806 = vpack.c.b16 %v4169, %v4162
    %v4807 = vpack.c.b16 %v4170, %v4163
    %v4808 = vpack.c.b16 %v4171, %v4164
    %v4809 = vpack.c.b16 %v4172, %v4165
    %v4810 = vpack.c.b16 %v4173, %v4166
    %v4811 = vpack.c.b16 %v4174, %v4167
    %v4812 = vpack.c.b16 %v4175, %v4168
    %v4813 = vpack.c.b16 %v4183, %v4176
    %v4814 = vpack.c.b16 %v4184, %v4177
    %v4815 = vpack.c.b16 %v4185, %v4178
    %v4816 = vpack.c.b16 %v4186, %v4179
    %v4817 = vpack.c.b16 %v4187, %v4180
    %v4818 = vpack.c.b16 %v4188, %v4181
    %v4819 = vpack.c.b16 %v4189, %v4182
    %v4820 = vpack.c.b16 %v4197, %v4190
    %v4821 = vpack.c.b16 %v4198, %v4191
    %v4822 = vpack.c.b16 %v4199, %v4192
    %v4823 = vpack.c.b16 %v4200, %v4193
    %v4824 = vpack.c.b16 %v4201, %v4194
    %v4825 = vpack.c.b16 %v4202, %v4195
    %v4826 = vpack.c.b16 %v4203, %v4196
    %v4827 = vpack.c.b16 %v4211, %v4204
    %v4828 = vpack.c.b16 %v4212, %v4205
    %v4829 = vpack.c.b16 %v4213, %v4206
    %v4830 = vpack.c.b16 %v4214, %v4207
    %v4831 = vpack.c.b16 %v4215, %v4208
    %v4832 = vpack.c.b16 %v4216, %v4209
    %v4833 = vpack.c.b16 %v4217, %v4210
    %v4834 = vpack.c.b16 %v4225, %v4218
    %v4835 = vpack.c.b16 %v4226, %v4219
    %v4836 = vpack.c.b16 %v4227, %v4220
    %v4837 = vpack.c.b16 %v4228, %v4221
    %v4838 = vpack.c.b16 %v4229, %v4222
    %v4839 = vpack.c.b16 %v4230, %v4223
    %v4840 = vpack.c.b16 %v4231, %v4224
    %v4841 = vpack.c.b16 %v4239, %v4232
    %v4842 = vpack.c.b16 %v4240, %v4233
    %v4843 = vpack.c.b16 %v4241, %v4234
    %v4844 = vpack.c.b16 %v4242, %v4235
    %v4845 = vpack.c.b16 %v4243, %v4236
    %v4846 = vpack.c.b16 %v4244, %v4237
    %v4847 = vpack.c.b16 %v4245, %v4238
    %v4848 = vpack.c.b16 %v4253, %v4246
    %v4849 = vpack.c.b16 %v4254, %v4247
    %v4850 = vpack.c.b16 %v4255, %v4248
    %v4851 = vpack.c.b16 %v4256, %v4249
    %v4852 = vpack.c.b16 %v4257, %v4250
    %v4853 = vpack.c.b16 %v4258, %v4251
    %v4854 = vpack.c.b16 %v4259, %v4252
    %v4855 = vpack.c.b16 %v4267, %v4260
    %v4856 = vpack.c.b16 %v4268, %v4261
    %v4857 = vpack.c.b16 %v4269, %v4262
    %v4858 = vpack.c.b16 %v4270, %v4263
    %v4859 = vpack.c.b16 %v4271, %v4264
    %v4860 = vpack.c.b16 %v4272, %v4265
    %v4861 = vpack.c.b16 %v4273, %v4266
    %v4862 = vpack.c.b16 %v4281, %v4274
    %v4863 = vpack.c.b16 %v4282, %v4275
    %v4864 = vpack.c.b16 %v4283, %v4276
    %v4865 = vpack.c.b16 %v4284, %v4277
    %v4866 = vpack.c.b16 %v4285, %v4278
    %v4867 = vpack.c.b16 %v4286, %v4279
    %v4868 = vpack.c.b16 %v4287, %v4280
    %v4869 = vpack.c.b16 %v4295, %v4288
    %v4870 = vpack.c.b16 %v4296, %v4289
    %v4871 = vpack.c.b16 %v4297, %v4290
    %v4872 = vpack.c.b16 %v4298, %v4291
    %v4873 = vpack.c.b16 %v4299, %v4292
    %v4874 = vpack.c.b16 %v4300, %v4293
    %v4875 = vpack.c.b16 %v4301, %v4294
    %v4876 = vpack.c.b16 %v4309, %v4302
    %v4877 = vpack.c.b16 %v4310, %v4303
    %v4878 = vpack.c.b16 %v4311, %v4304
    %v4879 = vpack.c.b16 %v4312, %v4305
    %v4880 = vpack.c.b16 %v4313, %v4306
    %v4881 = vpack.c.b16 %v4314, %v4307
    %v4882 = vpack.c.b16 %v4315, %v4308
    %v4883 = vpack.c.b16 %v4323, %v4316
    %v4884 = vpack.c.b16 %v4324, %v4317
    %v4885 = vpack.c.b16 %v4325, %v4318
    %v4886 = vpack.c.b16 %v4326, %v4319
    %v4887 = vpack.c.b16 %v4327, %v4320
    %v4888 = vpack.c.b16 %v4328, %v4321
    %v4889 = vpack.c.b16 %v4329, %v4322
    %v4890 = vpack.c.b16 %v4337, %v4330
    %v4891 = vpack.c.b16 %v4338, %v4331
    %v4892 = vpack.c.b16 %v4339, %v4332
    %v4893 = vpack.c.b16 %v4340, %v4333
    %v4894 = vpack.c.b16 %v4341, %v4334
    %v4895 = vpack.c.b16 %v4342, %v4335
    %v4896 = vpack.c.b16 %v4343, %v4336
    %v4897 = vpack.c.b16 %v4351, %v4344
    %v4898 = vpack.c.b16 %v4352, %v4345
    %v4899 = vpack.c.b16 %v4353, %v4346
    %v4900 = vpack.c.b16 %v4354, %v4347
    %v4901 = vpack.c.b16 %v4355, %v4348
    %v4902 = vpack.c.b16 %v4356, %v4349
    %v4903 = vpack.c.b16 %v4357, %v4350
    %v4904 = vpack.c.b16 %v4365, %v4358
    %v4905 = vpack.c.b16 %v4366, %v4359
    %v4906 = vpack.c.b16 %v4367, %v4360
    %v4907 = vpack.c.b16 %v4368, %v4361
    %v4908 = vpack.c.b16 %v4369, %v4362
    %v4909 = vpack.c.b16 %v4370, %v4363
    %v4910 = vpack.c.b16 %v4371, %v4364
    %v4911 = vpack.c.b16 %v4379, %v4372
    %v4912 = vpack.c.b16 %v4380, %v4373
    %v4913 = vpack.c.b16 %v4381, %v4374
    %v4914 = vpack.c.b16 %v4382, %v4375
    %v4915 = vpack.c.b16 %v4383, %v4376
    %v4916 = vpack.c.b16 %v4384, %v4377
    %v4917 = vpack.c.b16 %v4385, %v4378
    %v4918 = vpack.c.b16 %v4393, %v4386
    %v4919 = vpack.c.b16 %v4394, %v4387
    %v4920 = vpack.c.b16 %v4395, %v4388
    %v4921 = vpack.c.b16 %v4396, %v4389
    %v4922 = vpack.c.b16 %v4397, %v4390
    %v4923 = vpack.c.b16 %v4398, %v4391
    %v4924 = vpack.c.b16 %v4399, %v4392
    %v4925 = vpack.c.b16 %v4407, %v4400
    %v4926 = vpack.c.b16 %v4408, %v4401
    %v4927 = vpack.c.b16 %v4409, %v4402
    %v4928 = vpack.c.b16 %v4410, %v4403
    %v4929 = vpack.c.b16 %v4411, %v4404
    %v4930 = vpack.c.b16 %v4412, %v4405
    %v4931 = vpack.c.b16 %v4413, %v4406
    %v4932 = vpack.c.b16 %v4421, %v4414
    %v4933 = vpack.c.b16 %v4422, %v4415
    %v4934 = vpack.c.b16 %v4423, %v4416
    %v4935 = vpack.c.b16 %v4424, %v4417
    %v4936 = vpack.c.b16 %v4425, %v4418
    %v4937 = vpack.c.b16 %v4426, %v4419
    %v4938 = vpack.c.b16 %v4427, %v4420
    %v4939 = vpack.c.b16 %v4435, %v4428
    %v4940 = vpack.c.b16 %v4436, %v4429
    %v4941 = vpack.c.b16 %v4437, %v4430
    %v4942 = vpack.c.b16 %v4438, %v4431
    %v4943 = vpack.c.b16 %v4439, %v4432
    %v4944 = vpack.c.b16 %v4440, %v4433
    %v4945 = vpack.c.b16 %v4441, %v4434
    %v4946 = vpack.c.b16 %v4449, %v4442
    %v4947 = vpack.c.b16 %v4450, %v4443
    %v4948 = vpack.c.b16 %v4451, %v4444
    %v4949 = vpack.c.b16 %v4452, %v4445
    %v4950 = vpack.c.b16 %v4453, %v4446
    %v4951 = vpack.c.b16 %v4454, %v4447
    %v4952 = vpack.c.b16 %v4455, %v4448
    %v4953 = vpack.c.b16 %v4463, %v4456
    %v4954 = vpack.c.b16 %v4464, %v4457
    %v4955 = vpack.c.b16 %v4465, %v4458
    %v4956 = vpack.c.b16 %v4466, %v4459
    %v4957 = vpack.c.b16 %v4467, %v4460
    %v4958 = vpack.c.b16 %v4468, %v4461
    %v4959 = vpack.c.b16 %v4469, %v4462
    %v4960 = vpack.c.b16 %v4477, %v4470
    %v4961 = vpack.c.b16 %v4478, %v4471
    %v4962 = vpack.c.b16 %v4479, %v4472
    %v4963 = vpack.c.b16 %v4480, %v4473
    %v4964 = vpack.c.b16 %v4481, %v4474
    %v4965 = vpack.c.b16 %v4482, %v4475
    %v4966 = vpack.c.b16 %v4483, %v4476
    %v4967 = vpack.c.b16 %v4491, %v4484
    %v4968 = vpack.c.b16 %v4492, %v4485
    %v4969 = vpack.c.b16 %v4493, %v4486
    %v4970 = vpack.c.b16 %v4494, %v4487
    %v4971 = vpack.c.b16 %v4495, %v4488
    %v4972 = vpack.c.b16 %v4496, %v4489
    %v4973 = vpack.c.b16 %v4497, %v4490
    %v4974 = vpack.c.b16 %v4505, %v4498
    %v4975 = vpack.c.b16 %v4506, %v4499
    %v4976 = vpack.c.b16 %v4507, %v4500
    %v4977 = vpack.c.b16 %v4508, %v4501
    %v4978 = vpack.c.b16 %v4509, %v4502
    %v4979 = vpack.c.b16 %v4510, %v4503
    %v4980 = vpack.c.b16 %v4511, %v4504
    %v4981 = vpack.c.b16 %v4519, %v4512
    %v4982 = vpack.c.b16 %v4520, %v4513
    %v4983 = vpack.c.b16 %v4521, %v4514
    %v4984 = vpack.c.b16 %v4522, %v4515
    %v4985 = vpack.c.b16 %v4523, %v4516
    %v4986 = vpack.c.b16 %v4524, %v4517
    %v4987 = vpack.c.b16 %v4525, %v4518
    %v4988 = vpack.c.b16 %v4533, %v4526
    %v4989 = vpack.c.b16 %v4534, %v4527
    %v4990 = vpack.c.b16 %v4535, %v4528
    %v4991 = vpack.c.b16 %v4536, %v4529
    %v4992 = vpack.c.b16 %v4537, %v4530
    %v4993 = vpack.c.b16 %v4538, %v4531
    %v4994 = vpack.c.b16 %v4539, %v4532
    %v4995 = vpack.c.b16 %v4547, %v4540
    %v4996 = vpack.c.b16 %v4548, %v4541
    %v4997 = vpack.c.b16 %v4549, %v4542
    %v4998 = vpack.c.b16 %v4550, %v4543
    %v4999 = vpack.c.b16 %v4551, %v4544
    %v5000 = vpack.c.b16 %v4552, %v4545
    %v5001 = vpack.c.b16 %v4553, %v4546
    %v5002 = vpack.c.b16 %v4561, %v4554
    %v5003 = vpack.c.b16 %v4562, %v4555
    %v5004 = vpack.c.b16 %v4563, %v4556
    %v5005 = vpack.c.b16 %v4564, %v4557
    %v5006 = vpack.c.b16 %v4565, %v4558
    %v5007 = vpack.c.b16 %v4566, %v4559
    %v5008 = vpack.c.b16 %v4567, %v4560
    %v5009 = vpack.c.b16 %v4575, %v4568
    %v5010 = vpack.c.b16 %v4576, %v4569
    %v5011 = vpack.c.b16 %v4577, %v4570
    %v5012 = vpack.c.b16 %v4578, %v4571
    %v5013 = vpack.c.b16 %v4579, %v4572
    %v5014 = vpack.c.b16 %v4580, %v4573
    %v5015 = vpack.c.b16 %v4581, %v4574
    %v5016 = vpack.c.b16 %v4589, %v4582
    %v5017 = vpack.c.b16 %v4590, %v4583
    %v5018 = vpack.c.b16 %v4591, %v4584
    %v5019 = vpack.c.b16 %v4592, %v4585
    %v5020 = vpack.c.b16 %v4593, %v4586
    %v5021 = vpack.c.b16 %v4594, %v4587
    %v5022 = vpack.c.b16 %v4595, %v4588
    %v5023 = vpack.c.b16 %v4603, %v4596
    %v5024 = vpack.c.b16 %v4604, %v4597
    %v5025 = vpack.c.b16 %v4605, %v4598
    %v5026 = vpack.c.b16 %v4606, %v4599
    %v5027 = vpack.c.b16 %v4607, %v4600
    %v5028 = vpack.c.b16 %v4608, %v4601
    %v5029 = vpack.c.b16 %v4609, %v4602
    %v5030 = vpack.c.b16 %v4617, %v4610
    %v5031 = vpack.c.b16 %v4618, %v4611
    %v5032 = vpack.c.b16 %v4619, %v4612
    %v5033 = vpack.c.b16 %v4620, %v4613
    %v5034 = vpack.c.b16 %v4621, %v4614
    %v5035 = vpack.c.b16 %v4622, %v4615
    %v5036 = vpack.c.b16 %v4623, %v4616
    %v5037 = vpack.c.b16 %v4631, %v4624
    %v5038 = vpack.c.b16 %v4632, %v4625
    %v5039 = vpack.c.b16 %v4633, %v4626
    %v5040 = vpack.c.b16 %v4634, %v4627
    %v5041 = vpack.c.b16 %v4635, %v4628
    %v5042 = vpack.c.b16 %v4636, %v4629
    %v5043 = vpack.c.b16 %v4637, %v4630
    %v5044 = vpack.c.b16 %v4645, %v4638
    %v5045 = vpack.c.b16 %v4646, %v4639
    %v5046 = vpack.c.b16 %v4647, %v4640
    %v5047 = vpack.c.b16 %v4648, %v4641
    %v5048 = vpack.c.b16 %v4649, %v4642
    %v5049 = vpack.c.b16 %v4650, %v4643
    %v5050 = vpack.c.b16 %v4651, %v4644
    %v5051 = vpack.c.b16 %v4659, %v4652
    %v5052 = vpack.c.b16 %v4660, %v4653
    %v5053 = vpack.c.b16 %v4661, %v4654
    %v5054 = vpack.c.b16 %v4662, %v4655
    %v5055 = vpack.c.b16 %v4663, %v4656
    %v5056 = vpack.c.b16 %v4664, %v4657
    %v5057 = vpack.c.b16 %v4665, %v4658
    %5450 = vmatpush.bf16.msra.mxu0 %v4715
    %5451 = vmatpush.bf16.msra.mxu0 %v4708
    %5452 = vmatpush.bf16.msra.mxu0 %v4701
    %5453 = vmatpush.bf16.msra.mxu0 %v4694
    %5454 = vmatpush.bf16.msra.mxu0 %v4687
    %5455 = vmatpush.bf16.msra.mxu0 %v4680
    %5456 = vmatpush.bf16.msra.mxu0 %v4673
    %5457 = vmatpush.bf16.msra.mxu0 %v4666
    %5458 = vmatmul.bf16.gmra.mxu0 %v2963
    %v5459 = vpop.f32.mrf.mxu0
    %v5460 = vadd.f32 %v3420, %v5459
    %v5461 = vpop.f32.mrf.mxu0
    %5462 = vdwg.mxu0
    %5463 = vmatpush.bf16.msra.mxu0 %v4771
    %5464 = vmatpush.bf16.msra.mxu0 %v4764
    %5465 = vmatpush.bf16.msra.mxu0 %v4757
    %5466 = vmatpush.bf16.msra.mxu0 %v4750
    %5467 = vmatpush.bf16.msra.mxu0 %v4743
    %5468 = vmatpush.bf16.msra.mxu0 %v4736
    %5469 = vmatpush.bf16.msra.mxu0 %v4729
    %5470 = vmatpush.bf16.msra.mxu0 %v4722
    %5471 = vmatmul.bf16.gmra.mxu0 %v2964
    %v5472 = vpop.f32.mrf.mxu0
    %v5473 = vadd.f32 %v5460, %v5472
    %v5474 = vpop.f32.mrf.mxu0
    %5475 = vdwg.mxu0
    %5476 = vmatpush.bf16.msra.mxu0 %v4827
    %5477 = vmatpush.bf16.msra.mxu0 %v4820
    %5478 = vmatpush.bf16.msra.mxu0 %v4813
    %5479 = vmatpush.bf16.msra.mxu0 %v4806
    %5480 = vmatpush.bf16.msra.mxu0 %v4799
    %5481 = vmatpush.bf16.msra.mxu0 %v4792
    %5482 = vmatpush.bf16.msra.mxu0 %v4785
    %5483 = vmatpush.bf16.msra.mxu0 %v4778
    %5484 = vmatmul.bf16.gmra.mxu0 %v2965
    %v5485 = vpop.f32.mrf.mxu0
    %v5486 = vadd.f32 %v5473, %v5485
    %v5487 = vpop.f32.mrf.mxu0
    %5488 = vdwg.mxu0
    %5489 = vmatpush.bf16.msra.mxu0 %v4883
    %5490 = vmatpush.bf16.msra.mxu0 %v4876
    %5491 = vmatpush.bf16.msra.mxu0 %v4869
    %5492 = vmatpush.bf16.msra.mxu0 %v4862
    %5493 = vmatpush.bf16.msra.mxu0 %v4855
    %5494 = vmatpush.bf16.msra.mxu0 %v4848
    %5495 = vmatpush.bf16.msra.mxu0 %v4841
    %5496 = vmatpush.bf16.msra.mxu0 %v4834
    %5497 = vmatmul.bf16.gmra.mxu0 %v2966
    %v5498 = vpop.f32.mrf.mxu0
    %v5499 = vadd.f32 %v5486, %v5498
    %v5500 = vpop.f32.mrf.mxu0
    %5501 = vdwg.mxu0
    %5502 = vmatpush.bf16.msra.mxu0 %v4939
    %5503 = vmatpush.bf16.msra.mxu0 %v4932
    %5504 = vmatpush.bf16.msra.mxu0 %v4925
    %5505 = vmatpush.bf16.msra.mxu0 %v4918
    %5506 = vmatpush.bf16.msra.mxu0 %v4911
    %5507 = vmatpush.bf16.msra.mxu0 %v4904
    %5508 = vmatpush.bf16.msra.mxu0 %v4897
    %5509 = vmatpush.bf16.msra.mxu0 %v4890
    %5510 = vmatmul.bf16.gmra.mxu0 %v2967
    %v5511 = vpop.f32.mrf.mxu0
    %v5512 = vadd.f32 %v5499, %v5511
    %v5513 = vpop.f32.mrf.mxu0
    %5514 = vdwg.mxu0
    %5515 = vmatpush.bf16.msra.mxu0 %v4995
    %5516 = vmatpush.bf16.msra.mxu0 %v4988
    %5517 = vmatpush.bf16.msra.mxu0 %v4981
    %5518 = vmatpush.bf16.msra.mxu0 %v4974
    %5519 = vmatpush.bf16.msra.mxu0 %v4967
    %5520 = vmatpush.bf16.msra.mxu0 %v4960
    %5521 = vmatpush.bf16.msra.mxu0 %v4953
    %5522 = vmatpush.bf16.msra.mxu0 %v4946
    %5523 = vmatmul.bf16.gmra.mxu0 %v2968
    %v5524 = vpop.f32.mrf.mxu0
    %v5525 = vadd.f32 %v5512, %v5524
    %v5526 = vpop.f32.mrf.mxu0
    %5527 = vdwg.mxu0
    %5528 = vmatpush.bf16.msra.mxu0 %v5051
    %5529 = vmatpush.bf16.msra.mxu0 %v5044
    %5530 = vmatpush.bf16.msra.mxu0 %v5037
    %5531 = vmatpush.bf16.msra.mxu0 %v5030
    %5532 = vmatpush.bf16.msra.mxu0 %v5023
    %5533 = vmatpush.bf16.msra.mxu0 %v5016
    %5534 = vmatpush.bf16.msra.mxu0 %v5009
    %5535 = vmatpush.bf16.msra.mxu0 %v5002
    %5536 = vmatmul.bf16.gmra.mxu0 %v2969
    %v5537 = vpop.f32.mrf.mxu0
    %v5538 = vadd.f32 %v5525, %v5537
    %v5539 = vpop.f32.mrf.mxu0
    %5540 = vdwg.mxu0
    %5541 = vmatpush.bf16.msra.mxu0 %v4716
    %5542 = vmatpush.bf16.msra.mxu0 %v4709
    %5543 = vmatpush.bf16.msra.mxu0 %v4702
    %5544 = vmatpush.bf16.msra.mxu0 %v4695
    %5545 = vmatpush.bf16.msra.mxu0 %v4688
    %5546 = vmatpush.bf16.msra.mxu0 %v4681
    %5547 = vmatpush.bf16.msra.mxu0 %v4674
    %5548 = vmatpush.bf16.msra.mxu0 %v4667
    %5549 = vmatmul.bf16.gmra.mxu0 %v2963
    %v5550 = vpop.f32.mrf.mxu0
    %v5551 = vadd.f32 %v3421, %v5550
    %v5552 = vpop.f32.mrf.mxu0
    %5553 = vdwg.mxu0
    %5554 = vmatpush.bf16.msra.mxu0 %v4772
    %5555 = vmatpush.bf16.msra.mxu0 %v4765
    %5556 = vmatpush.bf16.msra.mxu0 %v4758
    %5557 = vmatpush.bf16.msra.mxu0 %v4751
    %5558 = vmatpush.bf16.msra.mxu0 %v4744
    %5559 = vmatpush.bf16.msra.mxu0 %v4737
    %5560 = vmatpush.bf16.msra.mxu0 %v4730
    %5561 = vmatpush.bf16.msra.mxu0 %v4723
    %5562 = vmatmul.bf16.gmra.mxu0 %v2964
    %v5563 = vpop.f32.mrf.mxu0
    %v5564 = vadd.f32 %v5551, %v5563
    %v5565 = vpop.f32.mrf.mxu0
    %5566 = vdwg.mxu0
    %5567 = vmatpush.bf16.msra.mxu0 %v4828
    %5568 = vmatpush.bf16.msra.mxu0 %v4821
    %5569 = vmatpush.bf16.msra.mxu0 %v4814
    %5570 = vmatpush.bf16.msra.mxu0 %v4807
    %5571 = vmatpush.bf16.msra.mxu0 %v4800
    %5572 = vmatpush.bf16.msra.mxu0 %v4793
    %5573 = vmatpush.bf16.msra.mxu0 %v4786
    %5574 = vmatpush.bf16.msra.mxu0 %v4779
    %5575 = vmatmul.bf16.gmra.mxu0 %v2965
    %v5576 = vpop.f32.mrf.mxu0
    %v5577 = vadd.f32 %v5564, %v5576
    %v5578 = vpop.f32.mrf.mxu0
    %5579 = vdwg.mxu0
    %5580 = vmatpush.bf16.msra.mxu0 %v4884
    %5581 = vmatpush.bf16.msra.mxu0 %v4877
    %5582 = vmatpush.bf16.msra.mxu0 %v4870
    %5583 = vmatpush.bf16.msra.mxu0 %v4863
    %5584 = vmatpush.bf16.msra.mxu0 %v4856
    %5585 = vmatpush.bf16.msra.mxu0 %v4849
    %5586 = vmatpush.bf16.msra.mxu0 %v4842
    %5587 = vmatpush.bf16.msra.mxu0 %v4835
    %5588 = vmatmul.bf16.gmra.mxu0 %v2966
    %v5589 = vpop.f32.mrf.mxu0
    %v5590 = vadd.f32 %v5577, %v5589
    %v5591 = vpop.f32.mrf.mxu0
    %5592 = vdwg.mxu0
    %5593 = vmatpush.bf16.msra.mxu0 %v4940
    %5594 = vmatpush.bf16.msra.mxu0 %v4933
    %5595 = vmatpush.bf16.msra.mxu0 %v4926
    %5596 = vmatpush.bf16.msra.mxu0 %v4919
    %5597 = vmatpush.bf16.msra.mxu0 %v4912
    %5598 = vmatpush.bf16.msra.mxu0 %v4905
    %5599 = vmatpush.bf16.msra.mxu0 %v4898
    %5600 = vmatpush.bf16.msra.mxu0 %v4891
    %5601 = vmatmul.bf16.gmra.mxu0 %v2967
    %v5602 = vpop.f32.mrf.mxu0
    %v5603 = vadd.f32 %v5590, %v5602
    %v5604 = vpop.f32.mrf.mxu0
    %5605 = vdwg.mxu0
    %5606 = vmatpush.bf16.msra.mxu0 %v4996
    %5607 = vmatpush.bf16.msra.mxu0 %v4989
    %5608 = vmatpush.bf16.msra.mxu0 %v4982
    %5609 = vmatpush.bf16.msra.mxu0 %v4975
    %5610 = vmatpush.bf16.msra.mxu0 %v4968
    %5611 = vmatpush.bf16.msra.mxu0 %v4961
    %5612 = vmatpush.bf16.msra.mxu0 %v4954
    %5613 = vmatpush.bf16.msra.mxu0 %v4947
    %5614 = vmatmul.bf16.gmra.mxu0 %v2968
    %v5615 = vpop.f32.mrf.mxu0
    %v5616 = vadd.f32 %v5603, %v5615
    %v5617 = vpop.f32.mrf.mxu0
    %5618 = vdwg.mxu0
    %5619 = vmatpush.bf16.msra.mxu0 %v5052
    %5620 = vmatpush.bf16.msra.mxu0 %v5045
    %5621 = vmatpush.bf16.msra.mxu0 %v5038
    %5622 = vmatpush.bf16.msra.mxu0 %v5031
    %5623 = vmatpush.bf16.msra.mxu0 %v5024
    %5624 = vmatpush.bf16.msra.mxu0 %v5017
    %5625 = vmatpush.bf16.msra.mxu0 %v5010
    %5626 = vmatpush.bf16.msra.mxu0 %v5003
    %5627 = vmatmul.bf16.gmra.mxu0 %v2969
    %v5628 = vpop.f32.mrf.mxu0
    %v5629 = vadd.f32 %v5616, %v5628
    %v5630 = vpop.f32.mrf.mxu0
    %5631 = vdwg.mxu0
    %5632 = vmatpush.bf16.msra.mxu0 %v4717
    %5633 = vmatpush.bf16.msra.mxu0 %v4710
    %5634 = vmatpush.bf16.msra.mxu0 %v4703
    %5635 = vmatpush.bf16.msra.mxu0 %v4696
    %5636 = vmatpush.bf16.msra.mxu0 %v4689
    %5637 = vmatpush.bf16.msra.mxu0 %v4682
    %5638 = vmatpush.bf16.msra.mxu0 %v4675
    %5639 = vmatpush.bf16.msra.mxu0 %v4668
    %5640 = vmatmul.bf16.gmra.mxu0 %v2963
    %v5641 = vpop.f32.mrf.mxu0
    %v5642 = vadd.f32 %v3422, %v5641
    %v5643 = vpop.f32.mrf.mxu0
    %5644 = vdwg.mxu0
    %5645 = vmatpush.bf16.msra.mxu0 %v4773
    %5646 = vmatpush.bf16.msra.mxu0 %v4766
    %5647 = vmatpush.bf16.msra.mxu0 %v4759
    %5648 = vmatpush.bf16.msra.mxu0 %v4752
    %5649 = vmatpush.bf16.msra.mxu0 %v4745
    %5650 = vmatpush.bf16.msra.mxu0 %v4738
    %5651 = vmatpush.bf16.msra.mxu0 %v4731
    %5652 = vmatpush.bf16.msra.mxu0 %v4724
    %5653 = vmatmul.bf16.gmra.mxu0 %v2964
    %v5654 = vpop.f32.mrf.mxu0
    %v5655 = vadd.f32 %v5642, %v5654
    %v5656 = vpop.f32.mrf.mxu0
    %5657 = vdwg.mxu0
    %5658 = vmatpush.bf16.msra.mxu0 %v4829
    %5659 = vmatpush.bf16.msra.mxu0 %v4822
    %5660 = vmatpush.bf16.msra.mxu0 %v4815
    %5661 = vmatpush.bf16.msra.mxu0 %v4808
    %5662 = vmatpush.bf16.msra.mxu0 %v4801
    %5663 = vmatpush.bf16.msra.mxu0 %v4794
    %5664 = vmatpush.bf16.msra.mxu0 %v4787
    %5665 = vmatpush.bf16.msra.mxu0 %v4780
    %5666 = vmatmul.bf16.gmra.mxu0 %v2965
    %v5667 = vpop.f32.mrf.mxu0
    %v5668 = vadd.f32 %v5655, %v5667
    %v5669 = vpop.f32.mrf.mxu0
    %5670 = vdwg.mxu0
    %5671 = vmatpush.bf16.msra.mxu0 %v4885
    %5672 = vmatpush.bf16.msra.mxu0 %v4878
    %5673 = vmatpush.bf16.msra.mxu0 %v4871
    %5674 = vmatpush.bf16.msra.mxu0 %v4864
    %5675 = vmatpush.bf16.msra.mxu0 %v4857
    %5676 = vmatpush.bf16.msra.mxu0 %v4850
    %5677 = vmatpush.bf16.msra.mxu0 %v4843
    %5678 = vmatpush.bf16.msra.mxu0 %v4836
    %5679 = vmatmul.bf16.gmra.mxu0 %v2966
    %v5680 = vpop.f32.mrf.mxu0
    %v5681 = vadd.f32 %v5668, %v5680
    %v5682 = vpop.f32.mrf.mxu0
    %5683 = vdwg.mxu0
    %5684 = vmatpush.bf16.msra.mxu0 %v4941
    %5685 = vmatpush.bf16.msra.mxu0 %v4934
    %5686 = vmatpush.bf16.msra.mxu0 %v4927
    %5687 = vmatpush.bf16.msra.mxu0 %v4920
    %5688 = vmatpush.bf16.msra.mxu0 %v4913
    %5689 = vmatpush.bf16.msra.mxu0 %v4906
    %5690 = vmatpush.bf16.msra.mxu0 %v4899
    %5691 = vmatpush.bf16.msra.mxu0 %v4892
    %5692 = vmatmul.bf16.gmra.mxu0 %v2967
    %v5693 = vpop.f32.mrf.mxu0
    %v5694 = vadd.f32 %v5681, %v5693
    %v5695 = vpop.f32.mrf.mxu0
    %5696 = vdwg.mxu0
    %5697 = vmatpush.bf16.msra.mxu0 %v4997
    %5698 = vmatpush.bf16.msra.mxu0 %v4990
    %5699 = vmatpush.bf16.msra.mxu0 %v4983
    %5700 = vmatpush.bf16.msra.mxu0 %v4976
    %5701 = vmatpush.bf16.msra.mxu0 %v4969
    %5702 = vmatpush.bf16.msra.mxu0 %v4962
    %5703 = vmatpush.bf16.msra.mxu0 %v4955
    %5704 = vmatpush.bf16.msra.mxu0 %v4948
    %5705 = vmatmul.bf16.gmra.mxu0 %v2968
    %v5706 = vpop.f32.mrf.mxu0
    %v5707 = vadd.f32 %v5694, %v5706
    %v5708 = vpop.f32.mrf.mxu0
    %5709 = vdwg.mxu0
    %5710 = vmatpush.bf16.msra.mxu0 %v5053
    %5711 = vmatpush.bf16.msra.mxu0 %v5046
    %5712 = vmatpush.bf16.msra.mxu0 %v5039
    %5713 = vmatpush.bf16.msra.mxu0 %v5032
    %5714 = vmatpush.bf16.msra.mxu0 %v5025
    %5715 = vmatpush.bf16.msra.mxu0 %v5018
    %5716 = vmatpush.bf16.msra.mxu0 %v5011
    %5717 = vmatpush.bf16.msra.mxu0 %v5004
    %5718 = vmatmul.bf16.gmra.mxu0 %v2969
    %v5719 = vpop.f32.mrf.mxu0
    %v5720 = vadd.f32 %v5707, %v5719
    %v5721 = vpop.f32.mrf.mxu0
    %5722 = vdwg.mxu0
    %5723 = vmatpush.bf16.msra.mxu0 %v4718
    %5724 = vmatpush.bf16.msra.mxu0 %v4711
    %5725 = vmatpush.bf16.msra.mxu0 %v4704
    %5726 = vmatpush.bf16.msra.mxu0 %v4697
    %5727 = vmatpush.bf16.msra.mxu0 %v4690
    %5728 = vmatpush.bf16.msra.mxu0 %v4683
    %5729 = vmatpush.bf16.msra.mxu0 %v4676
    %5730 = vmatpush.bf16.msra.mxu0 %v4669
    %5731 = vmatmul.bf16.gmra.mxu0 %v2963
    %v5732 = vpop.f32.mrf.mxu0
    %v5733 = vadd.f32 %v3423, %v5732
    %v5734 = vpop.f32.mrf.mxu0
    %5735 = vdwg.mxu0
    %5736 = vmatpush.bf16.msra.mxu0 %v4774
    %5737 = vmatpush.bf16.msra.mxu0 %v4767
    %5738 = vmatpush.bf16.msra.mxu0 %v4760
    %5739 = vmatpush.bf16.msra.mxu0 %v4753
    %5740 = vmatpush.bf16.msra.mxu0 %v4746
    %5741 = vmatpush.bf16.msra.mxu0 %v4739
    %5742 = vmatpush.bf16.msra.mxu0 %v4732
    %5743 = vmatpush.bf16.msra.mxu0 %v4725
    %5744 = vmatmul.bf16.gmra.mxu0 %v2964
    %v5745 = vpop.f32.mrf.mxu0
    %v5746 = vadd.f32 %v5733, %v5745
    %v5747 = vpop.f32.mrf.mxu0
    %5748 = vdwg.mxu0
    %5749 = vmatpush.bf16.msra.mxu0 %v4830
    %5750 = vmatpush.bf16.msra.mxu0 %v4823
    %5751 = vmatpush.bf16.msra.mxu0 %v4816
    %5752 = vmatpush.bf16.msra.mxu0 %v4809
    %5753 = vmatpush.bf16.msra.mxu0 %v4802
    %5754 = vmatpush.bf16.msra.mxu0 %v4795
    %5755 = vmatpush.bf16.msra.mxu0 %v4788
    %5756 = vmatpush.bf16.msra.mxu0 %v4781
    %5757 = vmatmul.bf16.gmra.mxu0 %v2965
    %v5758 = vpop.f32.mrf.mxu0
    %v5759 = vadd.f32 %v5746, %v5758
    %v5760 = vpop.f32.mrf.mxu0
    %5761 = vdwg.mxu0
    %5762 = vmatpush.bf16.msra.mxu0 %v4886
    %5763 = vmatpush.bf16.msra.mxu0 %v4879
    %5764 = vmatpush.bf16.msra.mxu0 %v4872
    %5765 = vmatpush.bf16.msra.mxu0 %v4865
    %5766 = vmatpush.bf16.msra.mxu0 %v4858
    %5767 = vmatpush.bf16.msra.mxu0 %v4851
    %5768 = vmatpush.bf16.msra.mxu0 %v4844
    %5769 = vmatpush.bf16.msra.mxu0 %v4837
    %5770 = vmatmul.bf16.gmra.mxu0 %v2966
    %v5771 = vpop.f32.mrf.mxu0
    %v5772 = vadd.f32 %v5759, %v5771
    %v5773 = vpop.f32.mrf.mxu0
    %5774 = vdwg.mxu0
    %5775 = vmatpush.bf16.msra.mxu0 %v4942
    %5776 = vmatpush.bf16.msra.mxu0 %v4935
    %5777 = vmatpush.bf16.msra.mxu0 %v4928
    %5778 = vmatpush.bf16.msra.mxu0 %v4921
    %5779 = vmatpush.bf16.msra.mxu0 %v4914
    %5780 = vmatpush.bf16.msra.mxu0 %v4907
    %5781 = vmatpush.bf16.msra.mxu0 %v4900
    %5782 = vmatpush.bf16.msra.mxu0 %v4893
    %5783 = vmatmul.bf16.gmra.mxu0 %v2967
    %v5784 = vpop.f32.mrf.mxu0
    %v5785 = vadd.f32 %v5772, %v5784
    %v5786 = vpop.f32.mrf.mxu0
    %5787 = vdwg.mxu0
    %5788 = vmatpush.bf16.msra.mxu0 %v4998
    %5789 = vmatpush.bf16.msra.mxu0 %v4991
    %5790 = vmatpush.bf16.msra.mxu0 %v4984
    %5791 = vmatpush.bf16.msra.mxu0 %v4977
    %5792 = vmatpush.bf16.msra.mxu0 %v4970
    %5793 = vmatpush.bf16.msra.mxu0 %v4963
    %5794 = vmatpush.bf16.msra.mxu0 %v4956
    %5795 = vmatpush.bf16.msra.mxu0 %v4949
    %5796 = vmatmul.bf16.gmra.mxu0 %v2968
    %v5797 = vpop.f32.mrf.mxu0
    %v5798 = vadd.f32 %v5785, %v5797
    %v5799 = vpop.f32.mrf.mxu0
    %5800 = vdwg.mxu0
    %5801 = vmatpush.bf16.msra.mxu0 %v5054
    %5802 = vmatpush.bf16.msra.mxu0 %v5047
    %5803 = vmatpush.bf16.msra.mxu0 %v5040
    %5804 = vmatpush.bf16.msra.mxu0 %v5033
    %5805 = vmatpush.bf16.msra.mxu0 %v5026
    %5806 = vmatpush.bf16.msra.mxu0 %v5019
    %5807 = vmatpush.bf16.msra.mxu0 %v5012
    %5808 = vmatpush.bf16.msra.mxu0 %v5005
    %5809 = vmatmul.bf16.gmra.mxu0 %v2969
    %v5810 = vpop.f32.mrf.mxu0
    %v5811 = vadd.f32 %v5798, %v5810
    %v5812 = vpop.f32.mrf.mxu0
    %5813 = vdwg.mxu0
    %5814 = vmatpush.bf16.msra.mxu0 %v4719
    %5815 = vmatpush.bf16.msra.mxu0 %v4712
    %5816 = vmatpush.bf16.msra.mxu0 %v4705
    %5817 = vmatpush.bf16.msra.mxu0 %v4698
    %5818 = vmatpush.bf16.msra.mxu0 %v4691
    %5819 = vmatpush.bf16.msra.mxu0 %v4684
    %5820 = vmatpush.bf16.msra.mxu0 %v4677
    %5821 = vmatpush.bf16.msra.mxu0 %v4670
    %5822 = vmatmul.bf16.gmra.mxu0 %v2963
    %v5823 = vpop.f32.mrf.mxu0
    %v5824 = vadd.f32 %v3424, %v5823
    %v5825 = vpop.f32.mrf.mxu0
    %5826 = vdwg.mxu0
    %5827 = vmatpush.bf16.msra.mxu0 %v4775
    %5828 = vmatpush.bf16.msra.mxu0 %v4768
    %5829 = vmatpush.bf16.msra.mxu0 %v4761
    %5830 = vmatpush.bf16.msra.mxu0 %v4754
    %5831 = vmatpush.bf16.msra.mxu0 %v4747
    %5832 = vmatpush.bf16.msra.mxu0 %v4740
    %5833 = vmatpush.bf16.msra.mxu0 %v4733
    %5834 = vmatpush.bf16.msra.mxu0 %v4726
    %5835 = vmatmul.bf16.gmra.mxu0 %v2964
    %v5836 = vpop.f32.mrf.mxu0
    %v5837 = vadd.f32 %v5824, %v5836
    %v5838 = vpop.f32.mrf.mxu0
    %5839 = vdwg.mxu0
    %5840 = vmatpush.bf16.msra.mxu0 %v4831
    %5841 = vmatpush.bf16.msra.mxu0 %v4824
    %5842 = vmatpush.bf16.msra.mxu0 %v4817
    %5843 = vmatpush.bf16.msra.mxu0 %v4810
    %5844 = vmatpush.bf16.msra.mxu0 %v4803
    %5845 = vmatpush.bf16.msra.mxu0 %v4796
    %5846 = vmatpush.bf16.msra.mxu0 %v4789
    %5847 = vmatpush.bf16.msra.mxu0 %v4782
    %5848 = vmatmul.bf16.gmra.mxu0 %v2965
    %v5849 = vpop.f32.mrf.mxu0
    %v5850 = vadd.f32 %v5837, %v5849
    %v5851 = vpop.f32.mrf.mxu0
    %5852 = vdwg.mxu0
    %5853 = vmatpush.bf16.msra.mxu0 %v4887
    %5854 = vmatpush.bf16.msra.mxu0 %v4880
    %5855 = vmatpush.bf16.msra.mxu0 %v4873
    %5856 = vmatpush.bf16.msra.mxu0 %v4866
    %5857 = vmatpush.bf16.msra.mxu0 %v4859
    %5858 = vmatpush.bf16.msra.mxu0 %v4852
    %5859 = vmatpush.bf16.msra.mxu0 %v4845
    %5860 = vmatpush.bf16.msra.mxu0 %v4838
    %5861 = vmatmul.bf16.gmra.mxu0 %v2966
    %v5862 = vpop.f32.mrf.mxu0
    %v5863 = vadd.f32 %v5850, %v5862
    %v5864 = vpop.f32.mrf.mxu0
    %5865 = vdwg.mxu0
    %5866 = vmatpush.bf16.msra.mxu0 %v4943
    %5867 = vmatpush.bf16.msra.mxu0 %v4936
    %5868 = vmatpush.bf16.msra.mxu0 %v4929
    %5869 = vmatpush.bf16.msra.mxu0 %v4922
    %5870 = vmatpush.bf16.msra.mxu0 %v4915
    %5871 = vmatpush.bf16.msra.mxu0 %v4908
    %5872 = vmatpush.bf16.msra.mxu0 %v4901
    %5873 = vmatpush.bf16.msra.mxu0 %v4894
    %5874 = vmatmul.bf16.gmra.mxu0 %v2967
    %v5875 = vpop.f32.mrf.mxu0
    %v5876 = vadd.f32 %v5863, %v5875
    %v5877 = vpop.f32.mrf.mxu0
    %5878 = vdwg.mxu0
    %5879 = vmatpush.bf16.msra.mxu0 %v4999
    %5880 = vmatpush.bf16.msra.mxu0 %v4992
    %5881 = vmatpush.bf16.msra.mxu0 %v4985
    %5882 = vmatpush.bf16.msra.mxu0 %v4978
    %5883 = vmatpush.bf16.msra.mxu0 %v4971
    %5884 = vmatpush.bf16.msra.mxu0 %v4964
    %5885 = vmatpush.bf16.msra.mxu0 %v4957
    %5886 = vmatpush.bf16.msra.mxu0 %v4950
    %5887 = vmatmul.bf16.gmra.mxu0 %v2968
    %v5888 = vpop.f32.mrf.mxu0
    %v5889 = vadd.f32 %v5876, %v5888
    %v5890 = vpop.f32.mrf.mxu0
    %5891 = vdwg.mxu0
    %5892 = vmatpush.bf16.msra.mxu0 %v5055
    %5893 = vmatpush.bf16.msra.mxu0 %v5048
    %5894 = vmatpush.bf16.msra.mxu0 %v5041
    %5895 = vmatpush.bf16.msra.mxu0 %v5034
    %5896 = vmatpush.bf16.msra.mxu0 %v5027
    %5897 = vmatpush.bf16.msra.mxu0 %v5020
    %5898 = vmatpush.bf16.msra.mxu0 %v5013
    %5899 = vmatpush.bf16.msra.mxu0 %v5006
    %5900 = vmatmul.bf16.gmra.mxu0 %v2969
    %v5901 = vpop.f32.mrf.mxu0
    %v5902 = vadd.f32 %v5889, %v5901
    %v5903 = vpop.f32.mrf.mxu0
    %5904 = vdwg.mxu0
    %5905 = vmatpush.bf16.msra.mxu0 %v4720
    %5906 = vmatpush.bf16.msra.mxu0 %v4713
    %5907 = vmatpush.bf16.msra.mxu0 %v4706
    %5908 = vmatpush.bf16.msra.mxu0 %v4699
    %5909 = vmatpush.bf16.msra.mxu0 %v4692
    %5910 = vmatpush.bf16.msra.mxu0 %v4685
    %5911 = vmatpush.bf16.msra.mxu0 %v4678
    %5912 = vmatpush.bf16.msra.mxu0 %v4671
    %5913 = vmatmul.bf16.gmra.mxu0 %v2963
    %v5914 = vpop.f32.mrf.mxu0
    %v5915 = vadd.f32 %v3425, %v5914
    %v5916 = vpop.f32.mrf.mxu0
    %5917 = vdwg.mxu0
    %5918 = vmatpush.bf16.msra.mxu0 %v4776
    %5919 = vmatpush.bf16.msra.mxu0 %v4769
    %5920 = vmatpush.bf16.msra.mxu0 %v4762
    %5921 = vmatpush.bf16.msra.mxu0 %v4755
    %5922 = vmatpush.bf16.msra.mxu0 %v4748
    %5923 = vmatpush.bf16.msra.mxu0 %v4741
    %5924 = vmatpush.bf16.msra.mxu0 %v4734
    %5925 = vmatpush.bf16.msra.mxu0 %v4727
    %5926 = vmatmul.bf16.gmra.mxu0 %v2964
    %v5927 = vpop.f32.mrf.mxu0
    %v5928 = vadd.f32 %v5915, %v5927
    %v5929 = vpop.f32.mrf.mxu0
    %5930 = vdwg.mxu0
    %5931 = vmatpush.bf16.msra.mxu0 %v4832
    %5932 = vmatpush.bf16.msra.mxu0 %v4825
    %5933 = vmatpush.bf16.msra.mxu0 %v4818
    %5934 = vmatpush.bf16.msra.mxu0 %v4811
    %5935 = vmatpush.bf16.msra.mxu0 %v4804
    %5936 = vmatpush.bf16.msra.mxu0 %v4797
    %5937 = vmatpush.bf16.msra.mxu0 %v4790
    %5938 = vmatpush.bf16.msra.mxu0 %v4783
    %5939 = vmatmul.bf16.gmra.mxu0 %v2965
    %v5940 = vpop.f32.mrf.mxu0
    %v5941 = vadd.f32 %v5928, %v5940
    %v5942 = vpop.f32.mrf.mxu0
    %5943 = vdwg.mxu0
    %5944 = vmatpush.bf16.msra.mxu0 %v4888
    %5945 = vmatpush.bf16.msra.mxu0 %v4881
    %5946 = vmatpush.bf16.msra.mxu0 %v4874
    %5947 = vmatpush.bf16.msra.mxu0 %v4867
    %5948 = vmatpush.bf16.msra.mxu0 %v4860
    %5949 = vmatpush.bf16.msra.mxu0 %v4853
    %5950 = vmatpush.bf16.msra.mxu0 %v4846
    %5951 = vmatpush.bf16.msra.mxu0 %v4839
    %5952 = vmatmul.bf16.gmra.mxu0 %v2966
    %v5953 = vpop.f32.mrf.mxu0
    %v5954 = vadd.f32 %v5941, %v5953
    %v5955 = vpop.f32.mrf.mxu0
    %5956 = vdwg.mxu0
    %5957 = vmatpush.bf16.msra.mxu0 %v4944
    %5958 = vmatpush.bf16.msra.mxu0 %v4937
    %5959 = vmatpush.bf16.msra.mxu0 %v4930
    %5960 = vmatpush.bf16.msra.mxu0 %v4923
    %5961 = vmatpush.bf16.msra.mxu0 %v4916
    %5962 = vmatpush.bf16.msra.mxu0 %v4909
    %5963 = vmatpush.bf16.msra.mxu0 %v4902
    %5964 = vmatpush.bf16.msra.mxu0 %v4895
    %5965 = vmatmul.bf16.gmra.mxu0 %v2967
    %v5966 = vpop.f32.mrf.mxu0
    %v5967 = vadd.f32 %v5954, %v5966
    %v5968 = vpop.f32.mrf.mxu0
    %5969 = vdwg.mxu0
    %5970 = vmatpush.bf16.msra.mxu0 %v5000
    %5971 = vmatpush.bf16.msra.mxu0 %v4993
    %5972 = vmatpush.bf16.msra.mxu0 %v4986
    %5973 = vmatpush.bf16.msra.mxu0 %v4979
    %5974 = vmatpush.bf16.msra.mxu0 %v4972
    %5975 = vmatpush.bf16.msra.mxu0 %v4965
    %5976 = vmatpush.bf16.msra.mxu0 %v4958
    %5977 = vmatpush.bf16.msra.mxu0 %v4951
    %5978 = vmatmul.bf16.gmra.mxu0 %v2968
    %v5979 = vpop.f32.mrf.mxu0
    %v5980 = vadd.f32 %v5967, %v5979
    %v5981 = vpop.f32.mrf.mxu0
    %5982 = vdwg.mxu0
    %5983 = vmatpush.bf16.msra.mxu0 %v5056
    %5984 = vmatpush.bf16.msra.mxu0 %v5049
    %5985 = vmatpush.bf16.msra.mxu0 %v5042
    %5986 = vmatpush.bf16.msra.mxu0 %v5035
    %5987 = vmatpush.bf16.msra.mxu0 %v5028
    %5988 = vmatpush.bf16.msra.mxu0 %v5021
    %5989 = vmatpush.bf16.msra.mxu0 %v5014
    %5990 = vmatpush.bf16.msra.mxu0 %v5007
    %5991 = vmatmul.bf16.gmra.mxu0 %v2969
    %v5992 = vpop.f32.mrf.mxu0
    %v5993 = vadd.f32 %v5980, %v5992
    %v5994 = vpop.f32.mrf.mxu0
    %5995 = vdwg.mxu0
    %5996 = vmatpush.bf16.msra.mxu0 %v4721
    %5997 = vmatpush.bf16.msra.mxu0 %v4714
    %5998 = vmatpush.bf16.msra.mxu0 %v4707
    %5999 = vmatpush.bf16.msra.mxu0 %v4700
    %6000 = vmatpush.bf16.msra.mxu0 %v4693
    %6001 = vmatpush.bf16.msra.mxu0 %v4686
    %6002 = vmatpush.bf16.msra.mxu0 %v4679
    %6003 = vmatpush.bf16.msra.mxu0 %v4672
    %6004 = vmatmul.bf16.gmra.mxu0 %v2963
    %v6005 = vpop.f32.mrf.mxu0
    %v6006 = vadd.f32 %v3426, %v6005
    %v6007 = vpop.f32.mrf.mxu0
    %6008 = vdwg.mxu0
    %6009 = vmatpush.bf16.msra.mxu0 %v4777
    %6010 = vmatpush.bf16.msra.mxu0 %v4770
    %6011 = vmatpush.bf16.msra.mxu0 %v4763
    %6012 = vmatpush.bf16.msra.mxu0 %v4756
    %6013 = vmatpush.bf16.msra.mxu0 %v4749
    %6014 = vmatpush.bf16.msra.mxu0 %v4742
    %6015 = vmatpush.bf16.msra.mxu0 %v4735
    %6016 = vmatpush.bf16.msra.mxu0 %v4728
    %6017 = vmatmul.bf16.gmra.mxu0 %v2964
    %v6018 = vpop.f32.mrf.mxu0
    %v6019 = vadd.f32 %v6006, %v6018
    %v6020 = vpop.f32.mrf.mxu0
    %6021 = vdwg.mxu0
    %6022 = vmatpush.bf16.msra.mxu0 %v4833
    %6023 = vmatpush.bf16.msra.mxu0 %v4826
    %6024 = vmatpush.bf16.msra.mxu0 %v4819
    %6025 = vmatpush.bf16.msra.mxu0 %v4812
    %6026 = vmatpush.bf16.msra.mxu0 %v4805
    %6027 = vmatpush.bf16.msra.mxu0 %v4798
    %6028 = vmatpush.bf16.msra.mxu0 %v4791
    %6029 = vmatpush.bf16.msra.mxu0 %v4784
    %6030 = vmatmul.bf16.gmra.mxu0 %v2965
    %v6031 = vpop.f32.mrf.mxu0
    %v6032 = vadd.f32 %v6019, %v6031
    %v6033 = vpop.f32.mrf.mxu0
    %6034 = vdwg.mxu0
    %6035 = vmatpush.bf16.msra.mxu0 %v4889
    %6036 = vmatpush.bf16.msra.mxu0 %v4882
    %6037 = vmatpush.bf16.msra.mxu0 %v4875
    %6038 = vmatpush.bf16.msra.mxu0 %v4868
    %6039 = vmatpush.bf16.msra.mxu0 %v4861
    %6040 = vmatpush.bf16.msra.mxu0 %v4854
    %6041 = vmatpush.bf16.msra.mxu0 %v4847
    %6042 = vmatpush.bf16.msra.mxu0 %v4840
    %6043 = vmatmul.bf16.gmra.mxu0 %v2966
    %v6044 = vpop.f32.mrf.mxu0
    %v6045 = vadd.f32 %v6032, %v6044
    %v6046 = vpop.f32.mrf.mxu0
    %6047 = vdwg.mxu0
    %6048 = vmatpush.bf16.msra.mxu0 %v4945
    %6049 = vmatpush.bf16.msra.mxu0 %v4938
    %6050 = vmatpush.bf16.msra.mxu0 %v4931
    %6051 = vmatpush.bf16.msra.mxu0 %v4924
    %6052 = vmatpush.bf16.msra.mxu0 %v4917
    %6053 = vmatpush.bf16.msra.mxu0 %v4910
    %6054 = vmatpush.bf16.msra.mxu0 %v4903
    %6055 = vmatpush.bf16.msra.mxu0 %v4896
    %6056 = vmatmul.bf16.gmra.mxu0 %v2967
    %v6057 = vpop.f32.mrf.mxu0
    %v6058 = vadd.f32 %v6045, %v6057
    %v6059 = vpop.f32.mrf.mxu0
    %6060 = vdwg.mxu0
    %6061 = vmatpush.bf16.msra.mxu0 %v5001
    %6062 = vmatpush.bf16.msra.mxu0 %v4994
    %6063 = vmatpush.bf16.msra.mxu0 %v4987
    %6064 = vmatpush.bf16.msra.mxu0 %v4980
    %6065 = vmatpush.bf16.msra.mxu0 %v4973
    %6066 = vmatpush.bf16.msra.mxu0 %v4966
    %6067 = vmatpush.bf16.msra.mxu0 %v4959
    %6068 = vmatpush.bf16.msra.mxu0 %v4952
    %6069 = vmatmul.bf16.gmra.mxu0 %v2968
    %v6070 = vpop.f32.mrf.mxu0
    %v6071 = vadd.f32 %v6058, %v6070
    %v6072 = vpop.f32.mrf.mxu0
    %6073 = vdwg.mxu0
    %6074 = vmatpush.bf16.msra.mxu0 %v5057
    %6075 = vmatpush.bf16.msra.mxu0 %v5050
    %6076 = vmatpush.bf16.msra.mxu0 %v5043
    %6077 = vmatpush.bf16.msra.mxu0 %v5036
    %6078 = vmatpush.bf16.msra.mxu0 %v5029
    %6079 = vmatpush.bf16.msra.mxu0 %v5022
    %6080 = vmatpush.bf16.msra.mxu0 %v5015
    %6081 = vmatpush.bf16.msra.mxu0 %v5008
    %6082 = vmatmul.bf16.gmra.mxu0 %v2969
    %v6083 = vpop.f32.mrf.mxu0
    %v6084 = vadd.f32 %v6071, %v6083
    %v6085 = vpop.f32.mrf.mxu0
    %6086 = vdwg.mxu0
    %v6087 = vmax.f32 %v5538, 0.0
    %v6088 = vmax.f32 %v5629, 0.0
    %v6089 = vmax.f32 %v5720, 0.0
    %v6090 = vmax.f32 %v5811, 0.0
    %v6091 = vmax.f32 %v5902, 0.0
    %v6092 = vmax.f32 %v5993, 0.0
    %v6093 = vmax.f32 %v6084, 0.0
    %v6094 = vpack.c.bf16 %v6087, %v6087
    %v6095 = vpack.c.bf16 %v6088, %v6088
    %v6096 = vpack.c.bf16 %v6089, %v6089
    %v6097 = vpack.c.bf16 %v6090, %v6090
    %v6098 = vpack.c.bf16 %v6091, %v6091
    %v6099 = vpack.c.bf16 %v6092, %v6092
    %v6100 = vpack.c.bf16 %v6093, %v6093
    %v6101 = vld [vmem:[#allocation11] sm:$0xf]
    %v6102 = vld [vmem:[#allocation11 + $0x4] sm:$0xf]
    %v6103 = vld [vmem:[#allocation11 + $0x8] sm:$0xf]
    %v6104 = vld [vmem:[#allocation11 + $0xc] sm:$0xf]
    %v6105 = vld [vmem:[#allocation11 + $0x10] sm:$0xf]
    %v6106 = vld [vmem:[#allocation11 + $0x14] sm:$0xf]
    %v6107 = vld [vmem:[#allocation11 + $0x18] sm:$0xf]
    %v6108 = vld [vmem:[#allocation11 + $0x1c] sm:$0xf]
    %v6109 = vld [vmem:[#allocation11 + $0x20] sm:$0xf]
    %v6110 = vld [vmem:[#allocation11 + $0x24] sm:$0xf]
    %v6111 = vld [vmem:[#allocation11 + $0x28] sm:$0xf]
    %v6112 = vld [vmem:[#allocation11 + $0x2c] sm:$0xf]
    %v6113 = vld [vmem:[#allocation11 + $0x30] sm:$0xf]
    %v6114 = vld [vmem:[#allocation11 + $0x34] sm:$0xf]
    %v6115 = vld [vmem:[#allocation11 + $0x38] sm:$0xf]
    %v6116 = vld [vmem:[#allocation11 + $0x3c] sm:$0xf]
    %v6117 = vld [vmem:[#allocation11 + $0x40] sm:$0xf]
    %v6118 = vld [vmem:[#allocation11 + $0x44] sm:$0xf]
    %v6119 = vld [vmem:[#allocation11 + $0x48] sm:$0xf]
    %v6120 = vld [vmem:[#allocation11 + $0x4c] sm:$0xf]
    %v6121 = vld [vmem:[#allocation11 + $0x50] sm:$0xf]
    %v6122 = vld [vmem:[#allocation11 + $0x54] sm:$0xf]
    %v6123 = vld [vmem:[#allocation11 + $0x58] sm:$0xf]
    %v6124 = vld [vmem:[#allocation11 + $0x5c] sm:$0xf]
    %v6125 = vld [vmem:[#allocation11 + $0x60] sm:$0xf]
    %v6126 = vld [vmem:[#allocation11 + $0x64] sm:$0xf]
    %v6127 = vld [vmem:[#allocation11 + $0x68] sm:$0xf]
    %v6128 = vld [vmem:[#allocation11 + $0x6c] sm:$0xf]
    %v6129 = vld [vmem:[#allocation11 + $0x70] sm:$0xf]
    %v6130 = vld [vmem:[#allocation11 + $0x74] sm:$0xf]
    %v6131 = vld [vmem:[#allocation11 + $0x78] sm:$0xf]
    %v6132 = vld [vmem:[#allocation11 + $0x7c] sm:$0xf]
    %v6133 = vld [vmem:[#allocation11 + $0x80] sm:$0xf]
    %v6134 = vld [vmem:[#allocation11 + $0x84] sm:$0xf]
    %v6135 = vld [vmem:[#allocation11 + $0x88] sm:$0xf]
    %v6136 = vld [vmem:[#allocation11 + $0x8c] sm:$0xf]
    %v6137 = vld [vmem:[#allocation11 + $0x90] sm:$0xf]
    %v6138 = vld [vmem:[#allocation11 + $0x94] sm:$0xf]
    %v6139 = vld [vmem:[#allocation11 + $0x98] sm:$0xf]
    %v6140 = vld [vmem:[#allocation11 + $0x9c] sm:$0xf]
    %v6141 = vld [vmem:[#allocation11 + $0xa0] sm:$0xf]
    %v6142 = vld [vmem:[#allocation11 + $0xa4] sm:$0xf]
    %v6143 = vld [vmem:[#allocation11 + $0xa8] sm:$0xf]
    %v6144 = vld [vmem:[#allocation11 + $0xac] sm:$0xf]
    %v6145 = vld [vmem:[#allocation11 + $0xb0] sm:$0xf]
    %v6146 = vld [vmem:[#allocation11 + $0xb4] sm:$0xf]
    %v6147 = vld [vmem:[#allocation11 + $0xb8] sm:$0xf]
    %v6148 = vld [vmem:[#allocation11 + $0xbc] sm:$0xf]
    %v6149 = vld [vmem:[#allocation11 + $0xc0] sm:$0xf]
    %v6150 = vld [vmem:[#allocation11 + $0xc4] sm:$0xf]
    %v6151 = vld [vmem:[#allocation11 + $0xc8] sm:$0xf]
    %v6152 = vld [vmem:[#allocation11 + $0xcc] sm:$0xf]
    %v6153 = vld [vmem:[#allocation11 + $0xd0] sm:$0xf]
    %v6154 = vld [vmem:[#allocation11 + $0xd4] sm:$0xf]
    %v6155 = vld [vmem:[#allocation11 + $0xd8] sm:$0xf]
    %v6156 = vld [vmem:[#allocation11 + $0xdc] sm:$0xf]
    %v6157 = vld [vmem:[#allocation11 + $0xe0] sm:$0xf]
    %v6158 = vld [vmem:[#allocation11 + $0xe4] sm:$0xf]
    %v6159 = vld [vmem:[#allocation11 + $0xe8] sm:$0xf]
    %v6160 = vld [vmem:[#allocation11 + $0xec] sm:$0xf]
    %v6161 = vld [vmem:[#allocation11 + $0xf0] sm:$0xf]
    %v6162 = vld [vmem:[#allocation11 + $0xf4] sm:$0xf]
    %v6163 = vld [vmem:[#allocation11 + $0xf8] sm:$0xf]
    %v6164 = vld [vmem:[#allocation11 + $0xfc] sm:$0xf]
    %v6165 = vld [vmem:[#allocation11 + $0x100] sm:$0xf]
    %v6166 = vld [vmem:[#allocation11 + $0x104] sm:$0xf]
    %v6167 = vld [vmem:[#allocation11 + $0x108] sm:$0xf]
    %v6168 = vld [vmem:[#allocation11 + $0x10c] sm:$0xf]
    %v6169 = vld [vmem:[#allocation11 + $0x110] sm:$0xf]
    %v6170 = vld [vmem:[#allocation11 + $0x114] sm:$0xf]
    %v6171 = vld [vmem:[#allocation11 + $0x118] sm:$0xf]
    %v6172 = vld [vmem:[#allocation11 + $0x11c] sm:$0xf]
    %v6173 = vld [vmem:[#allocation11 + $0x120] sm:$0xf]
    %v6174 = vld [vmem:[#allocation11 + $0x124] sm:$0xf]
    %v6175 = vld [vmem:[#allocation11 + $0x128] sm:$0xf]
    %v6176 = vld [vmem:[#allocation11 + $0x12c] sm:$0xf]
    %v6177 = vld [vmem:[#allocation11 + $0x130] sm:$0xf]
    %v6178 = vld [vmem:[#allocation11 + $0x134] sm:$0xf]
    %v6179 = vld [vmem:[#allocation11 + $0x138] sm:$0xf]
    %v6180 = vld [vmem:[#allocation11 + $0x13c] sm:$0xf]
    %v6181 = vld [vmem:[#allocation11 + $0x140] sm:$0xf]
    %v6182 = vld [vmem:[#allocation11 + $0x144] sm:$0xf]
    %v6183 = vld [vmem:[#allocation11 + $0x148] sm:$0xf]
    %v6184 = vld [vmem:[#allocation11 + $0x14c] sm:$0xf]
    %v6185 = vld [vmem:[#allocation11 + $0x150] sm:$0xf]
    %v6186 = vld [vmem:[#allocation11 + $0x154] sm:$0xf]
    %v6187 = vld [vmem:[#allocation11 + $0x158] sm:$0xf]
    %v6188 = vld [vmem:[#allocation11 + $0x15c] sm:$0xf]
    %v6189 = vld [vmem:[#allocation11 + $0x160] sm:$0xf]
    %v6190 = vld [vmem:[#allocation11 + $0x164] sm:$0xf]
    %v6191 = vld [vmem:[#allocation11 + $0x168] sm:$0xf]
    %v6192 = vld [vmem:[#allocation11 + $0x16c] sm:$0xf]
    %v6193 = vld [vmem:[#allocation11 + $0x170] sm:$0xf]
    %v6194 = vld [vmem:[#allocation11 + $0x174] sm:$0xf]
    %v6195 = vld [vmem:[#allocation11 + $0x178] sm:$0xf]
    %v6196 = vld [vmem:[#allocation11 + $0x17c] sm:$0xf]
    %v6197 = vld [vmem:[#allocation11 + $0x180] sm:$0xf]
    %v6198 = vld [vmem:[#allocation11 + $0x184] sm:$0xf]
    %v6199 = vld [vmem:[#allocation11 + $0x188] sm:$0xf]
    %v6200 = vld [vmem:[#allocation11 + $0x18c] sm:$0xf]
    %v6201 = vld [vmem:[#allocation11 + $0x190] sm:$0xf]
    %v6202 = vld [vmem:[#allocation11 + $0x194] sm:$0xf]
    %v6203 = vld [vmem:[#allocation11 + $0x198] sm:$0xf]
    %v6204 = vld [vmem:[#allocation11 + $0x19c] sm:$0xf]
    %v6205 = vld [vmem:[#allocation11 + $0x1a0] sm:$0xf]
    %v6206 = vld [vmem:[#allocation11 + $0x1a4] sm:$0xf]
    %v6207 = vld [vmem:[#allocation11 + $0x1a8] sm:$0xf]
    %v6208 = vld [vmem:[#allocation11 + $0x1ac] sm:$0xf]
    %v6209 = vld [vmem:[#allocation11 + $0x1b0] sm:$0xf]
    %v6210 = vld [vmem:[#allocation11 + $0x1b4] sm:$0xf]
    %v6211 = vld [vmem:[#allocation11 + $0x1b8] sm:$0xf]
    %v6212 = vld [vmem:[#allocation11 + $0x1bc] sm:$0xf]
    %v6213 = vld [vmem:[#allocation13] sm:$0x1]
    %v6215 = vperm.slane %v6213, 0
    %v6329 = vunpack.c.l.b16 %v6101
    %v6330 = vunpack.c.l.b16 %v6102
    %v6331 = vunpack.c.l.b16 %v6103
    %v6332 = vunpack.c.l.b16 %v6104
    %v6333 = vunpack.c.l.b16 %v6105
    %v6334 = vunpack.c.l.b16 %v6106
    %v6335 = vunpack.c.l.b16 %v6107
    %v6336 = vunpack.c.l.b16 %v6108
    %v6337 = vunpack.c.l.b16 %v6109
    %v6338 = vunpack.c.l.b16 %v6110
    %v6339 = vunpack.c.l.b16 %v6111
    %v6340 = vunpack.c.l.b16 %v6112
    %v6341 = vunpack.c.l.b16 %v6113
    %v6342 = vunpack.c.l.b16 %v6114
    %v6343 = vunpack.c.l.b16 %v6115
    %v6344 = vunpack.c.l.b16 %v6116
    %v6345 = vunpack.c.l.b16 %v6117
    %v6346 = vunpack.c.l.b16 %v6118
    %v6347 = vunpack.c.l.b16 %v6119
    %v6348 = vunpack.c.l.b16 %v6120
    %v6349 = vunpack.c.l.b16 %v6121
    %v6350 = vunpack.c.l.b16 %v6122
    %v6351 = vunpack.c.l.b16 %v6123
    %v6352 = vunpack.c.l.b16 %v6124
    %v6353 = vunpack.c.l.b16 %v6125
    %v6354 = vunpack.c.l.b16 %v6126
    %v6355 = vunpack.c.l.b16 %v6127
    %v6356 = vunpack.c.l.b16 %v6128
    %v6357 = vunpack.c.l.b16 %v6129
    %v6358 = vunpack.c.l.b16 %v6130
    %v6359 = vunpack.c.l.b16 %v6131
    %v6360 = vunpack.c.l.b16 %v6132
    %v6361 = vunpack.c.l.b16 %v6133
    %v6362 = vunpack.c.l.b16 %v6134
    %v6363 = vunpack.c.l.b16 %v6135
    %v6364 = vunpack.c.l.b16 %v6136
    %v6365 = vunpack.c.l.b16 %v6137
    %v6366 = vunpack.c.l.b16 %v6138
    %v6367 = vunpack.c.l.b16 %v6139
    %v6368 = vunpack.c.l.b16 %v6140
    %v6369 = vunpack.c.l.b16 %v6141
    %v6370 = vunpack.c.l.b16 %v6142
    %v6371 = vunpack.c.l.b16 %v6143
    %v6372 = vunpack.c.l.b16 %v6144
    %v6373 = vunpack.c.l.b16 %v6145
    %v6374 = vunpack.c.l.b16 %v6146
    %v6375 = vunpack.c.l.b16 %v6147
    %v6376 = vunpack.c.l.b16 %v6148
    %v6377 = vunpack.c.l.b16 %v6149
    %v6378 = vunpack.c.l.b16 %v6150
    %v6379 = vunpack.c.l.b16 %v6151
    %v6380 = vunpack.c.l.b16 %v6152
    %v6381 = vunpack.c.l.b16 %v6153
    %v6382 = vunpack.c.l.b16 %v6154
    %v6383 = vunpack.c.l.b16 %v6155
    %v6384 = vunpack.c.l.b16 %v6156
    %v6385 = vunpack.c.l.b16 %v6157
    %v6386 = vunpack.c.l.b16 %v6158
    %v6387 = vunpack.c.l.b16 %v6159
    %v6388 = vunpack.c.l.b16 %v6160
    %v6389 = vunpack.c.l.b16 %v6161
    %v6390 = vunpack.c.l.b16 %v6162
    %v6391 = vunpack.c.l.b16 %v6163
    %v6392 = vunpack.c.l.b16 %v6164
    %v6393 = vunpack.c.l.b16 %v6165
    %v6394 = vunpack.c.l.b16 %v6166
    %v6395 = vunpack.c.l.b16 %v6167
    %v6396 = vunpack.c.l.b16 %v6168
    %v6397 = vunpack.c.l.b16 %v6169
    %v6398 = vunpack.c.l.b16 %v6170
    %v6399 = vunpack.c.l.b16 %v6171
    %v6400 = vunpack.c.l.b16 %v6172
    %v6401 = vunpack.c.l.b16 %v6173
    %v6402 = vunpack.c.l.b16 %v6174
    %v6403 = vunpack.c.l.b16 %v6175
    %v6404 = vunpack.c.l.b16 %v6176
    %v6405 = vunpack.c.l.b16 %v6177
    %v6406 = vunpack.c.l.b16 %v6178
    %v6407 = vunpack.c.l.b16 %v6179
    %v6408 = vunpack.c.l.b16 %v6180
    %v6409 = vunpack.c.l.b16 %v6181
    %v6410 = vunpack.c.l.b16 %v6182
    %v6411 = vunpack.c.l.b16 %v6183
    %v6412 = vunpack.c.l.b16 %v6184
    %v6413 = vunpack.c.l.b16 %v6185
    %v6414 = vunpack.c.l.b16 %v6186
    %v6415 = vunpack.c.l.b16 %v6187
    %v6416 = vunpack.c.l.b16 %v6188
    %v6417 = vunpack.c.l.b16 %v6189
    %v6418 = vunpack.c.l.b16 %v6190
    %v6419 = vunpack.c.l.b16 %v6191
    %v6420 = vunpack.c.l.b16 %v6192
    %v6421 = vunpack.c.l.b16 %v6193
    %v6422 = vunpack.c.l.b16 %v6194
    %v6423 = vunpack.c.l.b16 %v6195
    %v6424 = vunpack.c.l.b16 %v6196
    %v6425 = vunpack.c.l.b16 %v6197
    %v6426 = vunpack.c.l.b16 %v6198
    %v6427 = vunpack.c.l.b16 %v6199
    %v6428 = vunpack.c.l.b16 %v6200
    %v6429 = vunpack.c.l.b16 %v6201
    %v6430 = vunpack.c.l.b16 %v6202
    %v6431 = vunpack.c.l.b16 %v6203
    %v6432 = vunpack.c.l.b16 %v6204
    %v6433 = vunpack.c.l.b16 %v6205
    %v6434 = vunpack.c.l.b16 %v6206
    %v6435 = vunpack.c.l.b16 %v6207
    %v6436 = vunpack.c.l.b16 %v6208
    %v6437 = vunpack.c.l.b16 %v6209
    %v6438 = vunpack.c.l.b16 %v6210
    %v6439 = vunpack.c.l.b16 %v6211
    %v6440 = vunpack.c.l.b16 %v6212
    %v6441 = vpack.c.b16 %v6330, %v6329
    %v6442 = vpack.c.b16 %v6332, %v6331
    %v6443 = vpack.c.b16 %v6334, %v6333
    %v6444 = vpack.c.b16 %v6336, %v6335
    %v6445 = vpack.c.b16 %v6338, %v6337
    %v6446 = vpack.c.b16 %v6340, %v6339
    %v6447 = vpack.c.b16 %v6342, %v6341
    %v6448 = vpack.c.b16 %v6344, %v6343
    %v6449 = vpack.c.b16 %v6346, %v6345
    %v6450 = vpack.c.b16 %v6348, %v6347
    %v6451 = vpack.c.b16 %v6350, %v6349
    %v6452 = vpack.c.b16 %v6352, %v6351
    %v6453 = vpack.c.b16 %v6354, %v6353
    %v6454 = vpack.c.b16 %v6356, %v6355
    %v6455 = vpack.c.b16 %v6358, %v6357
    %v6456 = vpack.c.b16 %v6360, %v6359
    %v6457 = vpack.c.b16 %v6362, %v6361
    %v6458 = vpack.c.b16 %v6364, %v6363
    %v6459 = vpack.c.b16 %v6366, %v6365
    %v6460 = vpack.c.b16 %v6368, %v6367
    %v6461 = vpack.c.b16 %v6370, %v6369
    %v6462 = vpack.c.b16 %v6372, %v6371
    %v6463 = vpack.c.b16 %v6374, %v6373
    %v6464 = vpack.c.b16 %v6376, %v6375
    %v6465 = vpack.c.b16 %v6378, %v6377
    %v6466 = vpack.c.b16 %v6380, %v6379
    %v6467 = vpack.c.b16 %v6382, %v6381
    %v6468 = vpack.c.b16 %v6384, %v6383
    %v6469 = vpack.c.b16 %v6386, %v6385
    %v6470 = vpack.c.b16 %v6388, %v6387
    %v6471 = vpack.c.b16 %v6390, %v6389
    %v6472 = vpack.c.b16 %v6392, %v6391
    %v6473 = vpack.c.b16 %v6394, %v6393
    %v6474 = vpack.c.b16 %v6396, %v6395
    %v6475 = vpack.c.b16 %v6398, %v6397
    %v6476 = vpack.c.b16 %v6400, %v6399
    %v6477 = vpack.c.b16 %v6402, %v6401
    %v6478 = vpack.c.b16 %v6404, %v6403
    %v6479 = vpack.c.b16 %v6406, %v6405
    %v6480 = vpack.c.b16 %v6408, %v6407
    %v6481 = vpack.c.b16 %v6410, %v6409
    %v6482 = vpack.c.b16 %v6412, %v6411
    %v6483 = vpack.c.b16 %v6414, %v6413
    %v6484 = vpack.c.b16 %v6416, %v6415
    %v6485 = vpack.c.b16 %v6418, %v6417
    %v6486 = vpack.c.b16 %v6420, %v6419
    %v6487 = vpack.c.b16 %v6422, %v6421
    %v6488 = vpack.c.b16 %v6424, %v6423
    %v6489 = vpack.c.b16 %v6426, %v6425
    %v6490 = vpack.c.b16 %v6428, %v6427
    %v6491 = vpack.c.b16 %v6430, %v6429
    %v6492 = vpack.c.b16 %v6432, %v6431
    %v6493 = vpack.c.b16 %v6434, %v6433
    %v6494 = vpack.c.b16 %v6436, %v6435
    %v6495 = vpack.c.b16 %v6438, %v6437
    %v6496 = vpack.c.b16 %v6440, %v6439
    %6553 = vmatpush.bf16.msra.mxu0 %v6448
    %6554 = vmatpush.bf16.msra.mxu0 %v6447
    %6555 = vmatpush.bf16.msra.mxu0 %v6446
    %6556 = vmatpush.bf16.msra.mxu0 %v6445
    %6557 = vmatpush.bf16.msra.mxu0 %v6444
    %6558 = vmatpush.bf16.msra.mxu0 %v6443
    %6559 = vmatpush.bf16.msra.mxu0 %v6442
    %6560 = vmatpush.bf16.msra.mxu0 %v6441
    %6561 = vmatmul.bf16.gmra.mxu0 %v6094
    %v6562 = vpop.f32.mrf.mxu0
    %v6563 = vadd.f32 %v6215, %v6562
    %v6564 = vpop.f32.mrf.mxu0
    %6565 = vdwg.mxu0
    %6566 = vmatpush.bf16.msra.mxu0 %v6456
    %6567 = vmatpush.bf16.msra.mxu0 %v6455
    %6568 = vmatpush.bf16.msra.mxu0 %v6454
    %6569 = vmatpush.bf16.msra.mxu0 %v6453
    %6570 = vmatpush.bf16.msra.mxu0 %v6452
    %6571 = vmatpush.bf16.msra.mxu0 %v6451
    %6572 = vmatpush.bf16.msra.mxu0 %v6450
    %6573 = vmatpush.bf16.msra.mxu0 %v6449
    %6574 = vmatmul.bf16.gmra.mxu0 %v6095
    %v6575 = vpop.f32.mrf.mxu0
    %v6576 = vadd.f32 %v6563, %v6575
    %v6577 = vpop.f32.mrf.mxu0
    %6578 = vdwg.mxu0
    %6579 = vmatpush.bf16.msra.mxu0 %v6464
    %6580 = vmatpush.bf16.msra.mxu0 %v6463
    %6581 = vmatpush.bf16.msra.mxu0 %v6462
    %6582 = vmatpush.bf16.msra.mxu0 %v6461
    %6583 = vmatpush.bf16.msra.mxu0 %v6460
    %6584 = vmatpush.bf16.msra.mxu0 %v6459
    %6585 = vmatpush.bf16.msra.mxu0 %v6458
    %6586 = vmatpush.bf16.msra.mxu0 %v6457
    %6587 = vmatmul.bf16.gmra.mxu0 %v6096
    %v6588 = vpop.f32.mrf.mxu0
    %v6589 = vadd.f32 %v6576, %v6588
    %v6590 = vpop.f32.mrf.mxu0
    %6591 = vdwg.mxu0
    %6592 = vmatpush.bf16.msra.mxu0 %v6472
    %6593 = vmatpush.bf16.msra.mxu0 %v6471
    %6594 = vmatpush.bf16.msra.mxu0 %v6470
    %6595 = vmatpush.bf16.msra.mxu0 %v6469
    %6596 = vmatpush.bf16.msra.mxu0 %v6468
    %6597 = vmatpush.bf16.msra.mxu0 %v6467
    %6598 = vmatpush.bf16.msra.mxu0 %v6466
    %6599 = vmatpush.bf16.msra.mxu0 %v6465
    %6600 = vmatmul.bf16.gmra.mxu0 %v6097
    %v6601 = vpop.f32.mrf.mxu0
    %v6602 = vadd.f32 %v6589, %v6601
    %v6603 = vpop.f32.mrf.mxu0
    %6604 = vdwg.mxu0
    %6605 = vmatpush.bf16.msra.mxu0 %v6480
    %6606 = vmatpush.bf16.msra.mxu0 %v6479
    %6607 = vmatpush.bf16.msra.mxu0 %v6478
    %6608 = vmatpush.bf16.msra.mxu0 %v6477
    %6609 = vmatpush.bf16.msra.mxu0 %v6476
    %6610 = vmatpush.bf16.msra.mxu0 %v6475
    %6611 = vmatpush.bf16.msra.mxu0 %v6474
    %6612 = vmatpush.bf16.msra.mxu0 %v6473
    %6613 = vmatmul.bf16.gmra.mxu0 %v6098
    %v6614 = vpop.f32.mrf.mxu0
    %v6615 = vadd.f32 %v6602, %v6614
    %v6616 = vpop.f32.mrf.mxu0
    %6617 = vdwg.mxu0
    %6618 = vmatpush.bf16.msra.mxu0 %v6488
    %6619 = vmatpush.bf16.msra.mxu0 %v6487
    %6620 = vmatpush.bf16.msra.mxu0 %v6486
    %6621 = vmatpush.bf16.msra.mxu0 %v6485
    %6622 = vmatpush.bf16.msra.mxu0 %v6484
    %6623 = vmatpush.bf16.msra.mxu0 %v6483
    %6624 = vmatpush.bf16.msra.mxu0 %v6482
    %6625 = vmatpush.bf16.msra.mxu0 %v6481
    %6626 = vmatmul.bf16.gmra.mxu0 %v6099
    %v6627 = vpop.f32.mrf.mxu0
    %v6628 = vadd.f32 %v6615, %v6627
    %v6629 = vpop.f32.mrf.mxu0
    %6630 = vdwg.mxu0
    %6631 = vmatpush.bf16.msra.mxu0 %v6496
    %6632 = vmatpush.bf16.msra.mxu0 %v6495
    %6633 = vmatpush.bf16.msra.mxu0 %v6494
    %6634 = vmatpush.bf16.msra.mxu0 %v6493
    %6635 = vmatpush.bf16.msra.mxu0 %v6492
    %6636 = vmatpush.bf16.msra.mxu0 %v6491
    %6637 = vmatpush.bf16.msra.mxu0 %v6490
    %6638 = vmatpush.bf16.msra.mxu0 %v6489
    %6639 = vmatmul.bf16.gmra.mxu0 %v6100
    %v6640 = vpop.f32.mrf.mxu0
    %v6641 = vadd.f32 %v6628, %v6640
    %v6642 = vpop.f32.mrf.mxu0
    %6643 = vdwg.mxu0
    %6644 = vmax.xlane.f32.xlu0 %v6641
    %v6645 = vpop.xlane.xlu0 %6644
    %v6646 = vsub.f32 %v6641, %v6645
    %v6647 = vmul.f32 %v6646, 1.442695
    %v6648 = vpow.pop %v6647
    %6649 = vadd.xlane.f32.xlu0 %v6648
    %v6650 = vpop.xlane.xlu0 %6649
    %v6651 = vlog2.pop %v6650
    %v6652 = vmul.f32 %v6651, 0.6931472
    %v6653 = vsub.f32 %v6646, %v6652
    %6654 = vst [vmem:[#allocation14] sm:$0xff] %v6653
    // Predicated region
    $region58: #{tpu_custom_call.1} parent=1 // pred_check
      _
    $region59: #{tpu_custom_call.1} parent=1 // pred_check_branch
      %6656 = sbr.rel (0) target = $region61
    $region60: #{tpu_custom_call.1} parent=1 // pred_region
      %6658 = vsyncadd [#allocation4], 0
      %s6660 = sshll.u32 [#allocation14], 4
      %s6661 = int_to_ptr.vmem [resolvable:$true] %s6660
      %s6662 = sshll.u32 %s7, 4
      %s6663 = int_to_ptr.hbm [resolvable:$true] %s6662
      %6665 = dma.vmem_to_hbm [thread:$0]  %s6661, 128, %s6663, [#allocation4]
    $region61: #{tpu_custom_call.1} parent=1 // pred_fallthru
      _
    // Predicated region
    $region62: #{tpu_custom_call.1} parent=1 // pred_check
      _
    $region63: #{tpu_custom_call.1} parent=1 // pred_check_branch
      %6667 = sbr.rel (0) target = $region65
    $region64: #{tpu_custom_call.1} parent=1 // pred_region
      %6669 = dma.done [#allocation4], 128
    $region65: #{tpu_custom_call.1} parent=1 // pred_fallthru
      _
    %6670 = vsyncpa [#allocation3], 1
    %6671 = vsyncpa [#allocation6], 1
    %6672 = vsyncpa [#allocation9], 1
    %6673 = vsyncpa [#allocation12], 1
    %6674 = vsyncpa [#allocation4], 1

</llo_original>
